<compile_context>
chip_gen: v5e
topology: v5e:2x2
jax: 0.10.0
libtpu: 0.0.40
codegen_flags: <defaults>
</compile_context>

<pallas_src>
import functools

import jax
import jax.numpy as jnp
from jax.experimental import pallas as pl
from jax.experimental.pallas import tpu as pltpu

# Above the v6e default scoped limit, safely below v7x's 64 MiB physical VMEM.
_VMEM_LIMIT_BYTES = 48 * 1024 * 1024


def _pick_time_chunk(s):
    """Largest convenient chunk of timesteps per sequential grid step."""
    for c in (32, 16, 8):
        if s % c == 0:
            return c
    return s


def _pick_row_chunk(n):
    """Row tile for the parallel x-path GEMM over the S*B rows."""
    for c in (512, 256, 128, 64, 32, 16, 8):
        if n % c == 0:
            return c
    return n


# ---------------------------------------------------------------------------
# Phase 1: fused x-path GEMM (parallel over row chunks).
# ---------------------------------------------------------------------------
def _xpath_gemm_kernel(x_ref, we_ref, be_ref, wx_ref, bx_ref, gx_ref):
    """(R, D) @ (D, E) + be  ->  (R, E) @ (E, 4H) + bx  ->  (R, 4H)."""
    x = x_ref[...].astype(we_ref.dtype)                       # bf16 rows
    emb = jnp.dot(x, we_ref[...],
                  preferred_element_type=jnp.float32) + be_ref[...]
    gx = jnp.dot(emb.astype(wx_ref.dtype), wx_ref[...],
                 preferred_element_type=jnp.float32) + bx_ref[...]
    gx_ref[...] = gx


# ---------------------------------------------------------------------------
# Phase 2: sequential recurrence over time chunks.
# ---------------------------------------------------------------------------
def _lstm_recurrent_kernel(gx_ref, h0_ref, c0_ref, wh_ref,
                           seq_ref, hn_ref, cn_ref,
                           h_sc, c_sc, *, hidden, t_chunk):
    tc = pl.program_id(0)

    @pl.when(tc == 0)
    def _():
        h_sc[...] = h0_ref[...].astype(jnp.float32)
        c_sc[...] = c0_ref[...].astype(jnp.float32)

    wh = wh_ref[...]                 # (H, 4H) bf16, VMEM-resident constant block

    def step(t, carry):
        h, c_prev = carry            # f32 (B, H), carried in vregs
        gates = gx_ref[t] + jnp.dot(h.astype(wh.dtype), wh,
                                    preferred_element_type=jnp.float32)
        # Gate order [i, f, g, o]; slices are lane-aligned when H % 128 == 0.
        i_g = jax.nn.sigmoid(gates[:, 0 * hidden:1 * hidden])
        f_g = jax.nn.sigmoid(gates[:, 1 * hidden:2 * hidden])
        g_g = jnp.tanh(gates[:, 2 * hidden:3 * hidden])
        o_g = jax.nn.sigmoid(gates[:, 3 * hidden:4 * hidden])
        c_next = g_g * i_g + f_g * c_prev
        h_next = o_g * jnp.tanh(c_next)
        seq_ref[t] = h_next.astype(seq_ref.dtype)
        return h_next, c_next

    h_fin, c_fin = jax.lax.fori_loop(
        0, t_chunk, step, (h_sc[...], c_sc[...]),
        unroll=(t_chunk <= 32))

    # One scratch store per chunk (not per timestep).
    h_sc[...] = h_fin
    c_sc[...] = c_fin

    @pl.when(tc == pl.num_programs(0) - 1)
    def _():
        hn_ref[...] = h_fin.astype(hn_ref.dtype)
        cn_ref[...] = c_fin.astype(cn_ref.dtype)


# ---------------------------------------------------------------------------
# Wrapper (PyTorch conventions: x (B,S,D) -> hidden_seq (B,S,H), h_n, c_n).
# ---------------------------------------------------------------------------
def lstm_forward(x, h0, c0, params, *, compute_dtype=jnp.bfloat16):
    B, S, D = x.shape
    H = h0.shape[1]
    E = params["we"].shape[1]
    G = 4 * H

    we = params["we"].astype(compute_dtype)
    wx = params["wx"].astype(compute_dtype)
    wh = params["wh"].astype(compute_dtype)
    be = params["be"]                       # (1, E)  f32
    bx = params["bx"]                       # (1, 4H) f32

    # Time-major flatten.  Only x (D lanes wide, the smallest tensor) takes an
    # HBM transpose; the 4H-wide gates tensor is produced directly time-major.
    x_rows = jnp.transpose(x, (1, 0, 2)).reshape(S * B, D)

    # --- Phase 1: one big fused GEMM for all timesteps (parallel grid). -----
    R = _pick_row_chunk(S * B)
    gx_rows = pl.pallas_call(
        _xpath_gemm_kernel,
        out_shape=jax.ShapeDtypeStruct((S * B, G), jnp.float32),
        grid_spec=pltpu.PrefetchScalarGridSpec(
            num_scalar_prefetch=0,
            grid=(S * B // R,),
            in_specs=[
                pl.BlockSpec((R, D), lambda r: (r, 0)),      # x rows
                pl.BlockSpec((D, E), lambda r: (0, 0)),      # We (bf16)
                pl.BlockSpec((1, E), lambda r: (0, 0)),      # be
                pl.BlockSpec((E, G), lambda r: (0, 0)),      # Wx (bf16, i|f|g|o)
                pl.BlockSpec((1, G), lambda r: (0, 0)),      # bx
            ],
            out_specs=pl.BlockSpec((R, G), lambda r: (r, 0)),
        ),
        compiler_params=pltpu.CompilerParams(
            dimension_semantics=("parallel",),
            vmem_limit_bytes=_VMEM_LIMIT_BYTES),
    )(x_rows, we, be, wx, bx)
    gx_tm = gx_rows.reshape(S, B, G)                          # time-major, free reshape

    # --- Phase 2: sequential recurrence, chunked over time. -----------------
    Tc = _pick_time_chunk(S)
    kernel = functools.partial(_lstm_recurrent_kernel, hidden=H, t_chunk=Tc)
    seq_tm, h_n, c_n = pl.pallas_call(
        kernel,
        out_shape=(
            jax.ShapeDtypeStruct((S, B, H), jnp.float32),
            jax.ShapeDtypeStruct((B, H), jnp.float32),
            jax.ShapeDtypeStruct((B, H), jnp.float32),
        ),
        grid_spec=pltpu.PrefetchScalarGridSpec(
            num_scalar_prefetch=0,
            grid=(S // Tc,),
            in_specs=[
                pl.BlockSpec((Tc, B, G), lambda t: (t, 0, 0)),  # gates_x chunk
                pl.BlockSpec((B, H), lambda t: (0, 0)),          # h0
                pl.BlockSpec((B, H), lambda t: (0, 0)),          # c0
                pl.BlockSpec((H, G), lambda t: (0, 0)),          # Wh (bf16)
            ],
            out_specs=[
                pl.BlockSpec((Tc, B, H), lambda t: (t, 0, 0)),   # hidden seq chunk
                pl.BlockSpec((B, H), lambda t: (0, 0)),          # h_next
                pl.BlockSpec((B, H), lambda t: (0, 0)),          # c_next
            ],
            scratch_shapes=[
                pltpu.VMEM((B, H), jnp.float32),                 # h state
                pltpu.VMEM((B, H), jnp.float32),                 # c state
            ],
        ),
        compiler_params=pltpu.CompilerParams(
            dimension_semantics=("arbitrary",),                  # true recurrence
            vmem_limit_bytes=_VMEM_LIMIT_BYTES),
    )(gx_tm, h0, c0, wh)

    # PyTorch returns (B, S, H); skip this transpose if the consumer can take
    # the time-major (S, B, H) layout directly.
    hidden_seq = jnp.transpose(seq_tm, (1, 0, 2))
    return hidden_seq, h_n, c_n


# ---------------------------------------------------------------------------
# Parameter init (mimics nn.Linear uniform +-1/sqrt(fan_in)), f32 master copy.
# ---------------------------------------------------------------------------
def init_params(key, dim, embed_dim, hidden):
    """Weights stored (in, out); gate Linears stacked on the output dim in
    order [input_gate(w2), forget(w1), cell(w3), out(w4)] == [i, f, g, o]."""
    ks = jax.random.split(key, 10)

    def lin(k, fan_in, fan_out, bias):
        bound = 1.0 / jnp.sqrt(jnp.float32(fan_in))
        w = jax.random.uniform(k, (fan_in, fan_out), jnp.float32, -bound, bound)
        b = (jax.random.uniform(jax.random.fold_in(k, 1), (fan_out,),
                                jnp.float32, -bound, bound)
             if bias else None)
        return w, b

    we, be = lin(ks[0], dim, embed_dim, True)
    w2, b2 = lin(ks[1], embed_dim, hidden, True)   # input gate
    w1, b1 = lin(ks[2], embed_dim, hidden, True)   # forget gate
    w3, b3 = lin(ks[3], embed_dim, hidden, True)   # cell gate
    w4, b4 = lin(ks[4], embed_dim, hidden, True)   # out gate
    r2, _ = lin(ks[5], hidden, hidden, False)
    r1, _ = lin(ks[6], hidden, hidden, False)
    r3, _ = lin(ks[7], hidden, hidden, False)
    r4, _ = lin(ks[8], hidden, hidden, False)

    wx = jnp.concatenate([w2, w1, w3, w4], axis=1)   # (E, 4H)
    bx = jnp.concatenate([b2, b1, b3, b4], axis=0)   # (4H,)
    wh = jnp.concatenate([r2, r1, r3, r4], axis=1)   # (H, 4H)

    return {
        "we": we, "be": be.reshape(1, -1),
        "wx": wx, "bx": bx.reshape(1, -1),
        "wh": wh,
    }


# ---------------------------------------------------------------------------
# Pure-JAX reference of the PyTorch forward (compute_dtype selects the matmul
# input precision; f32 == exact module semantics, bf16 mimics the kernel).
# ---------------------------------------------------------------------------
def lstm_reference(x, h0, c0, p, compute_dtype=jnp.float32):
    H = h0.shape[1]
    we = p["we"].astype(compute_dtype)
    wx = p["wx"].astype(compute_dtype)
    wh = p["wh"].astype(compute_dtype)

    def mm(a, w):
        return jnp.dot(a.astype(compute_dtype), w,
                       preferred_element_type=jnp.float32)

    emb = mm(x, we) + p["be"]              # (B, S, E), f32
    gx = mm(emb, wx) + p["bx"]             # (B, S, 4H), f32
    h, c = h0, c0
    outs = []
    for t in range(x.shape[1]):
        gates = gx[:, t, :] + mm(h, wh)
        i = jax.nn.sigmoid(gates[:, 0 * H:1 * H])
        f = jax.nn.sigmoid(gates[:, 1 * H:2 * H])
        g = jnp.tanh(gates[:, 2 * H:3 * H])
        o = jax.nn.sigmoid(gates[:, 3 * H:4 * H])
        c = g * i + f * c
        h = o * jnp.tanh(c)
        outs.append(h)
    return jnp.stack(outs, axis=1), h, c


if __name__ == "__main__":
    # Small but tile-aligned shapes (B % 8 == 0, H % 128 == 0) so gate slices
    # are lane-aligned and all stores are full (8,128) vregs.
    B, S, D, E, H = 8, 32, 16, 128, 128

    key = jax.random.PRNGKey(0)
    k_x, k_h, k_c, k_p = jax.random.split(key, 4)

    x = jax.random.normal(k_x, (B, S, D), jnp.float32)
    h0 = jax.random.normal(k_h, (B, H), jnp.float32)
    c0 = jax.random.normal(k_c, (B, H), jnp.float32)
    params = init_params(k_p, D, E, H)

    fwd = jax.jit(lstm_forward)
    seq, h_n, c_n = jax.block_until_ready(fwd(x, h0, c0, params))

    assert seq.shape == (B, S, H) and h_n.shape == (B, H) and c_n.shape == (B, H)

    # Primary check: reference with the same bf16-matmul / f32-accum numerics.
    ref_seq, ref_h, ref_c = lstm_reference(x, h0, c0, params,
                                           compute_dtype=jnp.bfloat16)
    assert jnp.allclose(seq, ref_seq, atol=2e-3, rtol=2e-3)
    assert jnp.allclose(h_n, ref_h, atol=2e-3, rtol=2e-3)
    assert jnp.allclose(c_n, ref_c, atol=2e-3, rtol=2e-3)

    # Sanity check against the exact f32 semantics of the PyTorch module
    # (bf16 weights introduce only ~1e-2-level deviations).
    f32_seq, f32_h, f32_c = lstm_reference(x, h0, c0, params,
                                           compute_dtype=jnp.float32)
    assert jnp.allclose(seq, f32_seq, atol=1e-1, rtol=1e-1)
    assert jnp.allclose(h_n, f32_h, atol=1e-1, rtol=1e-1)
    assert jnp.allclose(c_n, f32_c, atol=1e-1, rtol=1e-1)

    print("KERNEL_OK")
</pallas_src>

<mosaic_0001>
module attributes {stable_mosaic.version = 11 : i64} {
  func.func @_xpath_gemm_kernel(%arg0: i32, %arg1: memref<256x16xf32, #tpu.memory_space<vmem>>, %arg2: memref<16x128xbf16, #tpu.memory_space<vmem>>, %arg3: memref<1x128xf32, #tpu.memory_space<vmem>>, %arg4: memref<128x512xbf16, #tpu.memory_space<vmem>>, %arg5: memref<1x512xf32, #tpu.memory_space<vmem>>, %arg6: memref<256x512xf32, #tpu.memory_space<vmem>>) attributes {dimension_semantics = [#tpu.dimension_semantics<parallel>], iteration_bounds = array<i64: 1>, scalar_prefetch = 0 : i64, scratch_operands = 0 : i64, tpu.core_type = #tpu.core_type<tc>, window_params = [{transform_indices = @transform_0, window_bounds = array<i64: 256, 16>}, {pipeline_mode = #tpu.pipeline_mode<synchronous>, transform_indices = @transform_1, window_bounds = array<i64: 16, 128>}, {pipeline_mode = #tpu.pipeline_mode<synchronous>, transform_indices = @transform_2, window_bounds = array<i64: 1, 128>}, {pipeline_mode = #tpu.pipeline_mode<synchronous>, transform_indices = @transform_3, window_bounds = array<i64: 128, 512>}, {pipeline_mode = #tpu.pipeline_mode<synchronous>, transform_indices = @transform_4, window_bounds = array<i64: 1, 512>}, {transform_indices = @transform_5, window_bounds = array<i64: 256, 512>}]} {
    %c0 = arith.constant 0 : index
    %c0_0 = arith.constant 0 : index
    %0 = vector.load %arg1[%c0, %c0_0] : memref<256x16xf32, #tpu.memory_space<vmem>>, vector<256x16xf32>
    %1 = arith.truncf %0 : vector<256x16xf32> to vector<256x16xbf16>
    %c0_1 = arith.constant 0 : index
    %c0_2 = arith.constant 0 : index
    %2 = vector.load %arg2[%c0_1, %c0_2] : memref<16x128xbf16, #tpu.memory_space<vmem>>, vector<16x128xbf16>
    %cst = arith.constant dense<0.000000e+00> : vector<256x128xf32>
    %3 = tpu.matmul %1, %2, %cst {dimension_numbers = #tpu.dot_dimension_numbers<[1], [0], [0], [1], [0, 0, 1, 1], [], []>} : vector<256x16xbf16>, vector<16x128xbf16>, vector<256x128xf32> -> vector<256x128xf32>
    %c0_3 = arith.constant 0 : index
    %c0_4 = arith.constant 0 : index
    %4 = vector.load %arg3[%c0_3, %c0_4] : memref<1x128xf32, #tpu.memory_space<vmem>>, vector<1x128xf32>
    %5 = vector.broadcast %4 : vector<1x128xf32> to vector<256x128xf32>
    %6 = arith.addf %3, %5 : vector<256x128xf32>
    %7 = arith.truncf %6 : vector<256x128xf32> to vector<256x128xbf16>
    %c0_5 = arith.constant 0 : index
    %c0_6 = arith.constant 0 : index
    %8 = vector.load %arg4[%c0_5, %c0_6] : memref<128x512xbf16, #tpu.memory_space<vmem>>, vector<128x512xbf16>
    %cst_7 = arith.constant dense<0.000000e+00> : vector<256x512xf32>
    %9 = tpu.matmul %7, %8, %cst_7 {dimension_numbers = #tpu.dot_dimension_numbers<[1], [0], [0], [1], [0, 0, 1, 1], [], []>} : vector<256x128xbf16>, vector<128x512xbf16>, vector<256x512xf32> -> vector<256x512xf32>
    %c0_8 = arith.constant 0 : index
    %c0_9 = arith.constant 0 : index
    %10 = vector.load %arg5[%c0_8, %c0_9] : memref<1x512xf32, #tpu.memory_space<vmem>>, vector<1x512xf32>
    %11 = vector.broadcast %10 : vector<1x512xf32> to vector<256x512xf32>
    %12 = arith.addf %9, %11 : vector<256x512xf32>
    %c0_10 = arith.constant 0 : index
    %c0_11 = arith.constant 0 : index
    %13 = vector.load %arg6[%c0_10, %c0_11] : memref<256x512xf32, #tpu.memory_space<vmem>>, vector<256x512xf32>
    tpu.vector_store %arg6[%c0_10, %c0_11], %12 {strides = array<i32>} : memref<256x512xf32, #tpu.memory_space<vmem>>, vector<256x512xf32>,
    return
  }
  func.func @transform_0(%arg0: i32) -> (i32, i32) {
    %c0_i32 = arith.constant 0 : i32
    %c0_i32_0 = arith.constant 0 : i32
    return %arg0, %c0_i32 : i32, i32
  }
  func.func @transform_1(%arg0: i32) -> (i32, i32) {
    %c0_i32 = arith.constant 0 : i32
    %c0_i32_0 = arith.constant 0 : i32
    %c0_i32_1 = arith.constant 0 : i32
    return %c0_i32, %c0_i32_0 : i32, i32
  }
  func.func @transform_2(%arg0: i32) -> (i32, i32) {
    %c0_i32 = arith.constant 0 : i32
    %c0_i32_0 = arith.constant 0 : i32
    %c0_i32_1 = arith.constant 0 : i32
    return %c0_i32, %c0_i32_0 : i32, i32
  }
  func.func @transform_3(%arg0: i32) -> (i32, i32) {
    %c0_i32 = arith.constant 0 : i32
    %c0_i32_0 = arith.constant 0 : i32
    %c0_i32_1 = arith.constant 0 : i32
    return %c0_i32, %c0_i32_0 : i32, i32
  }
  func.func @transform_4(%arg0: i32) -> (i32, i32) {
    %c0_i32 = arith.constant 0 : i32
    %c0_i32_0 = arith.constant 0 : i32
    %c0_i32_1 = arith.constant 0 : i32
    return %c0_i32, %c0_i32_0 : i32, i32
  }
  func.func @transform_5(%arg0: i32) -> (i32, i32) {
    %c0_i32 = arith.constant 0 : i32
    %c0_i32_0 = arith.constant 0 : i32
    return %arg0, %c0_i32 : i32, i32
  }
}

module attributes {stable_mosaic.version = 11 : i64} {
  func.func @_lstm_recurrent_kernel(%arg0: i32, %arg1: memref<32x8x512xf32, #tpu.memory_space<vmem>>, %arg2: memref<8x128xf32, #tpu.memory_space<vmem>>, %arg3: memref<8x128xf32, #tpu.memory_space<vmem>>, %arg4: memref<128x512xbf16, #tpu.memory_space<vmem>>, %arg5: memref<32x8x128xf32, #tpu.memory_space<vmem>>, %arg6: memref<8x128xf32, #tpu.memory_space<vmem>>, %arg7: memref<8x128xf32, #tpu.memory_space<vmem>>, %arg8: memref<8x128xf32, #tpu.memory_space<vmem>>, %arg9: memref<8x128xf32, #tpu.memory_space<vmem>>) attributes {dimension_semantics = [#tpu.dimension_semantics<arbitrary>], iteration_bounds = array<i64: 1>, scalar_prefetch = 0 : i64, scratch_operands = 2 : i64, tpu.core_type = #tpu.core_type<tc>, window_params = [{transform_indices = @transform_0, window_bounds = array<i64: 32, 8, 512>}, {pipeline_mode = #tpu.pipeline_mode<synchronous>, transform_indices = @transform_1, window_bounds = array<i64: 8, 128>}, {pipeline_mode = #tpu.pipeline_mode<synchronous>, transform_indices = @transform_2, window_bounds = array<i64: 8, 128>}, {pipeline_mode = #tpu.pipeline_mode<synchronous>, transform_indices = @transform_3, window_bounds = array<i64: 128, 512>}, {transform_indices = @transform_4, window_bounds = array<i64: 32, 8, 128>}, {pipeline_mode = #tpu.pipeline_mode<synchronous>, transform_indices = @transform_5, window_bounds = array<i64: 8, 128>}, {pipeline_mode = #tpu.pipeline_mode<synchronous>, transform_indices = @transform_6, window_bounds = array<i64: 8, 128>}]} {
    %c0_i32 = arith.constant 0 : i32
    %0 = arith.cmpi eq, %arg0, %c0_i32 : i32
    %1 = arith.extui %0 : i1 to i32
    %c0_i32_0 = arith.constant 0 : i32
    %2 = arith.cmpi ne, %1, %c0_i32_0 : i32
    scf.if %2 {
      %c0_268 = arith.constant 0 : index
      %c0_269 = arith.constant 0 : index
      %1131 = vector.load %arg2[%c0_268, %c0_269] : memref<8x128xf32, #tpu.memory_space<vmem>>, vector<8x128xf32>
      %c0_270 = arith.constant 0 : index
      %c0_271 = arith.constant 0 : index
      %1132 = vector.load %arg8[%c0_270, %c0_271] : memref<8x128xf32, #tpu.memory_space<vmem>>, vector<8x128xf32>
      tpu.vector_store %arg8[%c0_270, %c0_271], %1131 {strides = array<i32>} : memref<8x128xf32, #tpu.memory_space<vmem>>, vector<8x128xf32>,
      %c0_272 = arith.constant 0 : index
      %c0_273 = arith.constant 0 : index
      %1133 = vector.load %arg3[%c0_272, %c0_273] : memref<8x128xf32, #tpu.memory_space<vmem>>, vector<8x128xf32>
      %c0_274 = arith.constant 0 : index
      %c0_275 = arith.constant 0 : index
      %1134 = vector.load %arg9[%c0_274, %c0_275] : memref<8x128xf32, #tpu.memory_space<vmem>>, vector<8x128xf32>
      tpu.vector_store %arg9[%c0_274, %c0_275], %1133 {strides = array<i32>} : memref<8x128xf32, #tpu.memory_space<vmem>>, vector<8x128xf32>,
    } else {
    }
    %c0 = arith.constant 0 : index
    %c0_1 = arith.constant 0 : index
    %3 = vector.load %arg4[%c0, %c0_1] : memref<128x512xbf16, #tpu.memory_space<vmem>>, vector<128x512xbf16>
    %c0_2 = arith.constant 0 : index
    %c0_3 = arith.constant 0 : index
    %4 = vector.load %arg8[%c0_2, %c0_3] : memref<8x128xf32, #tpu.memory_space<vmem>>, vector<8x128xf32>
    %c0_4 = arith.constant 0 : index
    %c0_5 = arith.constant 0 : index
    %5 = vector.load %arg9[%c0_4, %c0_5] : memref<8x128xf32, #tpu.memory_space<vmem>>, vector<8x128xf32>
    %c0_i32_6 = arith.constant 0 : i32
    %6 = arith.index_cast %c0_i32_6 : i32 to index
    %c0_7 = arith.constant 0 : index
    %c0_8 = arith.constant 0 : index
    %7 = vector.load %arg1[%6, %c0_7, %c0_8] : memref<32x8x512xf32, #tpu.memory_space<vmem>>, vector<1x8x512xf32>
    %8 = vector.shape_cast %7 : vector<1x8x512xf32> to vector<8x512xf32>
    %9 = arith.truncf %4 : vector<8x128xf32> to vector<8x128xbf16>
    %cst = arith.constant dense<0.000000e+00> : vector<8x512xf32>
    %10 = tpu.matmul %9, %3, %cst {dimension_numbers = #tpu.dot_dimension_numbers<[1], [0], [0], [1], [0, 0, 1, 1], [], []>} : vector<8x128xbf16>, vector<128x512xbf16>, vector<8x512xf32> -> vector<8x512xf32>
    %11 = arith.addf %8, %10 : vector<8x512xf32>
    %12 = vector.extract_strided_slice %11 {offsets = [0, 0], sizes = [8, 128], strides = [1, 1]} : vector<8x512xf32> to vector<8x128xf32>
    %13 = arith.negf %12 : vector<8x128xf32>
    %14 = math.exp %13 : vector<8x128xf32>
    %cst_9 = arith.constant 1.000000e+00 : f32
    %15 = vector.broadcast %cst_9 : f32 to vector<8x128xf32>
    %16 = arith.addf %15, %14 : vector<8x128xf32>
    %17 = arith.divf %15, %16 : vector<8x128xf32>
    %18 = vector.extract_strided_slice %11 {offsets = [0, 128], sizes = [8, 128], strides = [1, 1]} : vector<8x512xf32> to vector<8x128xf32>
    %19 = arith.negf %18 : vector<8x128xf32>
    %20 = math.exp %19 : vector<8x128xf32>
    %cst_10 = arith.constant 1.000000e+00 : f32
    %21 = vector.broadcast %cst_10 : f32 to vector<8x128xf32>
    %22 = arith.addf %21, %20 : vector<8x128xf32>
    %23 = arith.divf %21, %22 : vector<8x128xf32>
    %24 = vector.extract_strided_slice %11 {offsets = [0, 256], sizes = [8, 128], strides = [1, 1]} : vector<8x512xf32> to vector<8x128xf32>
    %25 = math.tanh %24 : vector<8x128xf32>
    %26 = vector.extract_strided_slice %11 {offsets = [0, 384], sizes = [8, 128], strides = [1, 1]} : vector<8x512xf32> to vector<8x128xf32>
    %27 = arith.negf %26 : vector<8x128xf32>
    %28 = math.exp %27 : vector<8x128xf32>
    %cst_11 = arith.constant 1.000000e+00 : f32
    %29 = vector.broadcast %cst_11 : f32 to vector<8x128xf32>
    %30 = arith.addf %29, %28 : vector<8x128xf32>
    %31 = arith.divf %29, %30 : vector<8x128xf32>
    %32 = arith.mulf %25, %17 : vector<8x128xf32>
    %33 = arith.mulf %23, %5 : vector<8x128xf32>
    %34 = arith.addf %32, %33 : vector<8x128xf32>
    %35 = math.tanh %34 : vector<8x128xf32>
    %36 = arith.mulf %31, %35 : vector<8x128xf32>
    %37 = arith.index_cast %c0_i32_6 : i32 to index
    %c0_12 = arith.constant 0 : index
    %c0_13 = arith.constant 0 : index
    %38 = vector.load %arg5[%37, %c0_12, %c0_13] : memref<32x8x128xf32, #tpu.memory_space<vmem>>, vector<1x8x128xf32>
    %39 = vector.shape_cast %38 : vector<1x8x128xf32> to vector<8x128xf32>
    %40 = vector.shape_cast %36 : vector<8x128xf32> to vector<1x8x128xf32>
    tpu.vector_store %arg5[%37, %c0_12, %c0_13], %40 {strides = array<i32>} : memref<32x8x128xf32, #tpu.memory_space<vmem>>, vector<1x8x128xf32>,
    %c1_i32 = arith.constant 1 : i32
    %41 = arith.index_cast %c1_i32 : i32 to index
    %c0_14 = arith.constant 0 : index
    %c0_15 = arith.constant 0 : index
    %42 = vector.load %arg1[%41, %c0_14, %c0_15] : memref<32x8x512xf32, #tpu.memory_space<vmem>>, vector<1x8x512xf32>
    %43 = vector.shape_cast %42 : vector<1x8x512xf32> to vector<8x512xf32>
    %44 = arith.truncf %36 : vector<8x128xf32> to vector<8x128xbf16>
    %cst_16 = arith.constant dense<0.000000e+00> : vector<8x512xf32>
    %45 = tpu.matmul %44, %3, %cst_16 {dimension_numbers = #tpu.dot_dimension_numbers<[1], [0], [0], [1], [0, 0, 1, 1], [], []>} : vector<8x128xbf16>, vector<128x512xbf16>, vector<8x512xf32> -> vector<8x512xf32>
    %46 = arith.addf %43, %45 : vector<8x512xf32>
    %47 = vector.extract_strided_slice %46 {offsets = [0, 0], sizes = [8, 128], strides = [1, 1]} : vector<8x512xf32> to vector<8x128xf32>
    %48 = arith.negf %47 : vector<8x128xf32>
    %49 = math.exp %48 : vector<8x128xf32>
    %cst_17 = arith.constant 1.000000e+00 : f32
    %50 = vector.broadcast %cst_17 : f32 to vector<8x128xf32>
    %51 = arith.addf %50, %49 : vector<8x128xf32>
    %52 = arith.divf %50, %51 : vector<8x128xf32>
    %53 = vector.extract_strided_slice %46 {offsets = [0, 128], sizes = [8, 128], strides = [1, 1]} : vector<8x512xf32> to vector<8x128xf32>
    %54 = arith.negf %53 : vector<8x128xf32>
    %55 = math.exp %54 : vector<8x128xf32>
    %cst_18 = arith.constant 1.000000e+00 : f32
    %56 = vector.broadcast %cst_18 : f32 to vector<8x128xf32>
    %57 = arith.addf %56, %55 : vector<8x128xf32>
    %58 = arith.divf %56, %57 : vector<8x128xf32>
    %59 = vector.extract_strided_slice %46 {offsets = [0, 256], sizes = [8, 128], strides = [1, 1]} : vector<8x512xf32> to vector<8x128xf32>
    %60 = math.tanh %59 : vector<8x128xf32>
    %61 = vector.extract_strided_slice %46 {offsets = [0, 384], sizes = [8, 128], strides = [1, 1]} : vector<8x512xf32> to vector<8x128xf32>
    %62 = arith.negf %61 : vector<8x128xf32>
    %63 = math.exp %62 : vector<8x128xf32>
    %cst_19 = arith.constant 1.000000e+00 : f32
    %64 = vector.broadcast %cst_19 : f32 to vector<8x128xf32>
    %65 = arith.addf %64, %63 : vector<8x128xf32>
    %66 = arith.divf %64, %65 : vector<8x128xf32>
    %67 = arith.mulf %60, %52 : vector<8x128xf32>
    %68 = arith.mulf %58, %34 : vector<8x128xf32>
    %69 = arith.addf %67, %68 : vector<8x128xf32>
    %70 = math.tanh %69 : vector<8x128xf32>
    %71 = arith.mulf %66, %70 : vector<8x128xf32>
    %72 = arith.index_cast %c1_i32 : i32 to index
    %c0_20 = arith.constant 0 : index
    %c0_21 = arith.constant 0 : index
    %73 = vector.load %arg5[%72, %c0_20, %c0_21] : memref<32x8x128xf32, #tpu.memory_space<vmem>>, vector<1x8x128xf32>
    %74 = vector.shape_cast %73 : vector<1x8x128xf32> to vector<8x128xf32>
    %75 = vector.shape_cast %71 : vector<8x128xf32> to vector<1x8x128xf32>
    tpu.vector_store %arg5[%72, %c0_20, %c0_21], %75 {strides = array<i32>} : memref<32x8x128xf32, #tpu.memory_space<vmem>>, vector<1x8x128xf32>,
    %c2_i32 = arith.constant 2 : i32
    %76 = arith.index_cast %c2_i32 : i32 to index
    %c0_22 = arith.constant 0 : index
    %c0_23 = arith.constant 0 : index
    %77 = vector.load %arg1[%76, %c0_22, %c0_23] : memref<32x8x512xf32, #tpu.memory_space<vmem>>, vector<1x8x512xf32>
    %78 = vector.shape_cast %77 : vector<1x8x512xf32> to vector<8x512xf32>
    %79 = arith.truncf %71 : vector<8x128xf32> to vector<8x128xbf16>
    %cst_24 = arith.constant dense<0.000000e+00> : vector<8x512xf32>
    %80 = tpu.matmul %79, %3, %cst_24 {dimension_numbers = #tpu.dot_dimension_numbers<[1], [0], [0], [1], [0, 0, 1, 1], [], []>} : vector<8x128xbf16>, vector<128x512xbf16>, vector<8x512xf32> -> vector<8x512xf32>
    %81 = arith.addf %78, %80 : vector<8x512xf32>
    %82 = vector.extract_strided_slice %81 {offsets = [0, 0], sizes = [8, 128], strides = [1, 1]} : vector<8x512xf32> to vector<8x128xf32>
    %83 = arith.negf %82 : vector<8x128xf32>
    %84 = math.exp %83 : vector<8x128xf32>
    %cst_25 = arith.constant 1.000000e+00 : f32
    %85 = vector.broadcast %cst_25 : f32 to vector<8x128xf32>
    %86 = arith.addf %85, %84 : vector<8x128xf32>
    %87 = arith.divf %85, %86 : vector<8x128xf32>
    %88 = vector.extract_strided_slice %81 {offsets = [0, 128], sizes = [8, 128], strides = [1, 1]} : vector<8x512xf32> to vector<8x128xf32>
    %89 = arith.negf %88 : vector<8x128xf32>
    %90 = math.exp %89 : vector<8x128xf32>
    %cst_26 = arith.constant 1.000000e+00 : f32
    %91 = vector.broadcast %cst_26 : f32 to vector<8x128xf32>
    %92 = arith.addf %91, %90 : vector<8x128xf32>
    %93 = arith.divf %91, %92 : vector<8x128xf32>
    %94 = vector.extract_strided_slice %81 {offsets = [0, 256], sizes = [8, 128], strides = [1, 1]} : vector<8x512xf32> to vector<8x128xf32>
    %95 = math.tanh %94 : vector<8x128xf32>
    %96 = vector.extract_strided_slice %81 {offsets = [0, 384], sizes = [8, 128], strides = [1, 1]} : vector<8x512xf32> to vector<8x128xf32>
    %97 = arith.negf %96 : vector<8x128xf32>
    %98 = math.exp %97 : vector<8x128xf32>
    %cst_27 = arith.constant 1.000000e+00 : f32
    %99 = vector.broadcast %cst_27 : f32 to vector<8x128xf32>
    %100 = arith.addf %99, %98 : vector<8x128xf32>
    %101 = arith.divf %99, %100 : vector<8x128xf32>
    %102 = arith.mulf %95, %87 : vector<8x128xf32>
    %103 = arith.mulf %93, %69 : vector<8x128xf32>
    %104 = arith.addf %102, %103 : vector<8x128xf32>
    %105 = math.tanh %104 : vector<8x128xf32>
    %106 = arith.mulf %101, %105 : vector<8x128xf32>
    %107 = arith.index_cast %c2_i32 : i32 to index
    %c0_28 = arith.constant 0 : index
    %c0_29 = arith.constant 0 : index
    %108 = vector.load %arg5[%107, %c0_28, %c0_29] : memref<32x8x128xf32, #tpu.memory_space<vmem>>, vector<1x8x128xf32>
    %109 = vector.shape_cast %108 : vector<1x8x128xf32> to vector<8x128xf32>
    %110 = vector.shape_cast %106 : vector<8x128xf32> to vector<1x8x128xf32>
    tpu.vector_store %arg5[%107, %c0_28, %c0_29], %110 {strides = array<i32>} : memref<32x8x128xf32, #tpu.memory_space<vmem>>, vector<1x8x128xf32>,
    %c3_i32 = arith.constant 3 : i32
    %111 = arith.index_cast %c3_i32 : i32 to index
    %c0_30 = arith.constant 0 : index
    %c0_31 = arith.constant 0 : index
    %112 = vector.load %arg1[%111, %c0_30, %c0_31] : memref<32x8x512xf32, #tpu.memory_space<vmem>>, vector<1x8x512xf32>
    %113 = vector.shape_cast %112 : vector<1x8x512xf32> to vector<8x512xf32>
    %114 = arith.truncf %106 : vector<8x128xf32> to vector<8x128xbf16>
    %cst_32 = arith.constant dense<0.000000e+00> : vector<8x512xf32>
    %115 = tpu.matmul %114, %3, %cst_32 {dimension_numbers = #tpu.dot_dimension_numbers<[1], [0], [0], [1], [0, 0, 1, 1], [], []>} : vector<8x128xbf16>, vector<128x512xbf16>, vector<8x512xf32> -> vector<8x512xf32>
    %116 = arith.addf %113, %115 : vector<8x512xf32>
    %117 = vector.extract_strided_slice %116 {offsets = [0, 0], sizes = [8, 128], strides = [1, 1]} : vector<8x512xf32> to vector<8x128xf32>
    %118 = arith.negf %117 : vector<8x128xf32>
    %119 = math.exp %118 : vector<8x128xf32>
    %cst_33 = arith.constant 1.000000e+00 : f32
    %120 = vector.broadcast %cst_33 : f32 to vector<8x128xf32>
    %121 = arith.addf %120, %119 : vector<8x128xf32>
    %122 = arith.divf %120, %121 : vector<8x128xf32>
    %123 = vector.extract_strided_slice %116 {offsets = [0, 128], sizes = [8, 128], strides = [1, 1]} : vector<8x512xf32> to vector<8x128xf32>
    %124 = arith.negf %123 : vector<8x128xf32>
    %125 = math.exp %124 : vector<8x128xf32>
    %cst_34 = arith.constant 1.000000e+00 : f32
    %126 = vector.broadcast %cst_34 : f32 to vector<8x128xf32>
    %127 = arith.addf %126, %125 : vector<8x128xf32>
    %128 = arith.divf %126, %127 : vector<8x128xf32>
    %129 = vector.extract_strided_slice %116 {offsets = [0, 256], sizes = [8, 128], strides = [1, 1]} : vector<8x512xf32> to vector<8x128xf32>
    %130 = math.tanh %129 : vector<8x128xf32>
    %131 = vector.extract_strided_slice %116 {offsets = [0, 384], sizes = [8, 128], strides = [1, 1]} : vector<8x512xf32> to vector<8x128xf32>
    %132 = arith.negf %131 : vector<8x128xf32>
    %133 = math.exp %132 : vector<8x128xf32>
    %cst_35 = arith.constant 1.000000e+00 : f32
    %134 = vector.broadcast %cst_35 : f32 to vector<8x128xf32>
    %135 = arith.addf %134, %133 : vector<8x128xf32>
    %136 = arith.divf %134, %135 : vector<8x128xf32>
    %137 = arith.mulf %130, %122 : vector<8x128xf32>
    %138 = arith.mulf %128, %104 : vector<8x128xf32>
    %139 = arith.addf %137, %138 : vector<8x128xf32>
    %140 = math.tanh %139 : vector<8x128xf32>
    %141 = arith.mulf %136, %140 : vector<8x128xf32>
    %142 = arith.index_cast %c3_i32 : i32 to index
    %c0_36 = arith.constant 0 : index
    %c0_37 = arith.constant 0 : index
    %143 = vector.load %arg5[%142, %c0_36, %c0_37] : memref<32x8x128xf32, #tpu.memory_space<vmem>>, vector<1x8x128xf32>
    %144 = vector.shape_cast %143 : vector<1x8x128xf32> to vector<8x128xf32>
    %145 = vector.shape_cast %141 : vector<8x128xf32> to vector<1x8x128xf32>
    tpu.vector_store %arg5[%142, %c0_36, %c0_37], %145 {strides = array<i32>} : memref<32x8x128xf32, #tpu.memory_space<vmem>>, vector<1x8x128xf32>,
    %c4_i32 = arith.constant 4 : i32
    %146 = arith.index_cast %c4_i32 : i32 to index
    %c0_38 = arith.constant 0 : index
    %c0_39 = arith.constant 0 : index
    %147 = vector.load %arg1[%146, %c0_38, %c0_39] : memref<32x8x512xf32, #tpu.memory_space<vmem>>, vector<1x8x512xf32>
    %148 = vector.shape_cast %147 : vector<1x8x512xf32> to vector<8x512xf32>
    %149 = arith.truncf %141 : vector<8x128xf32> to vector<8x128xbf16>
    %cst_40 = arith.constant dense<0.000000e+00> : vector<8x512xf32>
    %150 = tpu.matmul %149, %3, %cst_40 {dimension_numbers = #tpu.dot_dimension_numbers<[1], [0], [0], [1], [0, 0, 1, 1], [], []>} : vector<8x128xbf16>, vector<128x512xbf16>, vector<8x512xf32> -> vector<8x512xf32>
    %151 = arith.addf %148, %150 : vector<8x512xf32>
    %152 = vector.extract_strided_slice %151 {offsets = [0, 0], sizes = [8, 128], strides = [1, 1]} : vector<8x512xf32> to vector<8x128xf32>
    %153 = arith.negf %152 : vector<8x128xf32>
    %154 = math.exp %153 : vector<8x128xf32>
    %cst_41 = arith.constant 1.000000e+00 : f32
    %155 = vector.broadcast %cst_41 : f32 to vector<8x128xf32>
    %156 = arith.addf %155, %154 : vector<8x128xf32>
    %157 = arith.divf %155, %156 : vector<8x128xf32>
    %158 = vector.extract_strided_slice %151 {offsets = [0, 128], sizes = [8, 128], strides = [1, 1]} : vector<8x512xf32> to vector<8x128xf32>
    %159 = arith.negf %158 : vector<8x128xf32>
    %160 = math.exp %159 : vector<8x128xf32>
    %cst_42 = arith.constant 1.000000e+00 : f32
    %161 = vector.broadcast %cst_42 : f32 to vector<8x128xf32>
    %162 = arith.addf %161, %160 : vector<8x128xf32>
    %163 = arith.divf %161, %162 : vector<8x128xf32>
    %164 = vector.extract_strided_slice %151 {offsets = [0, 256], sizes = [8, 128], strides = [1, 1]} : vector<8x512xf32> to vector<8x128xf32>
    %165 = math.tanh %164 : vector<8x128xf32>
    %166 = vector.extract_strided_slice %151 {offsets = [0, 384], sizes = [8, 128], strides = [1, 1]} : vector<8x512xf32> to vector<8x128xf32>
    %167 = arith.negf %166 : vector<8x128xf32>
    %168 = math.exp %167 : vector<8x128xf32>
    %cst_43 = arith.constant 1.000000e+00 : f32
    %169 = vector.broadcast %cst_43 : f32 to vector<8x128xf32>
    %170 = arith.addf %169, %168 : vector<8x128xf32>
    %171 = arith.divf %169, %170 : vector<8x128xf32>
    %172 = arith.mulf %165, %157 : vector<8x128xf32>
    %173 = arith.mulf %163, %139 : vector<8x128xf32>
    %174 = arith.addf %172, %173 : vector<8x128xf32>
    %175 = math.tanh %174 : vector<8x128xf32>
    %176 = arith.mulf %171, %175 : vector<8x128xf32>
    %177 = arith.index_cast %c4_i32 : i32 to index
    %c0_44 = arith.constant 0 : index
    %c0_45 = arith.constant 0 : index
    %178 = vector.load %arg5[%177, %c0_44, %c0_45] : memref<32x8x128xf32, #tpu.memory_space<vmem>>, vector<1x8x128xf32>
    %179 = vector.shape_cast %178 : vector<1x8x128xf32> to vector<8x128xf32>
    %180 = vector.shape_cast %176 : vector<8x128xf32> to vector<1x8x128xf32>
    tpu.vector_store %arg5[%177, %c0_44, %c0_45], %180 {strides = array<i32>} : memref<32x8x128xf32, #tpu.memory_space<vmem>>, vector<1x8x128xf32>,
    %c5_i32 = arith.constant 5 : i32
    %181 = arith.index_cast %c5_i32 : i32 to index
    %c0_46 = arith.constant 0 : index
    %c0_47 = arith.constant 0 : index
    %182 = vector.load %arg1[%181, %c0_46, %c0_47] : memref<32x8x512xf32, #tpu.memory_space<vmem>>, vector<1x8x512xf32>
    %183 = vector.shape_cast %182 : vector<1x8x512xf32> to vector<8x512xf32>
    %184 = arith.truncf %176 : vector<8x128xf32> to vector<8x128xbf16>
    %cst_48 = arith.constant dense<0.000000e+00> : vector<8x512xf32>
    %185 = tpu.matmul %184, %3, %cst_48 {dimension_numbers = #tpu.dot_dimension_numbers<[1], [0], [0], [1], [0, 0, 1, 1], [], []>} : vector<8x128xbf16>, vector<128x512xbf16>, vector<8x512xf32> -> vector<8x512xf32>
    %186 = arith.addf %183, %185 : vector<8x512xf32>
    %187 = vector.extract_strided_slice %186 {offsets = [0, 0], sizes = [8, 128], strides = [1, 1]} : vector<8x512xf32> to vector<8x128xf32>
    %188 = arith.negf %187 : vector<8x128xf32>
    %189 = math.exp %188 : vector<8x128xf32>
    %cst_49 = arith.constant 1.000000e+00 : f32
    %190 = vector.broadcast %cst_49 : f32 to vector<8x128xf32>
    %191 = arith.addf %190, %189 : vector<8x128xf32>
    %192 = arith.divf %190, %191 : vector<8x128xf32>
    %193 = vector.extract_strided_slice %186 {offsets = [0, 128], sizes = [8, 128], strides = [1, 1]} : vector<8x512xf32> to vector<8x128xf32>
    %194 = arith.negf %193 : vector<8x128xf32>
    %195 = math.exp %194 : vector<8x128xf32>
    %cst_50 = arith.constant 1.000000e+00 : f32
    %196 = vector.broadcast %cst_50 : f32 to vector<8x128xf32>
    %197 = arith.addf %196, %195 : vector<8x128xf32>
    %198 = arith.divf %196, %197 : vector<8x128xf32>
    %199 = vector.extract_strided_slice %186 {offsets = [0, 256], sizes = [8, 128], strides = [1, 1]} : vector<8x512xf32> to vector<8x128xf32>
    %200 = math.tanh %199 : vector<8x128xf32>
    %201 = vector.extract_strided_slice %186 {offsets = [0, 384], sizes = [8, 128], strides = [1, 1]} : vector<8x512xf32> to vector<8x128xf32>
    %202 = arith.negf %201 : vector<8x128xf32>
    %203 = math.exp %202 : vector<8x128xf32>
    %cst_51 = arith.constant 1.000000e+00 : f32
    %204 = vector.broadcast %cst_51 : f32 to vector<8x128xf32>
    %205 = arith.addf %204, %203 : vector<8x128xf32>
    %206 = arith.divf %204, %205 : vector<8x128xf32>
    %207 = arith.mulf %200, %192 : vector<8x128xf32>
    %208 = arith.mulf %198, %174 : vector<8x128xf32>
    %209 = arith.addf %207, %208 : vector<8x128xf32>
    %210 = math.tanh %209 : vector<8x128xf32>
    %211 = arith.mulf %206, %210 : vector<8x128xf32>
    %212 = arith.index_cast %c5_i32 : i32 to index
    %c0_52 = arith.constant 0 : index
    %c0_53 = arith.constant 0 : index
    %213 = vector.load %arg5[%212, %c0_52, %c0_53] : memref<32x8x128xf32, #tpu.memory_space<vmem>>, vector<1x8x128xf32>
    %214 = vector.shape_cast %213 : vector<1x8x128xf32> to vector<8x128xf32>
    %215 = vector.shape_cast %211 : vector<8x128xf32> to vector<1x8x128xf32>
    tpu.vector_store %arg5[%212, %c0_52, %c0_53], %215 {strides = array<i32>} : memref<32x8x128xf32, #tpu.memory_space<vmem>>, vector<1x8x128xf32>,
    %c6_i32 = arith.constant 6 : i32
    %216 = arith.index_cast %c6_i32 : i32 to index
    %c0_54 = arith.constant 0 : index
    %c0_55 = arith.constant 0 : index
    %217 = vector.load %arg1[%216, %c0_54, %c0_55] : memref<32x8x512xf32, #tpu.memory_space<vmem>>, vector<1x8x512xf32>
    %218 = vector.shape_cast %217 : vector<1x8x512xf32> to vector<8x512xf32>
    %219 = arith.truncf %211 : vector<8x128xf32> to vector<8x128xbf16>
    %cst_56 = arith.constant dense<0.000000e+00> : vector<8x512xf32>
    %220 = tpu.matmul %219, %3, %cst_56 {dimension_numbers = #tpu.dot_dimension_numbers<[1], [0], [0], [1], [0, 0, 1, 1], [], []>} : vector<8x128xbf16>, vector<128x512xbf16>, vector<8x512xf32> -> vector<8x512xf32>
    %221 = arith.addf %218, %220 : vector<8x512xf32>
    %222 = vector.extract_strided_slice %221 {offsets = [0, 0], sizes = [8, 128], strides = [1, 1]} : vector<8x512xf32> to vector<8x128xf32>
    %223 = arith.negf %222 : vector<8x128xf32>
    %224 = math.exp %223 : vector<8x128xf32>
    %cst_57 = arith.constant 1.000000e+00 : f32
    %225 = vector.broadcast %cst_57 : f32 to vector<8x128xf32>
    %226 = arith.addf %225, %224 : vector<8x128xf32>
    %227 = arith.divf %225, %226 : vector<8x128xf32>
    %228 = vector.extract_strided_slice %221 {offsets = [0, 128], sizes = [8, 128], strides = [1, 1]} : vector<8x512xf32> to vector<8x128xf32>
    %229 = arith.negf %228 : vector<8x128xf32>
    %230 = math.exp %229 : vector<8x128xf32>
    %cst_58 = arith.constant 1.000000e+00 : f32
    %231 = vector.broadcast %cst_58 : f32 to vector<8x128xf32>
    %232 = arith.addf %231, %230 : vector<8x128xf32>
    %233 = arith.divf %231, %232 : vector<8x128xf32>
    %234 = vector.extract_strided_slice %221 {offsets = [0, 256], sizes = [8, 128], strides = [1, 1]} : vector<8x512xf32> to vector<8x128xf32>
    %235 = math.tanh %234 : vector<8x128xf32>
    %236 = vector.extract_strided_slice %221 {offsets = [0, 384], sizes = [8, 128], strides = [1, 1]} : vector<8x512xf32> to vector<8x128xf32>
    %237 = arith.negf %236 : vector<8x128xf32>
    %238 = math.exp %237 : vector<8x128xf32>
    %cst_59 = arith.constant 1.000000e+00 : f32
    %239 = vector.broadcast %cst_59 : f32 to vector<8x128xf32>
    %240 = arith.addf %239, %238 : vector<8x128xf32>
    %241 = arith.divf %239, %240 : vector<8x128xf32>
    %242 = arith.mulf %235, %227 : vector<8x128xf32>
    %243 = arith.mulf %233, %209 : vector<8x128xf32>
    %244 = arith.addf %242, %243 : vector<8x128xf32>
    %245 = math.tanh %244 : vector<8x128xf32>
    %246 = arith.mulf %241, %245 : vector<8x128xf32>
    %247 = arith.index_cast %c6_i32 : i32 to index
    %c0_60 = arith.constant 0 : index
    %c0_61 = arith.constant 0 : index
    %248 = vector.load %arg5[%247, %c0_60, %c0_61] : memref<32x8x128xf32, #tpu.memory_space<vmem>>, vector<1x8x128xf32>
    %249 = vector.shape_cast %248 : vector<1x8x128xf32> to vector<8x128xf32>
    %250 = vector.shape_cast %246 : vector<8x128xf32> to vector<1x8x128xf32>
    tpu.vector_store %arg5[%247, %c0_60, %c0_61], %250 {strides = array<i32>} : memref<32x8x128xf32, #tpu.memory_space<vmem>>, vector<1x8x128xf32>,
    %c7_i32 = arith.constant 7 : i32
    %251 = arith.index_cast %c7_i32 : i32 to index
    %c0_62 = arith.constant 0 : index
    %c0_63 = arith.constant 0 : index
    %252 = vector.load %arg1[%251, %c0_62, %c0_63] : memref<32x8x512xf32, #tpu.memory_space<vmem>>, vector<1x8x512xf32>
    %253 = vector.shape_cast %252 : vector<1x8x512xf32> to vector<8x512xf32>
    %254 = arith.truncf %246 : vector<8x128xf32> to vector<8x128xbf16>
    %cst_64 = arith.constant dense<0.000000e+00> : vector<8x512xf32>
    %255 = tpu.matmul %254, %3, %cst_64 {dimension_numbers = #tpu.dot_dimension_numbers<[1], [0], [0], [1], [0, 0, 1, 1], [], []>} : vector<8x128xbf16>, vector<128x512xbf16>, vector<8x512xf32> -> vector<8x512xf32>
    %256 = arith.addf %253, %255 : vector<8x512xf32>
    %257 = vector.extract_strided_slice %256 {offsets = [0, 0], sizes = [8, 128], strides = [1, 1]} : vector<8x512xf32> to vector<8x128xf32>
    %258 = arith.negf %257 : vector<8x128xf32>
    %259 = math.exp %258 : vector<8x128xf32>
    %cst_65 = arith.constant 1.000000e+00 : f32
    %260 = vector.broadcast %cst_65 : f32 to vector<8x128xf32>
    %261 = arith.addf %260, %259 : vector<8x128xf32>
    %262 = arith.divf %260, %261 : vector<8x128xf32>
    %263 = vector.extract_strided_slice %256 {offsets = [0, 128], sizes = [8, 128], strides = [1, 1]} : vector<8x512xf32> to vector<8x128xf32>
    %264 = arith.negf %263 : vector<8x128xf32>
    %265 = math.exp %264 : vector<8x128xf32>
    %cst_66 = arith.constant 1.000000e+00 : f32
    %266 = vector.broadcast %cst_66 : f32 to vector<8x128xf32>
    %267 = arith.addf %266, %265 : vector<8x128xf32>
    %268 = arith.divf %266, %267 : vector<8x128xf32>
    %269 = vector.extract_strided_slice %256 {offsets = [0, 256], sizes = [8, 128], strides = [1, 1]} : vector<8x512xf32> to vector<8x128xf32>
    %270 = math.tanh %269 : vector<8x128xf32>
    %271 = vector.extract_strided_slice %256 {offsets = [0, 384], sizes = [8, 128], strides = [1, 1]} : vector<8x512xf32> to vector<8x128xf32>
    %272 = arith.negf %271 : vector<8x128xf32>
    %273 = math.exp %272 : vector<8x128xf32>
    %cst_67 = arith.constant 1.000000e+00 : f32
    %274 = vector.broadcast %cst_67 : f32 to vector<8x128xf32>
    %275 = arith.addf %274, %273 : vector<8x128xf32>
    %276 = arith.divf %274, %275 : vector<8x128xf32>
    %277 = arith.mulf %270, %262 : vector<8x128xf32>
    %278 = arith.mulf %268, %244 : vector<8x128xf32>
    %279 = arith.addf %277, %278 : vector<8x128xf32>
    %280 = math.tanh %279 : vector<8x128xf32>
    %281 = arith.mulf %276, %280 : vector<8x128xf32>
    %282 = arith.index_cast %c7_i32 : i32 to index
    %c0_68 = arith.constant 0 : index
    %c0_69 = arith.constant 0 : index
    %283 = vector.load %arg5[%282, %c0_68, %c0_69] : memref<32x8x128xf32, #tpu.memory_space<vmem>>, vector<1x8x128xf32>
    %284 = vector.shape_cast %283 : vector<1x8x128xf32> to vector<8x128xf32>
    %285 = vector.shape_cast %281 : vector<8x128xf32> to vector<1x8x128xf32>
    tpu.vector_store %arg5[%282, %c0_68, %c0_69], %285 {strides = array<i32>} : memref<32x8x128xf32, #tpu.memory_space<vmem>>, vector<1x8x128xf32>,
    %c8_i32 = arith.constant 8 : i32
    %286 = arith.index_cast %c8_i32 : i32 to index
    %c0_70 = arith.constant 0 : index
    %c0_71 = arith.constant 0 : index
    %287 = vector.load %arg1[%286, %c0_70, %c0_71] : memref<32x8x512xf32, #tpu.memory_space<vmem>>, vector<1x8x512xf32>
    %288 = vector.shape_cast %287 : vector<1x8x512xf32> to vector<8x512xf32>
    %289 = arith.truncf %281 : vector<8x128xf32> to vector<8x128xbf16>
    %cst_72 = arith.constant dense<0.000000e+00> : vector<8x512xf32>
    %290 = tpu.matmul %289, %3, %cst_72 {dimension_numbers = #tpu.dot_dimension_numbers<[1], [0], [0], [1], [0, 0, 1, 1], [], []>} : vector<8x128xbf16>, vector<128x512xbf16>, vector<8x512xf32> -> vector<8x512xf32>
    %291 = arith.addf %288, %290 : vector<8x512xf32>
    %292 = vector.extract_strided_slice %291 {offsets = [0, 0], sizes = [8, 128], strides = [1, 1]} : vector<8x512xf32> to vector<8x128xf32>
    %293 = arith.negf %292 : vector<8x128xf32>
    %294 = math.exp %293 : vector<8x128xf32>
    %cst_73 = arith.constant 1.000000e+00 : f32
    %295 = vector.broadcast %cst_73 : f32 to vector<8x128xf32>
    %296 = arith.addf %295, %294 : vector<8x128xf32>
    %297 = arith.divf %295, %296 : vector<8x128xf32>
    %298 = vector.extract_strided_slice %291 {offsets = [0, 128], sizes = [8, 128], strides = [1, 1]} : vector<8x512xf32> to vector<8x128xf32>
    %299 = arith.negf %298 : vector<8x128xf32>
    %300 = math.exp %299 : vector<8x128xf32>
    %cst_74 = arith.constant 1.000000e+00 : f32
    %301 = vector.broadcast %cst_74 : f32 to vector<8x128xf32>
    %302 = arith.addf %301, %300 : vector<8x128xf32>
    %303 = arith.divf %301, %302 : vector<8x128xf32>
    %304 = vector.extract_strided_slice %291 {offsets = [0, 256], sizes = [8, 128], strides = [1, 1]} : vector<8x512xf32> to vector<8x128xf32>
    %305 = math.tanh %304 : vector<8x128xf32>
    %306 = vector.extract_strided_slice %291 {offsets = [0, 384], sizes = [8, 128], strides = [1, 1]} : vector<8x512xf32> to vector<8x128xf32>
    %307 = arith.negf %306 : vector<8x128xf32>
    %308 = math.exp %307 : vector<8x128xf32>
    %cst_75 = arith.constant 1.000000e+00 : f32
    %309 = vector.broadcast %cst_75 : f32 to vector<8x128xf32>
    %310 = arith.addf %309, %308 : vector<8x128xf32>
    %311 = arith.divf %309, %310 : vector<8x128xf32>
    %312 = arith.mulf %305, %297 : vector<8x128xf32>
    %313 = arith.mulf %303, %279 : vector<8x128xf32>
    %314 = arith.addf %312, %313 : vector<8x128xf32>
    %315 = math.tanh %314 : vector<8x128xf32>
    %316 = arith.mulf %311, %315 : vector<8x128xf32>
    %317 = arith.index_cast %c8_i32 : i32 to index
    %c0_76 = arith.constant 0 : index
    %c0_77 = arith.constant 0 : index
    %318 = vector.load %arg5[%317, %c0_76, %c0_77] : memref<32x8x128xf32, #tpu.memory_space<vmem>>, vector<1x8x128xf32>
    %319 = vector.shape_cast %318 : vector<1x8x128xf32> to vector<8x128xf32>
    %320 = vector.shape_cast %316 : vector<8x128xf32> to vector<1x8x128xf32>
    tpu.vector_store %arg5[%317, %c0_76, %c0_77], %320 {strides = array<i32>} : memref<32x8x128xf32, #tpu.memory_space<vmem>>, vector<1x8x128xf32>,
    %c9_i32 = arith.constant 9 : i32
    %321 = arith.index_cast %c9_i32 : i32 to index
    %c0_78 = arith.constant 0 : index
    %c0_79 = arith.constant 0 : index
    %322 = vector.load %arg1[%321, %c0_78, %c0_79] : memref<32x8x512xf32, #tpu.memory_space<vmem>>, vector<1x8x512xf32>
    %323 = vector.shape_cast %322 : vector<1x8x512xf32> to vector<8x512xf32>
    %324 = arith.truncf %316 : vector<8x128xf32> to vector<8x128xbf16>
    %cst_80 = arith.constant dense<0.000000e+00> : vector<8x512xf32>
    %325 = tpu.matmul %324, %3, %cst_80 {dimension_numbers = #tpu.dot_dimension_numbers<[1], [0], [0], [1], [0, 0, 1, 1], [], []>} : vector<8x128xbf16>, vector<128x512xbf16>, vector<8x512xf32> -> vector<8x512xf32>
    %326 = arith.addf %323, %325 : vector<8x512xf32>
    %327 = vector.extract_strided_slice %326 {offsets = [0, 0], sizes = [8, 128], strides = [1, 1]} : vector<8x512xf32> to vector<8x128xf32>
    %328 = arith.negf %327 : vector<8x128xf32>
    %329 = math.exp %328 : vector<8x128xf32>
    %cst_81 = arith.constant 1.000000e+00 : f32
    %330 = vector.broadcast %cst_81 : f32 to vector<8x128xf32>
    %331 = arith.addf %330, %329 : vector<8x128xf32>
    %332 = arith.divf %330, %331 : vector<8x128xf32>
    %333 = vector.extract_strided_slice %326 {offsets = [0, 128], sizes = [8, 128], strides = [1, 1]} : vector<8x512xf32> to vector<8x128xf32>
    %334 = arith.negf %333 : vector<8x128xf32>
    %335 = math.exp %334 : vector<8x128xf32>
    %cst_82 = arith.constant 1.000000e+00 : f32
    %336 = vector.broadcast %cst_82 : f32 to vector<8x128xf32>
    %337 = arith.addf %336, %335 : vector<8x128xf32>
    %338 = arith.divf %336, %337 : vector<8x128xf32>
    %339 = vector.extract_strided_slice %326 {offsets = [0, 256], sizes = [8, 128], strides = [1, 1]} : vector<8x512xf32> to vector<8x128xf32>
    %340 = math.tanh %339 : vector<8x128xf32>
    %341 = vector.extract_strided_slice %326 {offsets = [0, 384], sizes = [8, 128], strides = [1, 1]} : vector<8x512xf32> to vector<8x128xf32>
    %342 = arith.negf %341 : vector<8x128xf32>
    %343 = math.exp %342 : vector<8x128xf32>
    %cst_83 = arith.constant 1.000000e+00 : f32
    %344 = vector.broadcast %cst_83 : f32 to vector<8x128xf32>
    %345 = arith.addf %344, %343 : vector<8x128xf32>
    %346 = arith.divf %344, %345 : vector<8x128xf32>
    %347 = arith.mulf %340, %332 : vector<8x128xf32>
    %348 = arith.mulf %338, %314 : vector<8x128xf32>
    %349 = arith.addf %347, %348 : vector<8x128xf32>
    %350 = math.tanh %349 : vector<8x128xf32>
    %351 = arith.mulf %346, %350 : vector<8x128xf32>
    %352 = arith.index_cast %c9_i32 : i32 to index
    %c0_84 = arith.constant 0 : index
    %c0_85 = arith.constant 0 : index
    %353 = vector.load %arg5[%352, %c0_84, %c0_85] : memref<32x8x128xf32, #tpu.memory_space<vmem>>, vector<1x8x128xf32>
    %354 = vector.shape_cast %353 : vector<1x8x128xf32> to vector<8x128xf32>
    %355 = vector.shape_cast %351 : vector<8x128xf32> to vector<1x8x128xf32>
    tpu.vector_store %arg5[%352, %c0_84, %c0_85], %355 {strides = array<i32>} : memref<32x8x128xf32, #tpu.memory_space<vmem>>, vector<1x8x128xf32>,
    %c10_i32 = arith.constant 10 : i32
    %356 = arith.index_cast %c10_i32 : i32 to index
    %c0_86 = arith.constant 0 : index
    %c0_87 = arith.constant 0 : index
    %357 = vector.load %arg1[%356, %c0_86, %c0_87] : memref<32x8x512xf32, #tpu.memory_space<vmem>>, vector<1x8x512xf32>
    %358 = vector.shape_cast %357 : vector<1x8x512xf32> to vector<8x512xf32>
    %359 = arith.truncf %351 : vector<8x128xf32> to vector<8x128xbf16>
    %cst_88 = arith.constant dense<0.000000e+00> : vector<8x512xf32>
    %360 = tpu.matmul %359, %3, %cst_88 {dimension_numbers = #tpu.dot_dimension_numbers<[1], [0], [0], [1], [0, 0, 1, 1], [], []>} : vector<8x128xbf16>, vector<128x512xbf16>, vector<8x512xf32> -> vector<8x512xf32>
    %361 = arith.addf %358, %360 : vector<8x512xf32>
    %362 = vector.extract_strided_slice %361 {offsets = [0, 0], sizes = [8, 128], strides = [1, 1]} : vector<8x512xf32> to vector<8x128xf32>
    %363 = arith.negf %362 : vector<8x128xf32>
    %364 = math.exp %363 : vector<8x128xf32>
    %cst_89 = arith.constant 1.000000e+00 : f32
    %365 = vector.broadcast %cst_89 : f32 to vector<8x128xf32>
    %366 = arith.addf %365, %364 : vector<8x128xf32>
    %367 = arith.divf %365, %366 : vector<8x128xf32>
    %368 = vector.extract_strided_slice %361 {offsets = [0, 128], sizes = [8, 128], strides = [1, 1]} : vector<8x512xf32> to vector<8x128xf32>
    %369 = arith.negf %368 : vector<8x128xf32>
    %370 = math.exp %369 : vector<8x128xf32>
    %cst_90 = arith.constant 1.000000e+00 : f32
    %371 = vector.broadcast %cst_90 : f32 to vector<8x128xf32>
    %372 = arith.addf %371, %370 : vector<8x128xf32>
    %373 = arith.divf %371, %372 : vector<8x128xf32>
    %374 = vector.extract_strided_slice %361 {offsets = [0, 256], sizes = [8, 128], strides = [1, 1]} : vector<8x512xf32> to vector<8x128xf32>
    %375 = math.tanh %374 : vector<8x128xf32>
    %376 = vector.extract_strided_slice %361 {offsets = [0, 384], sizes = [8, 128], strides = [1, 1]} : vector<8x512xf32> to vector<8x128xf32>
    %377 = arith.negf %376 : vector<8x128xf32>
    %378 = math.exp %377 : vector<8x128xf32>
    %cst_91 = arith.constant 1.000000e+00 : f32
    %379 = vector.broadcast %cst_91 : f32 to vector<8x128xf32>
    %380 = arith.addf %379, %378 : vector<8x128xf32>
    %381 = arith.divf %379, %380 : vector<8x128xf32>
    %382 = arith.mulf %375, %367 : vector<8x128xf32>
    %383 = arith.mulf %373, %349 : vector<8x128xf32>
    %384 = arith.addf %382, %383 : vector<8x128xf32>
    %385 = math.tanh %384 : vector<8x128xf32>
    %386 = arith.mulf %381, %385 : vector<8x128xf32>
    %387 = arith.index_cast %c10_i32 : i32 to index
    %c0_92 = arith.constant 0 : index
    %c0_93 = arith.constant 0 : index
    %388 = vector.load %arg5[%387, %c0_92, %c0_93] : memref<32x8x128xf32, #tpu.memory_space<vmem>>, vector<1x8x128xf32>
    %389 = vector.shape_cast %388 : vector<1x8x128xf32> to vector<8x128xf32>
    %390 = vector.shape_cast %386 : vector<8x128xf32> to vector<1x8x128xf32>
    tpu.vector_store %arg5[%387, %c0_92, %c0_93], %390 {strides = array<i32>} : memref<32x8x128xf32, #tpu.memory_space<vmem>>, vector<1x8x128xf32>,
    %c11_i32 = arith.constant 11 : i32
    %391 = arith.index_cast %c11_i32 : i32 to index
    %c0_94 = arith.constant 0 : index
    %c0_95 = arith.constant 0 : index
    %392 = vector.load %arg1[%391, %c0_94, %c0_95] : memref<32x8x512xf32, #tpu.memory_space<vmem>>, vector<1x8x512xf32>
    %393 = vector.shape_cast %392 : vector<1x8x512xf32> to vector<8x512xf32>
    %394 = arith.truncf %386 : vector<8x128xf32> to vector<8x128xbf16>
    %cst_96 = arith.constant dense<0.000000e+00> : vector<8x512xf32>
    %395 = tpu.matmul %394, %3, %cst_96 {dimension_numbers = #tpu.dot_dimension_numbers<[1], [0], [0], [1], [0, 0, 1, 1], [], []>} : vector<8x128xbf16>, vector<128x512xbf16>, vector<8x512xf32> -> vector<8x512xf32>
    %396 = arith.addf %393, %395 : vector<8x512xf32>
    %397 = vector.extract_strided_slice %396 {offsets = [0, 0], sizes = [8, 128], strides = [1, 1]} : vector<8x512xf32> to vector<8x128xf32>
    %398 = arith.negf %397 : vector<8x128xf32>
    %399 = math.exp %398 : vector<8x128xf32>
    %cst_97 = arith.constant 1.000000e+00 : f32
    %400 = vector.broadcast %cst_97 : f32 to vector<8x128xf32>
    %401 = arith.addf %400, %399 : vector<8x128xf32>
    %402 = arith.divf %400, %401 : vector<8x128xf32>
    %403 = vector.extract_strided_slice %396 {offsets = [0, 128], sizes = [8, 128], strides = [1, 1]} : vector<8x512xf32> to vector<8x128xf32>
    %404 = arith.negf %403 : vector<8x128xf32>
    %405 = math.exp %404 : vector<8x128xf32>
    %cst_98 = arith.constant 1.000000e+00 : f32
    %406 = vector.broadcast %cst_98 : f32 to vector<8x128xf32>
    %407 = arith.addf %406, %405 : vector<8x128xf32>
    %408 = arith.divf %406, %407 : vector<8x128xf32>
    %409 = vector.extract_strided_slice %396 {offsets = [0, 256], sizes = [8, 128], strides = [1, 1]} : vector<8x512xf32> to vector<8x128xf32>
    %410 = math.tanh %409 : vector<8x128xf32>
    %411 = vector.extract_strided_slice %396 {offsets = [0, 384], sizes = [8, 128], strides = [1, 1]} : vector<8x512xf32> to vector<8x128xf32>
    %412 = arith.negf %411 : vector<8x128xf32>
    %413 = math.exp %412 : vector<8x128xf32>
    %cst_99 = arith.constant 1.000000e+00 : f32
    %414 = vector.broadcast %cst_99 : f32 to vector<8x128xf32>
    %415 = arith.addf %414, %413 : vector<8x128xf32>
    %416 = arith.divf %414, %415 : vector<8x128xf32>
    %417 = arith.mulf %410, %402 : vector<8x128xf32>
    %418 = arith.mulf %408, %384 : vector<8x128xf32>
    %419 = arith.addf %417, %418 : vector<8x128xf32>
    %420 = math.tanh %419 : vector<8x128xf32>
    %421 = arith.mulf %416, %420 : vector<8x128xf32>
    %422 = arith.index_cast %c11_i32 : i32 to index
    %c0_100 = arith.constant 0 : index
    %c0_101 = arith.constant 0 : index
    %423 = vector.load %arg5[%422, %c0_100, %c0_101] : memref<32x8x128xf32, #tpu.memory_space<vmem>>, vector<1x8x128xf32>
    %424 = vector.shape_cast %423 : vector<1x8x128xf32> to vector<8x128xf32>
    %425 = vector.shape_cast %421 : vector<8x128xf32> to vector<1x8x128xf32>
    tpu.vector_store %arg5[%422, %c0_100, %c0_101], %425 {strides = array<i32>} : memref<32x8x128xf32, #tpu.memory_space<vmem>>, vector<1x8x128xf32>,
    %c12_i32 = arith.constant 12 : i32
    %426 = arith.index_cast %c12_i32 : i32 to index
    %c0_102 = arith.constant 0 : index
    %c0_103 = arith.constant 0 : index
    %427 = vector.load %arg1[%426, %c0_102, %c0_103] : memref<32x8x512xf32, #tpu.memory_space<vmem>>, vector<1x8x512xf32>
    %428 = vector.shape_cast %427 : vector<1x8x512xf32> to vector<8x512xf32>
    %429 = arith.truncf %421 : vector<8x128xf32> to vector<8x128xbf16>
    %cst_104 = arith.constant dense<0.000000e+00> : vector<8x512xf32>
    %430 = tpu.matmul %429, %3, %cst_104 {dimension_numbers = #tpu.dot_dimension_numbers<[1], [0], [0], [1], [0, 0, 1, 1], [], []>} : vector<8x128xbf16>, vector<128x512xbf16>, vector<8x512xf32> -> vector<8x512xf32>
    %431 = arith.addf %428, %430 : vector<8x512xf32>
    %432 = vector.extract_strided_slice %431 {offsets = [0, 0], sizes = [8, 128], strides = [1, 1]} : vector<8x512xf32> to vector<8x128xf32>
    %433 = arith.negf %432 : vector<8x128xf32>
    %434 = math.exp %433 : vector<8x128xf32>
    %cst_105 = arith.constant 1.000000e+00 : f32
    %435 = vector.broadcast %cst_105 : f32 to vector<8x128xf32>
    %436 = arith.addf %435, %434 : vector<8x128xf32>
    %437 = arith.divf %435, %436 : vector<8x128xf32>
    %438 = vector.extract_strided_slice %431 {offsets = [0, 128], sizes = [8, 128], strides = [1, 1]} : vector<8x512xf32> to vector<8x128xf32>
    %439 = arith.negf %438 : vector<8x128xf32>
    %440 = math.exp %439 : vector<8x128xf32>
    %cst_106 = arith.constant 1.000000e+00 : f32
    %441 = vector.broadcast %cst_106 : f32 to vector<8x128xf32>
    %442 = arith.addf %441, %440 : vector<8x128xf32>
    %443 = arith.divf %441, %442 : vector<8x128xf32>
    %444 = vector.extract_strided_slice %431 {offsets = [0, 256], sizes = [8, 128], strides = [1, 1]} : vector<8x512xf32> to vector<8x128xf32>
    %445 = math.tanh %444 : vector<8x128xf32>
    %446 = vector.extract_strided_slice %431 {offsets = [0, 384], sizes = [8, 128], strides = [1, 1]} : vector<8x512xf32> to vector<8x128xf32>
    %447 = arith.negf %446 : vector<8x128xf32>
    %448 = math.exp %447 : vector<8x128xf32>
    %cst_107 = arith.constant 1.000000e+00 : f32
    %449 = vector.broadcast %cst_107 : f32 to vector<8x128xf32>
    %450 = arith.addf %449, %448 : vector<8x128xf32>
    %451 = arith.divf %449, %450 : vector<8x128xf32>
    %452 = arith.mulf %445, %437 : vector<8x128xf32>
    %453 = arith.mulf %443, %419 : vector<8x128xf32>
    %454 = arith.addf %452, %453 : vector<8x128xf32>
    %455 = math.tanh %454 : vector<8x128xf32>
    %456 = arith.mulf %451, %455 : vector<8x128xf32>
    %457 = arith.index_cast %c12_i32 : i32 to index
    %c0_108 = arith.constant 0 : index
    %c0_109 = arith.constant 0 : index
    %458 = vector.load %arg5[%457, %c0_108, %c0_109] : memref<32x8x128xf32, #tpu.memory_space<vmem>>, vector<1x8x128xf32>
    %459 = vector.shape_cast %458 : vector<1x8x128xf32> to vector<8x128xf32>
    %460 = vector.shape_cast %456 : vector<8x128xf32> to vector<1x8x128xf32>
    tpu.vector_store %arg5[%457, %c0_108, %c0_109], %460 {strides = array<i32>} : memref<32x8x128xf32, #tpu.memory_space<vmem>>, vector<1x8x128xf32>,
    %c13_i32 = arith.constant 13 : i32
    %461 = arith.index_cast %c13_i32 : i32 to index
    %c0_110 = arith.constant 0 : index
    %c0_111 = arith.constant 0 : index
    %462 = vector.load %arg1[%461, %c0_110, %c0_111] : memref<32x8x512xf32, #tpu.memory_space<vmem>>, vector<1x8x512xf32>
    %463 = vector.shape_cast %462 : vector<1x8x512xf32> to vector<8x512xf32>
    %464 = arith.truncf %456 : vector<8x128xf32> to vector<8x128xbf16>
    %cst_112 = arith.constant dense<0.000000e+00> : vector<8x512xf32>
    %465 = tpu.matmul %464, %3, %cst_112 {dimension_numbers = #tpu.dot_dimension_numbers<[1], [0], [0], [1], [0, 0, 1, 1], [], []>} : vector<8x128xbf16>, vector<128x512xbf16>, vector<8x512xf32> -> vector<8x512xf32>
    %466 = arith.addf %463, %465 : vector<8x512xf32>
    %467 = vector.extract_strided_slice %466 {offsets = [0, 0], sizes = [8, 128], strides = [1, 1]} : vector<8x512xf32> to vector<8x128xf32>
    %468 = arith.negf %467 : vector<8x128xf32>
    %469 = math.exp %468 : vector<8x128xf32>
    %cst_113 = arith.constant 1.000000e+00 : f32
    %470 = vector.broadcast %cst_113 : f32 to vector<8x128xf32>
    %471 = arith.addf %470, %469 : vector<8x128xf32>
    %472 = arith.divf %470, %471 : vector<8x128xf32>
    %473 = vector.extract_strided_slice %466 {offsets = [0, 128], sizes = [8, 128], strides = [1, 1]} : vector<8x512xf32> to vector<8x128xf32>
    %474 = arith.negf %473 : vector<8x128xf32>
    %475 = math.exp %474 : vector<8x128xf32>
    %cst_114 = arith.constant 1.000000e+00 : f32
    %476 = vector.broadcast %cst_114 : f32 to vector<8x128xf32>
    %477 = arith.addf %476, %475 : vector<8x128xf32>
    %478 = arith.divf %476, %477 : vector<8x128xf32>
    %479 = vector.extract_strided_slice %466 {offsets = [0, 256], sizes = [8, 128], strides = [1, 1]} : vector<8x512xf32> to vector<8x128xf32>
    %480 = math.tanh %479 : vector<8x128xf32>
    %481 = vector.extract_strided_slice %466 {offsets = [0, 384], sizes = [8, 128], strides = [1, 1]} : vector<8x512xf32> to vector<8x128xf32>
    %482 = arith.negf %481 : vector<8x128xf32>
    %483 = math.exp %482 : vector<8x128xf32>
    %cst_115 = arith.constant 1.000000e+00 : f32
    %484 = vector.broadcast %cst_115 : f32 to vector<8x128xf32>
    %485 = arith.addf %484, %483 : vector<8x128xf32>
    %486 = arith.divf %484, %485 : vector<8x128xf32>
    %487 = arith.mulf %480, %472 : vector<8x128xf32>
    %488 = arith.mulf %478, %454 : vector<8x128xf32>
    %489 = arith.addf %487, %488 : vector<8x128xf32>
    %490 = math.tanh %489 : vector<8x128xf32>
    %491 = arith.mulf %486, %490 : vector<8x128xf32>
    %492 = arith.index_cast %c13_i32 : i32 to index
    %c0_116 = arith.constant 0 : index
    %c0_117 = arith.constant 0 : index
    %493 = vector.load %arg5[%492, %c0_116, %c0_117] : memref<32x8x128xf32, #tpu.memory_space<vmem>>, vector<1x8x128xf32>
    %494 = vector.shape_cast %493 : vector<1x8x128xf32> to vector<8x128xf32>
    %495 = vector.shape_cast %491 : vector<8x128xf32> to vector<1x8x128xf32>
    tpu.vector_store %arg5[%492, %c0_116, %c0_117], %495 {strides = array<i32>} : memref<32x8x128xf32, #tpu.memory_space<vmem>>, vector<1x8x128xf32>,
    %c14_i32 = arith.constant 14 : i32
    %496 = arith.index_cast %c14_i32 : i32 to index
    %c0_118 = arith.constant 0 : index
    %c0_119 = arith.constant 0 : index
    %497 = vector.load %arg1[%496, %c0_118, %c0_119] : memref<32x8x512xf32, #tpu.memory_space<vmem>>, vector<1x8x512xf32>
    %498 = vector.shape_cast %497 : vector<1x8x512xf32> to vector<8x512xf32>
    %499 = arith.truncf %491 : vector<8x128xf32> to vector<8x128xbf16>
    %cst_120 = arith.constant dense<0.000000e+00> : vector<8x512xf32>
    %500 = tpu.matmul %499, %3, %cst_120 {dimension_numbers = #tpu.dot_dimension_numbers<[1], [0], [0], [1], [0, 0, 1, 1], [], []>} : vector<8x128xbf16>, vector<128x512xbf16>, vector<8x512xf32> -> vector<8x512xf32>
    %501 = arith.addf %498, %500 : vector<8x512xf32>
    %502 = vector.extract_strided_slice %501 {offsets = [0, 0], sizes = [8, 128], strides = [1, 1]} : vector<8x512xf32> to vector<8x128xf32>
    %503 = arith.negf %502 : vector<8x128xf32>
    %504 = math.exp %503 : vector<8x128xf32>
    %cst_121 = arith.constant 1.000000e+00 : f32
    %505 = vector.broadcast %cst_121 : f32 to vector<8x128xf32>
    %506 = arith.addf %505, %504 : vector<8x128xf32>
    %507 = arith.divf %505, %506 : vector<8x128xf32>
    %508 = vector.extract_strided_slice %501 {offsets = [0, 128], sizes = [8, 128], strides = [1, 1]} : vector<8x512xf32> to vector<8x128xf32>
    %509 = arith.negf %508 : vector<8x128xf32>
    %510 = math.exp %509 : vector<8x128xf32>
    %cst_122 = arith.constant 1.000000e+00 : f32
    %511 = vector.broadcast %cst_122 : f32 to vector<8x128xf32>
    %512 = arith.addf %511, %510 : vector<8x128xf32>
    %513 = arith.divf %511, %512 : vector<8x128xf32>
    %514 = vector.extract_strided_slice %501 {offsets = [0, 256], sizes = [8, 128], strides = [1, 1]} : vector<8x512xf32> to vector<8x128xf32>
    %515 = math.tanh %514 : vector<8x128xf32>
    %516 = vector.extract_strided_slice %501 {offsets = [0, 384], sizes = [8, 128], strides = [1, 1]} : vector<8x512xf32> to vector<8x128xf32>
    %517 = arith.negf %516 : vector<8x128xf32>
    %518 = math.exp %517 : vector<8x128xf32>
    %cst_123 = arith.constant 1.000000e+00 : f32
    %519 = vector.broadcast %cst_123 : f32 to vector<8x128xf32>
    %520 = arith.addf %519, %518 : vector<8x128xf32>
    %521 = arith.divf %519, %520 : vector<8x128xf32>
    %522 = arith.mulf %515, %507 : vector<8x128xf32>
    %523 = arith.mulf %513, %489 : vector<8x128xf32>
    %524 = arith.addf %522, %523 : vector<8x128xf32>
    %525 = math.tanh %524 : vector<8x128xf32>
    %526 = arith.mulf %521, %525 : vector<8x128xf32>
    %527 = arith.index_cast %c14_i32 : i32 to index
    %c0_124 = arith.constant 0 : index
    %c0_125 = arith.constant 0 : index
    %528 = vector.load %arg5[%527, %c0_124, %c0_125] : memref<32x8x128xf32, #tpu.memory_space<vmem>>, vector<1x8x128xf32>
    %529 = vector.shape_cast %528 : vector<1x8x128xf32> to vector<8x128xf32>
    %530 = vector.shape_cast %526 : vector<8x128xf32> to vector<1x8x128xf32>
    tpu.vector_store %arg5[%527, %c0_124, %c0_125], %530 {strides = array<i32>} : memref<32x8x128xf32, #tpu.memory_space<vmem>>, vector<1x8x128xf32>,
    %c15_i32 = arith.constant 15 : i32
    %531 = arith.index_cast %c15_i32 : i32 to index
    %c0_126 = arith.constant 0 : index
    %c0_127 = arith.constant 0 : index
    %532 = vector.load %arg1[%531, %c0_126, %c0_127] : memref<32x8x512xf32, #tpu.memory_space<vmem>>, vector<1x8x512xf32>
    %533 = vector.shape_cast %532 : vector<1x8x512xf32> to vector<8x512xf32>
    %534 = arith.truncf %526 : vector<8x128xf32> to vector<8x128xbf16>
    %cst_128 = arith.constant dense<0.000000e+00> : vector<8x512xf32>
    %535 = tpu.matmul %534, %3, %cst_128 {dimension_numbers = #tpu.dot_dimension_numbers<[1], [0], [0], [1], [0, 0, 1, 1], [], []>} : vector<8x128xbf16>, vector<128x512xbf16>, vector<8x512xf32> -> vector<8x512xf32>
    %536 = arith.addf %533, %535 : vector<8x512xf32>
    %537 = vector.extract_strided_slice %536 {offsets = [0, 0], sizes = [8, 128], strides = [1, 1]} : vector<8x512xf32> to vector<8x128xf32>
    %538 = arith.negf %537 : vector<8x128xf32>
    %539 = math.exp %538 : vector<8x128xf32>
    %cst_129 = arith.constant 1.000000e+00 : f32
    %540 = vector.broadcast %cst_129 : f32 to vector<8x128xf32>
    %541 = arith.addf %540, %539 : vector<8x128xf32>
    %542 = arith.divf %540, %541 : vector<8x128xf32>
    %543 = vector.extract_strided_slice %536 {offsets = [0, 128], sizes = [8, 128], strides = [1, 1]} : vector<8x512xf32> to vector<8x128xf32>
    %544 = arith.negf %543 : vector<8x128xf32>
    %545 = math.exp %544 : vector<8x128xf32>
    %cst_130 = arith.constant 1.000000e+00 : f32
    %546 = vector.broadcast %cst_130 : f32 to vector<8x128xf32>
    %547 = arith.addf %546, %545 : vector<8x128xf32>
    %548 = arith.divf %546, %547 : vector<8x128xf32>
    %549 = vector.extract_strided_slice %536 {offsets = [0, 256], sizes = [8, 128], strides = [1, 1]} : vector<8x512xf32> to vector<8x128xf32>
    %550 = math.tanh %549 : vector<8x128xf32>
    %551 = vector.extract_strided_slice %536 {offsets = [0, 384], sizes = [8, 128], strides = [1, 1]} : vector<8x512xf32> to vector<8x128xf32>
    %552 = arith.negf %551 : vector<8x128xf32>
    %553 = math.exp %552 : vector<8x128xf32>
    %cst_131 = arith.constant 1.000000e+00 : f32
    %554 = vector.broadcast %cst_131 : f32 to vector<8x128xf32>
    %555 = arith.addf %554, %553 : vector<8x128xf32>
    %556 = arith.divf %554, %555 : vector<8x128xf32>
    %557 = arith.mulf %550, %542 : vector<8x128xf32>
    %558 = arith.mulf %548, %524 : vector<8x128xf32>
    %559 = arith.addf %557, %558 : vector<8x128xf32>
    %560 = math.tanh %559 : vector<8x128xf32>
    %561 = arith.mulf %556, %560 : vector<8x128xf32>
    %562 = arith.index_cast %c15_i32 : i32 to index
    %c0_132 = arith.constant 0 : index
    %c0_133 = arith.constant 0 : index
    %563 = vector.load %arg5[%562, %c0_132, %c0_133] : memref<32x8x128xf32, #tpu.memory_space<vmem>>, vector<1x8x128xf32>
    %564 = vector.shape_cast %563 : vector<1x8x128xf32> to vector<8x128xf32>
    %565 = vector.shape_cast %561 : vector<8x128xf32> to vector<1x8x128xf32>
    tpu.vector_store %arg5[%562, %c0_132, %c0_133], %565 {strides = array<i32>} : memref<32x8x128xf32, #tpu.memory_space<vmem>>, vector<1x8x128xf32>,
    %c16_i32 = arith.constant 16 : i32
    %566 = arith.index_cast %c16_i32 : i32 to index
    %c0_134 = arith.constant 0 : index
    %c0_135 = arith.constant 0 : index
    %567 = vector.load %arg1[%566, %c0_134, %c0_135] : memref<32x8x512xf32, #tpu.memory_space<vmem>>, vector<1x8x512xf32>
    %568 = vector.shape_cast %567 : vector<1x8x512xf32> to vector<8x512xf32>
    %569 = arith.truncf %561 : vector<8x128xf32> to vector<8x128xbf16>
    %cst_136 = arith.constant dense<0.000000e+00> : vector<8x512xf32>
    %570 = tpu.matmul %569, %3, %cst_136 {dimension_numbers = #tpu.dot_dimension_numbers<[1], [0], [0], [1], [0, 0, 1, 1], [], []>} : vector<8x128xbf16>, vector<128x512xbf16>, vector<8x512xf32> -> vector<8x512xf32>
    %571 = arith.addf %568, %570 : vector<8x512xf32>
    %572 = vector.extract_strided_slice %571 {offsets = [0, 0], sizes = [8, 128], strides = [1, 1]} : vector<8x512xf32> to vector<8x128xf32>
    %573 = arith.negf %572 : vector<8x128xf32>
    %574 = math.exp %573 : vector<8x128xf32>
    %cst_137 = arith.constant 1.000000e+00 : f32
    %575 = vector.broadcast %cst_137 : f32 to vector<8x128xf32>
    %576 = arith.addf %575, %574 : vector<8x128xf32>
    %577 = arith.divf %575, %576 : vector<8x128xf32>
    %578 = vector.extract_strided_slice %571 {offsets = [0, 128], sizes = [8, 128], strides = [1, 1]} : vector<8x512xf32> to vector<8x128xf32>
    %579 = arith.negf %578 : vector<8x128xf32>
    %580 = math.exp %579 : vector<8x128xf32>
    %cst_138 = arith.constant 1.000000e+00 : f32
    %581 = vector.broadcast %cst_138 : f32 to vector<8x128xf32>
    %582 = arith.addf %581, %580 : vector<8x128xf32>
    %583 = arith.divf %581, %582 : vector<8x128xf32>
    %584 = vector.extract_strided_slice %571 {offsets = [0, 256], sizes = [8, 128], strides = [1, 1]} : vector<8x512xf32> to vector<8x128xf32>
    %585 = math.tanh %584 : vector<8x128xf32>
    %586 = vector.extract_strided_slice %571 {offsets = [0, 384], sizes = [8, 128], strides = [1, 1]} : vector<8x512xf32> to vector<8x128xf32>
    %587 = arith.negf %586 : vector<8x128xf32>
    %588 = math.exp %587 : vector<8x128xf32>
    %cst_139 = arith.constant 1.000000e+00 : f32
    %589 = vector.broadcast %cst_139 : f32 to vector<8x128xf32>
    %590 = arith.addf %589, %588 : vector<8x128xf32>
    %591 = arith.divf %589, %590 : vector<8x128xf32>
    %592 = arith.mulf %585, %577 : vector<8x128xf32>
    %593 = arith.mulf %583, %559 : vector<8x128xf32>
    %594 = arith.addf %592, %593 : vector<8x128xf32>
    %595 = math.tanh %594 : vector<8x128xf32>
    %596 = arith.mulf %591, %595 : vector<8x128xf32>
    %597 = arith.index_cast %c16_i32 : i32 to index
    %c0_140 = arith.constant 0 : index
    %c0_141 = arith.constant 0 : index
    %598 = vector.load %arg5[%597, %c0_140, %c0_141] : memref<32x8x128xf32, #tpu.memory_space<vmem>>, vector<1x8x128xf32>
    %599 = vector.shape_cast %598 : vector<1x8x128xf32> to vector<8x128xf32>
    %600 = vector.shape_cast %596 : vector<8x128xf32> to vector<1x8x128xf32>
    tpu.vector_store %arg5[%597, %c0_140, %c0_141], %600 {strides = array<i32>} : memref<32x8x128xf32, #tpu.memory_space<vmem>>, vector<1x8x128xf32>,
    %c17_i32 = arith.constant 17 : i32
    %601 = arith.index_cast %c17_i32 : i32 to index
    %c0_142 = arith.constant 0 : index
    %c0_143 = arith.constant 0 : index
    %602 = vector.load %arg1[%601, %c0_142, %c0_143] : memref<32x8x512xf32, #tpu.memory_space<vmem>>, vector<1x8x512xf32>
    %603 = vector.shape_cast %602 : vector<1x8x512xf32> to vector<8x512xf32>
    %604 = arith.truncf %596 : vector<8x128xf32> to vector<8x128xbf16>
    %cst_144 = arith.constant dense<0.000000e+00> : vector<8x512xf32>
    %605 = tpu.matmul %604, %3, %cst_144 {dimension_numbers = #tpu.dot_dimension_numbers<[1], [0], [0], [1], [0, 0, 1, 1], [], []>} : vector<8x128xbf16>, vector<128x512xbf16>, vector<8x512xf32> -> vector<8x512xf32>
    %606 = arith.addf %603, %605 : vector<8x512xf32>
    %607 = vector.extract_strided_slice %606 {offsets = [0, 0], sizes = [8, 128], strides = [1, 1]} : vector<8x512xf32> to vector<8x128xf32>
    %608 = arith.negf %607 : vector<8x128xf32>
    %609 = math.exp %608 : vector<8x128xf32>
    %cst_145 = arith.constant 1.000000e+00 : f32
    %610 = vector.broadcast %cst_145 : f32 to vector<8x128xf32>
    %611 = arith.addf %610, %609 : vector<8x128xf32>
    %612 = arith.divf %610, %611 : vector<8x128xf32>
    %613 = vector.extract_strided_slice %606 {offsets = [0, 128], sizes = [8, 128], strides = [1, 1]} : vector<8x512xf32> to vector<8x128xf32>
    %614 = arith.negf %613 : vector<8x128xf32>
    %615 = math.exp %614 : vector<8x128xf32>
    %cst_146 = arith.constant 1.000000e+00 : f32
    %616 = vector.broadcast %cst_146 : f32 to vector<8x128xf32>
    %617 = arith.addf %616, %615 : vector<8x128xf32>
    %618 = arith.divf %616, %617 : vector<8x128xf32>
    %619 = vector.extract_strided_slice %606 {offsets = [0, 256], sizes = [8, 128], strides = [1, 1]} : vector<8x512xf32> to vector<8x128xf32>
    %620 = math.tanh %619 : vector<8x128xf32>
    %621 = vector.extract_strided_slice %606 {offsets = [0, 384], sizes = [8, 128], strides = [1, 1]} : vector<8x512xf32> to vector<8x128xf32>
    %622 = arith.negf %621 : vector<8x128xf32>
    %623 = math.exp %622 : vector<8x128xf32>
    %cst_147 = arith.constant 1.000000e+00 : f32
    %624 = vector.broadcast %cst_147 : f32 to vector<8x128xf32>
    %625 = arith.addf %624, %623 : vector<8x128xf32>
    %626 = arith.divf %624, %625 : vector<8x128xf32>
    %627 = arith.mulf %620, %612 : vector<8x128xf32>
    %628 = arith.mulf %618, %594 : vector<8x128xf32>
    %629 = arith.addf %627, %628 : vector<8x128xf32>
    %630 = math.tanh %629 : vector<8x128xf32>
    %631 = arith.mulf %626, %630 : vector<8x128xf32>
    %632 = arith.index_cast %c17_i32 : i32 to index
    %c0_148 = arith.constant 0 : index
    %c0_149 = arith.constant 0 : index
    %633 = vector.load %arg5[%632, %c0_148, %c0_149] : memref<32x8x128xf32, #tpu.memory_space<vmem>>, vector<1x8x128xf32>
    %634 = vector.shape_cast %633 : vector<1x8x128xf32> to vector<8x128xf32>
    %635 = vector.shape_cast %631 : vector<8x128xf32> to vector<1x8x128xf32>
    tpu.vector_store %arg5[%632, %c0_148, %c0_149], %635 {strides = array<i32>} : memref<32x8x128xf32, #tpu.memory_space<vmem>>, vector<1x8x128xf32>,
    %c18_i32 = arith.constant 18 : i32
    %636 = arith.index_cast %c18_i32 : i32 to index
    %c0_150 = arith.constant 0 : index
    %c0_151 = arith.constant 0 : index
    %637 = vector.load %arg1[%636, %c0_150, %c0_151] : memref<32x8x512xf32, #tpu.memory_space<vmem>>, vector<1x8x512xf32>
    %638 = vector.shape_cast %637 : vector<1x8x512xf32> to vector<8x512xf32>
    %639 = arith.truncf %631 : vector<8x128xf32> to vector<8x128xbf16>
    %cst_152 = arith.constant dense<0.000000e+00> : vector<8x512xf32>
    %640 = tpu.matmul %639, %3, %cst_152 {dimension_numbers = #tpu.dot_dimension_numbers<[1], [0], [0], [1], [0, 0, 1, 1], [], []>} : vector<8x128xbf16>, vector<128x512xbf16>, vector<8x512xf32> -> vector<8x512xf32>
    %641 = arith.addf %638, %640 : vector<8x512xf32>
    %642 = vector.extract_strided_slice %641 {offsets = [0, 0], sizes = [8, 128], strides = [1, 1]} : vector<8x512xf32> to vector<8x128xf32>
    %643 = arith.negf %642 : vector<8x128xf32>
    %644 = math.exp %643 : vector<8x128xf32>
    %cst_153 = arith.constant 1.000000e+00 : f32
    %645 = vector.broadcast %cst_153 : f32 to vector<8x128xf32>
    %646 = arith.addf %645, %644 : vector<8x128xf32>
    %647 = arith.divf %645, %646 : vector<8x128xf32>
    %648 = vector.extract_strided_slice %641 {offsets = [0, 128], sizes = [8, 128], strides = [1, 1]} : vector<8x512xf32> to vector<8x128xf32>
    %649 = arith.negf %648 : vector<8x128xf32>
    %650 = math.exp %649 : vector<8x128xf32>
    %cst_154 = arith.constant 1.000000e+00 : f32
    %651 = vector.broadcast %cst_154 : f32 to vector<8x128xf32>
    %652 = arith.addf %651, %650 : vector<8x128xf32>
    %653 = arith.divf %651, %652 : vector<8x128xf32>
    %654 = vector.extract_strided_slice %641 {offsets = [0, 256], sizes = [8, 128], strides = [1, 1]} : vector<8x512xf32> to vector<8x128xf32>
    %655 = math.tanh %654 : vector<8x128xf32>
    %656 = vector.extract_strided_slice %641 {offsets = [0, 384], sizes = [8, 128], strides = [1, 1]} : vector<8x512xf32> to vector<8x128xf32>
    %657 = arith.negf %656 : vector<8x128xf32>
    %658 = math.exp %657 : vector<8x128xf32>
    %cst_155 = arith.constant 1.000000e+00 : f32
    %659 = vector.broadcast %cst_155 : f32 to vector<8x128xf32>
    %660 = arith.addf %659, %658 : vector<8x128xf32>
    %661 = arith.divf %659, %660 : vector<8x128xf32>
    %662 = arith.mulf %655, %647 : vector<8x128xf32>
    %663 = arith.mulf %653, %629 : vector<8x128xf32>
    %664 = arith.addf %662, %663 : vector<8x128xf32>
    %665 = math.tanh %664 : vector<8x128xf32>
    %666 = arith.mulf %661, %665 : vector<8x128xf32>
    %667 = arith.index_cast %c18_i32 : i32 to index
    %c0_156 = arith.constant 0 : index
    %c0_157 = arith.constant 0 : index
    %668 = vector.load %arg5[%667, %c0_156, %c0_157] : memref<32x8x128xf32, #tpu.memory_space<vmem>>, vector<1x8x128xf32>
    %669 = vector.shape_cast %668 : vector<1x8x128xf32> to vector<8x128xf32>
    %670 = vector.shape_cast %666 : vector<8x128xf32> to vector<1x8x128xf32>
    tpu.vector_store %arg5[%667, %c0_156, %c0_157], %670 {strides = array<i32>} : memref<32x8x128xf32, #tpu.memory_space<vmem>>, vector<1x8x128xf32>,
    %c19_i32 = arith.constant 19 : i32
    %671 = arith.index_cast %c19_i32 : i32 to index
    %c0_158 = arith.constant 0 : index
    %c0_159 = arith.constant 0 : index
    %672 = vector.load %arg1[%671, %c0_158, %c0_159] : memref<32x8x512xf32, #tpu.memory_space<vmem>>, vector<1x8x512xf32>
    %673 = vector.shape_cast %672 : vector<1x8x512xf32> to vector<8x512xf32>
    %674 = arith.truncf %666 : vector<8x128xf32> to vector<8x128xbf16>
    %cst_160 = arith.constant dense<0.000000e+00> : vector<8x512xf32>
    %675 = tpu.matmul %674, %3, %cst_160 {dimension_numbers = #tpu.dot_dimension_numbers<[1], [0], [0], [1], [0, 0, 1, 1], [], []>} : vector<8x128xbf16>, vector<128x512xbf16>, vector<8x512xf32> -> vector<8x512xf32>
    %676 = arith.addf %673, %675 : vector<8x512xf32>
    %677 = vector.extract_strided_slice %676 {offsets = [0, 0], sizes = [8, 128], strides = [1, 1]} : vector<8x512xf32> to vector<8x128xf32>
    %678 = arith.negf %677 : vector<8x128xf32>
    %679 = math.exp %678 : vector<8x128xf32>
    %cst_161 = arith.constant 1.000000e+00 : f32
    %680 = vector.broadcast %cst_161 : f32 to vector<8x128xf32>
    %681 = arith.addf %680, %679 : vector<8x128xf32>
    %682 = arith.divf %680, %681 : vector<8x128xf32>
    %683 = vector.extract_strided_slice %676 {offsets = [0, 128], sizes = [8, 128], strides = [1, 1]} : vector<8x512xf32> to vector<8x128xf32>
    %684 = arith.negf %683 : vector<8x128xf32>
    %685 = math.exp %684 : vector<8x128xf32>
    %cst_162 = arith.constant 1.000000e+00 : f32
    %686 = vector.broadcast %cst_162 : f32 to vector<8x128xf32>
    %687 = arith.addf %686, %685 : vector<8x128xf32>
    %688 = arith.divf %686, %687 : vector<8x128xf32>
    %689 = vector.extract_strided_slice %676 {offsets = [0, 256], sizes = [8, 128], strides = [1, 1]} : vector<8x512xf32> to vector<8x128xf32>
    %690 = math.tanh %689 : vector<8x128xf32>
    %691 = vector.extract_strided_slice %676 {offsets = [0, 384], sizes = [8, 128], strides = [1, 1]} : vector<8x512xf32> to vector<8x128xf32>
    %692 = arith.negf %691 : vector<8x128xf32>
    %693 = math.exp %692 : vector<8x128xf32>
    %cst_163 = arith.constant 1.000000e+00 : f32
    %694 = vector.broadcast %cst_163 : f32 to vector<8x128xf32>
    %695 = arith.addf %694, %693 : vector<8x128xf32>
    %696 = arith.divf %694, %695 : vector<8x128xf32>
    %697 = arith.mulf %690, %682 : vector<8x128xf32>
    %698 = arith.mulf %688, %664 : vector<8x128xf32>
    %699 = arith.addf %697, %698 : vector<8x128xf32>
    %700 = math.tanh %699 : vector<8x128xf32>
    %701 = arith.mulf %696, %700 : vector<8x128xf32>
    %702 = arith.index_cast %c19_i32 : i32 to index
    %c0_164 = arith.constant 0 : index
    %c0_165 = arith.constant 0 : index
    %703 = vector.load %arg5[%702, %c0_164, %c0_165] : memref<32x8x128xf32, #tpu.memory_space<vmem>>, vector<1x8x128xf32>
    %704 = vector.shape_cast %703 : vector<1x8x128xf32> to vector<8x128xf32>
    %705 = vector.shape_cast %701 : vector<8x128xf32> to vector<1x8x128xf32>
    tpu.vector_store %arg5[%702, %c0_164, %c0_165], %705 {strides = array<i32>} : memref<32x8x128xf32, #tpu.memory_space<vmem>>, vector<1x8x128xf32>,
    %c20_i32 = arith.constant 20 : i32
    %706 = arith.index_cast %c20_i32 : i32 to index
    %c0_166 = arith.constant 0 : index
    %c0_167 = arith.constant 0 : index
    %707 = vector.load %arg1[%706, %c0_166, %c0_167] : memref<32x8x512xf32, #tpu.memory_space<vmem>>, vector<1x8x512xf32>
    %708 = vector.shape_cast %707 : vector<1x8x512xf32> to vector<8x512xf32>
    %709 = arith.truncf %701 : vector<8x128xf32> to vector<8x128xbf16>
    %cst_168 = arith.constant dense<0.000000e+00> : vector<8x512xf32>
    %710 = tpu.matmul %709, %3, %cst_168 {dimension_numbers = #tpu.dot_dimension_numbers<[1], [0], [0], [1], [0, 0, 1, 1], [], []>} : vector<8x128xbf16>, vector<128x512xbf16>, vector<8x512xf32> -> vector<8x512xf32>
    %711 = arith.addf %708, %710 : vector<8x512xf32>
    %712 = vector.extract_strided_slice %711 {offsets = [0, 0], sizes = [8, 128], strides = [1, 1]} : vector<8x512xf32> to vector<8x128xf32>
    %713 = arith.negf %712 : vector<8x128xf32>
    %714 = math.exp %713 : vector<8x128xf32>
    %cst_169 = arith.constant 1.000000e+00 : f32
    %715 = vector.broadcast %cst_169 : f32 to vector<8x128xf32>
    %716 = arith.addf %715, %714 : vector<8x128xf32>
    %717 = arith.divf %715, %716 : vector<8x128xf32>
    %718 = vector.extract_strided_slice %711 {offsets = [0, 128], sizes = [8, 128], strides = [1, 1]} : vector<8x512xf32> to vector<8x128xf32>
    %719 = arith.negf %718 : vector<8x128xf32>
    %720 = math.exp %719 : vector<8x128xf32>
    %cst_170 = arith.constant 1.000000e+00 : f32
    %721 = vector.broadcast %cst_170 : f32 to vector<8x128xf32>
    %722 = arith.addf %721, %720 : vector<8x128xf32>
    %723 = arith.divf %721, %722 : vector<8x128xf32>
    %724 = vector.extract_strided_slice %711 {offsets = [0, 256], sizes = [8, 128], strides = [1, 1]} : vector<8x512xf32> to vector<8x128xf32>
    %725 = math.tanh %724 : vector<8x128xf32>
    %726 = vector.extract_strided_slice %711 {offsets = [0, 384], sizes = [8, 128], strides = [1, 1]} : vector<8x512xf32> to vector<8x128xf32>
    %727 = arith.negf %726 : vector<8x128xf32>
    %728 = math.exp %727 : vector<8x128xf32>
    %cst_171 = arith.constant 1.000000e+00 : f32
    %729 = vector.broadcast %cst_171 : f32 to vector<8x128xf32>
    %730 = arith.addf %729, %728 : vector<8x128xf32>
    %731 = arith.divf %729, %730 : vector<8x128xf32>
    %732 = arith.mulf %725, %717 : vector<8x128xf32>
    %733 = arith.mulf %723, %699 : vector<8x128xf32>
    %734 = arith.addf %732, %733 : vector<8x128xf32>
    %735 = math.tanh %734 : vector<8x128xf32>
    %736 = arith.mulf %731, %735 : vector<8x128xf32>
    %737 = arith.index_cast %c20_i32 : i32 to index
    %c0_172 = arith.constant 0 : index
    %c0_173 = arith.constant 0 : index
    %738 = vector.load %arg5[%737, %c0_172, %c0_173] : memref<32x8x128xf32, #tpu.memory_space<vmem>>, vector<1x8x128xf32>
    %739 = vector.shape_cast %738 : vector<1x8x128xf32> to vector<8x128xf32>
    %740 = vector.shape_cast %736 : vector<8x128xf32> to vector<1x8x128xf32>
    tpu.vector_store %arg5[%737, %c0_172, %c0_173], %740 {strides = array<i32>} : memref<32x8x128xf32, #tpu.memory_space<vmem>>, vector<1x8x128xf32>,
    %c21_i32 = arith.constant 21 : i32
    %741 = arith.index_cast %c21_i32 : i32 to index
    %c0_174 = arith.constant 0 : index
    %c0_175 = arith.constant 0 : index
    %742 = vector.load %arg1[%741, %c0_174, %c0_175] : memref<32x8x512xf32, #tpu.memory_space<vmem>>, vector<1x8x512xf32>
    %743 = vector.shape_cast %742 : vector<1x8x512xf32> to vector<8x512xf32>
    %744 = arith.truncf %736 : vector<8x128xf32> to vector<8x128xbf16>
    %cst_176 = arith.constant dense<0.000000e+00> : vector<8x512xf32>
    %745 = tpu.matmul %744, %3, %cst_176 {dimension_numbers = #tpu.dot_dimension_numbers<[1], [0], [0], [1], [0, 0, 1, 1], [], []>} : vector<8x128xbf16>, vector<128x512xbf16>, vector<8x512xf32> -> vector<8x512xf32>
    %746 = arith.addf %743, %745 : vector<8x512xf32>
    %747 = vector.extract_strided_slice %746 {offsets = [0, 0], sizes = [8, 128], strides = [1, 1]} : vector<8x512xf32> to vector<8x128xf32>
    %748 = arith.negf %747 : vector<8x128xf32>
    %749 = math.exp %748 : vector<8x128xf32>
    %cst_177 = arith.constant 1.000000e+00 : f32
    %750 = vector.broadcast %cst_177 : f32 to vector<8x128xf32>
    %751 = arith.addf %750, %749 : vector<8x128xf32>
    %752 = arith.divf %750, %751 : vector<8x128xf32>
    %753 = vector.extract_strided_slice %746 {offsets = [0, 128], sizes = [8, 128], strides = [1, 1]} : vector<8x512xf32> to vector<8x128xf32>
    %754 = arith.negf %753 : vector<8x128xf32>
    %755 = math.exp %754 : vector<8x128xf32>
    %cst_178 = arith.constant 1.000000e+00 : f32
    %756 = vector.broadcast %cst_178 : f32 to vector<8x128xf32>
    %757 = arith.addf %756, %755 : vector<8x128xf32>
    %758 = arith.divf %756, %757 : vector<8x128xf32>
    %759 = vector.extract_strided_slice %746 {offsets = [0, 256], sizes = [8, 128], strides = [1, 1]} : vector<8x512xf32> to vector<8x128xf32>
    %760 = math.tanh %759 : vector<8x128xf32>
    %761 = vector.extract_strided_slice %746 {offsets = [0, 384], sizes = [8, 128], strides = [1, 1]} : vector<8x512xf32> to vector<8x128xf32>
    %762 = arith.negf %761 : vector<8x128xf32>
    %763 = math.exp %762 : vector<8x128xf32>
    %cst_179 = arith.constant 1.000000e+00 : f32
    %764 = vector.broadcast %cst_179 : f32 to vector<8x128xf32>
    %765 = arith.addf %764, %763 : vector<8x128xf32>
    %766 = arith.divf %764, %765 : vector<8x128xf32>
    %767 = arith.mulf %760, %752 : vector<8x128xf32>
    %768 = arith.mulf %758, %734 : vector<8x128xf32>
    %769 = arith.addf %767, %768 : vector<8x128xf32>
    %770 = math.tanh %769 : vector<8x128xf32>
    %771 = arith.mulf %766, %770 : vector<8x128xf32>
    %772 = arith.index_cast %c21_i32 : i32 to index
    %c0_180 = arith.constant 0 : index
    %c0_181 = arith.constant 0 : index
    %773 = vector.load %arg5[%772, %c0_180, %c0_181] : memref<32x8x128xf32, #tpu.memory_space<vmem>>, vector<1x8x128xf32>
    %774 = vector.shape_cast %773 : vector<1x8x128xf32> to vector<8x128xf32>
    %775 = vector.shape_cast %771 : vector<8x128xf32> to vector<1x8x128xf32>
    tpu.vector_store %arg5[%772, %c0_180, %c0_181], %775 {strides = array<i32>} : memref<32x8x128xf32, #tpu.memory_space<vmem>>, vector<1x8x128xf32>,
    %c22_i32 = arith.constant 22 : i32
    %776 = arith.index_cast %c22_i32 : i32 to index
    %c0_182 = arith.constant 0 : index
    %c0_183 = arith.constant 0 : index
    %777 = vector.load %arg1[%776, %c0_182, %c0_183] : memref<32x8x512xf32, #tpu.memory_space<vmem>>, vector<1x8x512xf32>
    %778 = vector.shape_cast %777 : vector<1x8x512xf32> to vector<8x512xf32>
    %779 = arith.truncf %771 : vector<8x128xf32> to vector<8x128xbf16>
    %cst_184 = arith.constant dense<0.000000e+00> : vector<8x512xf32>
    %780 = tpu.matmul %779, %3, %cst_184 {dimension_numbers = #tpu.dot_dimension_numbers<[1], [0], [0], [1], [0, 0, 1, 1], [], []>} : vector<8x128xbf16>, vector<128x512xbf16>, vector<8x512xf32> -> vector<8x512xf32>
    %781 = arith.addf %778, %780 : vector<8x512xf32>
    %782 = vector.extract_strided_slice %781 {offsets = [0, 0], sizes = [8, 128], strides = [1, 1]} : vector<8x512xf32> to vector<8x128xf32>
    %783 = arith.negf %782 : vector<8x128xf32>
    %784 = math.exp %783 : vector<8x128xf32>
    %cst_185 = arith.constant 1.000000e+00 : f32
    %785 = vector.broadcast %cst_185 : f32 to vector<8x128xf32>
    %786 = arith.addf %785, %784 : vector<8x128xf32>
    %787 = arith.divf %785, %786 : vector<8x128xf32>
    %788 = vector.extract_strided_slice %781 {offsets = [0, 128], sizes = [8, 128], strides = [1, 1]} : vector<8x512xf32> to vector<8x128xf32>
    %789 = arith.negf %788 : vector<8x128xf32>
    %790 = math.exp %789 : vector<8x128xf32>
    %cst_186 = arith.constant 1.000000e+00 : f32
    %791 = vector.broadcast %cst_186 : f32 to vector<8x128xf32>
    %792 = arith.addf %791, %790 : vector<8x128xf32>
    %793 = arith.divf %791, %792 : vector<8x128xf32>
    %794 = vector.extract_strided_slice %781 {offsets = [0, 256], sizes = [8, 128], strides = [1, 1]} : vector<8x512xf32> to vector<8x128xf32>
    %795 = math.tanh %794 : vector<8x128xf32>
    %796 = vector.extract_strided_slice %781 {offsets = [0, 384], sizes = [8, 128], strides = [1, 1]} : vector<8x512xf32> to vector<8x128xf32>
    %797 = arith.negf %796 : vector<8x128xf32>
    %798 = math.exp %797 : vector<8x128xf32>
    %cst_187 = arith.constant 1.000000e+00 : f32
    %799 = vector.broadcast %cst_187 : f32 to vector<8x128xf32>
    %800 = arith.addf %799, %798 : vector<8x128xf32>
    %801 = arith.divf %799, %800 : vector<8x128xf32>
    %802 = arith.mulf %795, %787 : vector<8x128xf32>
    %803 = arith.mulf %793, %769 : vector<8x128xf32>
    %804 = arith.addf %802, %803 : vector<8x128xf32>
    %805 = math.tanh %804 : vector<8x128xf32>
    %806 = arith.mulf %801, %805 : vector<8x128xf32>
    %807 = arith.index_cast %c22_i32 : i32 to index
    %c0_188 = arith.constant 0 : index
    %c0_189 = arith.constant 0 : index
    %808 = vector.load %arg5[%807, %c0_188, %c0_189] : memref<32x8x128xf32, #tpu.memory_space<vmem>>, vector<1x8x128xf32>
    %809 = vector.shape_cast %808 : vector<1x8x128xf32> to vector<8x128xf32>
    %810 = vector.shape_cast %806 : vector<8x128xf32> to vector<1x8x128xf32>
    tpu.vector_store %arg5[%807, %c0_188, %c0_189], %810 {strides = array<i32>} : memref<32x8x128xf32, #tpu.memory_space<vmem>>, vector<1x8x128xf32>,
    %c23_i32 = arith.constant 23 : i32
    %811 = arith.index_cast %c23_i32 : i32 to index
    %c0_190 = arith.constant 0 : index
    %c0_191 = arith.constant 0 : index
    %812 = vector.load %arg1[%811, %c0_190, %c0_191] : memref<32x8x512xf32, #tpu.memory_space<vmem>>, vector<1x8x512xf32>
    %813 = vector.shape_cast %812 : vector<1x8x512xf32> to vector<8x512xf32>
    %814 = arith.truncf %806 : vector<8x128xf32> to vector<8x128xbf16>
    %cst_192 = arith.constant dense<0.000000e+00> : vector<8x512xf32>
    %815 = tpu.matmul %814, %3, %cst_192 {dimension_numbers = #tpu.dot_dimension_numbers<[1], [0], [0], [1], [0, 0, 1, 1], [], []>} : vector<8x128xbf16>, vector<128x512xbf16>, vector<8x512xf32> -> vector<8x512xf32>
    %816 = arith.addf %813, %815 : vector<8x512xf32>
    %817 = vector.extract_strided_slice %816 {offsets = [0, 0], sizes = [8, 128], strides = [1, 1]} : vector<8x512xf32> to vector<8x128xf32>
    %818 = arith.negf %817 : vector<8x128xf32>
    %819 = math.exp %818 : vector<8x128xf32>
    %cst_193 = arith.constant 1.000000e+00 : f32
    %820 = vector.broadcast %cst_193 : f32 to vector<8x128xf32>
    %821 = arith.addf %820, %819 : vector<8x128xf32>
    %822 = arith.divf %820, %821 : vector<8x128xf32>
    %823 = vector.extract_strided_slice %816 {offsets = [0, 128], sizes = [8, 128], strides = [1, 1]} : vector<8x512xf32> to vector<8x128xf32>
    %824 = arith.negf %823 : vector<8x128xf32>
    %825 = math.exp %824 : vector<8x128xf32>
    %cst_194 = arith.constant 1.000000e+00 : f32
    %826 = vector.broadcast %cst_194 : f32 to vector<8x128xf32>
    %827 = arith.addf %826, %825 : vector<8x128xf32>
    %828 = arith.divf %826, %827 : vector<8x128xf32>
    %829 = vector.extract_strided_slice %816 {offsets = [0, 256], sizes = [8, 128], strides = [1, 1]} : vector<8x512xf32> to vector<8x128xf32>
    %830 = math.tanh %829 : vector<8x128xf32>
    %831 = vector.extract_strided_slice %816 {offsets = [0, 384], sizes = [8, 128], strides = [1, 1]} : vector<8x512xf32> to vector<8x128xf32>
    %832 = arith.negf %831 : vector<8x128xf32>
    %833 = math.exp %832 : vector<8x128xf32>
    %cst_195 = arith.constant 1.000000e+00 : f32
    %834 = vector.broadcast %cst_195 : f32 to vector<8x128xf32>
    %835 = arith.addf %834, %833 : vector<8x128xf32>
    %836 = arith.divf %834, %835 : vector<8x128xf32>
    %837 = arith.mulf %830, %822 : vector<8x128xf32>
    %838 = arith.mulf %828, %804 : vector<8x128xf32>
    %839 = arith.addf %837, %838 : vector<8x128xf32>
    %840 = math.tanh %839 : vector<8x128xf32>
    %841 = arith.mulf %836, %840 : vector<8x128xf32>
    %842 = arith.index_cast %c23_i32 : i32 to index
    %c0_196 = arith.constant 0 : index
    %c0_197 = arith.constant 0 : index
    %843 = vector.load %arg5[%842, %c0_196, %c0_197] : memref<32x8x128xf32, #tpu.memory_space<vmem>>, vector<1x8x128xf32>
    %844 = vector.shape_cast %843 : vector<1x8x128xf32> to vector<8x128xf32>
    %845 = vector.shape_cast %841 : vector<8x128xf32> to vector<1x8x128xf32>
    tpu.vector_store %arg5[%842, %c0_196, %c0_197], %845 {strides = array<i32>} : memref<32x8x128xf32, #tpu.memory_space<vmem>>, vector<1x8x128xf32>,
    %c24_i32 = arith.constant 24 : i32
    %846 = arith.index_cast %c24_i32 : i32 to index
    %c0_198 = arith.constant 0 : index
    %c0_199 = arith.constant 0 : index
    %847 = vector.load %arg1[%846, %c0_198, %c0_199] : memref<32x8x512xf32, #tpu.memory_space<vmem>>, vector<1x8x512xf32>
    %848 = vector.shape_cast %847 : vector<1x8x512xf32> to vector<8x512xf32>
    %849 = arith.truncf %841 : vector<8x128xf32> to vector<8x128xbf16>
    %cst_200 = arith.constant dense<0.000000e+00> : vector<8x512xf32>
    %850 = tpu.matmul %849, %3, %cst_200 {dimension_numbers = #tpu.dot_dimension_numbers<[1], [0], [0], [1], [0, 0, 1, 1], [], []>} : vector<8x128xbf16>, vector<128x512xbf16>, vector<8x512xf32> -> vector<8x512xf32>
    %851 = arith.addf %848, %850 : vector<8x512xf32>
    %852 = vector.extract_strided_slice %851 {offsets = [0, 0], sizes = [8, 128], strides = [1, 1]} : vector<8x512xf32> to vector<8x128xf32>
    %853 = arith.negf %852 : vector<8x128xf32>
    %854 = math.exp %853 : vector<8x128xf32>
    %cst_201 = arith.constant 1.000000e+00 : f32
    %855 = vector.broadcast %cst_201 : f32 to vector<8x128xf32>
    %856 = arith.addf %855, %854 : vector<8x128xf32>
    %857 = arith.divf %855, %856 : vector<8x128xf32>
    %858 = vector.extract_strided_slice %851 {offsets = [0, 128], sizes = [8, 128], strides = [1, 1]} : vector<8x512xf32> to vector<8x128xf32>
    %859 = arith.negf %858 : vector<8x128xf32>
    %860 = math.exp %859 : vector<8x128xf32>
    %cst_202 = arith.constant 1.000000e+00 : f32
    %861 = vector.broadcast %cst_202 : f32 to vector<8x128xf32>
    %862 = arith.addf %861, %860 : vector<8x128xf32>
    %863 = arith.divf %861, %862 : vector<8x128xf32>
    %864 = vector.extract_strided_slice %851 {offsets = [0, 256], sizes = [8, 128], strides = [1, 1]} : vector<8x512xf32> to vector<8x128xf32>
    %865 = math.tanh %864 : vector<8x128xf32>
    %866 = vector.extract_strided_slice %851 {offsets = [0, 384], sizes = [8, 128], strides = [1, 1]} : vector<8x512xf32> to vector<8x128xf32>
    %867 = arith.negf %866 : vector<8x128xf32>
    %868 = math.exp %867 : vector<8x128xf32>
    %cst_203 = arith.constant 1.000000e+00 : f32
    %869 = vector.broadcast %cst_203 : f32 to vector<8x128xf32>
    %870 = arith.addf %869, %868 : vector<8x128xf32>
    %871 = arith.divf %869, %870 : vector<8x128xf32>
    %872 = arith.mulf %865, %857 : vector<8x128xf32>
    %873 = arith.mulf %863, %839 : vector<8x128xf32>
    %874 = arith.addf %872, %873 : vector<8x128xf32>
    %875 = math.tanh %874 : vector<8x128xf32>
    %876 = arith.mulf %871, %875 : vector<8x128xf32>
    %877 = arith.index_cast %c24_i32 : i32 to index
    %c0_204 = arith.constant 0 : index
    %c0_205 = arith.constant 0 : index
    %878 = vector.load %arg5[%877, %c0_204, %c0_205] : memref<32x8x128xf32, #tpu.memory_space<vmem>>, vector<1x8x128xf32>
    %879 = vector.shape_cast %878 : vector<1x8x128xf32> to vector<8x128xf32>
    %880 = vector.shape_cast %876 : vector<8x128xf32> to vector<1x8x128xf32>
    tpu.vector_store %arg5[%877, %c0_204, %c0_205], %880 {strides = array<i32>} : memref<32x8x128xf32, #tpu.memory_space<vmem>>, vector<1x8x128xf32>,
    %c25_i32 = arith.constant 25 : i32
    %881 = arith.index_cast %c25_i32 : i32 to index
    %c0_206 = arith.constant 0 : index
    %c0_207 = arith.constant 0 : index
    %882 = vector.load %arg1[%881, %c0_206, %c0_207] : memref<32x8x512xf32, #tpu.memory_space<vmem>>, vector<1x8x512xf32>
    %883 = vector.shape_cast %882 : vector<1x8x512xf32> to vector<8x512xf32>
    %884 = arith.truncf %876 : vector<8x128xf32> to vector<8x128xbf16>
    %cst_208 = arith.constant dense<0.000000e+00> : vector<8x512xf32>
    %885 = tpu.matmul %884, %3, %cst_208 {dimension_numbers = #tpu.dot_dimension_numbers<[1], [0], [0], [1], [0, 0, 1, 1], [], []>} : vector<8x128xbf16>, vector<128x512xbf16>, vector<8x512xf32> -> vector<8x512xf32>
    %886 = arith.addf %883, %885 : vector<8x512xf32>
    %887 = vector.extract_strided_slice %886 {offsets = [0, 0], sizes = [8, 128], strides = [1, 1]} : vector<8x512xf32> to vector<8x128xf32>
    %888 = arith.negf %887 : vector<8x128xf32>
    %889 = math.exp %888 : vector<8x128xf32>
    %cst_209 = arith.constant 1.000000e+00 : f32
    %890 = vector.broadcast %cst_209 : f32 to vector<8x128xf32>
    %891 = arith.addf %890, %889 : vector<8x128xf32>
    %892 = arith.divf %890, %891 : vector<8x128xf32>
    %893 = vector.extract_strided_slice %886 {offsets = [0, 128], sizes = [8, 128], strides = [1, 1]} : vector<8x512xf32> to vector<8x128xf32>
    %894 = arith.negf %893 : vector<8x128xf32>
    %895 = math.exp %894 : vector<8x128xf32>
    %cst_210 = arith.constant 1.000000e+00 : f32
    %896 = vector.broadcast %cst_210 : f32 to vector<8x128xf32>
    %897 = arith.addf %896, %895 : vector<8x128xf32>
    %898 = arith.divf %896, %897 : vector<8x128xf32>
    %899 = vector.extract_strided_slice %886 {offsets = [0, 256], sizes = [8, 128], strides = [1, 1]} : vector<8x512xf32> to vector<8x128xf32>
    %900 = math.tanh %899 : vector<8x128xf32>
    %901 = vector.extract_strided_slice %886 {offsets = [0, 384], sizes = [8, 128], strides = [1, 1]} : vector<8x512xf32> to vector<8x128xf32>
    %902 = arith.negf %901 : vector<8x128xf32>
    %903 = math.exp %902 : vector<8x128xf32>
    %cst_211 = arith.constant 1.000000e+00 : f32
    %904 = vector.broadcast %cst_211 : f32 to vector<8x128xf32>
    %905 = arith.addf %904, %903 : vector<8x128xf32>
    %906 = arith.divf %904, %905 : vector<8x128xf32>
    %907 = arith.mulf %900, %892 : vector<8x128xf32>
    %908 = arith.mulf %898, %874 : vector<8x128xf32>
    %909 = arith.addf %907, %908 : vector<8x128xf32>
    %910 = math.tanh %909 : vector<8x128xf32>
    %911 = arith.mulf %906, %910 : vector<8x128xf32>
    %912 = arith.index_cast %c25_i32 : i32 to index
    %c0_212 = arith.constant 0 : index
    %c0_213 = arith.constant 0 : index
    %913 = vector.load %arg5[%912, %c0_212, %c0_213] : memref<32x8x128xf32, #tpu.memory_space<vmem>>, vector<1x8x128xf32>
    %914 = vector.shape_cast %913 : vector<1x8x128xf32> to vector<8x128xf32>
    %915 = vector.shape_cast %911 : vector<8x128xf32> to vector<1x8x128xf32>
    tpu.vector_store %arg5[%912, %c0_212, %c0_213], %915 {strides = array<i32>} : memref<32x8x128xf32, #tpu.memory_space<vmem>>, vector<1x8x128xf32>,
    %c26_i32 = arith.constant 26 : i32
    %916 = arith.index_cast %c26_i32 : i32 to index
    %c0_214 = arith.constant 0 : index
    %c0_215 = arith.constant 0 : index
    %917 = vector.load %arg1[%916, %c0_214, %c0_215] : memref<32x8x512xf32, #tpu.memory_space<vmem>>, vector<1x8x512xf32>
    %918 = vector.shape_cast %917 : vector<1x8x512xf32> to vector<8x512xf32>
    %919 = arith.truncf %911 : vector<8x128xf32> to vector<8x128xbf16>
    %cst_216 = arith.constant dense<0.000000e+00> : vector<8x512xf32>
    %920 = tpu.matmul %919, %3, %cst_216 {dimension_numbers = #tpu.dot_dimension_numbers<[1], [0], [0], [1], [0, 0, 1, 1], [], []>} : vector<8x128xbf16>, vector<128x512xbf16>, vector<8x512xf32> -> vector<8x512xf32>
    %921 = arith.addf %918, %920 : vector<8x512xf32>
    %922 = vector.extract_strided_slice %921 {offsets = [0, 0], sizes = [8, 128], strides = [1, 1]} : vector<8x512xf32> to vector<8x128xf32>
    %923 = arith.negf %922 : vector<8x128xf32>
    %924 = math.exp %923 : vector<8x128xf32>
    %cst_217 = arith.constant 1.000000e+00 : f32
    %925 = vector.broadcast %cst_217 : f32 to vector<8x128xf32>
    %926 = arith.addf %925, %924 : vector<8x128xf32>
    %927 = arith.divf %925, %926 : vector<8x128xf32>
    %928 = vector.extract_strided_slice %921 {offsets = [0, 128], sizes = [8, 128], strides = [1, 1]} : vector<8x512xf32> to vector<8x128xf32>
    %929 = arith.negf %928 : vector<8x128xf32>
    %930 = math.exp %929 : vector<8x128xf32>
    %cst_218 = arith.constant 1.000000e+00 : f32
    %931 = vector.broadcast %cst_218 : f32 to vector<8x128xf32>
    %932 = arith.addf %931, %930 : vector<8x128xf32>
    %933 = arith.divf %931, %932 : vector<8x128xf32>
    %934 = vector.extract_strided_slice %921 {offsets = [0, 256], sizes = [8, 128], strides = [1, 1]} : vector<8x512xf32> to vector<8x128xf32>
    %935 = math.tanh %934 : vector<8x128xf32>
    %936 = vector.extract_strided_slice %921 {offsets = [0, 384], sizes = [8, 128], strides = [1, 1]} : vector<8x512xf32> to vector<8x128xf32>
    %937 = arith.negf %936 : vector<8x128xf32>
    %938 = math.exp %937 : vector<8x128xf32>
    %cst_219 = arith.constant 1.000000e+00 : f32
    %939 = vector.broadcast %cst_219 : f32 to vector<8x128xf32>
    %940 = arith.addf %939, %938 : vector<8x128xf32>
    %941 = arith.divf %939, %940 : vector<8x128xf32>
    %942 = arith.mulf %935, %927 : vector<8x128xf32>
    %943 = arith.mulf %933, %909 : vector<8x128xf32>
    %944 = arith.addf %942, %943 : vector<8x128xf32>
    %945 = math.tanh %944 : vector<8x128xf32>
    %946 = arith.mulf %941, %945 : vector<8x128xf32>
    %947 = arith.index_cast %c26_i32 : i32 to index
    %c0_220 = arith.constant 0 : index
    %c0_221 = arith.constant 0 : index
    %948 = vector.load %arg5[%947, %c0_220, %c0_221] : memref<32x8x128xf32, #tpu.memory_space<vmem>>, vector<1x8x128xf32>
    %949 = vector.shape_cast %948 : vector<1x8x128xf32> to vector<8x128xf32>
    %950 = vector.shape_cast %946 : vector<8x128xf32> to vector<1x8x128xf32>
    tpu.vector_store %arg5[%947, %c0_220, %c0_221], %950 {strides = array<i32>} : memref<32x8x128xf32, #tpu.memory_space<vmem>>, vector<1x8x128xf32>,
    %c27_i32 = arith.constant 27 : i32
    %951 = arith.index_cast %c27_i32 : i32 to index
    %c0_222 = arith.constant 0 : index
    %c0_223 = arith.constant 0 : index
    %952 = vector.load %arg1[%951, %c0_222, %c0_223] : memref<32x8x512xf32, #tpu.memory_space<vmem>>, vector<1x8x512xf32>
    %953 = vector.shape_cast %952 : vector<1x8x512xf32> to vector<8x512xf32>
    %954 = arith.truncf %946 : vector<8x128xf32> to vector<8x128xbf16>
    %cst_224 = arith.constant dense<0.000000e+00> : vector<8x512xf32>
    %955 = tpu.matmul %954, %3, %cst_224 {dimension_numbers = #tpu.dot_dimension_numbers<[1], [0], [0], [1], [0, 0, 1, 1], [], []>} : vector<8x128xbf16>, vector<128x512xbf16>, vector<8x512xf32> -> vector<8x512xf32>
    %956 = arith.addf %953, %955 : vector<8x512xf32>
    %957 = vector.extract_strided_slice %956 {offsets = [0, 0], sizes = [8, 128], strides = [1, 1]} : vector<8x512xf32> to vector<8x128xf32>
    %958 = arith.negf %957 : vector<8x128xf32>
    %959 = math.exp %958 : vector<8x128xf32>
    %cst_225 = arith.constant 1.000000e+00 : f32
    %960 = vector.broadcast %cst_225 : f32 to vector<8x128xf32>
    %961 = arith.addf %960, %959 : vector<8x128xf32>
    %962 = arith.divf %960, %961 : vector<8x128xf32>
    %963 = vector.extract_strided_slice %956 {offsets = [0, 128], sizes = [8, 128], strides = [1, 1]} : vector<8x512xf32> to vector<8x128xf32>
    %964 = arith.negf %963 : vector<8x128xf32>
    %965 = math.exp %964 : vector<8x128xf32>
    %cst_226 = arith.constant 1.000000e+00 : f32
    %966 = vector.broadcast %cst_226 : f32 to vector<8x128xf32>
    %967 = arith.addf %966, %965 : vector<8x128xf32>
    %968 = arith.divf %966, %967 : vector<8x128xf32>
    %969 = vector.extract_strided_slice %956 {offsets = [0, 256], sizes = [8, 128], strides = [1, 1]} : vector<8x512xf32> to vector<8x128xf32>
    %970 = math.tanh %969 : vector<8x128xf32>
    %971 = vector.extract_strided_slice %956 {offsets = [0, 384], sizes = [8, 128], strides = [1, 1]} : vector<8x512xf32> to vector<8x128xf32>
    %972 = arith.negf %971 : vector<8x128xf32>
    %973 = math.exp %972 : vector<8x128xf32>
    %cst_227 = arith.constant 1.000000e+00 : f32
    %974 = vector.broadcast %cst_227 : f32 to vector<8x128xf32>
    %975 = arith.addf %974, %973 : vector<8x128xf32>
    %976 = arith.divf %974, %975 : vector<8x128xf32>
    %977 = arith.mulf %970, %962 : vector<8x128xf32>
    %978 = arith.mulf %968, %944 : vector<8x128xf32>
    %979 = arith.addf %977, %978 : vector<8x128xf32>
    %980 = math.tanh %979 : vector<8x128xf32>
    %981 = arith.mulf %976, %980 : vector<8x128xf32>
    %982 = arith.index_cast %c27_i32 : i32 to index
    %c0_228 = arith.constant 0 : index
    %c0_229 = arith.constant 0 : index
    %983 = vector.load %arg5[%982, %c0_228, %c0_229] : memref<32x8x128xf32, #tpu.memory_space<vmem>>, vector<1x8x128xf32>
    %984 = vector.shape_cast %983 : vector<1x8x128xf32> to vector<8x128xf32>
    %985 = vector.shape_cast %981 : vector<8x128xf32> to vector<1x8x128xf32>
    tpu.vector_store %arg5[%982, %c0_228, %c0_229], %985 {strides = array<i32>} : memref<32x8x128xf32, #tpu.memory_space<vmem>>, vector<1x8x128xf32>,
    %c28_i32 = arith.constant 28 : i32
    %986 = arith.index_cast %c28_i32 : i32 to index
    %c0_230 = arith.constant 0 : index
    %c0_231 = arith.constant 0 : index
    %987 = vector.load %arg1[%986, %c0_230, %c0_231] : memref<32x8x512xf32, #tpu.memory_space<vmem>>, vector<1x8x512xf32>
    %988 = vector.shape_cast %987 : vector<1x8x512xf32> to vector<8x512xf32>
    %989 = arith.truncf %981 : vector<8x128xf32> to vector<8x128xbf16>
    %cst_232 = arith.constant dense<0.000000e+00> : vector<8x512xf32>
    %990 = tpu.matmul %989, %3, %cst_232 {dimension_numbers = #tpu.dot_dimension_numbers<[1], [0], [0], [1], [0, 0, 1, 1], [], []>} : vector<8x128xbf16>, vector<128x512xbf16>, vector<8x512xf32> -> vector<8x512xf32>
    %991 = arith.addf %988, %990 : vector<8x512xf32>
    %992 = vector.extract_strided_slice %991 {offsets = [0, 0], sizes = [8, 128], strides = [1, 1]} : vector<8x512xf32> to vector<8x128xf32>
    %993 = arith.negf %992 : vector<8x128xf32>
    %994 = math.exp %993 : vector<8x128xf32>
    %cst_233 = arith.constant 1.000000e+00 : f32
    %995 = vector.broadcast %cst_233 : f32 to vector<8x128xf32>
    %996 = arith.addf %995, %994 : vector<8x128xf32>
    %997 = arith.divf %995, %996 : vector<8x128xf32>
    %998 = vector.extract_strided_slice %991 {offsets = [0, 128], sizes = [8, 128], strides = [1, 1]} : vector<8x512xf32> to vector<8x128xf32>
    %999 = arith.negf %998 : vector<8x128xf32>
    %1000 = math.exp %999 : vector<8x128xf32>
    %cst_234 = arith.constant 1.000000e+00 : f32
    %1001 = vector.broadcast %cst_234 : f32 to vector<8x128xf32>
    %1002 = arith.addf %1001, %1000 : vector<8x128xf32>
    %1003 = arith.divf %1001, %1002 : vector<8x128xf32>
    %1004 = vector.extract_strided_slice %991 {offsets = [0, 256], sizes = [8, 128], strides = [1, 1]} : vector<8x512xf32> to vector<8x128xf32>
    %1005 = math.tanh %1004 : vector<8x128xf32>
    %1006 = vector.extract_strided_slice %991 {offsets = [0, 384], sizes = [8, 128], strides = [1, 1]} : vector<8x512xf32> to vector<8x128xf32>
    %1007 = arith.negf %1006 : vector<8x128xf32>
    %1008 = math.exp %1007 : vector<8x128xf32>
    %cst_235 = arith.constant 1.000000e+00 : f32
    %1009 = vector.broadcast %cst_235 : f32 to vector<8x128xf32>
    %1010 = arith.addf %1009, %1008 : vector<8x128xf32>
    %1011 = arith.divf %1009, %1010 : vector<8x128xf32>
    %1012 = arith.mulf %1005, %997 : vector<8x128xf32>
    %1013 = arith.mulf %1003, %979 : vector<8x128xf32>
    %1014 = arith.addf %1012, %1013 : vector<8x128xf32>
    %1015 = math.tanh %1014 : vector<8x128xf32>
    %1016 = arith.mulf %1011, %1015 : vector<8x128xf32>
    %1017 = arith.index_cast %c28_i32 : i32 to index
    %c0_236 = arith.constant 0 : index
    %c0_237 = arith.constant 0 : index
    %1018 = vector.load %arg5[%1017, %c0_236, %c0_237] : memref<32x8x128xf32, #tpu.memory_space<vmem>>, vector<1x8x128xf32>
    %1019 = vector.shape_cast %1018 : vector<1x8x128xf32> to vector<8x128xf32>
    %1020 = vector.shape_cast %1016 : vector<8x128xf32> to vector<1x8x128xf32>
    tpu.vector_store %arg5[%1017, %c0_236, %c0_237], %1020 {strides = array<i32>} : memref<32x8x128xf32, #tpu.memory_space<vmem>>, vector<1x8x128xf32>,
    %c29_i32 = arith.constant 29 : i32
    %1021 = arith.index_cast %c29_i32 : i32 to index
    %c0_238 = arith.constant 0 : index
    %c0_239 = arith.constant 0 : index
    %1022 = vector.load %arg1[%1021, %c0_238, %c0_239] : memref<32x8x512xf32, #tpu.memory_space<vmem>>, vector<1x8x512xf32>
    %1023 = vector.shape_cast %1022 : vector<1x8x512xf32> to vector<8x512xf32>
    %1024 = arith.truncf %1016 : vector<8x128xf32> to vector<8x128xbf16>
    %cst_240 = arith.constant dense<0.000000e+00> : vector<8x512xf32>
    %1025 = tpu.matmul %1024, %3, %cst_240 {dimension_numbers = #tpu.dot_dimension_numbers<[1], [0], [0], [1], [0, 0, 1, 1], [], []>} : vector<8x128xbf16>, vector<128x512xbf16>, vector<8x512xf32> -> vector<8x512xf32>
    %1026 = arith.addf %1023, %1025 : vector<8x512xf32>
    %1027 = vector.extract_strided_slice %1026 {offsets = [0, 0], sizes = [8, 128], strides = [1, 1]} : vector<8x512xf32> to vector<8x128xf32>
    %1028 = arith.negf %1027 : vector<8x128xf32>
    %1029 = math.exp %1028 : vector<8x128xf32>
    %cst_241 = arith.constant 1.000000e+00 : f32
    %1030 = vector.broadcast %cst_241 : f32 to vector<8x128xf32>
    %1031 = arith.addf %1030, %1029 : vector<8x128xf32>
    %1032 = arith.divf %1030, %1031 : vector<8x128xf32>
    %1033 = vector.extract_strided_slice %1026 {offsets = [0, 128], sizes = [8, 128], strides = [1, 1]} : vector<8x512xf32> to vector<8x128xf32>
    %1034 = arith.negf %1033 : vector<8x128xf32>
    %1035 = math.exp %1034 : vector<8x128xf32>
    %cst_242 = arith.constant 1.000000e+00 : f32
    %1036 = vector.broadcast %cst_242 : f32 to vector<8x128xf32>
    %1037 = arith.addf %1036, %1035 : vector<8x128xf32>
    %1038 = arith.divf %1036, %1037 : vector<8x128xf32>
    %1039 = vector.extract_strided_slice %1026 {offsets = [0, 256], sizes = [8, 128], strides = [1, 1]} : vector<8x512xf32> to vector<8x128xf32>
    %1040 = math.tanh %1039 : vector<8x128xf32>
    %1041 = vector.extract_strided_slice %1026 {offsets = [0, 384], sizes = [8, 128], strides = [1, 1]} : vector<8x512xf32> to vector<8x128xf32>
    %1042 = arith.negf %1041 : vector<8x128xf32>
    %1043 = math.exp %1042 : vector<8x128xf32>
    %cst_243 = arith.constant 1.000000e+00 : f32
    %1044 = vector.broadcast %cst_243 : f32 to vector<8x128xf32>
    %1045 = arith.addf %1044, %1043 : vector<8x128xf32>
    %1046 = arith.divf %1044, %1045 : vector<8x128xf32>
    %1047 = arith.mulf %1040, %1032 : vector<8x128xf32>
    %1048 = arith.mulf %1038, %1014 : vector<8x128xf32>
    %1049 = arith.addf %1047, %1048 : vector<8x128xf32>
    %1050 = math.tanh %1049 : vector<8x128xf32>
    %1051 = arith.mulf %1046, %1050 : vector<8x128xf32>
    %1052 = arith.index_cast %c29_i32 : i32 to index
    %c0_244 = arith.constant 0 : index
    %c0_245 = arith.constant 0 : index
    %1053 = vector.load %arg5[%1052, %c0_244, %c0_245] : memref<32x8x128xf32, #tpu.memory_space<vmem>>, vector<1x8x128xf32>
    %1054 = vector.shape_cast %1053 : vector<1x8x128xf32> to vector<8x128xf32>
    %1055 = vector.shape_cast %1051 : vector<8x128xf32> to vector<1x8x128xf32>
    tpu.vector_store %arg5[%1052, %c0_244, %c0_245], %1055 {strides = array<i32>} : memref<32x8x128xf32, #tpu.memory_space<vmem>>, vector<1x8x128xf32>,
    %c30_i32 = arith.constant 30 : i32
    %1056 = arith.index_cast %c30_i32 : i32 to index
    %c0_246 = arith.constant 0 : index
    %c0_247 = arith.constant 0 : index
    %1057 = vector.load %arg1[%1056, %c0_246, %c0_247] : memref<32x8x512xf32, #tpu.memory_space<vmem>>, vector<1x8x512xf32>
    %1058 = vector.shape_cast %1057 : vector<1x8x512xf32> to vector<8x512xf32>
    %1059 = arith.truncf %1051 : vector<8x128xf32> to vector<8x128xbf16>
    %cst_248 = arith.constant dense<0.000000e+00> : vector<8x512xf32>
    %1060 = tpu.matmul %1059, %3, %cst_248 {dimension_numbers = #tpu.dot_dimension_numbers<[1], [0], [0], [1], [0, 0, 1, 1], [], []>} : vector<8x128xbf16>, vector<128x512xbf16>, vector<8x512xf32> -> vector<8x512xf32>
    %1061 = arith.addf %1058, %1060 : vector<8x512xf32>
    %1062 = vector.extract_strided_slice %1061 {offsets = [0, 0], sizes = [8, 128], strides = [1, 1]} : vector<8x512xf32> to vector<8x128xf32>
    %1063 = arith.negf %1062 : vector<8x128xf32>
    %1064 = math.exp %1063 : vector<8x128xf32>
    %cst_249 = arith.constant 1.000000e+00 : f32
    %1065 = vector.broadcast %cst_249 : f32 to vector<8x128xf32>
    %1066 = arith.addf %1065, %1064 : vector<8x128xf32>
    %1067 = arith.divf %1065, %1066 : vector<8x128xf32>
    %1068 = vector.extract_strided_slice %1061 {offsets = [0, 128], sizes = [8, 128], strides = [1, 1]} : vector<8x512xf32> to vector<8x128xf32>
    %1069 = arith.negf %1068 : vector<8x128xf32>
    %1070 = math.exp %1069 : vector<8x128xf32>
    %cst_250 = arith.constant 1.000000e+00 : f32
    %1071 = vector.broadcast %cst_250 : f32 to vector<8x128xf32>
    %1072 = arith.addf %1071, %1070 : vector<8x128xf32>
    %1073 = arith.divf %1071, %1072 : vector<8x128xf32>
    %1074 = vector.extract_strided_slice %1061 {offsets = [0, 256], sizes = [8, 128], strides = [1, 1]} : vector<8x512xf32> to vector<8x128xf32>
    %1075 = math.tanh %1074 : vector<8x128xf32>
    %1076 = vector.extract_strided_slice %1061 {offsets = [0, 384], sizes = [8, 128], strides = [1, 1]} : vector<8x512xf32> to vector<8x128xf32>
    %1077 = arith.negf %1076 : vector<8x128xf32>
    %1078 = math.exp %1077 : vector<8x128xf32>
    %cst_251 = arith.constant 1.000000e+00 : f32
    %1079 = vector.broadcast %cst_251 : f32 to vector<8x128xf32>
    %1080 = arith.addf %1079, %1078 : vector<8x128xf32>
    %1081 = arith.divf %1079, %1080 : vector<8x128xf32>
    %1082 = arith.mulf %1075, %1067 : vector<8x128xf32>
    %1083 = arith.mulf %1073, %1049 : vector<8x128xf32>
    %1084 = arith.addf %1082, %1083 : vector<8x128xf32>
    %1085 = math.tanh %1084 : vector<8x128xf32>
    %1086 = arith.mulf %1081, %1085 : vector<8x128xf32>
    %1087 = arith.index_cast %c30_i32 : i32 to index
    %c0_252 = arith.constant 0 : index
    %c0_253 = arith.constant 0 : index
    %1088 = vector.load %arg5[%1087, %c0_252, %c0_253] : memref<32x8x128xf32, #tpu.memory_space<vmem>>, vector<1x8x128xf32>
    %1089 = vector.shape_cast %1088 : vector<1x8x128xf32> to vector<8x128xf32>
    %1090 = vector.shape_cast %1086 : vector<8x128xf32> to vector<1x8x128xf32>
    tpu.vector_store %arg5[%1087, %c0_252, %c0_253], %1090 {strides = array<i32>} : memref<32x8x128xf32, #tpu.memory_space<vmem>>, vector<1x8x128xf32>,
    %c31_i32 = arith.constant 31 : i32
    %1091 = arith.index_cast %c31_i32 : i32 to index
    %c0_254 = arith.constant 0 : index
    %c0_255 = arith.constant 0 : index
    %1092 = vector.load %arg1[%1091, %c0_254, %c0_255] : memref<32x8x512xf32, #tpu.memory_space<vmem>>, vector<1x8x512xf32>
    %1093 = vector.shape_cast %1092 : vector<1x8x512xf32> to vector<8x512xf32>
    %1094 = arith.truncf %1086 : vector<8x128xf32> to vector<8x128xbf16>
    %cst_256 = arith.constant dense<0.000000e+00> : vector<8x512xf32>
    %1095 = tpu.matmul %1094, %3, %cst_256 {dimension_numbers = #tpu.dot_dimension_numbers<[1], [0], [0], [1], [0, 0, 1, 1], [], []>} : vector<8x128xbf16>, vector<128x512xbf16>, vector<8x512xf32> -> vector<8x512xf32>
    %1096 = arith.addf %1093, %1095 : vector<8x512xf32>
    %1097 = vector.extract_strided_slice %1096 {offsets = [0, 0], sizes = [8, 128], strides = [1, 1]} : vector<8x512xf32> to vector<8x128xf32>
    %1098 = arith.negf %1097 : vector<8x128xf32>
    %1099 = math.exp %1098 : vector<8x128xf32>
    %cst_257 = arith.constant 1.000000e+00 : f32
    %1100 = vector.broadcast %cst_257 : f32 to vector<8x128xf32>
    %1101 = arith.addf %1100, %1099 : vector<8x128xf32>
    %1102 = arith.divf %1100, %1101 : vector<8x128xf32>
    %1103 = vector.extract_strided_slice %1096 {offsets = [0, 128], sizes = [8, 128], strides = [1, 1]} : vector<8x512xf32> to vector<8x128xf32>
    %1104 = arith.negf %1103 : vector<8x128xf32>
    %1105 = math.exp %1104 : vector<8x128xf32>
    %cst_258 = arith.constant 1.000000e+00 : f32
    %1106 = vector.broadcast %cst_258 : f32 to vector<8x128xf32>
    %1107 = arith.addf %1106, %1105 : vector<8x128xf32>
    %1108 = arith.divf %1106, %1107 : vector<8x128xf32>
    %1109 = vector.extract_strided_slice %1096 {offsets = [0, 256], sizes = [8, 128], strides = [1, 1]} : vector<8x512xf32> to vector<8x128xf32>
    %1110 = math.tanh %1109 : vector<8x128xf32>
    %1111 = vector.extract_strided_slice %1096 {offsets = [0, 384], sizes = [8, 128], strides = [1, 1]} : vector<8x512xf32> to vector<8x128xf32>
    %1112 = arith.negf %1111 : vector<8x128xf32>
    %1113 = math.exp %1112 : vector<8x128xf32>
    %cst_259 = arith.constant 1.000000e+00 : f32
    %1114 = vector.broadcast %cst_259 : f32 to vector<8x128xf32>
    %1115 = arith.addf %1114, %1113 : vector<8x128xf32>
    %1116 = arith.divf %1114, %1115 : vector<8x128xf32>
    %1117 = arith.mulf %1110, %1102 : vector<8x128xf32>
    %1118 = arith.mulf %1108, %1084 : vector<8x128xf32>
    %1119 = arith.addf %1117, %1118 : vector<8x128xf32>
    %1120 = math.tanh %1119 : vector<8x128xf32>
    %1121 = arith.mulf %1116, %1120 : vector<8x128xf32>
    %1122 = arith.index_cast %c31_i32 : i32 to index
    %c0_260 = arith.constant 0 : index
    %c0_261 = arith.constant 0 : index
    %1123 = vector.load %arg5[%1122, %c0_260, %c0_261] : memref<32x8x128xf32, #tpu.memory_space<vmem>>, vector<1x8x128xf32>
    %1124 = vector.shape_cast %1123 : vector<1x8x128xf32> to vector<8x128xf32>
    %1125 = vector.shape_cast %1121 : vector<8x128xf32> to vector<1x8x128xf32>
    tpu.vector_store %arg5[%1122, %c0_260, %c0_261], %1125 {strides = array<i32>} : memref<32x8x128xf32, #tpu.memory_space<vmem>>, vector<1x8x128xf32>,
    %c32_i32 = arith.constant 32 : i32
    %c0_262 = arith.constant 0 : index
    %c0_263 = arith.constant 0 : index
    %1126 = vector.load %arg8[%c0_262, %c0_263] : memref<8x128xf32, #tpu.memory_space<vmem>>, vector<8x128xf32>
    tpu.vector_store %arg8[%c0_262, %c0_263], %1121 {strides = array<i32>} : memref<8x128xf32, #tpu.memory_space<vmem>>, vector<8x128xf32>,
    %c0_264 = arith.constant 0 : index
    %c0_265 = arith.constant 0 : index
    %1127 = vector.load %arg9[%c0_264, %c0_265] : memref<8x128xf32, #tpu.memory_space<vmem>>, vector<8x128xf32>
    tpu.vector_store %arg9[%c0_264, %c0_265], %1119 {strides = array<i32>} : memref<8x128xf32, #tpu.memory_space<vmem>>, vector<8x128xf32>,
    %c0_i32_266 = arith.constant 0 : i32
    %1128 = arith.cmpi eq, %arg0, %c0_i32_266 : i32
    %1129 = arith.extui %1128 : i1 to i32
    %c0_i32_267 = arith.constant 0 : i32
    %1130 = arith.cmpi ne, %1129, %c0_i32_267 : i32
    scf.if %1130 {
      %c0_268 = arith.constant 0 : index
      %c0_269 = arith.constant 0 : index
      %1131 = vector.load %arg6[%c0_268, %c0_269] : memref<8x128xf32, #tpu.memory_space<vmem>>, vector<8x128xf32>
      tpu.vector_store %arg6[%c0_268, %c0_269], %1121 {strides = array<i32>} : memref<8x128xf32, #tpu.memory_space<vmem>>, vector<8x128xf32>,
      %c0_270 = arith.constant 0 : index
      %c0_271 = arith.constant 0 : index
      %1132 = vector.load %arg7[%c0_270, %c0_271] : memref<8x128xf32, #tpu.memory_space<vmem>>, vector<8x128xf32>
      tpu.vector_store %arg7[%c0_270, %c0_271], %1119 {strides = array<i32>} : memref<8x128xf32, #tpu.memory_space<vmem>>, vector<8x128xf32>,
    } else {
    }
    return
  }
  func.func @transform_0(%arg0: i32) -> (i32, i32, i32) {
    %c0_i32 = arith.constant 0 : i32
    %c0_i32_0 = arith.constant 0 : i32
    %c0_i32_1 = arith.constant 0 : i32
    return %arg0, %c0_i32, %c0_i32_0 : i32, i32, i32
  }
  func.func @transform_1(%arg0: i32) -> (i32, i32) {
    %c0_i32 = arith.constant 0 : i32
    %c0_i32_0 = arith.constant 0 : i32
    %c0_i32_1 = arith.constant 0 : i32
    return %c0_i32, %c0_i32_0 : i32, i32
  }
  func.func @transform_2(%arg0: i32) -> (i32, i32) {
    %c0_i32 = arith.constant 0 : i32
    %c0_i32_0 = arith.constant 0 : i32
    %c0_i32_1 = arith.constant 0 : i32
    return %c0_i32, %c0_i32_0 : i32, i32
  }
  func.func @transform_3(%arg0: i32) -> (i32, i32) {
    %c0_i32 = arith.constant 0 : i32
    %c0_i32_0 = arith.constant 0 : i32
    %c0_i32_1 = arith.constant 0 : i32
    return %c0_i32, %c0_i32_0 : i32, i32
  }
  func.func @transform_4(%arg0: i32) -> (i32, i32, i32) {
    %c0_i32 = arith.constant 0 : i32
    %c0_i32_0 = arith.constant 0 : i32
    %c0_i32_1 = arith.constant 0 : i32
    return %arg0, %c0_i32, %c0_i32_0 : i32, i32, i32
  }
  func.func @transform_5(%arg0: i32) -> (i32, i32) {
    %c0_i32 = arith.constant 0 : i32
    %c0_i32_0 = arith.constant 0 : i32
    %c0_i32_1 = arith.constant 0 : i32
    return %c0_i32, %c0_i32_0 : i32, i32
  }
  func.func @transform_6(%arg0: i32) -> (i32, i32) {
    %c0_i32 = arith.constant 0 : i32
    %c0_i32_0 = arith.constant 0 : i32
    %c0_i32_1 = arith.constant 0 : i32
    return %c0_i32, %c0_i32_0 : i32, i32
  }
}

</mosaic_0001>

<llo_original>
// kernel: lstm_forward.2
$region0: #{lstm_forward.2}
  #allocation0 [shape = 'u32[]', space=smem, size = 0x4, offset = 0x4, fixed_abs, tag = 'smem constant byte address 0x4 - core index']
  #allocation1 [shape = 'u32[72,128]{1,0:T(1,128)}', space=vmem, size = 0x9000, scoped, tag = 'internal scratch']
  %s0 = inlined_call_operand.vmem [shape: f32[256,16], index: 0, kind: input, shape index: {}]
  %s1 = inlined_call_operand.vmem [shape: bf16[16,128], index: 1, kind: input, shape index: {}]
  %s2 = inlined_call_operand.vmem [shape: f32[1,128], index: 2, kind: input, shape index: {}]
  %s3 = inlined_call_operand.vmem [shape: bf16[128,512], index: 3, kind: input, shape index: {}]
  %s4 = inlined_call_operand.vmem [shape: f32[1,512], index: 4, kind: input, shape index: {}]
  %s5 = inlined_call_operand.vmem [shape: f32[256,512], index: 5, kind: output, shape index: {}]
  %s6 = sld [smem:[#allocation0]]
  $region30: #{lstm_forward.2} parent=0
    _
  %s8 = ssub.s32 1, %s6
  %s9 = scalar_select 0, %s8, %s6
  // Predicated region
  $region2: #{lstm_forward.2} parent=0 // pred_check
    _
  $region3: #{lstm_forward.2} parent=0 // pred_check_branch
    %11 = sbr.rel (0) target = $region5
  $region4: #{lstm_forward.2} parent=0 // pred_region
    _
  $region5: #{lstm_forward.2} parent=0 // pred_fallthru
    _
  // Predicated region
  $region6: #{lstm_forward.2} parent=0 // pred_check
    _
  $region7: #{lstm_forward.2} parent=0 // pred_check_branch
    %13 = sbr.rel (0) target = $region9
  $region8: #{lstm_forward.2} parent=0 // pred_region
    _
  $region9: #{lstm_forward.2} parent=0 // pred_fallthru
    _
  // Predicated region
  $region10: #{lstm_forward.2} parent=0 // pred_check
    _
  $region11: #{lstm_forward.2} parent=0 // pred_check_branch
    %15 = sbr.rel (0) target = $region13
  $region12: #{lstm_forward.2} parent=0 // pred_region
    _
  $region13: #{lstm_forward.2} parent=0 // pred_fallthru
    _
  // Predicated region
  $region14: #{lstm_forward.2} parent=0 // pred_check
    _
  $region15: #{lstm_forward.2} parent=0 // pred_check_branch
    %17 = sbr.rel (0) target = $region17
  $region16: #{lstm_forward.2} parent=0 // pred_region
    _
  $region17: #{lstm_forward.2} parent=0 // pred_fallthru
    _
  // Predicated region
  $region18: #{lstm_forward.2} parent=0 // pred_check
    _
  $region19: #{lstm_forward.2} parent=0 // pred_check_branch
    %19 = sbr.rel (0) target = $region21
  $region20: #{lstm_forward.2} parent=0 // pred_region
    _
  $region21: #{lstm_forward.2} parent=0 // pred_fallthru
    _
  %v21 = vld [vmem:[%s0] sm:$0xff]
  %v22 = vld [vmem:[%s0 + $0x8] sm:$0xff]
  %v23 = vld [vmem:[%s0 + $0x10] sm:$0xff]
  %v24 = vld [vmem:[%s0 + $0x18] sm:$0xff]
  %v25 = vld [vmem:[%s0 + $0x20] sm:$0xff]
  %v26 = vld [vmem:[%s0 + $0x28] sm:$0xff]
  %v27 = vld [vmem:[%s0 + $0x30] sm:$0xff]
  %v28 = vld [vmem:[%s0 + $0x38] sm:$0xff]
  %v29 = vld [vmem:[%s0 + $0x40] sm:$0xff]
  %v30 = vld [vmem:[%s0 + $0x48] sm:$0xff]
  %v31 = vld [vmem:[%s0 + $0x50] sm:$0xff]
  %v32 = vld [vmem:[%s0 + $0x58] sm:$0xff]
  %v33 = vld [vmem:[%s0 + $0x60] sm:$0xff]
  %v34 = vld [vmem:[%s0 + $0x68] sm:$0xff]
  %v35 = vld [vmem:[%s0 + $0x70] sm:$0xff]
  %v36 = vld [vmem:[%s0 + $0x78] sm:$0xff]
  %v37 = vld [vmem:[%s0 + $0x80] sm:$0xff]
  %v38 = vld [vmem:[%s0 + $0x88] sm:$0xff]
  %v39 = vld [vmem:[%s0 + $0x90] sm:$0xff]
  %v40 = vld [vmem:[%s0 + $0x98] sm:$0xff]
  %v41 = vld [vmem:[%s0 + $0xa0] sm:$0xff]
  %v42 = vld [vmem:[%s0 + $0xa8] sm:$0xff]
  %v43 = vld [vmem:[%s0 + $0xb0] sm:$0xff]
  %v44 = vld [vmem:[%s0 + $0xb8] sm:$0xff]
  %v45 = vld [vmem:[%s0 + $0xc0] sm:$0xff]
  %v46 = vld [vmem:[%s0 + $0xc8] sm:$0xff]
  %v47 = vld [vmem:[%s0 + $0xd0] sm:$0xff]
  %v48 = vld [vmem:[%s0 + $0xd8] sm:$0xff]
  %v49 = vld [vmem:[%s0 + $0xe0] sm:$0xff]
  %v50 = vld [vmem:[%s0 + $0xe8] sm:$0xff]
  %v51 = vld [vmem:[%s0 + $0xf0] sm:$0xff]
  %v52 = vld [vmem:[%s0 + $0xf8] sm:$0xff]
  %v53 = vpack.c.bf16 %v22, %v21
  %v54 = vpack.c.bf16 %v24, %v23
  %v55 = vpack.c.bf16 %v26, %v25
  %v56 = vpack.c.bf16 %v28, %v27
  %v57 = vpack.c.bf16 %v30, %v29
  %v58 = vpack.c.bf16 %v32, %v31
  %v59 = vpack.c.bf16 %v34, %v33
  %v60 = vpack.c.bf16 %v36, %v35
  %v61 = vpack.c.bf16 %v38, %v37
  %v62 = vpack.c.bf16 %v40, %v39
  %v63 = vpack.c.bf16 %v42, %v41
  %v64 = vpack.c.bf16 %v44, %v43
  %v65 = vpack.c.bf16 %v46, %v45
  %v66 = vpack.c.bf16 %v48, %v47
  %v67 = vpack.c.bf16 %v50, %v49
  %v68 = vpack.c.bf16 %v52, %v51
  %v69 = vld [vmem:[%s1] sm:$0xf]
  %v70 = vld [vmem:[%s1 + $0x4] sm:$0xf]
  %v71 = vld [vmem:[%s2] sm:$0x1]
  %v73 = vperm.slane %v71, 0
  %v77 = vunpack.c.l.b16 %v69
  %v78 = vunpack.c.l.b16 %v70
  %v79 = vpack.c.b16 %v78, %v77
  %vm81 = vcmask 130048
  %v83 = vsel %vm81, %v53, 0
  %v86 = vsel %vm81, %v54, 0
  %v89 = vsel %vm81, %v55, 0
  %v92 = vsel %vm81, %v56, 0
  %v95 = vsel %vm81, %v57, 0
  %v98 = vsel %vm81, %v58, 0
  %v101 = vsel %vm81, %v59, 0
  %v104 = vsel %vm81, %v60, 0
  %v107 = vsel %vm81, %v61, 0
  %v110 = vsel %vm81, %v62, 0
  %v113 = vsel %vm81, %v63, 0
  %v116 = vsel %vm81, %v64, 0
  %v119 = vsel %vm81, %v65, 0
  %v122 = vsel %vm81, %v66, 0
  %v125 = vsel %vm81, %v67, 0
  %v128 = vsel %vm81, %v68, 0
  %130 = vmatpush.bf16.msra.mxu0 0
  %131 = vmatpush.bf16.msra.mxu0 0
  %132 = vmatpush.bf16.msra.mxu0 0
  %133 = vmatpush.bf16.msra.mxu0 0
  %134 = vmatpush.bf16.msra.mxu0 0
  %135 = vmatpush.bf16.msra.mxu0 0
  %136 = vmatpush.bf16.msra.mxu0 0
  %137 = vmatpush.bf16.msra.mxu0 %v79
  %138 = vmatmul.bf16.gmra.mxu0 %v83
  %v139 = vpop.f32.mrf.mxu0
  %v140 = vadd.f32 %v73, %v139
  %v141 = vpop.f32.mrf.mxu0
  %v142 = vadd.f32 %v73, %v141
  %143 = vmatmul.bf16.gmra.mxu0 %v86
  %v144 = vpop.f32.mrf.mxu0
  %v145 = vadd.f32 %v73, %v144
  %v146 = vpop.f32.mrf.mxu0
  %v147 = vadd.f32 %v73, %v146
  %148 = vmatmul.bf16.gmra.mxu0 %v89
  %v149 = vpop.f32.mrf.mxu0
  %v150 = vadd.f32 %v73, %v149
  %v151 = vpop.f32.mrf.mxu0
  %v152 = vadd.f32 %v73, %v151
  %153 = vmatmul.bf16.gmra.mxu0 %v92
  %v154 = vpop.f32.mrf.mxu0
  %v155 = vadd.f32 %v73, %v154
  %v156 = vpop.f32.mrf.mxu0
  %v157 = vadd.f32 %v73, %v156
  %158 = vmatmul.bf16.gmra.mxu0 %v95
  %v159 = vpop.f32.mrf.mxu0
  %v160 = vadd.f32 %v73, %v159
  %v161 = vpop.f32.mrf.mxu0
  %v162 = vadd.f32 %v73, %v161
  %163 = vmatmul.bf16.gmra.mxu0 %v98
  %v164 = vpop.f32.mrf.mxu0
  %v165 = vadd.f32 %v73, %v164
  %v166 = vpop.f32.mrf.mxu0
  %v167 = vadd.f32 %v73, %v166
  %168 = vmatmul.bf16.gmra.mxu0 %v101
  %v169 = vpop.f32.mrf.mxu0
  %v170 = vadd.f32 %v73, %v169
  %v171 = vpop.f32.mrf.mxu0
  %v172 = vadd.f32 %v73, %v171
  %173 = vmatmul.bf16.gmra.mxu0 %v104
  %v174 = vpop.f32.mrf.mxu0
  %v175 = vadd.f32 %v73, %v174
  %v176 = vpop.f32.mrf.mxu0
  %v177 = vadd.f32 %v73, %v176
  %178 = vmatmul.bf16.gmra.mxu0 %v107
  %v179 = vpop.f32.mrf.mxu0
  %v180 = vadd.f32 %v73, %v179
  %v181 = vpop.f32.mrf.mxu0
  %v182 = vadd.f32 %v73, %v181
  %183 = vmatmul.bf16.gmra.mxu0 %v110
  %v184 = vpop.f32.mrf.mxu0
  %v185 = vadd.f32 %v73, %v184
  %v186 = vpop.f32.mrf.mxu0
  %v187 = vadd.f32 %v73, %v186
  %188 = vmatmul.bf16.gmra.mxu0 %v113
  %v189 = vpop.f32.mrf.mxu0
  %v190 = vadd.f32 %v73, %v189
  %v191 = vpop.f32.mrf.mxu0
  %v192 = vadd.f32 %v73, %v191
  %193 = vmatmul.bf16.gmra.mxu0 %v116
  %v194 = vpop.f32.mrf.mxu0
  %v195 = vadd.f32 %v73, %v194
  %v196 = vpop.f32.mrf.mxu0
  %v197 = vadd.f32 %v73, %v196
  %198 = vmatmul.bf16.gmra.mxu0 %v119
  %v199 = vpop.f32.mrf.mxu0
  %v200 = vadd.f32 %v73, %v199
  %v201 = vpop.f32.mrf.mxu0
  %v202 = vadd.f32 %v73, %v201
  %203 = vmatmul.bf16.gmra.mxu0 %v122
  %v204 = vpop.f32.mrf.mxu0
  %v205 = vadd.f32 %v73, %v204
  %v206 = vpop.f32.mrf.mxu0
  %v207 = vadd.f32 %v73, %v206
  %208 = vmatmul.bf16.gmra.mxu0 %v125
  %v209 = vpop.f32.mrf.mxu0
  %v210 = vadd.f32 %v73, %v209
  %v211 = vpop.f32.mrf.mxu0
  %v212 = vadd.f32 %v73, %v211
  %213 = vmatmul.bf16.gmra.mxu0 %v128
  %v214 = vpop.f32.mrf.mxu0
  %v215 = vadd.f32 %v73, %v214
  %v216 = vpop.f32.mrf.mxu0
  %v217 = vadd.f32 %v73, %v216
  %218 = vdwg.mxu0
  %v219 = vpack.c.bf16 %v142, %v140
  %v220 = vpack.c.bf16 %v147, %v145
  %v221 = vpack.c.bf16 %v152, %v150
  %v222 = vpack.c.bf16 %v157, %v155
  %v223 = vpack.c.bf16 %v162, %v160
  %v224 = vpack.c.bf16 %v167, %v165
  %v225 = vpack.c.bf16 %v172, %v170
  %v226 = vpack.c.bf16 %v177, %v175
  %v227 = vpack.c.bf16 %v182, %v180
  %v228 = vpack.c.bf16 %v187, %v185
  %v229 = vpack.c.bf16 %v192, %v190
  %v230 = vpack.c.bf16 %v197, %v195
  %v231 = vpack.c.bf16 %v202, %v200
  %v232 = vpack.c.bf16 %v207, %v205
  %v233 = vpack.c.bf16 %v212, %v210
  %v234 = vpack.c.bf16 %v217, %v215
  %v235 = vld [vmem:[%s3] sm:$0xff]
  %v236 = vld [vmem:[%s3 + $0x8] sm:$0xff]
  %v237 = vld [vmem:[%s3 + $0x10] sm:$0xff]
  %v238 = vld [vmem:[%s3 + $0x18] sm:$0xff]
  %v239 = vld [vmem:[%s3 + $0x20] sm:$0xff]
  %v240 = vld [vmem:[%s3 + $0x28] sm:$0xff]
  %v241 = vld [vmem:[%s3 + $0x30] sm:$0xff]
  %v242 = vld [vmem:[%s3 + $0x38] sm:$0xff]
  %v243 = vld [vmem:[%s3 + $0x40] sm:$0xff]
  %v244 = vld [vmem:[%s3 + $0x48] sm:$0xff]
  %v245 = vld [vmem:[%s3 + $0x50] sm:$0xff]
  %v246 = vld [vmem:[%s3 + $0x58] sm:$0xff]
  %v247 = vld [vmem:[%s3 + $0x60] sm:$0xff]
  %v248 = vld [vmem:[%s3 + $0x68] sm:$0xff]
  %v249 = vld [vmem:[%s3 + $0x70] sm:$0xff]
  %v250 = vld [vmem:[%s3 + $0x78] sm:$0xff]
  %v251 = vld [vmem:[%s3 + $0x80] sm:$0xff]
  %v252 = vld [vmem:[%s3 + $0x88] sm:$0xff]
  %v253 = vld [vmem:[%s3 + $0x90] sm:$0xff]
  %v254 = vld [vmem:[%s3 + $0x98] sm:$0xff]
  %v255 = vld [vmem:[%s3 + $0xa0] sm:$0xff]
  %v256 = vld [vmem:[%s3 + $0xa8] sm:$0xff]
  %v257 = vld [vmem:[%s3 + $0xb0] sm:$0xff]
  %v258 = vld [vmem:[%s3 + $0xb8] sm:$0xff]
  %v259 = vld [vmem:[%s3 + $0xc0] sm:$0xff]
  %v260 = vld [vmem:[%s3 + $0xc8] sm:$0xff]
  %v261 = vld [vmem:[%s3 + $0xd0] sm:$0xff]
  %v262 = vld [vmem:[%s3 + $0xd8] sm:$0xff]
  %v263 = vld [vmem:[%s3 + $0xe0] sm:$0xff]
  %v264 = vld [vmem:[%s3 + $0xe8] sm:$0xff]
  %v265 = vld [vmem:[%s3 + $0xf0] sm:$0xff]
  %v266 = vld [vmem:[%s3 + $0xf8] sm:$0xff]
  %v267 = vld [vmem:[%s4] sm:$0xf]
  %v269 = vperm.slane %v267, 0
  %v270 = vperm.slane %v267, 1
  %v271 = vperm.slane %v267, 2
  %v272 = vperm.slane %v267, 3
  %v309 = vunpack.c.l.b16 %v235
  %v310 = vunpack.c.h.b16 %v235
  %v311 = vunpack.c.l.b16 %v236
  %v312 = vunpack.c.h.b16 %v236
  %v313 = vunpack.c.l.b16 %v237
  %v314 = vunpack.c.h.b16 %v237
  %v315 = vunpack.c.l.b16 %v238
  %v316 = vunpack.c.h.b16 %v238
  %v317 = vunpack.c.l.b16 %v239
  %v318 = vunpack.c.h.b16 %v239
  %v319 = vunpack.c.l.b16 %v240
  %v320 = vunpack.c.h.b16 %v240
  %v321 = vunpack.c.l.b16 %v241
  %v322 = vunpack.c.h.b16 %v241
  %v323 = vunpack.c.l.b16 %v242
  %v324 = vunpack.c.h.b16 %v242
  %v325 = vunpack.c.l.b16 %v243
  %v326 = vunpack.c.h.b16 %v243
  %v327 = vunpack.c.l.b16 %v244
  %v328 = vunpack.c.h.b16 %v244
  %v329 = vunpack.c.l.b16 %v245
  %v330 = vunpack.c.h.b16 %v245
  %v331 = vunpack.c.l.b16 %v246
  %v332 = vunpack.c.h.b16 %v246
  %v333 = vunpack.c.l.b16 %v247
  %v334 = vunpack.c.h.b16 %v247
  %v335 = vunpack.c.l.b16 %v248
  %v336 = vunpack.c.h.b16 %v248
  %v337 = vunpack.c.l.b16 %v249
  %v338 = vunpack.c.h.b16 %v249
  %v339 = vunpack.c.l.b16 %v250
  %v340 = vunpack.c.h.b16 %v250
  %v341 = vunpack.c.l.b16 %v251
  %v342 = vunpack.c.h.b16 %v251
  %v343 = vunpack.c.l.b16 %v252
  %v344 = vunpack.c.h.b16 %v252
  %v345 = vunpack.c.l.b16 %v253
  %v346 = vunpack.c.h.b16 %v253
  %v347 = vunpack.c.l.b16 %v254
  %v348 = vunpack.c.h.b16 %v254
  %v349 = vunpack.c.l.b16 %v255
  %v350 = vunpack.c.h.b16 %v255
  %v351 = vunpack.c.l.b16 %v256
  %v352 = vunpack.c.h.b16 %v256
  %v353 = vunpack.c.l.b16 %v257
  %v354 = vunpack.c.h.b16 %v257
  %v355 = vunpack.c.l.b16 %v258
  %v356 = vunpack.c.h.b16 %v258
  %v357 = vunpack.c.l.b16 %v259
  %v358 = vunpack.c.h.b16 %v259
  %v359 = vunpack.c.l.b16 %v260
  %v360 = vunpack.c.h.b16 %v260
  %v361 = vunpack.c.l.b16 %v261
  %v362 = vunpack.c.h.b16 %v261
  %v363 = vunpack.c.l.b16 %v262
  %v364 = vunpack.c.h.b16 %v262
  %v365 = vunpack.c.l.b16 %v263
  %v366 = vunpack.c.h.b16 %v263
  %v367 = vunpack.c.l.b16 %v264
  %v368 = vunpack.c.h.b16 %v264
  %v369 = vunpack.c.l.b16 %v265
  %v370 = vunpack.c.h.b16 %v265
  %v371 = vunpack.c.l.b16 %v266
  %v372 = vunpack.c.h.b16 %v266
  %v373 = vpack.c.b16 %v313, %v309
  %v374 = vpack.c.b16 %v314, %v310
  %v375 = vpack.c.b16 %v315, %v311
  %v376 = vpack.c.b16 %v316, %v312
  %v377 = vpack.c.b16 %v321, %v317
  %v378 = vpack.c.b16 %v322, %v318
  %v379 = vpack.c.b16 %v323, %v319
  %v380 = vpack.c.b16 %v324, %v320
  %v381 = vpack.c.b16 %v329, %v325
  %v382 = vpack.c.b16 %v330, %v326
  %v383 = vpack.c.b16 %v331, %v327
  %v384 = vpack.c.b16 %v332, %v328
  %v385 = vpack.c.b16 %v337, %v333
  %v386 = vpack.c.b16 %v338, %v334
  %v387 = vpack.c.b16 %v339, %v335
  %v388 = vpack.c.b16 %v340, %v336
  %v389 = vpack.c.b16 %v345, %v341
  %v390 = vpack.c.b16 %v346, %v342
  %v391 = vpack.c.b16 %v347, %v343
  %v392 = vpack.c.b16 %v348, %v344
  %v393 = vpack.c.b16 %v353, %v349
  %v394 = vpack.c.b16 %v354, %v350
  %v395 = vpack.c.b16 %v355, %v351
  %v396 = vpack.c.b16 %v356, %v352
  %v397 = vpack.c.b16 %v361, %v357
  %v398 = vpack.c.b16 %v362, %v358
  %v399 = vpack.c.b16 %v363, %v359
  %v400 = vpack.c.b16 %v364, %v360
  %v401 = vpack.c.b16 %v369, %v365
  %v402 = vpack.c.b16 %v370, %v366
  %v403 = vpack.c.b16 %v371, %v367
  %v404 = vpack.c.b16 %v372, %v368
  %437 = vmatpush.bf16.msra.mxu0 %v401
  %438 = vmatpush.bf16.msra.mxu0 %v397
  %439 = vmatpush.bf16.msra.mxu0 %v393
  %440 = vmatpush.bf16.msra.mxu0 %v389
  %441 = vmatpush.bf16.msra.mxu0 %v385
  %442 = vmatpush.bf16.msra.mxu0 %v381
  %443 = vmatpush.bf16.msra.mxu0 %v377
  %444 = vmatpush.bf16.msra.mxu0 %v373
  %445 = vmatmul.bf16.gmra.mxu0 %v219
  %v446 = vpop.f32.mrf.mxu0
  %v447 = vadd.f32 %v269, %v446
  %v448 = vpop.f32.mrf.mxu0
  %v449 = vadd.f32 %v269, %v448
  %450 = vmatmul.bf16.gmra.mxu0 %v220
  %v451 = vpop.f32.mrf.mxu0
  %v452 = vadd.f32 %v269, %v451
  %v453 = vpop.f32.mrf.mxu0
  %v454 = vadd.f32 %v269, %v453
  %455 = vmatmul.bf16.gmra.mxu0 %v221
  %v456 = vpop.f32.mrf.mxu0
  %v457 = vadd.f32 %v269, %v456
  %v458 = vpop.f32.mrf.mxu0
  %v459 = vadd.f32 %v269, %v458
  %460 = vmatmul.bf16.gmra.mxu0 %v222
  %v461 = vpop.f32.mrf.mxu0
  %v462 = vadd.f32 %v269, %v461
  %v463 = vpop.f32.mrf.mxu0
  %v464 = vadd.f32 %v269, %v463
  %465 = vmatmul.bf16.gmra.mxu0 %v223
  %v466 = vpop.f32.mrf.mxu0
  %v467 = vadd.f32 %v269, %v466
  %v468 = vpop.f32.mrf.mxu0
  %v469 = vadd.f32 %v269, %v468
  %470 = vmatmul.bf16.gmra.mxu0 %v224
  %v471 = vpop.f32.mrf.mxu0
  %v472 = vadd.f32 %v269, %v471
  %v473 = vpop.f32.mrf.mxu0
  %v474 = vadd.f32 %v269, %v473
  %475 = vmatmul.bf16.gmra.mxu0 %v225
  %v476 = vpop.f32.mrf.mxu0
  %v477 = vadd.f32 %v269, %v476
  %v478 = vpop.f32.mrf.mxu0
  %v479 = vadd.f32 %v269, %v478
  %480 = vmatmul.bf16.gmra.mxu0 %v226
  %v481 = vpop.f32.mrf.mxu0
  %v482 = vadd.f32 %v269, %v481
  %v483 = vpop.f32.mrf.mxu0
  %v484 = vadd.f32 %v269, %v483
  %485 = vmatmul.bf16.gmra.mxu0 %v227
  %v486 = vpop.f32.mrf.mxu0
  %v487 = vadd.f32 %v269, %v486
  %v488 = vpop.f32.mrf.mxu0
  %v489 = vadd.f32 %v269, %v488
  %490 = vmatmul.bf16.gmra.mxu0 %v228
  %v491 = vpop.f32.mrf.mxu0
  %v492 = vadd.f32 %v269, %v491
  %v493 = vpop.f32.mrf.mxu0
  %v494 = vadd.f32 %v269, %v493
  %495 = vmatmul.bf16.gmra.mxu0 %v229
  %v496 = vpop.f32.mrf.mxu0
  %v497 = vadd.f32 %v269, %v496
  %v498 = vpop.f32.mrf.mxu0
  %v499 = vadd.f32 %v269, %v498
  %500 = vmatmul.bf16.gmra.mxu0 %v230
  %v501 = vpop.f32.mrf.mxu0
  %v502 = vadd.f32 %v269, %v501
  %v503 = vpop.f32.mrf.mxu0
  %v504 = vadd.f32 %v269, %v503
  %505 = vmatmul.bf16.gmra.mxu0 %v231
  %v506 = vpop.f32.mrf.mxu0
  %v507 = vadd.f32 %v269, %v506
  %v508 = vpop.f32.mrf.mxu0
  %v509 = vadd.f32 %v269, %v508
  %510 = vmatmul.bf16.gmra.mxu0 %v232
  %v511 = vpop.f32.mrf.mxu0
  %v512 = vadd.f32 %v269, %v511
  %v513 = vpop.f32.mrf.mxu0
  %v514 = vadd.f32 %v269, %v513
  %515 = vmatmul.bf16.gmra.mxu0 %v233
  %v516 = vpop.f32.mrf.mxu0
  %v517 = vadd.f32 %v269, %v516
  %v518 = vpop.f32.mrf.mxu0
  %v519 = vadd.f32 %v269, %v518
  %520 = vmatmul.bf16.gmra.mxu0 %v234
  %v521 = vpop.f32.mrf.mxu0
  %v522 = vadd.f32 %v269, %v521
  %v523 = vpop.f32.mrf.mxu0
  %v524 = vadd.f32 %v269, %v523
  %525 = vdwg.mxu0
  %526 = vmatpush.bf16.msra.mxu0 %v402
  %527 = vmatpush.bf16.msra.mxu0 %v398
  %528 = vmatpush.bf16.msra.mxu0 %v394
  %529 = vmatpush.bf16.msra.mxu0 %v390
  %530 = vmatpush.bf16.msra.mxu0 %v386
  %531 = vmatpush.bf16.msra.mxu0 %v382
  %532 = vmatpush.bf16.msra.mxu0 %v378
  %533 = vmatpush.bf16.msra.mxu0 %v374
  %534 = vmatmul.bf16.gmra.mxu0 %v219
  %v535 = vpop.f32.mrf.mxu0
  %v536 = vadd.f32 %v270, %v535
  %v537 = vpop.f32.mrf.mxu0
  %v538 = vadd.f32 %v270, %v537
  %539 = vmatmul.bf16.gmra.mxu0 %v220
  %v540 = vpop.f32.mrf.mxu0
  %v541 = vadd.f32 %v270, %v540
  %v542 = vpop.f32.mrf.mxu0
  %v543 = vadd.f32 %v270, %v542
  %544 = vmatmul.bf16.gmra.mxu0 %v221
  %v545 = vpop.f32.mrf.mxu0
  %v546 = vadd.f32 %v270, %v545
  %v547 = vpop.f32.mrf.mxu0
  %v548 = vadd.f32 %v270, %v547
  %549 = vmatmul.bf16.gmra.mxu0 %v222
  %v550 = vpop.f32.mrf.mxu0
  %v551 = vadd.f32 %v270, %v550
  %v552 = vpop.f32.mrf.mxu0
  %v553 = vadd.f32 %v270, %v552
  %554 = vmatmul.bf16.gmra.mxu0 %v223
  %v555 = vpop.f32.mrf.mxu0
  %v556 = vadd.f32 %v270, %v555
  %v557 = vpop.f32.mrf.mxu0
  %v558 = vadd.f32 %v270, %v557
  %559 = vmatmul.bf16.gmra.mxu0 %v224
  %v560 = vpop.f32.mrf.mxu0
  %v561 = vadd.f32 %v270, %v560
  %v562 = vpop.f32.mrf.mxu0
  %v563 = vadd.f32 %v270, %v562
  %564 = vmatmul.bf16.gmra.mxu0 %v225
  %v565 = vpop.f32.mrf.mxu0
  %v566 = vadd.f32 %v270, %v565
  %v567 = vpop.f32.mrf.mxu0
  %v568 = vadd.f32 %v270, %v567
  %569 = vmatmul.bf16.gmra.mxu0 %v226
  %v570 = vpop.f32.mrf.mxu0
  %v571 = vadd.f32 %v270, %v570
  %v572 = vpop.f32.mrf.mxu0
  %v573 = vadd.f32 %v270, %v572
  %574 = vmatmul.bf16.gmra.mxu0 %v227
  %v575 = vpop.f32.mrf.mxu0
  %v576 = vadd.f32 %v270, %v575
  %v577 = vpop.f32.mrf.mxu0
  %v578 = vadd.f32 %v270, %v577
  %579 = vmatmul.bf16.gmra.mxu0 %v228
  %v580 = vpop.f32.mrf.mxu0
  %v581 = vadd.f32 %v270, %v580
  %v582 = vpop.f32.mrf.mxu0
  %v583 = vadd.f32 %v270, %v582
  %584 = vmatmul.bf16.gmra.mxu0 %v229
  %v585 = vpop.f32.mrf.mxu0
  %v586 = vadd.f32 %v270, %v585
  %v587 = vpop.f32.mrf.mxu0
  %v588 = vadd.f32 %v270, %v587
  %589 = vmatmul.bf16.gmra.mxu0 %v230
  %v590 = vpop.f32.mrf.mxu0
  %v591 = vadd.f32 %v270, %v590
  %v592 = vpop.f32.mrf.mxu0
  %v593 = vadd.f32 %v270, %v592
  %594 = vmatmul.bf16.gmra.mxu0 %v231
  %v595 = vpop.f32.mrf.mxu0
  %v596 = vadd.f32 %v270, %v595
  %v597 = vpop.f32.mrf.mxu0
  %v598 = vadd.f32 %v270, %v597
  %599 = vmatmul.bf16.gmra.mxu0 %v232
  %v600 = vpop.f32.mrf.mxu0
  %v601 = vadd.f32 %v270, %v600
  %v602 = vpop.f32.mrf.mxu0
  %v603 = vadd.f32 %v270, %v602
  %604 = vmatmul.bf16.gmra.mxu0 %v233
  %v605 = vpop.f32.mrf.mxu0
  %v606 = vadd.f32 %v270, %v605
  %v607 = vpop.f32.mrf.mxu0
  %v608 = vadd.f32 %v270, %v607
  %609 = vmatmul.bf16.gmra.mxu0 %v234
  %v610 = vpop.f32.mrf.mxu0
  %v611 = vadd.f32 %v270, %v610
  %v612 = vpop.f32.mrf.mxu0
  %v613 = vadd.f32 %v270, %v612
  %614 = vdwg.mxu0
  %615 = vmatpush.bf16.msra.mxu0 %v403
  %616 = vmatpush.bf16.msra.mxu0 %v399
  %617 = vmatpush.bf16.msra.mxu0 %v395
  %618 = vmatpush.bf16.msra.mxu0 %v391
  %619 = vmatpush.bf16.msra.mxu0 %v387
  %620 = vmatpush.bf16.msra.mxu0 %v383
  %621 = vmatpush.bf16.msra.mxu0 %v379
  %622 = vmatpush.bf16.msra.mxu0 %v375
  %623 = vmatmul.bf16.gmra.mxu0 %v219
  %v624 = vpop.f32.mrf.mxu0
  %v625 = vadd.f32 %v271, %v624
  %v626 = vpop.f32.mrf.mxu0
  %v627 = vadd.f32 %v271, %v626
  %628 = vmatmul.bf16.gmra.mxu0 %v220
  %v629 = vpop.f32.mrf.mxu0
  %v630 = vadd.f32 %v271, %v629
  %v631 = vpop.f32.mrf.mxu0
  %v632 = vadd.f32 %v271, %v631
  %633 = vmatmul.bf16.gmra.mxu0 %v221
  %v634 = vpop.f32.mrf.mxu0
  %v635 = vadd.f32 %v271, %v634
  %v636 = vpop.f32.mrf.mxu0
  %v637 = vadd.f32 %v271, %v636
  %638 = vmatmul.bf16.gmra.mxu0 %v222
  %v639 = vpop.f32.mrf.mxu0
  %v640 = vadd.f32 %v271, %v639
  %v641 = vpop.f32.mrf.mxu0
  %v642 = vadd.f32 %v271, %v641
  %643 = vmatmul.bf16.gmra.mxu0 %v223
  %v644 = vpop.f32.mrf.mxu0
  %v645 = vadd.f32 %v271, %v644
  %v646 = vpop.f32.mrf.mxu0
  %v647 = vadd.f32 %v271, %v646
  %648 = vmatmul.bf16.gmra.mxu0 %v224
  %v649 = vpop.f32.mrf.mxu0
  %v650 = vadd.f32 %v271, %v649
  %v651 = vpop.f32.mrf.mxu0
  %v652 = vadd.f32 %v271, %v651
  %653 = vmatmul.bf16.gmra.mxu0 %v225
  %v654 = vpop.f32.mrf.mxu0
  %v655 = vadd.f32 %v271, %v654
  %v656 = vpop.f32.mrf.mxu0
  %v657 = vadd.f32 %v271, %v656
  %658 = vmatmul.bf16.gmra.mxu0 %v226
  %v659 = vpop.f32.mrf.mxu0
  %v660 = vadd.f32 %v271, %v659
  %v661 = vpop.f32.mrf.mxu0
  %v662 = vadd.f32 %v271, %v661
  %663 = vmatmul.bf16.gmra.mxu0 %v227
  %v664 = vpop.f32.mrf.mxu0
  %v665 = vadd.f32 %v271, %v664
  %v666 = vpop.f32.mrf.mxu0
  %v667 = vadd.f32 %v271, %v666
  %668 = vmatmul.bf16.gmra.mxu0 %v228
  %v669 = vpop.f32.mrf.mxu0
  %v670 = vadd.f32 %v271, %v669
  %v671 = vpop.f32.mrf.mxu0
  %v672 = vadd.f32 %v271, %v671
  %673 = vmatmul.bf16.gmra.mxu0 %v229
  %v674 = vpop.f32.mrf.mxu0
  %v675 = vadd.f32 %v271, %v674
  %v676 = vpop.f32.mrf.mxu0
  %v677 = vadd.f32 %v271, %v676
  %678 = vmatmul.bf16.gmra.mxu0 %v230
  %v679 = vpop.f32.mrf.mxu0
  %v680 = vadd.f32 %v271, %v679
  %v681 = vpop.f32.mrf.mxu0
  %v682 = vadd.f32 %v271, %v681
  %683 = vmatmul.bf16.gmra.mxu0 %v231
  %v684 = vpop.f32.mrf.mxu0
  %v685 = vadd.f32 %v271, %v684
  %v686 = vpop.f32.mrf.mxu0
  %v687 = vadd.f32 %v271, %v686
  %688 = vmatmul.bf16.gmra.mxu0 %v232
  %v689 = vpop.f32.mrf.mxu0
  %v690 = vadd.f32 %v271, %v689
  %v691 = vpop.f32.mrf.mxu0
  %v692 = vadd.f32 %v271, %v691
  %693 = vmatmul.bf16.gmra.mxu0 %v233
  %v694 = vpop.f32.mrf.mxu0
  %v695 = vadd.f32 %v271, %v694
  %v696 = vpop.f32.mrf.mxu0
  %v697 = vadd.f32 %v271, %v696
  %698 = vmatmul.bf16.gmra.mxu0 %v234
  %v699 = vpop.f32.mrf.mxu0
  %v700 = vadd.f32 %v271, %v699
  %v701 = vpop.f32.mrf.mxu0
  %v702 = vadd.f32 %v271, %v701
  %703 = vdwg.mxu0
  %704 = vmatpush.bf16.msra.mxu0 %v404
  %705 = vmatpush.bf16.msra.mxu0 %v400
  %706 = vmatpush.bf16.msra.mxu0 %v396
  %707 = vmatpush.bf16.msra.mxu0 %v392
  %708 = vmatpush.bf16.msra.mxu0 %v388
  %709 = vmatpush.bf16.msra.mxu0 %v384
  %710 = vmatpush.bf16.msra.mxu0 %v380
  %711 = vmatpush.bf16.msra.mxu0 %v376
  %712 = vmatmul.bf16.gmra.mxu0 %v219
  %v713 = vpop.f32.mrf.mxu0
  %v714 = vadd.f32 %v272, %v713
  %v715 = vpop.f32.mrf.mxu0
  %v716 = vadd.f32 %v272, %v715
  %717 = vmatmul.bf16.gmra.mxu0 %v220
  %v718 = vpop.f32.mrf.mxu0
  %v719 = vadd.f32 %v272, %v718
  %v720 = vpop.f32.mrf.mxu0
  %v721 = vadd.f32 %v272, %v720
  %722 = vmatmul.bf16.gmra.mxu0 %v221
  %v723 = vpop.f32.mrf.mxu0
  %v724 = vadd.f32 %v272, %v723
  %v725 = vpop.f32.mrf.mxu0
  %v726 = vadd.f32 %v272, %v725
  %727 = vmatmul.bf16.gmra.mxu0 %v222
  %v728 = vpop.f32.mrf.mxu0
  %v729 = vadd.f32 %v272, %v728
  %v730 = vpop.f32.mrf.mxu0
  %v731 = vadd.f32 %v272, %v730
  %732 = vmatmul.bf16.gmra.mxu0 %v223
  %v733 = vpop.f32.mrf.mxu0
  %v734 = vadd.f32 %v272, %v733
  %v735 = vpop.f32.mrf.mxu0
  %v736 = vadd.f32 %v272, %v735
  %737 = vmatmul.bf16.gmra.mxu0 %v224
  %v738 = vpop.f32.mrf.mxu0
  %v739 = vadd.f32 %v272, %v738
  %v740 = vpop.f32.mrf.mxu0
  %v741 = vadd.f32 %v272, %v740
  %742 = vmatmul.bf16.gmra.mxu0 %v225
  %v743 = vpop.f32.mrf.mxu0
  %v744 = vadd.f32 %v272, %v743
  %v745 = vpop.f32.mrf.mxu0
  %v746 = vadd.f32 %v272, %v745
  %747 = vmatmul.bf16.gmra.mxu0 %v226
  %v748 = vpop.f32.mrf.mxu0
  %v749 = vadd.f32 %v272, %v748
  %v750 = vpop.f32.mrf.mxu0
  %v751 = vadd.f32 %v272, %v750
  %752 = vmatmul.bf16.gmra.mxu0 %v227
  %v753 = vpop.f32.mrf.mxu0
  %v754 = vadd.f32 %v272, %v753
  %v755 = vpop.f32.mrf.mxu0
  %v756 = vadd.f32 %v272, %v755
  %757 = vmatmul.bf16.gmra.mxu0 %v228
  %v758 = vpop.f32.mrf.mxu0
  %v759 = vadd.f32 %v272, %v758
  %v760 = vpop.f32.mrf.mxu0
  %v761 = vadd.f32 %v272, %v760
  %762 = vmatmul.bf16.gmra.mxu0 %v229
  %v763 = vpop.f32.mrf.mxu0
  %v764 = vadd.f32 %v272, %v763
  %v765 = vpop.f32.mrf.mxu0
  %v766 = vadd.f32 %v272, %v765
  %767 = vmatmul.bf16.gmra.mxu0 %v230
  %v768 = vpop.f32.mrf.mxu0
  %v769 = vadd.f32 %v272, %v768
  %v770 = vpop.f32.mrf.mxu0
  %v771 = vadd.f32 %v272, %v770
  %772 = vmatmul.bf16.gmra.mxu0 %v231
  %v773 = vpop.f32.mrf.mxu0
  %v774 = vadd.f32 %v272, %v773
  %v775 = vpop.f32.mrf.mxu0
  %v776 = vadd.f32 %v272, %v775
  %777 = vmatmul.bf16.gmra.mxu0 %v232
  %v778 = vpop.f32.mrf.mxu0
  %v779 = vadd.f32 %v272, %v778
  %v780 = vpop.f32.mrf.mxu0
  %v781 = vadd.f32 %v272, %v780
  %782 = vmatmul.bf16.gmra.mxu0 %v233
  %v783 = vpop.f32.mrf.mxu0
  %v784 = vadd.f32 %v272, %v783
  %v785 = vpop.f32.mrf.mxu0
  %v786 = vadd.f32 %v272, %v785
  %787 = vmatmul.bf16.gmra.mxu0 %v234
  %v788 = vpop.f32.mrf.mxu0
  %v789 = vadd.f32 %v272, %v788
  %v790 = vpop.f32.mrf.mxu0
  %v791 = vadd.f32 %v272, %v790
  %792 = vdwg.mxu0
  %793 = vst [vmem:[%s5] sm:$0xff] %v447
  %794 = vst [vmem:[%s5 + $0x8] sm:$0xff] %v536
  %795 = vst [vmem:[%s5 + $0x10] sm:$0xff] %v625
  %796 = vst [vmem:[%s5 + $0x18] sm:$0xff] %v714
  %797 = vst [vmem:[%s5 + $0x20] sm:$0xff] %v449
  %798 = vst [vmem:[%s5 + $0x28] sm:$0xff] %v538
  %799 = vst [vmem:[%s5 + $0x30] sm:$0xff] %v627
  %800 = vst [vmem:[%s5 + $0x38] sm:$0xff] %v716
  %801 = vst [vmem:[%s5 + $0x40] sm:$0xff] %v452
  %802 = vst [vmem:[%s5 + $0x48] sm:$0xff] %v541
  %803 = vst [vmem:[%s5 + $0x50] sm:$0xff] %v630
  %804 = vst [vmem:[%s5 + $0x58] sm:$0xff] %v719
  %805 = vst [vmem:[%s5 + $0x60] sm:$0xff] %v454
  %806 = vst [vmem:[%s5 + $0x68] sm:$0xff] %v543
  %807 = vst [vmem:[%s5 + $0x70] sm:$0xff] %v632
  %808 = vst [vmem:[%s5 + $0x78] sm:$0xff] %v721
  %809 = vst [vmem:[%s5 + $0x80] sm:$0xff] %v457
  %810 = vst [vmem:[%s5 + $0x88] sm:$0xff] %v546
  %811 = vst [vmem:[%s5 + $0x90] sm:$0xff] %v635
  %812 = vst [vmem:[%s5 + $0x98] sm:$0xff] %v724
  %813 = vst [vmem:[%s5 + $0xa0] sm:$0xff] %v459
  %814 = vst [vmem:[%s5 + $0xa8] sm:$0xff] %v548
  %815 = vst [vmem:[%s5 + $0xb0] sm:$0xff] %v637
  %816 = vst [vmem:[%s5 + $0xb8] sm:$0xff] %v726
  %817 = vst [vmem:[%s5 + $0xc0] sm:$0xff] %v462
  %818 = vst [vmem:[%s5 + $0xc8] sm:$0xff] %v551
  %819 = vst [vmem:[%s5 + $0xd0] sm:$0xff] %v640
  %820 = vst [vmem:[%s5 + $0xd8] sm:$0xff] %v729
  %821 = vst [vmem:[%s5 + $0xe0] sm:$0xff] %v464
  %822 = vst [vmem:[%s5 + $0xe8] sm:$0xff] %v553
  %823 = vst [vmem:[%s5 + $0xf0] sm:$0xff] %v642
  %824 = vst [vmem:[%s5 + $0xf8] sm:$0xff] %v731
  %825 = vst [vmem:[%s5 + $0x100] sm:$0xff] %v467
  %826 = vst [vmem:[%s5 + $0x108] sm:$0xff] %v556
  %827 = vst [vmem:[%s5 + $0x110] sm:$0xff] %v645
  %828 = vst [vmem:[%s5 + $0x118] sm:$0xff] %v734
  %829 = vst [vmem:[%s5 + $0x120] sm:$0xff] %v469
  %830 = vst [vmem:[%s5 + $0x128] sm:$0xff] %v558
  %831 = vst [vmem:[%s5 + $0x130] sm:$0xff] %v647
  %832 = vst [vmem:[%s5 + $0x138] sm:$0xff] %v736
  %833 = vst [vmem:[%s5 + $0x140] sm:$0xff] %v472
  %834 = vst [vmem:[%s5 + $0x148] sm:$0xff] %v561
  %835 = vst [vmem:[%s5 + $0x150] sm:$0xff] %v650
  %836 = vst [vmem:[%s5 + $0x158] sm:$0xff] %v739
  %837 = vst [vmem:[%s5 + $0x160] sm:$0xff] %v474
  %838 = vst [vmem:[%s5 + $0x168] sm:$0xff] %v563
  %839 = vst [vmem:[%s5 + $0x170] sm:$0xff] %v652
  %840 = vst [vmem:[%s5 + $0x178] sm:$0xff] %v741
  %841 = vst [vmem:[%s5 + $0x180] sm:$0xff] %v477
  %842 = vst [vmem:[%s5 + $0x188] sm:$0xff] %v566
  %843 = vst [vmem:[%s5 + $0x190] sm:$0xff] %v655
  %844 = vst [vmem:[%s5 + $0x198] sm:$0xff] %v744
  %845 = vst [vmem:[%s5 + $0x1a0] sm:$0xff] %v479
  %846 = vst [vmem:[%s5 + $0x1a8] sm:$0xff] %v568
  %847 = vst [vmem:[%s5 + $0x1b0] sm:$0xff] %v657
  %848 = vst [vmem:[%s5 + $0x1b8] sm:$0xff] %v746
  %849 = vst [vmem:[%s5 + $0x1c0] sm:$0xff] %v482
  %850 = vst [vmem:[%s5 + $0x1c8] sm:$0xff] %v571
  %851 = vst [vmem:[%s5 + $0x1d0] sm:$0xff] %v660
  %852 = vst [vmem:[%s5 + $0x1d8] sm:$0xff] %v749
  %853 = vst [vmem:[%s5 + $0x1e0] sm:$0xff] %v484
  %854 = vst [vmem:[%s5 + $0x1e8] sm:$0xff] %v573
  %855 = vst [vmem:[%s5 + $0x1f0] sm:$0xff] %v662
  %856 = vst [vmem:[%s5 + $0x1f8] sm:$0xff] %v751
  %857 = vst [vmem:[%s5 + $0x200] sm:$0xff] %v487
  %858 = vst [vmem:[%s5 + $0x208] sm:$0xff] %v576
  %859 = vst [vmem:[%s5 + $0x210] sm:$0xff] %v665
  %860 = vst [vmem:[%s5 + $0x218] sm:$0xff] %v754
  %861 = vst [vmem:[%s5 + $0x220] sm:$0xff] %v489
  %862 = vst [vmem:[%s5 + $0x228] sm:$0xff] %v578
  %863 = vst [vmem:[%s5 + $0x230] sm:$0xff] %v667
  %864 = vst [vmem:[%s5 + $0x238] sm:$0xff] %v756
  %865 = vst [vmem:[%s5 + $0x240] sm:$0xff] %v492
  %866 = vst [vmem:[%s5 + $0x248] sm:$0xff] %v581
  %867 = vst [vmem:[%s5 + $0x250] sm:$0xff] %v670
  %868 = vst [vmem:[%s5 + $0x258] sm:$0xff] %v759
  %869 = vst [vmem:[%s5 + $0x260] sm:$0xff] %v494
  %870 = vst [vmem:[%s5 + $0x268] sm:$0xff] %v583
  %871 = vst [vmem:[%s5 + $0x270] sm:$0xff] %v672
  %872 = vst [vmem:[%s5 + $0x278] sm:$0xff] %v761
  %873 = vst [vmem:[%s5 + $0x280] sm:$0xff] %v497
  %874 = vst [vmem:[%s5 + $0x288] sm:$0xff] %v586
  %875 = vst [vmem:[%s5 + $0x290] sm:$0xff] %v675
  %876 = vst [vmem:[%s5 + $0x298] sm:$0xff] %v764
  %877 = vst [vmem:[%s5 + $0x2a0] sm:$0xff] %v499
  %878 = vst [vmem:[%s5 + $0x2a8] sm:$0xff] %v588
  %879 = vst [vmem:[%s5 + $0x2b0] sm:$0xff] %v677
  %880 = vst [vmem:[%s5 + $0x2b8] sm:$0xff] %v766
  %881 = vst [vmem:[%s5 + $0x2c0] sm:$0xff] %v502
  %882 = vst [vmem:[%s5 + $0x2c8] sm:$0xff] %v591
  %883 = vst [vmem:[%s5 + $0x2d0] sm:$0xff] %v680
  %884 = vst [vmem:[%s5 + $0x2d8] sm:$0xff] %v769
  %885 = vst [vmem:[%s5 + $0x2e0] sm:$0xff] %v504
  %886 = vst [vmem:[%s5 + $0x2e8] sm:$0xff] %v593
  %887 = vst [vmem:[%s5 + $0x2f0] sm:$0xff] %v682
  %888 = vst [vmem:[%s5 + $0x2f8] sm:$0xff] %v771
  %889 = vst [vmem:[%s5 + $0x300] sm:$0xff] %v507
  %890 = vst [vmem:[%s5 + $0x308] sm:$0xff] %v596
  %891 = vst [vmem:[%s5 + $0x310] sm:$0xff] %v685
  %892 = vst [vmem:[%s5 + $0x318] sm:$0xff] %v774
  %893 = vst [vmem:[%s5 + $0x320] sm:$0xff] %v509
  %894 = vst [vmem:[%s5 + $0x328] sm:$0xff] %v598
  %895 = vst [vmem:[%s5 + $0x330] sm:$0xff] %v687
  %896 = vst [vmem:[%s5 + $0x338] sm:$0xff] %v776
  %897 = vst [vmem:[%s5 + $0x340] sm:$0xff] %v512
  %898 = vst [vmem:[%s5 + $0x348] sm:$0xff] %v601
  %899 = vst [vmem:[%s5 + $0x350] sm:$0xff] %v690
  %900 = vst [vmem:[%s5 + $0x358] sm:$0xff] %v779
  %901 = vst [vmem:[%s5 + $0x360] sm:$0xff] %v514
  %902 = vst [vmem:[%s5 + $0x368] sm:$0xff] %v603
  %903 = vst [vmem:[%s5 + $0x370] sm:$0xff] %v692
  %904 = vst [vmem:[%s5 + $0x378] sm:$0xff] %v781
  %905 = vst [vmem:[%s5 + $0x380] sm:$0xff] %v517
  %906 = vst [vmem:[%s5 + $0x388] sm:$0xff] %v606
  %907 = vst [vmem:[%s5 + $0x390] sm:$0xff] %v695
  %908 = vst [vmem:[%s5 + $0x398] sm:$0xff] %v784
  %909 = vst [vmem:[%s5 + $0x3a0] sm:$0xff] %v519
  %910 = vst [vmem:[%s5 + $0x3a8] sm:$0xff] %v608
  %911 = vst [vmem:[%s5 + $0x3b0] sm:$0xff] %v697
  %912 = vst [vmem:[%s5 + $0x3b8] sm:$0xff] %v786
  %913 = vst [vmem:[%s5 + $0x3c0] sm:$0xff] %v522
  %914 = vst [vmem:[%s5 + $0x3c8] sm:$0xff] %v611
  %915 = vst [vmem:[%s5 + $0x3d0] sm:$0xff] %v700
  %916 = vst [vmem:[%s5 + $0x3d8] sm:$0xff] %v789
  %917 = vst [vmem:[%s5 + $0x3e0] sm:$0xff] %v524
  %918 = vst [vmem:[%s5 + $0x3e8] sm:$0xff] %v613
  %919 = vst [vmem:[%s5 + $0x3f0] sm:$0xff] %v702
  %920 = vst [vmem:[%s5 + $0x3f8] sm:$0xff] %v791
  // Predicated region
  $region22: #{lstm_forward.2} parent=0 // pred_check
    _
  $region23: #{lstm_forward.2} parent=0 // pred_check_branch
    %922 = sbr.rel (0) target = $region25
  $region24: #{lstm_forward.2} parent=0 // pred_region
    _
  $region25: #{lstm_forward.2} parent=0 // pred_fallthru
    _
  // Predicated region
  $region26: #{lstm_forward.2} parent=0 // pred_check
    _
  $region27: #{lstm_forward.2} parent=0 // pred_check_branch
    %924 = sbr.rel (0) target = $region29
  $region28: #{lstm_forward.2} parent=0 // pred_region
    _
  $region29: #{lstm_forward.2} parent=0 // pred_fallthru
    _

// kernel: lstm_forward.3
$region0: #{lstm_forward.3}
  #allocation0 [shape = 'u32[]', space=smem, size = 0x4, offset = 0x4, fixed_abs, tag = 'smem constant byte address 0x4 - core index']
  #allocation1 [shape = 'u32[72,128]{1,0:T(1,128)}', space=vmem, size = 0x9000, scoped, tag = 'internal scratch']
  #allocation2 [shape = 'f32[8,128]{1,0:T(8,128)}', space=vmem, size = 0x1000, scoped, tag = 'scratch operand']
  #allocation3 [shape = 'f32[8,128]{1,0:T(8,128)}', space=vmem, size = 0x1000, scoped, tag = 'scratch operand']
  %s0 = inlined_call_operand.vmem [shape: f32[32,8,512], index: 0, kind: input, shape index: {}]
  %s1 = inlined_call_operand.vmem [shape: f32[8,128], index: 1, kind: input, shape index: {}]
  %s2 = inlined_call_operand.vmem [shape: f32[8,128], index: 2, kind: input, shape index: {}]
  %s3 = inlined_call_operand.vmem [shape: bf16[128,512], index: 3, kind: input, shape index: {}]
  %s4 = inlined_call_operand.vmem [shape: f32[32,8,128], index: 4, kind: output, shape index: {0}]
  %s5 = inlined_call_operand.hbm [shape: f32[8,128], index: 5, kind: output, shape index: {1}]
  %s6 = inlined_call_operand.hbm [shape: f32[8,128], index: 6, kind: output, shape index: {2}]
  %7 = xla_tuple %s4, %s5, %s6
  %s8 = sld [smem:[#allocation0]]
  $region50: #{lstm_forward.3} parent=0
    _
  %s10 = ssub.s32 1, %s8
  %s11 = scalar_select 0, %s10, %s8
  $region1: #{lstm_forward.3} parent=0
    #allocation4 [shape = 'u8[4096]{0}', space=vmem, size = 0x1000, scoped, tag = 'output window, operand 1, single buffered']
    #allocation5 [shape = 's32[1]{0}', space=sflag, size = 0x4, scoped, tag = 'scoped memory for lstm_forward.3']
    #allocation6 [shape = 'u8[4096]{0}', space=vmem, size = 0x1000, scoped, tag = 'output window, operand 2, single buffered']
    #allocation7 [shape = 's32[1]{0}', space=sflag, size = 0x4, scoped, tag = 'scoped memory for lstm_forward.3']
    %12 = vsyncpa [#allocation5], 0
    %13 = vsyncpa [#allocation7], 0
    // Predicated region
    $region2: #{lstm_forward.3} parent=1 // pred_check
      _
    $region3: #{lstm_forward.3} parent=1 // pred_check_branch
      %15 = sbr.rel (0) target = $region5
    $region4: #{lstm_forward.3} parent=1 // pred_region
      _
    $region5: #{lstm_forward.3} parent=1 // pred_fallthru
      _
    // Predicated region
    $region6: #{lstm_forward.3} parent=1 // pred_check
      _
    $region7: #{lstm_forward.3} parent=1 // pred_check_branch
      %17 = sbr.rel (0) target = $region9
    $region8: #{lstm_forward.3} parent=1 // pred_region
      _
    $region9: #{lstm_forward.3} parent=1 // pred_fallthru
      _
    // Predicated region
    $region10: #{lstm_forward.3} parent=1 // pred_check
      _
    $region11: #{lstm_forward.3} parent=1 // pred_check_branch
      %19 = sbr.rel (0) target = $region13
    $region12: #{lstm_forward.3} parent=1 // pred_region
      _
    $region13: #{lstm_forward.3} parent=1 // pred_fallthru
      _
    // Predicated region
    $region14: #{lstm_forward.3} parent=1 // pred_check
      _
    $region15: #{lstm_forward.3} parent=1 // pred_check_branch
      %21 = sbr.rel (0) target = $region17
    $region16: #{lstm_forward.3} parent=1 // pred_region
      _
    $region17: #{lstm_forward.3} parent=1 // pred_fallthru
      _
    %p22 = scmp.eq.s32.totalorder 0, 0
    // Predicated region
    $region18: #{lstm_forward.3} parent=1 // pred_check
      %p23 = pneg %p22
    $region19: #{lstm_forward.3} parent=1 // pred_check_branch
      %25 = sbr.rel (%p23) target = $region21
    $region20: #{lstm_forward.3} parent=1 // pred_region
      %v26 = vld [vmem:[%s1] sm:$0xff]
      %27 = vst [vmem:[#allocation2] sm:$0xff] %v26
      %v28 = vld [vmem:[%s2] sm:$0xff]
      %29 = vst [vmem:[#allocation3] sm:$0xff] %v28
    $region21: #{lstm_forward.3} parent=1 // pred_fallthru
      _
    %v30 = vld [vmem:[%s3] sm:$0xff]
    %v31 = vld [vmem:[%s3 + $0x8] sm:$0xff]
    %v32 = vld [vmem:[%s3 + $0x10] sm:$0xff]
    %v33 = vld [vmem:[%s3 + $0x18] sm:$0xff]
    %v34 = vld [vmem:[%s3 + $0x20] sm:$0xff]
    %v35 = vld [vmem:[%s3 + $0x28] sm:$0xff]
    %v36 = vld [vmem:[%s3 + $0x30] sm:$0xff]
    %v37 = vld [vmem:[%s3 + $0x38] sm:$0xff]
    %v38 = vld [vmem:[%s3 + $0x40] sm:$0xff]
    %v39 = vld [vmem:[%s3 + $0x48] sm:$0xff]
    %v40 = vld [vmem:[%s3 + $0x50] sm:$0xff]
    %v41 = vld [vmem:[%s3 + $0x58] sm:$0xff]
    %v42 = vld [vmem:[%s3 + $0x60] sm:$0xff]
    %v43 = vld [vmem:[%s3 + $0x68] sm:$0xff]
    %v44 = vld [vmem:[%s3 + $0x70] sm:$0xff]
    %v45 = vld [vmem:[%s3 + $0x78] sm:$0xff]
    %v46 = vld [vmem:[%s3 + $0x80] sm:$0xff]
    %v47 = vld [vmem:[%s3 + $0x88] sm:$0xff]
    %v48 = vld [vmem:[%s3 + $0x90] sm:$0xff]
    %v49 = vld [vmem:[%s3 + $0x98] sm:$0xff]
    %v50 = vld [vmem:[%s3 + $0xa0] sm:$0xff]
    %v51 = vld [vmem:[%s3 + $0xa8] sm:$0xff]
    %v52 = vld [vmem:[%s3 + $0xb0] sm:$0xff]
    %v53 = vld [vmem:[%s3 + $0xb8] sm:$0xff]
    %v54 = vld [vmem:[%s3 + $0xc0] sm:$0xff]
    %v55 = vld [vmem:[%s3 + $0xc8] sm:$0xff]
    %v56 = vld [vmem:[%s3 + $0xd0] sm:$0xff]
    %v57 = vld [vmem:[%s3 + $0xd8] sm:$0xff]
    %v58 = vld [vmem:[%s3 + $0xe0] sm:$0xff]
    %v59 = vld [vmem:[%s3 + $0xe8] sm:$0xff]
    %v60 = vld [vmem:[%s3 + $0xf0] sm:$0xff]
    %v61 = vld [vmem:[%s3 + $0xf8] sm:$0xff]
    %v62 = vld [vmem:[#allocation2] sm:$0xff]
    %v63 = vld [vmem:[#allocation3] sm:$0xff]
    %v64 = vld [vmem:[%s0] sm:$0xff]
    %v65 = vld [vmem:[%s0 + $0x8] sm:$0xff]
    %v66 = vld [vmem:[%s0 + $0x10] sm:$0xff]
    %v67 = vld [vmem:[%s0 + $0x18] sm:$0xff]
    %v68 = vpack.c.bf16 %v62, %v62
    %v101 = vunpack.c.l.b16 %v30
    %v102 = vunpack.c.h.b16 %v30
    %v103 = vunpack.c.l.b16 %v31
    %v104 = vunpack.c.h.b16 %v31
    %v105 = vunpack.c.l.b16 %v32
    %v106 = vunpack.c.h.b16 %v32
    %v107 = vunpack.c.l.b16 %v33
    %v108 = vunpack.c.h.b16 %v33
    %v109 = vunpack.c.l.b16 %v34
    %v110 = vunpack.c.h.b16 %v34
    %v111 = vunpack.c.l.b16 %v35
    %v112 = vunpack.c.h.b16 %v35
    %v113 = vunpack.c.l.b16 %v36
    %v114 = vunpack.c.h.b16 %v36
    %v115 = vunpack.c.l.b16 %v37
    %v116 = vunpack.c.h.b16 %v37
    %v117 = vunpack.c.l.b16 %v38
    %v118 = vunpack.c.h.b16 %v38
    %v119 = vunpack.c.l.b16 %v39
    %v120 = vunpack.c.h.b16 %v39
    %v121 = vunpack.c.l.b16 %v40
    %v122 = vunpack.c.h.b16 %v40
    %v123 = vunpack.c.l.b16 %v41
    %v124 = vunpack.c.h.b16 %v41
    %v125 = vunpack.c.l.b16 %v42
    %v126 = vunpack.c.h.b16 %v42
    %v127 = vunpack.c.l.b16 %v43
    %v128 = vunpack.c.h.b16 %v43
    %v129 = vunpack.c.l.b16 %v44
    %v130 = vunpack.c.h.b16 %v44
    %v131 = vunpack.c.l.b16 %v45
    %v132 = vunpack.c.h.b16 %v45
    %v133 = vunpack.c.l.b16 %v46
    %v134 = vunpack.c.h.b16 %v46
    %v135 = vunpack.c.l.b16 %v47
    %v136 = vunpack.c.h.b16 %v47
    %v137 = vunpack.c.l.b16 %v48
    %v138 = vunpack.c.h.b16 %v48
    %v139 = vunpack.c.l.b16 %v49
    %v140 = vunpack.c.h.b16 %v49
    %v141 = vunpack.c.l.b16 %v50
    %v142 = vunpack.c.h.b16 %v50
    %v143 = vunpack.c.l.b16 %v51
    %v144 = vunpack.c.h.b16 %v51
    %v145 = vunpack.c.l.b16 %v52
    %v146 = vunpack.c.h.b16 %v52
    %v147 = vunpack.c.l.b16 %v53
    %v148 = vunpack.c.h.b16 %v53
    %v149 = vunpack.c.l.b16 %v54
    %v150 = vunpack.c.h.b16 %v54
    %v151 = vunpack.c.l.b16 %v55
    %v152 = vunpack.c.h.b16 %v55
    %v153 = vunpack.c.l.b16 %v56
    %v154 = vunpack.c.h.b16 %v56
    %v155 = vunpack.c.l.b16 %v57
    %v156 = vunpack.c.h.b16 %v57
    %v157 = vunpack.c.l.b16 %v58
    %v158 = vunpack.c.h.b16 %v58
    %v159 = vunpack.c.l.b16 %v59
    %v160 = vunpack.c.h.b16 %v59
    %v161 = vunpack.c.l.b16 %v60
    %v162 = vunpack.c.h.b16 %v60
    %v163 = vunpack.c.l.b16 %v61
    %v164 = vunpack.c.h.b16 %v61
    %v165 = vpack.c.b16 %v105, %v101
    %v166 = vpack.c.b16 %v106, %v102
    %v167 = vpack.c.b16 %v107, %v103
    %v168 = vpack.c.b16 %v108, %v104
    %v169 = vpack.c.b16 %v113, %v109
    %v170 = vpack.c.b16 %v114, %v110
    %v171 = vpack.c.b16 %v115, %v111
    %v172 = vpack.c.b16 %v116, %v112
    %v173 = vpack.c.b16 %v121, %v117
    %v174 = vpack.c.b16 %v122, %v118
    %v175 = vpack.c.b16 %v123, %v119
    %v176 = vpack.c.b16 %v124, %v120
    %v177 = vpack.c.b16 %v129, %v125
    %v178 = vpack.c.b16 %v130, %v126
    %v179 = vpack.c.b16 %v131, %v127
    %v180 = vpack.c.b16 %v132, %v128
    %v181 = vpack.c.b16 %v137, %v133
    %v182 = vpack.c.b16 %v138, %v134
    %v183 = vpack.c.b16 %v139, %v135
    %v184 = vpack.c.b16 %v140, %v136
    %v185 = vpack.c.b16 %v145, %v141
    %v186 = vpack.c.b16 %v146, %v142
    %v187 = vpack.c.b16 %v147, %v143
    %v188 = vpack.c.b16 %v148, %v144
    %v189 = vpack.c.b16 %v153, %v149
    %v190 = vpack.c.b16 %v154, %v150
    %v191 = vpack.c.b16 %v155, %v151
    %v192 = vpack.c.b16 %v156, %v152
    %v193 = vpack.c.b16 %v161, %v157
    %v194 = vpack.c.b16 %v162, %v158
    %v195 = vpack.c.b16 %v163, %v159
    %v196 = vpack.c.b16 %v164, %v160
    %229 = vmatpush.bf16.msra.mxu0 %v193
    %230 = vmatpush.bf16.msra.mxu0 %v189
    %231 = vmatpush.bf16.msra.mxu0 %v185
    %232 = vmatpush.bf16.msra.mxu0 %v181
    %233 = vmatpush.bf16.msra.mxu0 %v177
    %234 = vmatpush.bf16.msra.mxu0 %v173
    %235 = vmatpush.bf16.msra.mxu0 %v169
    %236 = vmatpush.bf16.msra.mxu0 %v165
    %237 = vmatmul.bf16.gmra.mxu0 %v68
    %v238 = vpop.f32.mrf.mxu0
    %v239 = vadd.f32 0.0, %v238
    %v240 = vpop.f32.mrf.mxu0
    %241 = vdwg.mxu0
    %242 = vmatpush.bf16.msra.mxu0 %v194
    %243 = vmatpush.bf16.msra.mxu0 %v190
    %244 = vmatpush.bf16.msra.mxu0 %v186
    %245 = vmatpush.bf16.msra.mxu0 %v182
    %246 = vmatpush.bf16.msra.mxu0 %v178
    %247 = vmatpush.bf16.msra.mxu0 %v174
    %248 = vmatpush.bf16.msra.mxu0 %v170
    %249 = vmatpush.bf16.msra.mxu0 %v166
    %250 = vmatmul.bf16.gmra.mxu0 %v68
    %v251 = vpop.f32.mrf.mxu0
    %v252 = vadd.f32 0.0, %v251
    %v253 = vpop.f32.mrf.mxu0
    %254 = vdwg.mxu0
    %255 = vmatpush.bf16.msra.mxu0 %v195
    %256 = vmatpush.bf16.msra.mxu0 %v191
    %257 = vmatpush.bf16.msra.mxu0 %v187
    %258 = vmatpush.bf16.msra.mxu0 %v183
    %259 = vmatpush.bf16.msra.mxu0 %v179
    %260 = vmatpush.bf16.msra.mxu0 %v175
    %261 = vmatpush.bf16.msra.mxu0 %v171
    %262 = vmatpush.bf16.msra.mxu0 %v167
    %263 = vmatmul.bf16.gmra.mxu0 %v68
    %v264 = vpop.f32.mrf.mxu0
    %v265 = vadd.f32 0.0, %v264
    %v266 = vpop.f32.mrf.mxu0
    %267 = vdwg.mxu0
    %268 = vmatpush.bf16.msra.mxu0 %v196
    %269 = vmatpush.bf16.msra.mxu0 %v192
    %270 = vmatpush.bf16.msra.mxu0 %v188
    %271 = vmatpush.bf16.msra.mxu0 %v184
    %272 = vmatpush.bf16.msra.mxu0 %v180
    %273 = vmatpush.bf16.msra.mxu0 %v176
    %274 = vmatpush.bf16.msra.mxu0 %v172
    %275 = vmatpush.bf16.msra.mxu0 %v168
    %276 = vmatmul.bf16.gmra.mxu0 %v68
    %v277 = vpop.f32.mrf.mxu0
    %v278 = vadd.f32 0.0, %v277
    %v279 = vpop.f32.mrf.mxu0
    %280 = vdwg.mxu0
    %v281 = vadd.f32 %v64, %v239
    %v282 = vadd.f32 %v65, %v252
    %v283 = vadd.f32 %v66, %v265
    %v284 = vadd.f32 %v67, %v278
    %v285 = vxor.u32 %v281, 2147483648
    %v286 = vmul.f32 %v285, 1.442695
    %v287 = vpow.pop %v286
    %v288 = vadd.f32 %v287, 1.0
    %v289 = vrcp.pop %v288
    %v290 = vmul.f32 %v288, %v289
    %v291 = vsub.f32 1.0, %v290
    %v292 = vmul.f32 %v289, %v291
    %v293 = vadd.f32 %v289, %v292
    %vm294 = vweird.f32 %v288
    %vm295 = vweird.f32 %v289
    %vm296 = vmor %vm294, %vm295
    %v297 = vsel %vm296, %v289, %v293
    %v298 = vand.u32 2147483647, %v288
    %vm299 = vcmp.eq.f32.partialorder %v298, 8.507059e+37
    %v300 = vand.u32 %v288, 2147483648
    %v301 = vor.u32 1.1754944e-38, %v300
    %v302 = vsel %vm299, %v301, %v297
    %v303 = vmul.f32 1.0, %v302
    %v304 = vxor.u32 %v282, 2147483648
    %v305 = vmul.f32 %v304, 1.442695
    %v306 = vpow.pop %v305
    %v307 = vadd.f32 %v306, 1.0
    %v308 = vrcp.pop %v307
    %v309 = vmul.f32 %v307, %v308
    %v310 = vsub.f32 1.0, %v309
    %v311 = vmul.f32 %v308, %v310
    %v312 = vadd.f32 %v308, %v311
    %vm313 = vweird.f32 %v307
    %vm314 = vweird.f32 %v308
    %vm315 = vmor %vm313, %vm314
    %v316 = vsel %vm315, %v308, %v312
    %v317 = vand.u32 2147483647, %v307
    %vm318 = vcmp.eq.f32.partialorder %v317, 8.507059e+37
    %v319 = vand.u32 %v307, 2147483648
    %v320 = vor.u32 1.1754944e-38, %v319
    %v321 = vsel %vm318, %v320, %v316
    %v322 = vmul.f32 1.0, %v321
    %v323 = vtanh.pop %v283
    %v324 = vxor.u32 %v284, 2147483648
    %v325 = vmul.f32 %v324, 1.442695
    %v326 = vpow.pop %v325
    %v327 = vadd.f32 %v326, 1.0
    %v328 = vrcp.pop %v327
    %v329 = vmul.f32 %v327, %v328
    %v330 = vsub.f32 1.0, %v329
    %v331 = vmul.f32 %v328, %v330
    %v332 = vadd.f32 %v328, %v331
    %vm333 = vweird.f32 %v327
    %vm334 = vweird.f32 %v328
    %vm335 = vmor %vm333, %vm334
    %v336 = vsel %vm335, %v328, %v332
    %v337 = vand.u32 2147483647, %v327
    %vm338 = vcmp.eq.f32.partialorder %v337, 8.507059e+37
    %v339 = vand.u32 %v327, 2147483648
    %v340 = vor.u32 1.1754944e-38, %v339
    %v341 = vsel %vm338, %v340, %v336
    %v342 = vmul.f32 1.0, %v341
    %v343 = vmul.f32 %v323, %v303
    %v344 = vmul.f32 %v322, %v63
    %v345 = vadd.f32 %v343, %v344
    %v346 = vtanh.pop %v345
    %v347 = vmul.f32 %v342, %v346
    %348 = vst [vmem:[%s4] sm:$0xff] %v347
    %s349 = scalar_lea.vmem %s0, 32
    %v350 = vld [vmem:[%s349] sm:$0xff]
    %v351 = vld [vmem:[%s349 + $0x8] sm:$0xff]
    %v352 = vld [vmem:[%s349 + $0x10] sm:$0xff]
    %v353 = vld [vmem:[%s349 + $0x18] sm:$0xff]
    %v354 = vpack.c.bf16 %v347, %v347
    %355 = vmatpush.bf16.msra.mxu0 %v193
    %356 = vmatpush.bf16.msra.mxu0 %v189
    %357 = vmatpush.bf16.msra.mxu0 %v185
    %358 = vmatpush.bf16.msra.mxu0 %v181
    %359 = vmatpush.bf16.msra.mxu0 %v177
    %360 = vmatpush.bf16.msra.mxu0 %v173
    %361 = vmatpush.bf16.msra.mxu0 %v169
    %362 = vmatpush.bf16.msra.mxu0 %v165
    %363 = vmatmul.bf16.gmra.mxu0 %v354
    %v364 = vpop.f32.mrf.mxu0
    %v365 = vadd.f32 0.0, %v364
    %v366 = vpop.f32.mrf.mxu0
    %367 = vdwg.mxu0
    %368 = vmatpush.bf16.msra.mxu0 %v194
    %369 = vmatpush.bf16.msra.mxu0 %v190
    %370 = vmatpush.bf16.msra.mxu0 %v186
    %371 = vmatpush.bf16.msra.mxu0 %v182
    %372 = vmatpush.bf16.msra.mxu0 %v178
    %373 = vmatpush.bf16.msra.mxu0 %v174
    %374 = vmatpush.bf16.msra.mxu0 %v170
    %375 = vmatpush.bf16.msra.mxu0 %v166
    %376 = vmatmul.bf16.gmra.mxu0 %v354
    %v377 = vpop.f32.mrf.mxu0
    %v378 = vadd.f32 0.0, %v377
    %v379 = vpop.f32.mrf.mxu0
    %380 = vdwg.mxu0
    %381 = vmatpush.bf16.msra.mxu0 %v195
    %382 = vmatpush.bf16.msra.mxu0 %v191
    %383 = vmatpush.bf16.msra.mxu0 %v187
    %384 = vmatpush.bf16.msra.mxu0 %v183
    %385 = vmatpush.bf16.msra.mxu0 %v179
    %386 = vmatpush.bf16.msra.mxu0 %v175
    %387 = vmatpush.bf16.msra.mxu0 %v171
    %388 = vmatpush.bf16.msra.mxu0 %v167
    %389 = vmatmul.bf16.gmra.mxu0 %v354
    %v390 = vpop.f32.mrf.mxu0
    %v391 = vadd.f32 0.0, %v390
    %v392 = vpop.f32.mrf.mxu0
    %393 = vdwg.mxu0
    %394 = vmatpush.bf16.msra.mxu0 %v196
    %395 = vmatpush.bf16.msra.mxu0 %v192
    %396 = vmatpush.bf16.msra.mxu0 %v188
    %397 = vmatpush.bf16.msra.mxu0 %v184
    %398 = vmatpush.bf16.msra.mxu0 %v180
    %399 = vmatpush.bf16.msra.mxu0 %v176
    %400 = vmatpush.bf16.msra.mxu0 %v172
    %401 = vmatpush.bf16.msra.mxu0 %v168
    %402 = vmatmul.bf16.gmra.mxu0 %v354
    %v403 = vpop.f32.mrf.mxu0
    %v404 = vadd.f32 0.0, %v403
    %v405 = vpop.f32.mrf.mxu0
    %406 = vdwg.mxu0
    %v407 = vadd.f32 %v350, %v365
    %v408 = vadd.f32 %v351, %v378
    %v409 = vadd.f32 %v352, %v391
    %v410 = vadd.f32 %v353, %v404
    %v411 = vxor.u32 %v407, 2147483648
    %v412 = vmul.f32 %v411, 1.442695
    %v413 = vpow.pop %v412
    %v414 = vadd.f32 %v413, 1.0
    %v415 = vrcp.pop %v414
    %v416 = vmul.f32 %v414, %v415
    %v417 = vsub.f32 1.0, %v416
    %v418 = vmul.f32 %v415, %v417
    %v419 = vadd.f32 %v415, %v418
    %vm420 = vweird.f32 %v414
    %vm421 = vweird.f32 %v415
    %vm422 = vmor %vm420, %vm421
    %v423 = vsel %vm422, %v415, %v419
    %v424 = vand.u32 2147483647, %v414
    %vm425 = vcmp.eq.f32.partialorder %v424, 8.507059e+37
    %v426 = vand.u32 %v414, 2147483648
    %v427 = vor.u32 1.1754944e-38, %v426
    %v428 = vsel %vm425, %v427, %v423
    %v429 = vmul.f32 1.0, %v428
    %v430 = vxor.u32 %v408, 2147483648
    %v431 = vmul.f32 %v430, 1.442695
    %v432 = vpow.pop %v431
    %v433 = vadd.f32 %v432, 1.0
    %v434 = vrcp.pop %v433
    %v435 = vmul.f32 %v433, %v434
    %v436 = vsub.f32 1.0, %v435
    %v437 = vmul.f32 %v434, %v436
    %v438 = vadd.f32 %v434, %v437
    %vm439 = vweird.f32 %v433
    %vm440 = vweird.f32 %v434
    %vm441 = vmor %vm439, %vm440
    %v442 = vsel %vm441, %v434, %v438
    %v443 = vand.u32 2147483647, %v433
    %vm444 = vcmp.eq.f32.partialorder %v443, 8.507059e+37
    %v445 = vand.u32 %v433, 2147483648
    %v446 = vor.u32 1.1754944e-38, %v445
    %v447 = vsel %vm444, %v446, %v442
    %v448 = vmul.f32 1.0, %v447
    %v449 = vtanh.pop %v409
    %v450 = vxor.u32 %v410, 2147483648
    %v451 = vmul.f32 %v450, 1.442695
    %v452 = vpow.pop %v451
    %v453 = vadd.f32 %v452, 1.0
    %v454 = vrcp.pop %v453
    %v455 = vmul.f32 %v453, %v454
    %v456 = vsub.f32 1.0, %v455
    %v457 = vmul.f32 %v454, %v456
    %v458 = vadd.f32 %v454, %v457
    %vm459 = vweird.f32 %v453
    %vm460 = vweird.f32 %v454
    %vm461 = vmor %vm459, %vm460
    %v462 = vsel %vm461, %v454, %v458
    %v463 = vand.u32 2147483647, %v453
    %vm464 = vcmp.eq.f32.partialorder %v463, 8.507059e+37
    %v465 = vand.u32 %v453, 2147483648
    %v466 = vor.u32 1.1754944e-38, %v465
    %v467 = vsel %vm464, %v466, %v462
    %v468 = vmul.f32 1.0, %v467
    %v469 = vmul.f32 %v449, %v429
    %v470 = vmul.f32 %v448, %v345
    %v471 = vadd.f32 %v469, %v470
    %v472 = vtanh.pop %v471
    %v473 = vmul.f32 %v468, %v472
    %s474 = scalar_lea.vmem %s4, 8
    %475 = vst [vmem:[%s474] sm:$0xff] %v473
    %s476 = scalar_lea.vmem %s0, 64
    %v477 = vld [vmem:[%s476] sm:$0xff]
    %v478 = vld [vmem:[%s476 + $0x8] sm:$0xff]
    %v479 = vld [vmem:[%s476 + $0x10] sm:$0xff]
    %v480 = vld [vmem:[%s476 + $0x18] sm:$0xff]
    %v481 = vpack.c.bf16 %v473, %v473
    %482 = vmatpush.bf16.msra.mxu0 %v193
    %483 = vmatpush.bf16.msra.mxu0 %v189
    %484 = vmatpush.bf16.msra.mxu0 %v185
    %485 = vmatpush.bf16.msra.mxu0 %v181
    %486 = vmatpush.bf16.msra.mxu0 %v177
    %487 = vmatpush.bf16.msra.mxu0 %v173
    %488 = vmatpush.bf16.msra.mxu0 %v169
    %489 = vmatpush.bf16.msra.mxu0 %v165
    %490 = vmatmul.bf16.gmra.mxu0 %v481
    %v491 = vpop.f32.mrf.mxu0
    %v492 = vadd.f32 0.0, %v491
    %v493 = vpop.f32.mrf.mxu0
    %494 = vdwg.mxu0
    %495 = vmatpush.bf16.msra.mxu0 %v194
    %496 = vmatpush.bf16.msra.mxu0 %v190
    %497 = vmatpush.bf16.msra.mxu0 %v186
    %498 = vmatpush.bf16.msra.mxu0 %v182
    %499 = vmatpush.bf16.msra.mxu0 %v178
    %500 = vmatpush.bf16.msra.mxu0 %v174
    %501 = vmatpush.bf16.msra.mxu0 %v170
    %502 = vmatpush.bf16.msra.mxu0 %v166
    %503 = vmatmul.bf16.gmra.mxu0 %v481
    %v504 = vpop.f32.mrf.mxu0
    %v505 = vadd.f32 0.0, %v504
    %v506 = vpop.f32.mrf.mxu0
    %507 = vdwg.mxu0
    %508 = vmatpush.bf16.msra.mxu0 %v195
    %509 = vmatpush.bf16.msra.mxu0 %v191
    %510 = vmatpush.bf16.msra.mxu0 %v187
    %511 = vmatpush.bf16.msra.mxu0 %v183
    %512 = vmatpush.bf16.msra.mxu0 %v179
    %513 = vmatpush.bf16.msra.mxu0 %v175
    %514 = vmatpush.bf16.msra.mxu0 %v171
    %515 = vmatpush.bf16.msra.mxu0 %v167
    %516 = vmatmul.bf16.gmra.mxu0 %v481
    %v517 = vpop.f32.mrf.mxu0
    %v518 = vadd.f32 0.0, %v517
    %v519 = vpop.f32.mrf.mxu0
    %520 = vdwg.mxu0
    %521 = vmatpush.bf16.msra.mxu0 %v196
    %522 = vmatpush.bf16.msra.mxu0 %v192
    %523 = vmatpush.bf16.msra.mxu0 %v188
    %524 = vmatpush.bf16.msra.mxu0 %v184
    %525 = vmatpush.bf16.msra.mxu0 %v180
    %526 = vmatpush.bf16.msra.mxu0 %v176
    %527 = vmatpush.bf16.msra.mxu0 %v172
    %528 = vmatpush.bf16.msra.mxu0 %v168
    %529 = vmatmul.bf16.gmra.mxu0 %v481
    %v530 = vpop.f32.mrf.mxu0
    %v531 = vadd.f32 0.0, %v530
    %v532 = vpop.f32.mrf.mxu0
    %533 = vdwg.mxu0
    %v534 = vadd.f32 %v477, %v492
    %v535 = vadd.f32 %v478, %v505
    %v536 = vadd.f32 %v479, %v518
    %v537 = vadd.f32 %v480, %v531
    %v538 = vxor.u32 %v534, 2147483648
    %v539 = vmul.f32 %v538, 1.442695
    %v540 = vpow.pop %v539
    %v541 = vadd.f32 %v540, 1.0
    %v542 = vrcp.pop %v541
    %v543 = vmul.f32 %v541, %v542
    %v544 = vsub.f32 1.0, %v543
    %v545 = vmul.f32 %v542, %v544
    %v546 = vadd.f32 %v542, %v545
    %vm547 = vweird.f32 %v541
    %vm548 = vweird.f32 %v542
    %vm549 = vmor %vm547, %vm548
    %v550 = vsel %vm549, %v542, %v546
    %v551 = vand.u32 2147483647, %v541
    %vm552 = vcmp.eq.f32.partialorder %v551, 8.507059e+37
    %v553 = vand.u32 %v541, 2147483648
    %v554 = vor.u32 1.1754944e-38, %v553
    %v555 = vsel %vm552, %v554, %v550
    %v556 = vmul.f32 1.0, %v555
    %v557 = vxor.u32 %v535, 2147483648
    %v558 = vmul.f32 %v557, 1.442695
    %v559 = vpow.pop %v558
    %v560 = vadd.f32 %v559, 1.0
    %v561 = vrcp.pop %v560
    %v562 = vmul.f32 %v560, %v561
    %v563 = vsub.f32 1.0, %v562
    %v564 = vmul.f32 %v561, %v563
    %v565 = vadd.f32 %v561, %v564
    %vm566 = vweird.f32 %v560
    %vm567 = vweird.f32 %v561
    %vm568 = vmor %vm566, %vm567
    %v569 = vsel %vm568, %v561, %v565
    %v570 = vand.u32 2147483647, %v560
    %vm571 = vcmp.eq.f32.partialorder %v570, 8.507059e+37
    %v572 = vand.u32 %v560, 2147483648
    %v573 = vor.u32 1.1754944e-38, %v572
    %v574 = vsel %vm571, %v573, %v569
    %v575 = vmul.f32 1.0, %v574
    %v576 = vtanh.pop %v536
    %v577 = vxor.u32 %v537, 2147483648
    %v578 = vmul.f32 %v577, 1.442695
    %v579 = vpow.pop %v578
    %v580 = vadd.f32 %v579, 1.0
    %v581 = vrcp.pop %v580
    %v582 = vmul.f32 %v580, %v581
    %v583 = vsub.f32 1.0, %v582
    %v584 = vmul.f32 %v581, %v583
    %v585 = vadd.f32 %v581, %v584
    %vm586 = vweird.f32 %v580
    %vm587 = vweird.f32 %v581
    %vm588 = vmor %vm586, %vm587
    %v589 = vsel %vm588, %v581, %v585
    %v590 = vand.u32 2147483647, %v580
    %vm591 = vcmp.eq.f32.partialorder %v590, 8.507059e+37
    %v592 = vand.u32 %v580, 2147483648
    %v593 = vor.u32 1.1754944e-38, %v592
    %v594 = vsel %vm591, %v593, %v589
    %v595 = vmul.f32 1.0, %v594
    %v596 = vmul.f32 %v576, %v556
    %v597 = vmul.f32 %v575, %v471
    %v598 = vadd.f32 %v596, %v597
    %v599 = vtanh.pop %v598
    %v600 = vmul.f32 %v595, %v599
    %s601 = scalar_lea.vmem %s4, 16
    %602 = vst [vmem:[%s601] sm:$0xff] %v600
    %s603 = scalar_lea.vmem %s0, 96
    %v604 = vld [vmem:[%s603] sm:$0xff]
    %v605 = vld [vmem:[%s603 + $0x8] sm:$0xff]
    %v606 = vld [vmem:[%s603 + $0x10] sm:$0xff]
    %v607 = vld [vmem:[%s603 + $0x18] sm:$0xff]
    %v608 = vpack.c.bf16 %v600, %v600
    %609 = vmatpush.bf16.msra.mxu0 %v193
    %610 = vmatpush.bf16.msra.mxu0 %v189
    %611 = vmatpush.bf16.msra.mxu0 %v185
    %612 = vmatpush.bf16.msra.mxu0 %v181
    %613 = vmatpush.bf16.msra.mxu0 %v177
    %614 = vmatpush.bf16.msra.mxu0 %v173
    %615 = vmatpush.bf16.msra.mxu0 %v169
    %616 = vmatpush.bf16.msra.mxu0 %v165
    %617 = vmatmul.bf16.gmra.mxu0 %v608
    %v618 = vpop.f32.mrf.mxu0
    %v619 = vadd.f32 0.0, %v618
    %v620 = vpop.f32.mrf.mxu0
    %621 = vdwg.mxu0
    %622 = vmatpush.bf16.msra.mxu0 %v194
    %623 = vmatpush.bf16.msra.mxu0 %v190
    %624 = vmatpush.bf16.msra.mxu0 %v186
    %625 = vmatpush.bf16.msra.mxu0 %v182
    %626 = vmatpush.bf16.msra.mxu0 %v178
    %627 = vmatpush.bf16.msra.mxu0 %v174
    %628 = vmatpush.bf16.msra.mxu0 %v170
    %629 = vmatpush.bf16.msra.mxu0 %v166
    %630 = vmatmul.bf16.gmra.mxu0 %v608
    %v631 = vpop.f32.mrf.mxu0
    %v632 = vadd.f32 0.0, %v631
    %v633 = vpop.f32.mrf.mxu0
    %634 = vdwg.mxu0
    %635 = vmatpush.bf16.msra.mxu0 %v195
    %636 = vmatpush.bf16.msra.mxu0 %v191
    %637 = vmatpush.bf16.msra.mxu0 %v187
    %638 = vmatpush.bf16.msra.mxu0 %v183
    %639 = vmatpush.bf16.msra.mxu0 %v179
    %640 = vmatpush.bf16.msra.mxu0 %v175
    %641 = vmatpush.bf16.msra.mxu0 %v171
    %642 = vmatpush.bf16.msra.mxu0 %v167
    %643 = vmatmul.bf16.gmra.mxu0 %v608
    %v644 = vpop.f32.mrf.mxu0
    %v645 = vadd.f32 0.0, %v644
    %v646 = vpop.f32.mrf.mxu0
    %647 = vdwg.mxu0
    %648 = vmatpush.bf16.msra.mxu0 %v196
    %649 = vmatpush.bf16.msra.mxu0 %v192
    %650 = vmatpush.bf16.msra.mxu0 %v188
    %651 = vmatpush.bf16.msra.mxu0 %v184
    %652 = vmatpush.bf16.msra.mxu0 %v180
    %653 = vmatpush.bf16.msra.mxu0 %v176
    %654 = vmatpush.bf16.msra.mxu0 %v172
    %655 = vmatpush.bf16.msra.mxu0 %v168
    %656 = vmatmul.bf16.gmra.mxu0 %v608
    %v657 = vpop.f32.mrf.mxu0
    %v658 = vadd.f32 0.0, %v657
    %v659 = vpop.f32.mrf.mxu0
    %660 = vdwg.mxu0
    %v661 = vadd.f32 %v604, %v619
    %v662 = vadd.f32 %v605, %v632
    %v663 = vadd.f32 %v606, %v645
    %v664 = vadd.f32 %v607, %v658
    %v665 = vxor.u32 %v661, 2147483648
    %v666 = vmul.f32 %v665, 1.442695
    %v667 = vpow.pop %v666
    %v668 = vadd.f32 %v667, 1.0
    %v669 = vrcp.pop %v668
    %v670 = vmul.f32 %v668, %v669
    %v671 = vsub.f32 1.0, %v670
    %v672 = vmul.f32 %v669, %v671
    %v673 = vadd.f32 %v669, %v672
    %vm674 = vweird.f32 %v668
    %vm675 = vweird.f32 %v669
    %vm676 = vmor %vm674, %vm675
    %v677 = vsel %vm676, %v669, %v673
    %v678 = vand.u32 2147483647, %v668
    %vm679 = vcmp.eq.f32.partialorder %v678, 8.507059e+37
    %v680 = vand.u32 %v668, 2147483648
    %v681 = vor.u32 1.1754944e-38, %v680
    %v682 = vsel %vm679, %v681, %v677
    %v683 = vmul.f32 1.0, %v682
    %v684 = vxor.u32 %v662, 2147483648
    %v685 = vmul.f32 %v684, 1.442695
    %v686 = vpow.pop %v685
    %v687 = vadd.f32 %v686, 1.0
    %v688 = vrcp.pop %v687
    %v689 = vmul.f32 %v687, %v688
    %v690 = vsub.f32 1.0, %v689
    %v691 = vmul.f32 %v688, %v690
    %v692 = vadd.f32 %v688, %v691
    %vm693 = vweird.f32 %v687
    %vm694 = vweird.f32 %v688
    %vm695 = vmor %vm693, %vm694
    %v696 = vsel %vm695, %v688, %v692
    %v697 = vand.u32 2147483647, %v687
    %vm698 = vcmp.eq.f32.partialorder %v697, 8.507059e+37
    %v699 = vand.u32 %v687, 2147483648
    %v700 = vor.u32 1.1754944e-38, %v699
    %v701 = vsel %vm698, %v700, %v696
    %v702 = vmul.f32 1.0, %v701
    %v703 = vtanh.pop %v663
    %v704 = vxor.u32 %v664, 2147483648
    %v705 = vmul.f32 %v704, 1.442695
    %v706 = vpow.pop %v705
    %v707 = vadd.f32 %v706, 1.0
    %v708 = vrcp.pop %v707
    %v709 = vmul.f32 %v707, %v708
    %v710 = vsub.f32 1.0, %v709
    %v711 = vmul.f32 %v708, %v710
    %v712 = vadd.f32 %v708, %v711
    %vm713 = vweird.f32 %v707
    %vm714 = vweird.f32 %v708
    %vm715 = vmor %vm713, %vm714
    %v716 = vsel %vm715, %v708, %v712
    %v717 = vand.u32 2147483647, %v707
    %vm718 = vcmp.eq.f32.partialorder %v717, 8.507059e+37
    %v719 = vand.u32 %v707, 2147483648
    %v720 = vor.u32 1.1754944e-38, %v719
    %v721 = vsel %vm718, %v720, %v716
    %v722 = vmul.f32 1.0, %v721
    %v723 = vmul.f32 %v703, %v683
    %v724 = vmul.f32 %v702, %v598
    %v725 = vadd.f32 %v723, %v724
    %v726 = vtanh.pop %v725
    %v727 = vmul.f32 %v722, %v726
    %s728 = scalar_lea.vmem %s4, 24
    %729 = vst [vmem:[%s728] sm:$0xff] %v727
    %s730 = scalar_lea.vmem %s0, 128
    %v731 = vld [vmem:[%s730] sm:$0xff]
    %v732 = vld [vmem:[%s730 + $0x8] sm:$0xff]
    %v733 = vld [vmem:[%s730 + $0x10] sm:$0xff]
    %v734 = vld [vmem:[%s730 + $0x18] sm:$0xff]
    %v735 = vpack.c.bf16 %v727, %v727
    %736 = vmatpush.bf16.msra.mxu0 %v193
    %737 = vmatpush.bf16.msra.mxu0 %v189
    %738 = vmatpush.bf16.msra.mxu0 %v185
    %739 = vmatpush.bf16.msra.mxu0 %v181
    %740 = vmatpush.bf16.msra.mxu0 %v177
    %741 = vmatpush.bf16.msra.mxu0 %v173
    %742 = vmatpush.bf16.msra.mxu0 %v169
    %743 = vmatpush.bf16.msra.mxu0 %v165
    %744 = vmatmul.bf16.gmra.mxu0 %v735
    %v745 = vpop.f32.mrf.mxu0
    %v746 = vadd.f32 0.0, %v745
    %v747 = vpop.f32.mrf.mxu0
    %748 = vdwg.mxu0
    %749 = vmatpush.bf16.msra.mxu0 %v194
    %750 = vmatpush.bf16.msra.mxu0 %v190
    %751 = vmatpush.bf16.msra.mxu0 %v186
    %752 = vmatpush.bf16.msra.mxu0 %v182
    %753 = vmatpush.bf16.msra.mxu0 %v178
    %754 = vmatpush.bf16.msra.mxu0 %v174
    %755 = vmatpush.bf16.msra.mxu0 %v170
    %756 = vmatpush.bf16.msra.mxu0 %v166
    %757 = vmatmul.bf16.gmra.mxu0 %v735
    %v758 = vpop.f32.mrf.mxu0
    %v759 = vadd.f32 0.0, %v758
    %v760 = vpop.f32.mrf.mxu0
    %761 = vdwg.mxu0
    %762 = vmatpush.bf16.msra.mxu0 %v195
    %763 = vmatpush.bf16.msra.mxu0 %v191
    %764 = vmatpush.bf16.msra.mxu0 %v187
    %765 = vmatpush.bf16.msra.mxu0 %v183
    %766 = vmatpush.bf16.msra.mxu0 %v179
    %767 = vmatpush.bf16.msra.mxu0 %v175
    %768 = vmatpush.bf16.msra.mxu0 %v171
    %769 = vmatpush.bf16.msra.mxu0 %v167
    %770 = vmatmul.bf16.gmra.mxu0 %v735
    %v771 = vpop.f32.mrf.mxu0
    %v772 = vadd.f32 0.0, %v771
    %v773 = vpop.f32.mrf.mxu0
    %774 = vdwg.mxu0
    %775 = vmatpush.bf16.msra.mxu0 %v196
    %776 = vmatpush.bf16.msra.mxu0 %v192
    %777 = vmatpush.bf16.msra.mxu0 %v188
    %778 = vmatpush.bf16.msra.mxu0 %v184
    %779 = vmatpush.bf16.msra.mxu0 %v180
    %780 = vmatpush.bf16.msra.mxu0 %v176
    %781 = vmatpush.bf16.msra.mxu0 %v172
    %782 = vmatpush.bf16.msra.mxu0 %v168
    %783 = vmatmul.bf16.gmra.mxu0 %v735
    %v784 = vpop.f32.mrf.mxu0
    %v785 = vadd.f32 0.0, %v784
    %v786 = vpop.f32.mrf.mxu0
    %787 = vdwg.mxu0
    %v788 = vadd.f32 %v731, %v746
    %v789 = vadd.f32 %v732, %v759
    %v790 = vadd.f32 %v733, %v772
    %v791 = vadd.f32 %v734, %v785
    %v792 = vxor.u32 %v788, 2147483648
    %v793 = vmul.f32 %v792, 1.442695
    %v794 = vpow.pop %v793
    %v795 = vadd.f32 %v794, 1.0
    %v796 = vrcp.pop %v795
    %v797 = vmul.f32 %v795, %v796
    %v798 = vsub.f32 1.0, %v797
    %v799 = vmul.f32 %v796, %v798
    %v800 = vadd.f32 %v796, %v799
    %vm801 = vweird.f32 %v795
    %vm802 = vweird.f32 %v796
    %vm803 = vmor %vm801, %vm802
    %v804 = vsel %vm803, %v796, %v800
    %v805 = vand.u32 2147483647, %v795
    %vm806 = vcmp.eq.f32.partialorder %v805, 8.507059e+37
    %v807 = vand.u32 %v795, 2147483648
    %v808 = vor.u32 1.1754944e-38, %v807
    %v809 = vsel %vm806, %v808, %v804
    %v810 = vmul.f32 1.0, %v809
    %v811 = vxor.u32 %v789, 2147483648
    %v812 = vmul.f32 %v811, 1.442695
    %v813 = vpow.pop %v812
    %v814 = vadd.f32 %v813, 1.0
    %v815 = vrcp.pop %v814
    %v816 = vmul.f32 %v814, %v815
    %v817 = vsub.f32 1.0, %v816
    %v818 = vmul.f32 %v815, %v817
    %v819 = vadd.f32 %v815, %v818
    %vm820 = vweird.f32 %v814
    %vm821 = vweird.f32 %v815
    %vm822 = vmor %vm820, %vm821
    %v823 = vsel %vm822, %v815, %v819
    %v824 = vand.u32 2147483647, %v814
    %vm825 = vcmp.eq.f32.partialorder %v824, 8.507059e+37
    %v826 = vand.u32 %v814, 2147483648
    %v827 = vor.u32 1.1754944e-38, %v826
    %v828 = vsel %vm825, %v827, %v823
    %v829 = vmul.f32 1.0, %v828
    %v830 = vtanh.pop %v790
    %v831 = vxor.u32 %v791, 2147483648
    %v832 = vmul.f32 %v831, 1.442695
    %v833 = vpow.pop %v832
    %v834 = vadd.f32 %v833, 1.0
    %v835 = vrcp.pop %v834
    %v836 = vmul.f32 %v834, %v835
    %v837 = vsub.f32 1.0, %v836
    %v838 = vmul.f32 %v835, %v837
    %v839 = vadd.f32 %v835, %v838
    %vm840 = vweird.f32 %v834
    %vm841 = vweird.f32 %v835
    %vm842 = vmor %vm840, %vm841
    %v843 = vsel %vm842, %v835, %v839
    %v844 = vand.u32 2147483647, %v834
    %vm845 = vcmp.eq.f32.partialorder %v844, 8.507059e+37
    %v846 = vand.u32 %v834, 2147483648
    %v847 = vor.u32 1.1754944e-38, %v846
    %v848 = vsel %vm845, %v847, %v843
    %v849 = vmul.f32 1.0, %v848
    %v850 = vmul.f32 %v830, %v810
    %v851 = vmul.f32 %v829, %v725
    %v852 = vadd.f32 %v850, %v851
    %v853 = vtanh.pop %v852
    %v854 = vmul.f32 %v849, %v853
    %s855 = scalar_lea.vmem %s4, 32
    %856 = vst [vmem:[%s855] sm:$0xff] %v854
    %s857 = scalar_lea.vmem %s0, 160
    %v858 = vld [vmem:[%s857] sm:$0xff]
    %v859 = vld [vmem:[%s857 + $0x8] sm:$0xff]
    %v860 = vld [vmem:[%s857 + $0x10] sm:$0xff]
    %v861 = vld [vmem:[%s857 + $0x18] sm:$0xff]
    %v862 = vpack.c.bf16 %v854, %v854
    %863 = vmatpush.bf16.msra.mxu0 %v193
    %864 = vmatpush.bf16.msra.mxu0 %v189
    %865 = vmatpush.bf16.msra.mxu0 %v185
    %866 = vmatpush.bf16.msra.mxu0 %v181
    %867 = vmatpush.bf16.msra.mxu0 %v177
    %868 = vmatpush.bf16.msra.mxu0 %v173
    %869 = vmatpush.bf16.msra.mxu0 %v169
    %870 = vmatpush.bf16.msra.mxu0 %v165
    %871 = vmatmul.bf16.gmra.mxu0 %v862
    %v872 = vpop.f32.mrf.mxu0
    %v873 = vadd.f32 0.0, %v872
    %v874 = vpop.f32.mrf.mxu0
    %875 = vdwg.mxu0
    %876 = vmatpush.bf16.msra.mxu0 %v194
    %877 = vmatpush.bf16.msra.mxu0 %v190
    %878 = vmatpush.bf16.msra.mxu0 %v186
    %879 = vmatpush.bf16.msra.mxu0 %v182
    %880 = vmatpush.bf16.msra.mxu0 %v178
    %881 = vmatpush.bf16.msra.mxu0 %v174
    %882 = vmatpush.bf16.msra.mxu0 %v170
    %883 = vmatpush.bf16.msra.mxu0 %v166
    %884 = vmatmul.bf16.gmra.mxu0 %v862
    %v885 = vpop.f32.mrf.mxu0
    %v886 = vadd.f32 0.0, %v885
    %v887 = vpop.f32.mrf.mxu0
    %888 = vdwg.mxu0
    %889 = vmatpush.bf16.msra.mxu0 %v195
    %890 = vmatpush.bf16.msra.mxu0 %v191
    %891 = vmatpush.bf16.msra.mxu0 %v187
    %892 = vmatpush.bf16.msra.mxu0 %v183
    %893 = vmatpush.bf16.msra.mxu0 %v179
    %894 = vmatpush.bf16.msra.mxu0 %v175
    %895 = vmatpush.bf16.msra.mxu0 %v171
    %896 = vmatpush.bf16.msra.mxu0 %v167
    %897 = vmatmul.bf16.gmra.mxu0 %v862
    %v898 = vpop.f32.mrf.mxu0
    %v899 = vadd.f32 0.0, %v898
    %v900 = vpop.f32.mrf.mxu0
    %901 = vdwg.mxu0
    %902 = vmatpush.bf16.msra.mxu0 %v196
    %903 = vmatpush.bf16.msra.mxu0 %v192
    %904 = vmatpush.bf16.msra.mxu0 %v188
    %905 = vmatpush.bf16.msra.mxu0 %v184
    %906 = vmatpush.bf16.msra.mxu0 %v180
    %907 = vmatpush.bf16.msra.mxu0 %v176
    %908 = vmatpush.bf16.msra.mxu0 %v172
    %909 = vmatpush.bf16.msra.mxu0 %v168
    %910 = vmatmul.bf16.gmra.mxu0 %v862
    %v911 = vpop.f32.mrf.mxu0
    %v912 = vadd.f32 0.0, %v911
    %v913 = vpop.f32.mrf.mxu0
    %914 = vdwg.mxu0
    %v915 = vadd.f32 %v858, %v873
    %v916 = vadd.f32 %v859, %v886
    %v917 = vadd.f32 %v860, %v899
    %v918 = vadd.f32 %v861, %v912
    %v919 = vxor.u32 %v915, 2147483648
    %v920 = vmul.f32 %v919, 1.442695
    %v921 = vpow.pop %v920
    %v922 = vadd.f32 %v921, 1.0
    %v923 = vrcp.pop %v922
    %v924 = vmul.f32 %v922, %v923
    %v925 = vsub.f32 1.0, %v924
    %v926 = vmul.f32 %v923, %v925
    %v927 = vadd.f32 %v923, %v926
    %vm928 = vweird.f32 %v922
    %vm929 = vweird.f32 %v923
    %vm930 = vmor %vm928, %vm929
    %v931 = vsel %vm930, %v923, %v927
    %v932 = vand.u32 2147483647, %v922
    %vm933 = vcmp.eq.f32.partialorder %v932, 8.507059e+37
    %v934 = vand.u32 %v922, 2147483648
    %v935 = vor.u32 1.1754944e-38, %v934
    %v936 = vsel %vm933, %v935, %v931
    %v937 = vmul.f32 1.0, %v936
    %v938 = vxor.u32 %v916, 2147483648
    %v939 = vmul.f32 %v938, 1.442695
    %v940 = vpow.pop %v939
    %v941 = vadd.f32 %v940, 1.0
    %v942 = vrcp.pop %v941
    %v943 = vmul.f32 %v941, %v942
    %v944 = vsub.f32 1.0, %v943
    %v945 = vmul.f32 %v942, %v944
    %v946 = vadd.f32 %v942, %v945
    %vm947 = vweird.f32 %v941
    %vm948 = vweird.f32 %v942
    %vm949 = vmor %vm947, %vm948
    %v950 = vsel %vm949, %v942, %v946
    %v951 = vand.u32 2147483647, %v941
    %vm952 = vcmp.eq.f32.partialorder %v951, 8.507059e+37
    %v953 = vand.u32 %v941, 2147483648
    %v954 = vor.u32 1.1754944e-38, %v953
    %v955 = vsel %vm952, %v954, %v950
    %v956 = vmul.f32 1.0, %v955
    %v957 = vtanh.pop %v917
    %v958 = vxor.u32 %v918, 2147483648
    %v959 = vmul.f32 %v958, 1.442695
    %v960 = vpow.pop %v959
    %v961 = vadd.f32 %v960, 1.0
    %v962 = vrcp.pop %v961
    %v963 = vmul.f32 %v961, %v962
    %v964 = vsub.f32 1.0, %v963
    %v965 = vmul.f32 %v962, %v964
    %v966 = vadd.f32 %v962, %v965
    %vm967 = vweird.f32 %v961
    %vm968 = vweird.f32 %v962
    %vm969 = vmor %vm967, %vm968
    %v970 = vsel %vm969, %v962, %v966
    %v971 = vand.u32 2147483647, %v961
    %vm972 = vcmp.eq.f32.partialorder %v971, 8.507059e+37
    %v973 = vand.u32 %v961, 2147483648
    %v974 = vor.u32 1.1754944e-38, %v973
    %v975 = vsel %vm972, %v974, %v970
    %v976 = vmul.f32 1.0, %v975
    %v977 = vmul.f32 %v957, %v937
    %v978 = vmul.f32 %v956, %v852
    %v979 = vadd.f32 %v977, %v978
    %v980 = vtanh.pop %v979
    %v981 = vmul.f32 %v976, %v980
    %s982 = scalar_lea.vmem %s4, 40
    %983 = vst [vmem:[%s982] sm:$0xff] %v981
    %s984 = scalar_lea.vmem %s0, 192
    %v985 = vld [vmem:[%s984] sm:$0xff]
    %v986 = vld [vmem:[%s984 + $0x8] sm:$0xff]
    %v987 = vld [vmem:[%s984 + $0x10] sm:$0xff]
    %v988 = vld [vmem:[%s984 + $0x18] sm:$0xff]
    %v989 = vpack.c.bf16 %v981, %v981
    %990 = vmatpush.bf16.msra.mxu0 %v193
    %991 = vmatpush.bf16.msra.mxu0 %v189
    %992 = vmatpush.bf16.msra.mxu0 %v185
    %993 = vmatpush.bf16.msra.mxu0 %v181
    %994 = vmatpush.bf16.msra.mxu0 %v177
    %995 = vmatpush.bf16.msra.mxu0 %v173
    %996 = vmatpush.bf16.msra.mxu0 %v169
    %997 = vmatpush.bf16.msra.mxu0 %v165
    %998 = vmatmul.bf16.gmra.mxu0 %v989
    %v999 = vpop.f32.mrf.mxu0
    %v1000 = vadd.f32 0.0, %v999
    %v1001 = vpop.f32.mrf.mxu0
    %1002 = vdwg.mxu0
    %1003 = vmatpush.bf16.msra.mxu0 %v194
    %1004 = vmatpush.bf16.msra.mxu0 %v190
    %1005 = vmatpush.bf16.msra.mxu0 %v186
    %1006 = vmatpush.bf16.msra.mxu0 %v182
    %1007 = vmatpush.bf16.msra.mxu0 %v178
    %1008 = vmatpush.bf16.msra.mxu0 %v174
    %1009 = vmatpush.bf16.msra.mxu0 %v170
    %1010 = vmatpush.bf16.msra.mxu0 %v166
    %1011 = vmatmul.bf16.gmra.mxu0 %v989
    %v1012 = vpop.f32.mrf.mxu0
    %v1013 = vadd.f32 0.0, %v1012
    %v1014 = vpop.f32.mrf.mxu0
    %1015 = vdwg.mxu0
    %1016 = vmatpush.bf16.msra.mxu0 %v195
    %1017 = vmatpush.bf16.msra.mxu0 %v191
    %1018 = vmatpush.bf16.msra.mxu0 %v187
    %1019 = vmatpush.bf16.msra.mxu0 %v183
    %1020 = vmatpush.bf16.msra.mxu0 %v179
    %1021 = vmatpush.bf16.msra.mxu0 %v175
    %1022 = vmatpush.bf16.msra.mxu0 %v171
    %1023 = vmatpush.bf16.msra.mxu0 %v167
    %1024 = vmatmul.bf16.gmra.mxu0 %v989
    %v1025 = vpop.f32.mrf.mxu0
    %v1026 = vadd.f32 0.0, %v1025
    %v1027 = vpop.f32.mrf.mxu0
    %1028 = vdwg.mxu0
    %1029 = vmatpush.bf16.msra.mxu0 %v196
    %1030 = vmatpush.bf16.msra.mxu0 %v192
    %1031 = vmatpush.bf16.msra.mxu0 %v188
    %1032 = vmatpush.bf16.msra.mxu0 %v184
    %1033 = vmatpush.bf16.msra.mxu0 %v180
    %1034 = vmatpush.bf16.msra.mxu0 %v176
    %1035 = vmatpush.bf16.msra.mxu0 %v172
    %1036 = vmatpush.bf16.msra.mxu0 %v168
    %1037 = vmatmul.bf16.gmra.mxu0 %v989
    %v1038 = vpop.f32.mrf.mxu0
    %v1039 = vadd.f32 0.0, %v1038
    %v1040 = vpop.f32.mrf.mxu0
    %1041 = vdwg.mxu0
    %v1042 = vadd.f32 %v985, %v1000
    %v1043 = vadd.f32 %v986, %v1013
    %v1044 = vadd.f32 %v987, %v1026
    %v1045 = vadd.f32 %v988, %v1039
    %v1046 = vxor.u32 %v1042, 2147483648
    %v1047 = vmul.f32 %v1046, 1.442695
    %v1048 = vpow.pop %v1047
    %v1049 = vadd.f32 %v1048, 1.0
    %v1050 = vrcp.pop %v1049
    %v1051 = vmul.f32 %v1049, %v1050
    %v1052 = vsub.f32 1.0, %v1051
    %v1053 = vmul.f32 %v1050, %v1052
    %v1054 = vadd.f32 %v1050, %v1053
    %vm1055 = vweird.f32 %v1049
    %vm1056 = vweird.f32 %v1050
    %vm1057 = vmor %vm1055, %vm1056
    %v1058 = vsel %vm1057, %v1050, %v1054
    %v1059 = vand.u32 2147483647, %v1049
    %vm1060 = vcmp.eq.f32.partialorder %v1059, 8.507059e+37
    %v1061 = vand.u32 %v1049, 2147483648
    %v1062 = vor.u32 1.1754944e-38, %v1061
    %v1063 = vsel %vm1060, %v1062, %v1058
    %v1064 = vmul.f32 1.0, %v1063
    %v1065 = vxor.u32 %v1043, 2147483648
    %v1066 = vmul.f32 %v1065, 1.442695
    %v1067 = vpow.pop %v1066
    %v1068 = vadd.f32 %v1067, 1.0
    %v1069 = vrcp.pop %v1068
    %v1070 = vmul.f32 %v1068, %v1069
    %v1071 = vsub.f32 1.0, %v1070
    %v1072 = vmul.f32 %v1069, %v1071
    %v1073 = vadd.f32 %v1069, %v1072
    %vm1074 = vweird.f32 %v1068
    %vm1075 = vweird.f32 %v1069
    %vm1076 = vmor %vm1074, %vm1075
    %v1077 = vsel %vm1076, %v1069, %v1073
    %v1078 = vand.u32 2147483647, %v1068
    %vm1079 = vcmp.eq.f32.partialorder %v1078, 8.507059e+37
    %v1080 = vand.u32 %v1068, 2147483648
    %v1081 = vor.u32 1.1754944e-38, %v1080
    %v1082 = vsel %vm1079, %v1081, %v1077
    %v1083 = vmul.f32 1.0, %v1082
    %v1084 = vtanh.pop %v1044
    %v1085 = vxor.u32 %v1045, 2147483648
    %v1086 = vmul.f32 %v1085, 1.442695
    %v1087 = vpow.pop %v1086
    %v1088 = vadd.f32 %v1087, 1.0
    %v1089 = vrcp.pop %v1088
    %v1090 = vmul.f32 %v1088, %v1089
    %v1091 = vsub.f32 1.0, %v1090
    %v1092 = vmul.f32 %v1089, %v1091
    %v1093 = vadd.f32 %v1089, %v1092
    %vm1094 = vweird.f32 %v1088
    %vm1095 = vweird.f32 %v1089
    %vm1096 = vmor %vm1094, %vm1095
    %v1097 = vsel %vm1096, %v1089, %v1093
    %v1098 = vand.u32 2147483647, %v1088
    %vm1099 = vcmp.eq.f32.partialorder %v1098, 8.507059e+37
    %v1100 = vand.u32 %v1088, 2147483648
    %v1101 = vor.u32 1.1754944e-38, %v1100
    %v1102 = vsel %vm1099, %v1101, %v1097
    %v1103 = vmul.f32 1.0, %v1102
    %v1104 = vmul.f32 %v1084, %v1064
    %v1105 = vmul.f32 %v1083, %v979
    %v1106 = vadd.f32 %v1104, %v1105
    %v1107 = vtanh.pop %v1106
    %v1108 = vmul.f32 %v1103, %v1107
    %s1109 = scalar_lea.vmem %s4, 48
    %1110 = vst [vmem:[%s1109] sm:$0xff] %v1108
    %s1111 = scalar_lea.vmem %s0, 224
    %v1112 = vld [vmem:[%s1111] sm:$0xff]
    %v1113 = vld [vmem:[%s1111 + $0x8] sm:$0xff]
    %v1114 = vld [vmem:[%s1111 + $0x10] sm:$0xff]
    %v1115 = vld [vmem:[%s1111 + $0x18] sm:$0xff]
    %v1116 = vpack.c.bf16 %v1108, %v1108
    %1117 = vmatpush.bf16.msra.mxu0 %v193
    %1118 = vmatpush.bf16.msra.mxu0 %v189
    %1119 = vmatpush.bf16.msra.mxu0 %v185
    %1120 = vmatpush.bf16.msra.mxu0 %v181
    %1121 = vmatpush.bf16.msra.mxu0 %v177
    %1122 = vmatpush.bf16.msra.mxu0 %v173
    %1123 = vmatpush.bf16.msra.mxu0 %v169
    %1124 = vmatpush.bf16.msra.mxu0 %v165
    %1125 = vmatmul.bf16.gmra.mxu0 %v1116
    %v1126 = vpop.f32.mrf.mxu0
    %v1127 = vadd.f32 0.0, %v1126
    %v1128 = vpop.f32.mrf.mxu0
    %1129 = vdwg.mxu0
    %1130 = vmatpush.bf16.msra.mxu0 %v194
    %1131 = vmatpush.bf16.msra.mxu0 %v190
    %1132 = vmatpush.bf16.msra.mxu0 %v186
    %1133 = vmatpush.bf16.msra.mxu0 %v182
    %1134 = vmatpush.bf16.msra.mxu0 %v178
    %1135 = vmatpush.bf16.msra.mxu0 %v174
    %1136 = vmatpush.bf16.msra.mxu0 %v170
    %1137 = vmatpush.bf16.msra.mxu0 %v166
    %1138 = vmatmul.bf16.gmra.mxu0 %v1116
    %v1139 = vpop.f32.mrf.mxu0
    %v1140 = vadd.f32 0.0, %v1139
    %v1141 = vpop.f32.mrf.mxu0
    %1142 = vdwg.mxu0
    %1143 = vmatpush.bf16.msra.mxu0 %v195
    %1144 = vmatpush.bf16.msra.mxu0 %v191
    %1145 = vmatpush.bf16.msra.mxu0 %v187
    %1146 = vmatpush.bf16.msra.mxu0 %v183
    %1147 = vmatpush.bf16.msra.mxu0 %v179
    %1148 = vmatpush.bf16.msra.mxu0 %v175
    %1149 = vmatpush.bf16.msra.mxu0 %v171
    %1150 = vmatpush.bf16.msra.mxu0 %v167
    %1151 = vmatmul.bf16.gmra.mxu0 %v1116
    %v1152 = vpop.f32.mrf.mxu0
    %v1153 = vadd.f32 0.0, %v1152
    %v1154 = vpop.f32.mrf.mxu0
    %1155 = vdwg.mxu0
    %1156 = vmatpush.bf16.msra.mxu0 %v196
    %1157 = vmatpush.bf16.msra.mxu0 %v192
    %1158 = vmatpush.bf16.msra.mxu0 %v188
    %1159 = vmatpush.bf16.msra.mxu0 %v184
    %1160 = vmatpush.bf16.msra.mxu0 %v180
    %1161 = vmatpush.bf16.msra.mxu0 %v176
    %1162 = vmatpush.bf16.msra.mxu0 %v172
    %1163 = vmatpush.bf16.msra.mxu0 %v168
    %1164 = vmatmul.bf16.gmra.mxu0 %v1116
    %v1165 = vpop.f32.mrf.mxu0
    %v1166 = vadd.f32 0.0, %v1165
    %v1167 = vpop.f32.mrf.mxu0
    %1168 = vdwg.mxu0
    %v1169 = vadd.f32 %v1112, %v1127
    %v1170 = vadd.f32 %v1113, %v1140
    %v1171 = vadd.f32 %v1114, %v1153
    %v1172 = vadd.f32 %v1115, %v1166
    %v1173 = vxor.u32 %v1169, 2147483648
    %v1174 = vmul.f32 %v1173, 1.442695
    %v1175 = vpow.pop %v1174
    %v1176 = vadd.f32 %v1175, 1.0
    %v1177 = vrcp.pop %v1176
    %v1178 = vmul.f32 %v1176, %v1177
    %v1179 = vsub.f32 1.0, %v1178
    %v1180 = vmul.f32 %v1177, %v1179
    %v1181 = vadd.f32 %v1177, %v1180
    %vm1182 = vweird.f32 %v1176
    %vm1183 = vweird.f32 %v1177
    %vm1184 = vmor %vm1182, %vm1183
    %v1185 = vsel %vm1184, %v1177, %v1181
    %v1186 = vand.u32 2147483647, %v1176
    %vm1187 = vcmp.eq.f32.partialorder %v1186, 8.507059e+37
    %v1188 = vand.u32 %v1176, 2147483648
    %v1189 = vor.u32 1.1754944e-38, %v1188
    %v1190 = vsel %vm1187, %v1189, %v1185
    %v1191 = vmul.f32 1.0, %v1190
    %v1192 = vxor.u32 %v1170, 2147483648
    %v1193 = vmul.f32 %v1192, 1.442695
    %v1194 = vpow.pop %v1193
    %v1195 = vadd.f32 %v1194, 1.0
    %v1196 = vrcp.pop %v1195
    %v1197 = vmul.f32 %v1195, %v1196
    %v1198 = vsub.f32 1.0, %v1197
    %v1199 = vmul.f32 %v1196, %v1198
    %v1200 = vadd.f32 %v1196, %v1199
    %vm1201 = vweird.f32 %v1195
    %vm1202 = vweird.f32 %v1196
    %vm1203 = vmor %vm1201, %vm1202
    %v1204 = vsel %vm1203, %v1196, %v1200
    %v1205 = vand.u32 2147483647, %v1195
    %vm1206 = vcmp.eq.f32.partialorder %v1205, 8.507059e+37
    %v1207 = vand.u32 %v1195, 2147483648
    %v1208 = vor.u32 1.1754944e-38, %v1207
    %v1209 = vsel %vm1206, %v1208, %v1204
    %v1210 = vmul.f32 1.0, %v1209
    %v1211 = vtanh.pop %v1171
    %v1212 = vxor.u32 %v1172, 2147483648
    %v1213 = vmul.f32 %v1212, 1.442695
    %v1214 = vpow.pop %v1213
    %v1215 = vadd.f32 %v1214, 1.0
    %v1216 = vrcp.pop %v1215
    %v1217 = vmul.f32 %v1215, %v1216
    %v1218 = vsub.f32 1.0, %v1217
    %v1219 = vmul.f32 %v1216, %v1218
    %v1220 = vadd.f32 %v1216, %v1219
    %vm1221 = vweird.f32 %v1215
    %vm1222 = vweird.f32 %v1216
    %vm1223 = vmor %vm1221, %vm1222
    %v1224 = vsel %vm1223, %v1216, %v1220
    %v1225 = vand.u32 2147483647, %v1215
    %vm1226 = vcmp.eq.f32.partialorder %v1225, 8.507059e+37
    %v1227 = vand.u32 %v1215, 2147483648
    %v1228 = vor.u32 1.1754944e-38, %v1227
    %v1229 = vsel %vm1226, %v1228, %v1224
    %v1230 = vmul.f32 1.0, %v1229
    %v1231 = vmul.f32 %v1211, %v1191
    %v1232 = vmul.f32 %v1210, %v1106
    %v1233 = vadd.f32 %v1231, %v1232
    %v1234 = vtanh.pop %v1233
    %v1235 = vmul.f32 %v1230, %v1234
    %s1236 = scalar_lea.vmem %s4, 56
    %1237 = vst [vmem:[%s1236] sm:$0xff] %v1235
    %s1238 = scalar_lea.vmem %s0, 256
    %v1239 = vld [vmem:[%s1238] sm:$0xff]
    %v1240 = vld [vmem:[%s1238 + $0x8] sm:$0xff]
    %v1241 = vld [vmem:[%s1238 + $0x10] sm:$0xff]
    %v1242 = vld [vmem:[%s1238 + $0x18] sm:$0xff]
    %v1243 = vpack.c.bf16 %v1235, %v1235
    %1244 = vmatpush.bf16.msra.mxu0 %v193
    %1245 = vmatpush.bf16.msra.mxu0 %v189
    %1246 = vmatpush.bf16.msra.mxu0 %v185
    %1247 = vmatpush.bf16.msra.mxu0 %v181
    %1248 = vmatpush.bf16.msra.mxu0 %v177
    %1249 = vmatpush.bf16.msra.mxu0 %v173
    %1250 = vmatpush.bf16.msra.mxu0 %v169
    %1251 = vmatpush.bf16.msra.mxu0 %v165
    %1252 = vmatmul.bf16.gmra.mxu0 %v1243
    %v1253 = vpop.f32.mrf.mxu0
    %v1254 = vadd.f32 0.0, %v1253
    %v1255 = vpop.f32.mrf.mxu0
    %1256 = vdwg.mxu0
    %1257 = vmatpush.bf16.msra.mxu0 %v194
    %1258 = vmatpush.bf16.msra.mxu0 %v190
    %1259 = vmatpush.bf16.msra.mxu0 %v186
    %1260 = vmatpush.bf16.msra.mxu0 %v182
    %1261 = vmatpush.bf16.msra.mxu0 %v178
    %1262 = vmatpush.bf16.msra.mxu0 %v174
    %1263 = vmatpush.bf16.msra.mxu0 %v170
    %1264 = vmatpush.bf16.msra.mxu0 %v166
    %1265 = vmatmul.bf16.gmra.mxu0 %v1243
    %v1266 = vpop.f32.mrf.mxu0
    %v1267 = vadd.f32 0.0, %v1266
    %v1268 = vpop.f32.mrf.mxu0
    %1269 = vdwg.mxu0
    %1270 = vmatpush.bf16.msra.mxu0 %v195
    %1271 = vmatpush.bf16.msra.mxu0 %v191
    %1272 = vmatpush.bf16.msra.mxu0 %v187
    %1273 = vmatpush.bf16.msra.mxu0 %v183
    %1274 = vmatpush.bf16.msra.mxu0 %v179
    %1275 = vmatpush.bf16.msra.mxu0 %v175
    %1276 = vmatpush.bf16.msra.mxu0 %v171
    %1277 = vmatpush.bf16.msra.mxu0 %v167
    %1278 = vmatmul.bf16.gmra.mxu0 %v1243
    %v1279 = vpop.f32.mrf.mxu0
    %v1280 = vadd.f32 0.0, %v1279
    %v1281 = vpop.f32.mrf.mxu0
    %1282 = vdwg.mxu0
    %1283 = vmatpush.bf16.msra.mxu0 %v196
    %1284 = vmatpush.bf16.msra.mxu0 %v192
    %1285 = vmatpush.bf16.msra.mxu0 %v188
    %1286 = vmatpush.bf16.msra.mxu0 %v184
    %1287 = vmatpush.bf16.msra.mxu0 %v180
    %1288 = vmatpush.bf16.msra.mxu0 %v176
    %1289 = vmatpush.bf16.msra.mxu0 %v172
    %1290 = vmatpush.bf16.msra.mxu0 %v168
    %1291 = vmatmul.bf16.gmra.mxu0 %v1243
    %v1292 = vpop.f32.mrf.mxu0
    %v1293 = vadd.f32 0.0, %v1292
    %v1294 = vpop.f32.mrf.mxu0
    %1295 = vdwg.mxu0
    %v1296 = vadd.f32 %v1239, %v1254
    %v1297 = vadd.f32 %v1240, %v1267
    %v1298 = vadd.f32 %v1241, %v1280
    %v1299 = vadd.f32 %v1242, %v1293
    %v1300 = vxor.u32 %v1296, 2147483648
    %v1301 = vmul.f32 %v1300, 1.442695
    %v1302 = vpow.pop %v1301
    %v1303 = vadd.f32 %v1302, 1.0
    %v1304 = vrcp.pop %v1303
    %v1305 = vmul.f32 %v1303, %v1304
    %v1306 = vsub.f32 1.0, %v1305
    %v1307 = vmul.f32 %v1304, %v1306
    %v1308 = vadd.f32 %v1304, %v1307
    %vm1309 = vweird.f32 %v1303
    %vm1310 = vweird.f32 %v1304
    %vm1311 = vmor %vm1309, %vm1310
    %v1312 = vsel %vm1311, %v1304, %v1308
    %v1313 = vand.u32 2147483647, %v1303
    %vm1314 = vcmp.eq.f32.partialorder %v1313, 8.507059e+37
    %v1315 = vand.u32 %v1303, 2147483648
    %v1316 = vor.u32 1.1754944e-38, %v1315
    %v1317 = vsel %vm1314, %v1316, %v1312
    %v1318 = vmul.f32 1.0, %v1317
    %v1319 = vxor.u32 %v1297, 2147483648
    %v1320 = vmul.f32 %v1319, 1.442695
    %v1321 = vpow.pop %v1320
    %v1322 = vadd.f32 %v1321, 1.0
    %v1323 = vrcp.pop %v1322
    %v1324 = vmul.f32 %v1322, %v1323
    %v1325 = vsub.f32 1.0, %v1324
    %v1326 = vmul.f32 %v1323, %v1325
    %v1327 = vadd.f32 %v1323, %v1326
    %vm1328 = vweird.f32 %v1322
    %vm1329 = vweird.f32 %v1323
    %vm1330 = vmor %vm1328, %vm1329
    %v1331 = vsel %vm1330, %v1323, %v1327
    %v1332 = vand.u32 2147483647, %v1322
    %vm1333 = vcmp.eq.f32.partialorder %v1332, 8.507059e+37
    %v1334 = vand.u32 %v1322, 2147483648
    %v1335 = vor.u32 1.1754944e-38, %v1334
    %v1336 = vsel %vm1333, %v1335, %v1331
    %v1337 = vmul.f32 1.0, %v1336
    %v1338 = vtanh.pop %v1298
    %v1339 = vxor.u32 %v1299, 2147483648
    %v1340 = vmul.f32 %v1339, 1.442695
    %v1341 = vpow.pop %v1340
    %v1342 = vadd.f32 %v1341, 1.0
    %v1343 = vrcp.pop %v1342
    %v1344 = vmul.f32 %v1342, %v1343
    %v1345 = vsub.f32 1.0, %v1344
    %v1346 = vmul.f32 %v1343, %v1345
    %v1347 = vadd.f32 %v1343, %v1346
    %vm1348 = vweird.f32 %v1342
    %vm1349 = vweird.f32 %v1343
    %vm1350 = vmor %vm1348, %vm1349
    %v1351 = vsel %vm1350, %v1343, %v1347
    %v1352 = vand.u32 2147483647, %v1342
    %vm1353 = vcmp.eq.f32.partialorder %v1352, 8.507059e+37
    %v1354 = vand.u32 %v1342, 2147483648
    %v1355 = vor.u32 1.1754944e-38, %v1354
    %v1356 = vsel %vm1353, %v1355, %v1351
    %v1357 = vmul.f32 1.0, %v1356
    %v1358 = vmul.f32 %v1338, %v1318
    %v1359 = vmul.f32 %v1337, %v1233
    %v1360 = vadd.f32 %v1358, %v1359
    %v1361 = vtanh.pop %v1360
    %v1362 = vmul.f32 %v1357, %v1361
    %s1363 = scalar_lea.vmem %s4, 64
    %1364 = vst [vmem:[%s1363] sm:$0xff] %v1362
    %s1365 = scalar_lea.vmem %s0, 288
    %v1366 = vld [vmem:[%s1365] sm:$0xff]
    %v1367 = vld [vmem:[%s1365 + $0x8] sm:$0xff]
    %v1368 = vld [vmem:[%s1365 + $0x10] sm:$0xff]
    %v1369 = vld [vmem:[%s1365 + $0x18] sm:$0xff]
    %v1370 = vpack.c.bf16 %v1362, %v1362
    %1371 = vmatpush.bf16.msra.mxu0 %v193
    %1372 = vmatpush.bf16.msra.mxu0 %v189
    %1373 = vmatpush.bf16.msra.mxu0 %v185
    %1374 = vmatpush.bf16.msra.mxu0 %v181
    %1375 = vmatpush.bf16.msra.mxu0 %v177
    %1376 = vmatpush.bf16.msra.mxu0 %v173
    %1377 = vmatpush.bf16.msra.mxu0 %v169
    %1378 = vmatpush.bf16.msra.mxu0 %v165
    %1379 = vmatmul.bf16.gmra.mxu0 %v1370
    %v1380 = vpop.f32.mrf.mxu0
    %v1381 = vadd.f32 0.0, %v1380
    %v1382 = vpop.f32.mrf.mxu0
    %1383 = vdwg.mxu0
    %1384 = vmatpush.bf16.msra.mxu0 %v194
    %1385 = vmatpush.bf16.msra.mxu0 %v190
    %1386 = vmatpush.bf16.msra.mxu0 %v186
    %1387 = vmatpush.bf16.msra.mxu0 %v182
    %1388 = vmatpush.bf16.msra.mxu0 %v178
    %1389 = vmatpush.bf16.msra.mxu0 %v174
    %1390 = vmatpush.bf16.msra.mxu0 %v170
    %1391 = vmatpush.bf16.msra.mxu0 %v166
    %1392 = vmatmul.bf16.gmra.mxu0 %v1370
    %v1393 = vpop.f32.mrf.mxu0
    %v1394 = vadd.f32 0.0, %v1393
    %v1395 = vpop.f32.mrf.mxu0
    %1396 = vdwg.mxu0
    %1397 = vmatpush.bf16.msra.mxu0 %v195
    %1398 = vmatpush.bf16.msra.mxu0 %v191
    %1399 = vmatpush.bf16.msra.mxu0 %v187
    %1400 = vmatpush.bf16.msra.mxu0 %v183
    %1401 = vmatpush.bf16.msra.mxu0 %v179
    %1402 = vmatpush.bf16.msra.mxu0 %v175
    %1403 = vmatpush.bf16.msra.mxu0 %v171
    %1404 = vmatpush.bf16.msra.mxu0 %v167
    %1405 = vmatmul.bf16.gmra.mxu0 %v1370
    %v1406 = vpop.f32.mrf.mxu0
    %v1407 = vadd.f32 0.0, %v1406
    %v1408 = vpop.f32.mrf.mxu0
    %1409 = vdwg.mxu0
    %1410 = vmatpush.bf16.msra.mxu0 %v196
    %1411 = vmatpush.bf16.msra.mxu0 %v192
    %1412 = vmatpush.bf16.msra.mxu0 %v188
    %1413 = vmatpush.bf16.msra.mxu0 %v184
    %1414 = vmatpush.bf16.msra.mxu0 %v180
    %1415 = vmatpush.bf16.msra.mxu0 %v176
    %1416 = vmatpush.bf16.msra.mxu0 %v172
    %1417 = vmatpush.bf16.msra.mxu0 %v168
    %1418 = vmatmul.bf16.gmra.mxu0 %v1370
    %v1419 = vpop.f32.mrf.mxu0
    %v1420 = vadd.f32 0.0, %v1419
    %v1421 = vpop.f32.mrf.mxu0
    %1422 = vdwg.mxu0
    %v1423 = vadd.f32 %v1366, %v1381
    %v1424 = vadd.f32 %v1367, %v1394
    %v1425 = vadd.f32 %v1368, %v1407
    %v1426 = vadd.f32 %v1369, %v1420
    %v1427 = vxor.u32 %v1423, 2147483648
    %v1428 = vmul.f32 %v1427, 1.442695
    %v1429 = vpow.pop %v1428
    %v1430 = vadd.f32 %v1429, 1.0
    %v1431 = vrcp.pop %v1430
    %v1432 = vmul.f32 %v1430, %v1431
    %v1433 = vsub.f32 1.0, %v1432
    %v1434 = vmul.f32 %v1431, %v1433
    %v1435 = vadd.f32 %v1431, %v1434
    %vm1436 = vweird.f32 %v1430
    %vm1437 = vweird.f32 %v1431
    %vm1438 = vmor %vm1436, %vm1437
    %v1439 = vsel %vm1438, %v1431, %v1435
    %v1440 = vand.u32 2147483647, %v1430
    %vm1441 = vcmp.eq.f32.partialorder %v1440, 8.507059e+37
    %v1442 = vand.u32 %v1430, 2147483648
    %v1443 = vor.u32 1.1754944e-38, %v1442
    %v1444 = vsel %vm1441, %v1443, %v1439
    %v1445 = vmul.f32 1.0, %v1444
    %v1446 = vxor.u32 %v1424, 2147483648
    %v1447 = vmul.f32 %v1446, 1.442695
    %v1448 = vpow.pop %v1447
    %v1449 = vadd.f32 %v1448, 1.0
    %v1450 = vrcp.pop %v1449
    %v1451 = vmul.f32 %v1449, %v1450
    %v1452 = vsub.f32 1.0, %v1451
    %v1453 = vmul.f32 %v1450, %v1452
    %v1454 = vadd.f32 %v1450, %v1453
    %vm1455 = vweird.f32 %v1449
    %vm1456 = vweird.f32 %v1450
    %vm1457 = vmor %vm1455, %vm1456
    %v1458 = vsel %vm1457, %v1450, %v1454
    %v1459 = vand.u32 2147483647, %v1449
    %vm1460 = vcmp.eq.f32.partialorder %v1459, 8.507059e+37
    %v1461 = vand.u32 %v1449, 2147483648
    %v1462 = vor.u32 1.1754944e-38, %v1461
    %v1463 = vsel %vm1460, %v1462, %v1458
    %v1464 = vmul.f32 1.0, %v1463
    %v1465 = vtanh.pop %v1425
    %v1466 = vxor.u32 %v1426, 2147483648
    %v1467 = vmul.f32 %v1466, 1.442695
    %v1468 = vpow.pop %v1467
    %v1469 = vadd.f32 %v1468, 1.0
    %v1470 = vrcp.pop %v1469
    %v1471 = vmul.f32 %v1469, %v1470
    %v1472 = vsub.f32 1.0, %v1471
    %v1473 = vmul.f32 %v1470, %v1472
    %v1474 = vadd.f32 %v1470, %v1473
    %vm1475 = vweird.f32 %v1469
    %vm1476 = vweird.f32 %v1470
    %vm1477 = vmor %vm1475, %vm1476
    %v1478 = vsel %vm1477, %v1470, %v1474
    %v1479 = vand.u32 2147483647, %v1469
    %vm1480 = vcmp.eq.f32.partialorder %v1479, 8.507059e+37
    %v1481 = vand.u32 %v1469, 2147483648
    %v1482 = vor.u32 1.1754944e-38, %v1481
    %v1483 = vsel %vm1480, %v1482, %v1478
    %v1484 = vmul.f32 1.0, %v1483
    %v1485 = vmul.f32 %v1465, %v1445
    %v1486 = vmul.f32 %v1464, %v1360
    %v1487 = vadd.f32 %v1485, %v1486
    %v1488 = vtanh.pop %v1487
    %v1489 = vmul.f32 %v1484, %v1488
    %s1490 = scalar_lea.vmem %s4, 72
    %1491 = vst [vmem:[%s1490] sm:$0xff] %v1489
    %s1492 = scalar_lea.vmem %s0, 320
    %v1493 = vld [vmem:[%s1492] sm:$0xff]
    %v1494 = vld [vmem:[%s1492 + $0x8] sm:$0xff]
    %v1495 = vld [vmem:[%s1492 + $0x10] sm:$0xff]
    %v1496 = vld [vmem:[%s1492 + $0x18] sm:$0xff]
    %v1497 = vpack.c.bf16 %v1489, %v1489
    %1498 = vmatpush.bf16.msra.mxu0 %v193
    %1499 = vmatpush.bf16.msra.mxu0 %v189
    %1500 = vmatpush.bf16.msra.mxu0 %v185
    %1501 = vmatpush.bf16.msra.mxu0 %v181
    %1502 = vmatpush.bf16.msra.mxu0 %v177
    %1503 = vmatpush.bf16.msra.mxu0 %v173
    %1504 = vmatpush.bf16.msra.mxu0 %v169
    %1505 = vmatpush.bf16.msra.mxu0 %v165
    %1506 = vmatmul.bf16.gmra.mxu0 %v1497
    %v1507 = vpop.f32.mrf.mxu0
    %v1508 = vadd.f32 0.0, %v1507
    %v1509 = vpop.f32.mrf.mxu0
    %1510 = vdwg.mxu0
    %1511 = vmatpush.bf16.msra.mxu0 %v194
    %1512 = vmatpush.bf16.msra.mxu0 %v190
    %1513 = vmatpush.bf16.msra.mxu0 %v186
    %1514 = vmatpush.bf16.msra.mxu0 %v182
    %1515 = vmatpush.bf16.msra.mxu0 %v178
    %1516 = vmatpush.bf16.msra.mxu0 %v174
    %1517 = vmatpush.bf16.msra.mxu0 %v170
    %1518 = vmatpush.bf16.msra.mxu0 %v166
    %1519 = vmatmul.bf16.gmra.mxu0 %v1497
    %v1520 = vpop.f32.mrf.mxu0
    %v1521 = vadd.f32 0.0, %v1520
    %v1522 = vpop.f32.mrf.mxu0
    %1523 = vdwg.mxu0
    %1524 = vmatpush.bf16.msra.mxu0 %v195
    %1525 = vmatpush.bf16.msra.mxu0 %v191
    %1526 = vmatpush.bf16.msra.mxu0 %v187
    %1527 = vmatpush.bf16.msra.mxu0 %v183
    %1528 = vmatpush.bf16.msra.mxu0 %v179
    %1529 = vmatpush.bf16.msra.mxu0 %v175
    %1530 = vmatpush.bf16.msra.mxu0 %v171
    %1531 = vmatpush.bf16.msra.mxu0 %v167
    %1532 = vmatmul.bf16.gmra.mxu0 %v1497
    %v1533 = vpop.f32.mrf.mxu0
    %v1534 = vadd.f32 0.0, %v1533
    %v1535 = vpop.f32.mrf.mxu0
    %1536 = vdwg.mxu0
    %1537 = vmatpush.bf16.msra.mxu0 %v196
    %1538 = vmatpush.bf16.msra.mxu0 %v192
    %1539 = vmatpush.bf16.msra.mxu0 %v188
    %1540 = vmatpush.bf16.msra.mxu0 %v184
    %1541 = vmatpush.bf16.msra.mxu0 %v180
    %1542 = vmatpush.bf16.msra.mxu0 %v176
    %1543 = vmatpush.bf16.msra.mxu0 %v172
    %1544 = vmatpush.bf16.msra.mxu0 %v168
    %1545 = vmatmul.bf16.gmra.mxu0 %v1497
    %v1546 = vpop.f32.mrf.mxu0
    %v1547 = vadd.f32 0.0, %v1546
    %v1548 = vpop.f32.mrf.mxu0
    %1549 = vdwg.mxu0
    %v1550 = vadd.f32 %v1493, %v1508
    %v1551 = vadd.f32 %v1494, %v1521
    %v1552 = vadd.f32 %v1495, %v1534
    %v1553 = vadd.f32 %v1496, %v1547
    %v1554 = vxor.u32 %v1550, 2147483648
    %v1555 = vmul.f32 %v1554, 1.442695
    %v1556 = vpow.pop %v1555
    %v1557 = vadd.f32 %v1556, 1.0
    %v1558 = vrcp.pop %v1557
    %v1559 = vmul.f32 %v1557, %v1558
    %v1560 = vsub.f32 1.0, %v1559
    %v1561 = vmul.f32 %v1558, %v1560
    %v1562 = vadd.f32 %v1558, %v1561
    %vm1563 = vweird.f32 %v1557
    %vm1564 = vweird.f32 %v1558
    %vm1565 = vmor %vm1563, %vm1564
    %v1566 = vsel %vm1565, %v1558, %v1562
    %v1567 = vand.u32 2147483647, %v1557
    %vm1568 = vcmp.eq.f32.partialorder %v1567, 8.507059e+37
    %v1569 = vand.u32 %v1557, 2147483648
    %v1570 = vor.u32 1.1754944e-38, %v1569
    %v1571 = vsel %vm1568, %v1570, %v1566
    %v1572 = vmul.f32 1.0, %v1571
    %v1573 = vxor.u32 %v1551, 2147483648
    %v1574 = vmul.f32 %v1573, 1.442695
    %v1575 = vpow.pop %v1574
    %v1576 = vadd.f32 %v1575, 1.0
    %v1577 = vrcp.pop %v1576
    %v1578 = vmul.f32 %v1576, %v1577
    %v1579 = vsub.f32 1.0, %v1578
    %v1580 = vmul.f32 %v1577, %v1579
    %v1581 = vadd.f32 %v1577, %v1580
    %vm1582 = vweird.f32 %v1576
    %vm1583 = vweird.f32 %v1577
    %vm1584 = vmor %vm1582, %vm1583
    %v1585 = vsel %vm1584, %v1577, %v1581
    %v1586 = vand.u32 2147483647, %v1576
    %vm1587 = vcmp.eq.f32.partialorder %v1586, 8.507059e+37
    %v1588 = vand.u32 %v1576, 2147483648
    %v1589 = vor.u32 1.1754944e-38, %v1588
    %v1590 = vsel %vm1587, %v1589, %v1585
    %v1591 = vmul.f32 1.0, %v1590
    %v1592 = vtanh.pop %v1552
    %v1593 = vxor.u32 %v1553, 2147483648
    %v1594 = vmul.f32 %v1593, 1.442695
    %v1595 = vpow.pop %v1594
    %v1596 = vadd.f32 %v1595, 1.0
    %v1597 = vrcp.pop %v1596
    %v1598 = vmul.f32 %v1596, %v1597
    %v1599 = vsub.f32 1.0, %v1598
    %v1600 = vmul.f32 %v1597, %v1599
    %v1601 = vadd.f32 %v1597, %v1600
    %vm1602 = vweird.f32 %v1596
    %vm1603 = vweird.f32 %v1597
    %vm1604 = vmor %vm1602, %vm1603
    %v1605 = vsel %vm1604, %v1597, %v1601
    %v1606 = vand.u32 2147483647, %v1596
    %vm1607 = vcmp.eq.f32.partialorder %v1606, 8.507059e+37
    %v1608 = vand.u32 %v1596, 2147483648
    %v1609 = vor.u32 1.1754944e-38, %v1608
    %v1610 = vsel %vm1607, %v1609, %v1605
    %v1611 = vmul.f32 1.0, %v1610
    %v1612 = vmul.f32 %v1592, %v1572
    %v1613 = vmul.f32 %v1591, %v1487
    %v1614 = vadd.f32 %v1612, %v1613
    %v1615 = vtanh.pop %v1614
    %v1616 = vmul.f32 %v1611, %v1615
    %s1617 = scalar_lea.vmem %s4, 80
    %1618 = vst [vmem:[%s1617] sm:$0xff] %v1616
    %s1619 = scalar_lea.vmem %s0, 352
    %v1620 = vld [vmem:[%s1619] sm:$0xff]
    %v1621 = vld [vmem:[%s1619 + $0x8] sm:$0xff]
    %v1622 = vld [vmem:[%s1619 + $0x10] sm:$0xff]
    %v1623 = vld [vmem:[%s1619 + $0x18] sm:$0xff]
    %v1624 = vpack.c.bf16 %v1616, %v1616
    %1625 = vmatpush.bf16.msra.mxu0 %v193
    %1626 = vmatpush.bf16.msra.mxu0 %v189
    %1627 = vmatpush.bf16.msra.mxu0 %v185
    %1628 = vmatpush.bf16.msra.mxu0 %v181
    %1629 = vmatpush.bf16.msra.mxu0 %v177
    %1630 = vmatpush.bf16.msra.mxu0 %v173
    %1631 = vmatpush.bf16.msra.mxu0 %v169
    %1632 = vmatpush.bf16.msra.mxu0 %v165
    %1633 = vmatmul.bf16.gmra.mxu0 %v1624
    %v1634 = vpop.f32.mrf.mxu0
    %v1635 = vadd.f32 0.0, %v1634
    %v1636 = vpop.f32.mrf.mxu0
    %1637 = vdwg.mxu0
    %1638 = vmatpush.bf16.msra.mxu0 %v194
    %1639 = vmatpush.bf16.msra.mxu0 %v190
    %1640 = vmatpush.bf16.msra.mxu0 %v186
    %1641 = vmatpush.bf16.msra.mxu0 %v182
    %1642 = vmatpush.bf16.msra.mxu0 %v178
    %1643 = vmatpush.bf16.msra.mxu0 %v174
    %1644 = vmatpush.bf16.msra.mxu0 %v170
    %1645 = vmatpush.bf16.msra.mxu0 %v166
    %1646 = vmatmul.bf16.gmra.mxu0 %v1624
    %v1647 = vpop.f32.mrf.mxu0
    %v1648 = vadd.f32 0.0, %v1647
    %v1649 = vpop.f32.mrf.mxu0
    %1650 = vdwg.mxu0
    %1651 = vmatpush.bf16.msra.mxu0 %v195
    %1652 = vmatpush.bf16.msra.mxu0 %v191
    %1653 = vmatpush.bf16.msra.mxu0 %v187
    %1654 = vmatpush.bf16.msra.mxu0 %v183
    %1655 = vmatpush.bf16.msra.mxu0 %v179
    %1656 = vmatpush.bf16.msra.mxu0 %v175
    %1657 = vmatpush.bf16.msra.mxu0 %v171
    %1658 = vmatpush.bf16.msra.mxu0 %v167
    %1659 = vmatmul.bf16.gmra.mxu0 %v1624
    %v1660 = vpop.f32.mrf.mxu0
    %v1661 = vadd.f32 0.0, %v1660
    %v1662 = vpop.f32.mrf.mxu0
    %1663 = vdwg.mxu0
    %1664 = vmatpush.bf16.msra.mxu0 %v196
    %1665 = vmatpush.bf16.msra.mxu0 %v192
    %1666 = vmatpush.bf16.msra.mxu0 %v188
    %1667 = vmatpush.bf16.msra.mxu0 %v184
    %1668 = vmatpush.bf16.msra.mxu0 %v180
    %1669 = vmatpush.bf16.msra.mxu0 %v176
    %1670 = vmatpush.bf16.msra.mxu0 %v172
    %1671 = vmatpush.bf16.msra.mxu0 %v168
    %1672 = vmatmul.bf16.gmra.mxu0 %v1624
    %v1673 = vpop.f32.mrf.mxu0
    %v1674 = vadd.f32 0.0, %v1673
    %v1675 = vpop.f32.mrf.mxu0
    %1676 = vdwg.mxu0
    %v1677 = vadd.f32 %v1620, %v1635
    %v1678 = vadd.f32 %v1621, %v1648
    %v1679 = vadd.f32 %v1622, %v1661
    %v1680 = vadd.f32 %v1623, %v1674
    %v1681 = vxor.u32 %v1677, 2147483648
    %v1682 = vmul.f32 %v1681, 1.442695
    %v1683 = vpow.pop %v1682
    %v1684 = vadd.f32 %v1683, 1.0
    %v1685 = vrcp.pop %v1684
    %v1686 = vmul.f32 %v1684, %v1685
    %v1687 = vsub.f32 1.0, %v1686
    %v1688 = vmul.f32 %v1685, %v1687
    %v1689 = vadd.f32 %v1685, %v1688
    %vm1690 = vweird.f32 %v1684
    %vm1691 = vweird.f32 %v1685
    %vm1692 = vmor %vm1690, %vm1691
    %v1693 = vsel %vm1692, %v1685, %v1689
    %v1694 = vand.u32 2147483647, %v1684
    %vm1695 = vcmp.eq.f32.partialorder %v1694, 8.507059e+37
    %v1696 = vand.u32 %v1684, 2147483648
    %v1697 = vor.u32 1.1754944e-38, %v1696
    %v1698 = vsel %vm1695, %v1697, %v1693
    %v1699 = vmul.f32 1.0, %v1698
    %v1700 = vxor.u32 %v1678, 2147483648
    %v1701 = vmul.f32 %v1700, 1.442695
    %v1702 = vpow.pop %v1701
    %v1703 = vadd.f32 %v1702, 1.0
    %v1704 = vrcp.pop %v1703
    %v1705 = vmul.f32 %v1703, %v1704
    %v1706 = vsub.f32 1.0, %v1705
    %v1707 = vmul.f32 %v1704, %v1706
    %v1708 = vadd.f32 %v1704, %v1707
    %vm1709 = vweird.f32 %v1703
    %vm1710 = vweird.f32 %v1704
    %vm1711 = vmor %vm1709, %vm1710
    %v1712 = vsel %vm1711, %v1704, %v1708
    %v1713 = vand.u32 2147483647, %v1703
    %vm1714 = vcmp.eq.f32.partialorder %v1713, 8.507059e+37
    %v1715 = vand.u32 %v1703, 2147483648
    %v1716 = vor.u32 1.1754944e-38, %v1715
    %v1717 = vsel %vm1714, %v1716, %v1712
    %v1718 = vmul.f32 1.0, %v1717
    %v1719 = vtanh.pop %v1679
    %v1720 = vxor.u32 %v1680, 2147483648
    %v1721 = vmul.f32 %v1720, 1.442695
    %v1722 = vpow.pop %v1721
    %v1723 = vadd.f32 %v1722, 1.0
    %v1724 = vrcp.pop %v1723
    %v1725 = vmul.f32 %v1723, %v1724
    %v1726 = vsub.f32 1.0, %v1725
    %v1727 = vmul.f32 %v1724, %v1726
    %v1728 = vadd.f32 %v1724, %v1727
    %vm1729 = vweird.f32 %v1723
    %vm1730 = vweird.f32 %v1724
    %vm1731 = vmor %vm1729, %vm1730
    %v1732 = vsel %vm1731, %v1724, %v1728
    %v1733 = vand.u32 2147483647, %v1723
    %vm1734 = vcmp.eq.f32.partialorder %v1733, 8.507059e+37
    %v1735 = vand.u32 %v1723, 2147483648
    %v1736 = vor.u32 1.1754944e-38, %v1735
    %v1737 = vsel %vm1734, %v1736, %v1732
    %v1738 = vmul.f32 1.0, %v1737
    %v1739 = vmul.f32 %v1719, %v1699
    %v1740 = vmul.f32 %v1718, %v1614
    %v1741 = vadd.f32 %v1739, %v1740
    %v1742 = vtanh.pop %v1741
    %v1743 = vmul.f32 %v1738, %v1742
    %s1744 = scalar_lea.vmem %s4, 88
    %1745 = vst [vmem:[%s1744] sm:$0xff] %v1743
    %s1746 = scalar_lea.vmem %s0, 384
    %v1747 = vld [vmem:[%s1746] sm:$0xff]
    %v1748 = vld [vmem:[%s1746 + $0x8] sm:$0xff]
    %v1749 = vld [vmem:[%s1746 + $0x10] sm:$0xff]
    %v1750 = vld [vmem:[%s1746 + $0x18] sm:$0xff]
    %v1751 = vpack.c.bf16 %v1743, %v1743
    %1752 = vmatpush.bf16.msra.mxu0 %v193
    %1753 = vmatpush.bf16.msra.mxu0 %v189
    %1754 = vmatpush.bf16.msra.mxu0 %v185
    %1755 = vmatpush.bf16.msra.mxu0 %v181
    %1756 = vmatpush.bf16.msra.mxu0 %v177
    %1757 = vmatpush.bf16.msra.mxu0 %v173
    %1758 = vmatpush.bf16.msra.mxu0 %v169
    %1759 = vmatpush.bf16.msra.mxu0 %v165
    %1760 = vmatmul.bf16.gmra.mxu0 %v1751
    %v1761 = vpop.f32.mrf.mxu0
    %v1762 = vadd.f32 0.0, %v1761
    %v1763 = vpop.f32.mrf.mxu0
    %1764 = vdwg.mxu0
    %1765 = vmatpush.bf16.msra.mxu0 %v194
    %1766 = vmatpush.bf16.msra.mxu0 %v190
    %1767 = vmatpush.bf16.msra.mxu0 %v186
    %1768 = vmatpush.bf16.msra.mxu0 %v182
    %1769 = vmatpush.bf16.msra.mxu0 %v178
    %1770 = vmatpush.bf16.msra.mxu0 %v174
    %1771 = vmatpush.bf16.msra.mxu0 %v170
    %1772 = vmatpush.bf16.msra.mxu0 %v166
    %1773 = vmatmul.bf16.gmra.mxu0 %v1751
    %v1774 = vpop.f32.mrf.mxu0
    %v1775 = vadd.f32 0.0, %v1774
    %v1776 = vpop.f32.mrf.mxu0
    %1777 = vdwg.mxu0
    %1778 = vmatpush.bf16.msra.mxu0 %v195
    %1779 = vmatpush.bf16.msra.mxu0 %v191
    %1780 = vmatpush.bf16.msra.mxu0 %v187
    %1781 = vmatpush.bf16.msra.mxu0 %v183
    %1782 = vmatpush.bf16.msra.mxu0 %v179
    %1783 = vmatpush.bf16.msra.mxu0 %v175
    %1784 = vmatpush.bf16.msra.mxu0 %v171
    %1785 = vmatpush.bf16.msra.mxu0 %v167
    %1786 = vmatmul.bf16.gmra.mxu0 %v1751
    %v1787 = vpop.f32.mrf.mxu0
    %v1788 = vadd.f32 0.0, %v1787
    %v1789 = vpop.f32.mrf.mxu0
    %1790 = vdwg.mxu0
    %1791 = vmatpush.bf16.msra.mxu0 %v196
    %1792 = vmatpush.bf16.msra.mxu0 %v192
    %1793 = vmatpush.bf16.msra.mxu0 %v188
    %1794 = vmatpush.bf16.msra.mxu0 %v184
    %1795 = vmatpush.bf16.msra.mxu0 %v180
    %1796 = vmatpush.bf16.msra.mxu0 %v176
    %1797 = vmatpush.bf16.msra.mxu0 %v172
    %1798 = vmatpush.bf16.msra.mxu0 %v168
    %1799 = vmatmul.bf16.gmra.mxu0 %v1751
    %v1800 = vpop.f32.mrf.mxu0
    %v1801 = vadd.f32 0.0, %v1800
    %v1802 = vpop.f32.mrf.mxu0
    %1803 = vdwg.mxu0
    %v1804 = vadd.f32 %v1747, %v1762
    %v1805 = vadd.f32 %v1748, %v1775
    %v1806 = vadd.f32 %v1749, %v1788
    %v1807 = vadd.f32 %v1750, %v1801
    %v1808 = vxor.u32 %v1804, 2147483648
    %v1809 = vmul.f32 %v1808, 1.442695
    %v1810 = vpow.pop %v1809
    %v1811 = vadd.f32 %v1810, 1.0
    %v1812 = vrcp.pop %v1811
    %v1813 = vmul.f32 %v1811, %v1812
    %v1814 = vsub.f32 1.0, %v1813
    %v1815 = vmul.f32 %v1812, %v1814
    %v1816 = vadd.f32 %v1812, %v1815
    %vm1817 = vweird.f32 %v1811
    %vm1818 = vweird.f32 %v1812
    %vm1819 = vmor %vm1817, %vm1818
    %v1820 = vsel %vm1819, %v1812, %v1816
    %v1821 = vand.u32 2147483647, %v1811
    %vm1822 = vcmp.eq.f32.partialorder %v1821, 8.507059e+37
    %v1823 = vand.u32 %v1811, 2147483648
    %v1824 = vor.u32 1.1754944e-38, %v1823
    %v1825 = vsel %vm1822, %v1824, %v1820
    %v1826 = vmul.f32 1.0, %v1825
    %v1827 = vxor.u32 %v1805, 2147483648
    %v1828 = vmul.f32 %v1827, 1.442695
    %v1829 = vpow.pop %v1828
    %v1830 = vadd.f32 %v1829, 1.0
    %v1831 = vrcp.pop %v1830
    %v1832 = vmul.f32 %v1830, %v1831
    %v1833 = vsub.f32 1.0, %v1832
    %v1834 = vmul.f32 %v1831, %v1833
    %v1835 = vadd.f32 %v1831, %v1834
    %vm1836 = vweird.f32 %v1830
    %vm1837 = vweird.f32 %v1831
    %vm1838 = vmor %vm1836, %vm1837
    %v1839 = vsel %vm1838, %v1831, %v1835
    %v1840 = vand.u32 2147483647, %v1830
    %vm1841 = vcmp.eq.f32.partialorder %v1840, 8.507059e+37
    %v1842 = vand.u32 %v1830, 2147483648
    %v1843 = vor.u32 1.1754944e-38, %v1842
    %v1844 = vsel %vm1841, %v1843, %v1839
    %v1845 = vmul.f32 1.0, %v1844
    %v1846 = vtanh.pop %v1806
    %v1847 = vxor.u32 %v1807, 2147483648
    %v1848 = vmul.f32 %v1847, 1.442695
    %v1849 = vpow.pop %v1848
    %v1850 = vadd.f32 %v1849, 1.0
    %v1851 = vrcp.pop %v1850
    %v1852 = vmul.f32 %v1850, %v1851
    %v1853 = vsub.f32 1.0, %v1852
    %v1854 = vmul.f32 %v1851, %v1853
    %v1855 = vadd.f32 %v1851, %v1854
    %vm1856 = vweird.f32 %v1850
    %vm1857 = vweird.f32 %v1851
    %vm1858 = vmor %vm1856, %vm1857
    %v1859 = vsel %vm1858, %v1851, %v1855
    %v1860 = vand.u32 2147483647, %v1850
    %vm1861 = vcmp.eq.f32.partialorder %v1860, 8.507059e+37
    %v1862 = vand.u32 %v1850, 2147483648
    %v1863 = vor.u32 1.1754944e-38, %v1862
    %v1864 = vsel %vm1861, %v1863, %v1859
    %v1865 = vmul.f32 1.0, %v1864
    %v1866 = vmul.f32 %v1846, %v1826
    %v1867 = vmul.f32 %v1845, %v1741
    %v1868 = vadd.f32 %v1866, %v1867
    %v1869 = vtanh.pop %v1868
    %v1870 = vmul.f32 %v1865, %v1869
    %s1871 = scalar_lea.vmem %s4, 96
    %1872 = vst [vmem:[%s1871] sm:$0xff] %v1870
    %s1873 = scalar_lea.vmem %s0, 416
    %v1874 = vld [vmem:[%s1873] sm:$0xff]
    %v1875 = vld [vmem:[%s1873 + $0x8] sm:$0xff]
    %v1876 = vld [vmem:[%s1873 + $0x10] sm:$0xff]
    %v1877 = vld [vmem:[%s1873 + $0x18] sm:$0xff]
    %v1878 = vpack.c.bf16 %v1870, %v1870
    %1879 = vmatpush.bf16.msra.mxu0 %v193
    %1880 = vmatpush.bf16.msra.mxu0 %v189
    %1881 = vmatpush.bf16.msra.mxu0 %v185
    %1882 = vmatpush.bf16.msra.mxu0 %v181
    %1883 = vmatpush.bf16.msra.mxu0 %v177
    %1884 = vmatpush.bf16.msra.mxu0 %v173
    %1885 = vmatpush.bf16.msra.mxu0 %v169
    %1886 = vmatpush.bf16.msra.mxu0 %v165
    %1887 = vmatmul.bf16.gmra.mxu0 %v1878
    %v1888 = vpop.f32.mrf.mxu0
    %v1889 = vadd.f32 0.0, %v1888
    %v1890 = vpop.f32.mrf.mxu0
    %1891 = vdwg.mxu0
    %1892 = vmatpush.bf16.msra.mxu0 %v194
    %1893 = vmatpush.bf16.msra.mxu0 %v190
    %1894 = vmatpush.bf16.msra.mxu0 %v186
    %1895 = vmatpush.bf16.msra.mxu0 %v182
    %1896 = vmatpush.bf16.msra.mxu0 %v178
    %1897 = vmatpush.bf16.msra.mxu0 %v174
    %1898 = vmatpush.bf16.msra.mxu0 %v170
    %1899 = vmatpush.bf16.msra.mxu0 %v166
    %1900 = vmatmul.bf16.gmra.mxu0 %v1878
    %v1901 = vpop.f32.mrf.mxu0
    %v1902 = vadd.f32 0.0, %v1901
    %v1903 = vpop.f32.mrf.mxu0
    %1904 = vdwg.mxu0
    %1905 = vmatpush.bf16.msra.mxu0 %v195
    %1906 = vmatpush.bf16.msra.mxu0 %v191
    %1907 = vmatpush.bf16.msra.mxu0 %v187
    %1908 = vmatpush.bf16.msra.mxu0 %v183
    %1909 = vmatpush.bf16.msra.mxu0 %v179
    %1910 = vmatpush.bf16.msra.mxu0 %v175
    %1911 = vmatpush.bf16.msra.mxu0 %v171
    %1912 = vmatpush.bf16.msra.mxu0 %v167
    %1913 = vmatmul.bf16.gmra.mxu0 %v1878
    %v1914 = vpop.f32.mrf.mxu0
    %v1915 = vadd.f32 0.0, %v1914
    %v1916 = vpop.f32.mrf.mxu0
    %1917 = vdwg.mxu0
    %1918 = vmatpush.bf16.msra.mxu0 %v196
    %1919 = vmatpush.bf16.msra.mxu0 %v192
    %1920 = vmatpush.bf16.msra.mxu0 %v188
    %1921 = vmatpush.bf16.msra.mxu0 %v184
    %1922 = vmatpush.bf16.msra.mxu0 %v180
    %1923 = vmatpush.bf16.msra.mxu0 %v176
    %1924 = vmatpush.bf16.msra.mxu0 %v172
    %1925 = vmatpush.bf16.msra.mxu0 %v168
    %1926 = vmatmul.bf16.gmra.mxu0 %v1878
    %v1927 = vpop.f32.mrf.mxu0
    %v1928 = vadd.f32 0.0, %v1927
    %v1929 = vpop.f32.mrf.mxu0
    %1930 = vdwg.mxu0
    %v1931 = vadd.f32 %v1874, %v1889
    %v1932 = vadd.f32 %v1875, %v1902
    %v1933 = vadd.f32 %v1876, %v1915
    %v1934 = vadd.f32 %v1877, %v1928
    %v1935 = vxor.u32 %v1931, 2147483648
    %v1936 = vmul.f32 %v1935, 1.442695
    %v1937 = vpow.pop %v1936
    %v1938 = vadd.f32 %v1937, 1.0
    %v1939 = vrcp.pop %v1938
    %v1940 = vmul.f32 %v1938, %v1939
    %v1941 = vsub.f32 1.0, %v1940
    %v1942 = vmul.f32 %v1939, %v1941
    %v1943 = vadd.f32 %v1939, %v1942
    %vm1944 = vweird.f32 %v1938
    %vm1945 = vweird.f32 %v1939
    %vm1946 = vmor %vm1944, %vm1945
    %v1947 = vsel %vm1946, %v1939, %v1943
    %v1948 = vand.u32 2147483647, %v1938
    %vm1949 = vcmp.eq.f32.partialorder %v1948, 8.507059e+37
    %v1950 = vand.u32 %v1938, 2147483648
    %v1951 = vor.u32 1.1754944e-38, %v1950
    %v1952 = vsel %vm1949, %v1951, %v1947
    %v1953 = vmul.f32 1.0, %v1952
    %v1954 = vxor.u32 %v1932, 2147483648
    %v1955 = vmul.f32 %v1954, 1.442695
    %v1956 = vpow.pop %v1955
    %v1957 = vadd.f32 %v1956, 1.0
    %v1958 = vrcp.pop %v1957
    %v1959 = vmul.f32 %v1957, %v1958
    %v1960 = vsub.f32 1.0, %v1959
    %v1961 = vmul.f32 %v1958, %v1960
    %v1962 = vadd.f32 %v1958, %v1961
    %vm1963 = vweird.f32 %v1957
    %vm1964 = vweird.f32 %v1958
    %vm1965 = vmor %vm1963, %vm1964
    %v1966 = vsel %vm1965, %v1958, %v1962
    %v1967 = vand.u32 2147483647, %v1957
    %vm1968 = vcmp.eq.f32.partialorder %v1967, 8.507059e+37
    %v1969 = vand.u32 %v1957, 2147483648
    %v1970 = vor.u32 1.1754944e-38, %v1969
    %v1971 = vsel %vm1968, %v1970, %v1966
    %v1972 = vmul.f32 1.0, %v1971
    %v1973 = vtanh.pop %v1933
    %v1974 = vxor.u32 %v1934, 2147483648
    %v1975 = vmul.f32 %v1974, 1.442695
    %v1976 = vpow.pop %v1975
    %v1977 = vadd.f32 %v1976, 1.0
    %v1978 = vrcp.pop %v1977
    %v1979 = vmul.f32 %v1977, %v1978
    %v1980 = vsub.f32 1.0, %v1979
    %v1981 = vmul.f32 %v1978, %v1980
    %v1982 = vadd.f32 %v1978, %v1981
    %vm1983 = vweird.f32 %v1977
    %vm1984 = vweird.f32 %v1978
    %vm1985 = vmor %vm1983, %vm1984
    %v1986 = vsel %vm1985, %v1978, %v1982
    %v1987 = vand.u32 2147483647, %v1977
    %vm1988 = vcmp.eq.f32.partialorder %v1987, 8.507059e+37
    %v1989 = vand.u32 %v1977, 2147483648
    %v1990 = vor.u32 1.1754944e-38, %v1989
    %v1991 = vsel %vm1988, %v1990, %v1986
    %v1992 = vmul.f32 1.0, %v1991
    %v1993 = vmul.f32 %v1973, %v1953
    %v1994 = vmul.f32 %v1972, %v1868
    %v1995 = vadd.f32 %v1993, %v1994
    %v1996 = vtanh.pop %v1995
    %v1997 = vmul.f32 %v1992, %v1996
    %s1998 = scalar_lea.vmem %s4, 104
    %1999 = vst [vmem:[%s1998] sm:$0xff] %v1997
    %s2000 = scalar_lea.vmem %s0, 448
    %v2001 = vld [vmem:[%s2000] sm:$0xff]
    %v2002 = vld [vmem:[%s2000 + $0x8] sm:$0xff]
    %v2003 = vld [vmem:[%s2000 + $0x10] sm:$0xff]
    %v2004 = vld [vmem:[%s2000 + $0x18] sm:$0xff]
    %v2005 = vpack.c.bf16 %v1997, %v1997
    %2006 = vmatpush.bf16.msra.mxu0 %v193
    %2007 = vmatpush.bf16.msra.mxu0 %v189
    %2008 = vmatpush.bf16.msra.mxu0 %v185
    %2009 = vmatpush.bf16.msra.mxu0 %v181
    %2010 = vmatpush.bf16.msra.mxu0 %v177
    %2011 = vmatpush.bf16.msra.mxu0 %v173
    %2012 = vmatpush.bf16.msra.mxu0 %v169
    %2013 = vmatpush.bf16.msra.mxu0 %v165
    %2014 = vmatmul.bf16.gmra.mxu0 %v2005
    %v2015 = vpop.f32.mrf.mxu0
    %v2016 = vadd.f32 0.0, %v2015
    %v2017 = vpop.f32.mrf.mxu0
    %2018 = vdwg.mxu0
    %2019 = vmatpush.bf16.msra.mxu0 %v194
    %2020 = vmatpush.bf16.msra.mxu0 %v190
    %2021 = vmatpush.bf16.msra.mxu0 %v186
    %2022 = vmatpush.bf16.msra.mxu0 %v182
    %2023 = vmatpush.bf16.msra.mxu0 %v178
    %2024 = vmatpush.bf16.msra.mxu0 %v174
    %2025 = vmatpush.bf16.msra.mxu0 %v170
    %2026 = vmatpush.bf16.msra.mxu0 %v166
    %2027 = vmatmul.bf16.gmra.mxu0 %v2005
    %v2028 = vpop.f32.mrf.mxu0
    %v2029 = vadd.f32 0.0, %v2028
    %v2030 = vpop.f32.mrf.mxu0
    %2031 = vdwg.mxu0
    %2032 = vmatpush.bf16.msra.mxu0 %v195
    %2033 = vmatpush.bf16.msra.mxu0 %v191
    %2034 = vmatpush.bf16.msra.mxu0 %v187
    %2035 = vmatpush.bf16.msra.mxu0 %v183
    %2036 = vmatpush.bf16.msra.mxu0 %v179
    %2037 = vmatpush.bf16.msra.mxu0 %v175
    %2038 = vmatpush.bf16.msra.mxu0 %v171
    %2039 = vmatpush.bf16.msra.mxu0 %v167
    %2040 = vmatmul.bf16.gmra.mxu0 %v2005
    %v2041 = vpop.f32.mrf.mxu0
    %v2042 = vadd.f32 0.0, %v2041
    %v2043 = vpop.f32.mrf.mxu0
    %2044 = vdwg.mxu0
    %2045 = vmatpush.bf16.msra.mxu0 %v196
    %2046 = vmatpush.bf16.msra.mxu0 %v192
    %2047 = vmatpush.bf16.msra.mxu0 %v188
    %2048 = vmatpush.bf16.msra.mxu0 %v184
    %2049 = vmatpush.bf16.msra.mxu0 %v180
    %2050 = vmatpush.bf16.msra.mxu0 %v176
    %2051 = vmatpush.bf16.msra.mxu0 %v172
    %2052 = vmatpush.bf16.msra.mxu0 %v168
    %2053 = vmatmul.bf16.gmra.mxu0 %v2005
    %v2054 = vpop.f32.mrf.mxu0
    %v2055 = vadd.f32 0.0, %v2054
    %v2056 = vpop.f32.mrf.mxu0
    %2057 = vdwg.mxu0
    %v2058 = vadd.f32 %v2001, %v2016
    %v2059 = vadd.f32 %v2002, %v2029
    %v2060 = vadd.f32 %v2003, %v2042
    %v2061 = vadd.f32 %v2004, %v2055
    %v2062 = vxor.u32 %v2058, 2147483648
    %v2063 = vmul.f32 %v2062, 1.442695
    %v2064 = vpow.pop %v2063
    %v2065 = vadd.f32 %v2064, 1.0
    %v2066 = vrcp.pop %v2065
    %v2067 = vmul.f32 %v2065, %v2066
    %v2068 = vsub.f32 1.0, %v2067
    %v2069 = vmul.f32 %v2066, %v2068
    %v2070 = vadd.f32 %v2066, %v2069
    %vm2071 = vweird.f32 %v2065
    %vm2072 = vweird.f32 %v2066
    %vm2073 = vmor %vm2071, %vm2072
    %v2074 = vsel %vm2073, %v2066, %v2070
    %v2075 = vand.u32 2147483647, %v2065
    %vm2076 = vcmp.eq.f32.partialorder %v2075, 8.507059e+37
    %v2077 = vand.u32 %v2065, 2147483648
    %v2078 = vor.u32 1.1754944e-38, %v2077
    %v2079 = vsel %vm2076, %v2078, %v2074
    %v2080 = vmul.f32 1.0, %v2079
    %v2081 = vxor.u32 %v2059, 2147483648
    %v2082 = vmul.f32 %v2081, 1.442695
    %v2083 = vpow.pop %v2082
    %v2084 = vadd.f32 %v2083, 1.0
    %v2085 = vrcp.pop %v2084
    %v2086 = vmul.f32 %v2084, %v2085
    %v2087 = vsub.f32 1.0, %v2086
    %v2088 = vmul.f32 %v2085, %v2087
    %v2089 = vadd.f32 %v2085, %v2088
    %vm2090 = vweird.f32 %v2084
    %vm2091 = vweird.f32 %v2085
    %vm2092 = vmor %vm2090, %vm2091
    %v2093 = vsel %vm2092, %v2085, %v2089
    %v2094 = vand.u32 2147483647, %v2084
    %vm2095 = vcmp.eq.f32.partialorder %v2094, 8.507059e+37
    %v2096 = vand.u32 %v2084, 2147483648
    %v2097 = vor.u32 1.1754944e-38, %v2096
    %v2098 = vsel %vm2095, %v2097, %v2093
    %v2099 = vmul.f32 1.0, %v2098
    %v2100 = vtanh.pop %v2060
    %v2101 = vxor.u32 %v2061, 2147483648
    %v2102 = vmul.f32 %v2101, 1.442695
    %v2103 = vpow.pop %v2102
    %v2104 = vadd.f32 %v2103, 1.0
    %v2105 = vrcp.pop %v2104
    %v2106 = vmul.f32 %v2104, %v2105
    %v2107 = vsub.f32 1.0, %v2106
    %v2108 = vmul.f32 %v2105, %v2107
    %v2109 = vadd.f32 %v2105, %v2108
    %vm2110 = vweird.f32 %v2104
    %vm2111 = vweird.f32 %v2105
    %vm2112 = vmor %vm2110, %vm2111
    %v2113 = vsel %vm2112, %v2105, %v2109
    %v2114 = vand.u32 2147483647, %v2104
    %vm2115 = vcmp.eq.f32.partialorder %v2114, 8.507059e+37
    %v2116 = vand.u32 %v2104, 2147483648
    %v2117 = vor.u32 1.1754944e-38, %v2116
    %v2118 = vsel %vm2115, %v2117, %v2113
    %v2119 = vmul.f32 1.0, %v2118
    %v2120 = vmul.f32 %v2100, %v2080
    %v2121 = vmul.f32 %v2099, %v1995
    %v2122 = vadd.f32 %v2120, %v2121
    %v2123 = vtanh.pop %v2122
    %v2124 = vmul.f32 %v2119, %v2123
    %s2125 = scalar_lea.vmem %s4, 112
    %2126 = vst [vmem:[%s2125] sm:$0xff] %v2124
    %s2127 = scalar_lea.vmem %s0, 480
    %v2128 = vld [vmem:[%s2127] sm:$0xff]
    %v2129 = vld [vmem:[%s2127 + $0x8] sm:$0xff]
    %v2130 = vld [vmem:[%s2127 + $0x10] sm:$0xff]
    %v2131 = vld [vmem:[%s2127 + $0x18] sm:$0xff]
    %v2132 = vpack.c.bf16 %v2124, %v2124
    %2133 = vmatpush.bf16.msra.mxu0 %v193
    %2134 = vmatpush.bf16.msra.mxu0 %v189
    %2135 = vmatpush.bf16.msra.mxu0 %v185
    %2136 = vmatpush.bf16.msra.mxu0 %v181
    %2137 = vmatpush.bf16.msra.mxu0 %v177
    %2138 = vmatpush.bf16.msra.mxu0 %v173
    %2139 = vmatpush.bf16.msra.mxu0 %v169
    %2140 = vmatpush.bf16.msra.mxu0 %v165
    %2141 = vmatmul.bf16.gmra.mxu0 %v2132
    %v2142 = vpop.f32.mrf.mxu0
    %v2143 = vadd.f32 0.0, %v2142
    %v2144 = vpop.f32.mrf.mxu0
    %2145 = vdwg.mxu0
    %2146 = vmatpush.bf16.msra.mxu0 %v194
    %2147 = vmatpush.bf16.msra.mxu0 %v190
    %2148 = vmatpush.bf16.msra.mxu0 %v186
    %2149 = vmatpush.bf16.msra.mxu0 %v182
    %2150 = vmatpush.bf16.msra.mxu0 %v178
    %2151 = vmatpush.bf16.msra.mxu0 %v174
    %2152 = vmatpush.bf16.msra.mxu0 %v170
    %2153 = vmatpush.bf16.msra.mxu0 %v166
    %2154 = vmatmul.bf16.gmra.mxu0 %v2132
    %v2155 = vpop.f32.mrf.mxu0
    %v2156 = vadd.f32 0.0, %v2155
    %v2157 = vpop.f32.mrf.mxu0
    %2158 = vdwg.mxu0
    %2159 = vmatpush.bf16.msra.mxu0 %v195
    %2160 = vmatpush.bf16.msra.mxu0 %v191
    %2161 = vmatpush.bf16.msra.mxu0 %v187
    %2162 = vmatpush.bf16.msra.mxu0 %v183
    %2163 = vmatpush.bf16.msra.mxu0 %v179
    %2164 = vmatpush.bf16.msra.mxu0 %v175
    %2165 = vmatpush.bf16.msra.mxu0 %v171
    %2166 = vmatpush.bf16.msra.mxu0 %v167
    %2167 = vmatmul.bf16.gmra.mxu0 %v2132
    %v2168 = vpop.f32.mrf.mxu0
    %v2169 = vadd.f32 0.0, %v2168
    %v2170 = vpop.f32.mrf.mxu0
    %2171 = vdwg.mxu0
    %2172 = vmatpush.bf16.msra.mxu0 %v196
    %2173 = vmatpush.bf16.msra.mxu0 %v192
    %2174 = vmatpush.bf16.msra.mxu0 %v188
    %2175 = vmatpush.bf16.msra.mxu0 %v184
    %2176 = vmatpush.bf16.msra.mxu0 %v180
    %2177 = vmatpush.bf16.msra.mxu0 %v176
    %2178 = vmatpush.bf16.msra.mxu0 %v172
    %2179 = vmatpush.bf16.msra.mxu0 %v168
    %2180 = vmatmul.bf16.gmra.mxu0 %v2132
    %v2181 = vpop.f32.mrf.mxu0
    %v2182 = vadd.f32 0.0, %v2181
    %v2183 = vpop.f32.mrf.mxu0
    %2184 = vdwg.mxu0
    %v2185 = vadd.f32 %v2128, %v2143
    %v2186 = vadd.f32 %v2129, %v2156
    %v2187 = vadd.f32 %v2130, %v2169
    %v2188 = vadd.f32 %v2131, %v2182
    %v2189 = vxor.u32 %v2185, 2147483648
    %v2190 = vmul.f32 %v2189, 1.442695
    %v2191 = vpow.pop %v2190
    %v2192 = vadd.f32 %v2191, 1.0
    %v2193 = vrcp.pop %v2192
    %v2194 = vmul.f32 %v2192, %v2193
    %v2195 = vsub.f32 1.0, %v2194
    %v2196 = vmul.f32 %v2193, %v2195
    %v2197 = vadd.f32 %v2193, %v2196
    %vm2198 = vweird.f32 %v2192
    %vm2199 = vweird.f32 %v2193
    %vm2200 = vmor %vm2198, %vm2199
    %v2201 = vsel %vm2200, %v2193, %v2197
    %v2202 = vand.u32 2147483647, %v2192
    %vm2203 = vcmp.eq.f32.partialorder %v2202, 8.507059e+37
    %v2204 = vand.u32 %v2192, 2147483648
    %v2205 = vor.u32 1.1754944e-38, %v2204
    %v2206 = vsel %vm2203, %v2205, %v2201
    %v2207 = vmul.f32 1.0, %v2206
    %v2208 = vxor.u32 %v2186, 2147483648
    %v2209 = vmul.f32 %v2208, 1.442695
    %v2210 = vpow.pop %v2209
    %v2211 = vadd.f32 %v2210, 1.0
    %v2212 = vrcp.pop %v2211
    %v2213 = vmul.f32 %v2211, %v2212
    %v2214 = vsub.f32 1.0, %v2213
    %v2215 = vmul.f32 %v2212, %v2214
    %v2216 = vadd.f32 %v2212, %v2215
    %vm2217 = vweird.f32 %v2211
    %vm2218 = vweird.f32 %v2212
    %vm2219 = vmor %vm2217, %vm2218
    %v2220 = vsel %vm2219, %v2212, %v2216
    %v2221 = vand.u32 2147483647, %v2211
    %vm2222 = vcmp.eq.f32.partialorder %v2221, 8.507059e+37
    %v2223 = vand.u32 %v2211, 2147483648
    %v2224 = vor.u32 1.1754944e-38, %v2223
    %v2225 = vsel %vm2222, %v2224, %v2220
    %v2226 = vmul.f32 1.0, %v2225
    %v2227 = vtanh.pop %v2187
    %v2228 = vxor.u32 %v2188, 2147483648
    %v2229 = vmul.f32 %v2228, 1.442695
    %v2230 = vpow.pop %v2229
    %v2231 = vadd.f32 %v2230, 1.0
    %v2232 = vrcp.pop %v2231
    %v2233 = vmul.f32 %v2231, %v2232
    %v2234 = vsub.f32 1.0, %v2233
    %v2235 = vmul.f32 %v2232, %v2234
    %v2236 = vadd.f32 %v2232, %v2235
    %vm2237 = vweird.f32 %v2231
    %vm2238 = vweird.f32 %v2232
    %vm2239 = vmor %vm2237, %vm2238
    %v2240 = vsel %vm2239, %v2232, %v2236
    %v2241 = vand.u32 2147483647, %v2231
    %vm2242 = vcmp.eq.f32.partialorder %v2241, 8.507059e+37
    %v2243 = vand.u32 %v2231, 2147483648
    %v2244 = vor.u32 1.1754944e-38, %v2243
    %v2245 = vsel %vm2242, %v2244, %v2240
    %v2246 = vmul.f32 1.0, %v2245
    %v2247 = vmul.f32 %v2227, %v2207
    %v2248 = vmul.f32 %v2226, %v2122
    %v2249 = vadd.f32 %v2247, %v2248
    %v2250 = vtanh.pop %v2249
    %v2251 = vmul.f32 %v2246, %v2250
    %s2252 = scalar_lea.vmem %s4, 120
    %2253 = vst [vmem:[%s2252] sm:$0xff] %v2251
    %s2254 = scalar_lea.vmem %s0, 512
    %v2255 = vld [vmem:[%s2254] sm:$0xff]
    %v2256 = vld [vmem:[%s2254 + $0x8] sm:$0xff]
    %v2257 = vld [vmem:[%s2254 + $0x10] sm:$0xff]
    %v2258 = vld [vmem:[%s2254 + $0x18] sm:$0xff]
    %v2259 = vpack.c.bf16 %v2251, %v2251
    %2260 = vmatpush.bf16.msra.mxu0 %v193
    %2261 = vmatpush.bf16.msra.mxu0 %v189
    %2262 = vmatpush.bf16.msra.mxu0 %v185
    %2263 = vmatpush.bf16.msra.mxu0 %v181
    %2264 = vmatpush.bf16.msra.mxu0 %v177
    %2265 = vmatpush.bf16.msra.mxu0 %v173
    %2266 = vmatpush.bf16.msra.mxu0 %v169
    %2267 = vmatpush.bf16.msra.mxu0 %v165
    %2268 = vmatmul.bf16.gmra.mxu0 %v2259
    %v2269 = vpop.f32.mrf.mxu0
    %v2270 = vadd.f32 0.0, %v2269
    %v2271 = vpop.f32.mrf.mxu0
    %2272 = vdwg.mxu0
    %2273 = vmatpush.bf16.msra.mxu0 %v194
    %2274 = vmatpush.bf16.msra.mxu0 %v190
    %2275 = vmatpush.bf16.msra.mxu0 %v186
    %2276 = vmatpush.bf16.msra.mxu0 %v182
    %2277 = vmatpush.bf16.msra.mxu0 %v178
    %2278 = vmatpush.bf16.msra.mxu0 %v174
    %2279 = vmatpush.bf16.msra.mxu0 %v170
    %2280 = vmatpush.bf16.msra.mxu0 %v166
    %2281 = vmatmul.bf16.gmra.mxu0 %v2259
    %v2282 = vpop.f32.mrf.mxu0
    %v2283 = vadd.f32 0.0, %v2282
    %v2284 = vpop.f32.mrf.mxu0
    %2285 = vdwg.mxu0
    %2286 = vmatpush.bf16.msra.mxu0 %v195
    %2287 = vmatpush.bf16.msra.mxu0 %v191
    %2288 = vmatpush.bf16.msra.mxu0 %v187
    %2289 = vmatpush.bf16.msra.mxu0 %v183
    %2290 = vmatpush.bf16.msra.mxu0 %v179
    %2291 = vmatpush.bf16.msra.mxu0 %v175
    %2292 = vmatpush.bf16.msra.mxu0 %v171
    %2293 = vmatpush.bf16.msra.mxu0 %v167
    %2294 = vmatmul.bf16.gmra.mxu0 %v2259
    %v2295 = vpop.f32.mrf.mxu0
    %v2296 = vadd.f32 0.0, %v2295
    %v2297 = vpop.f32.mrf.mxu0
    %2298 = vdwg.mxu0
    %2299 = vmatpush.bf16.msra.mxu0 %v196
    %2300 = vmatpush.bf16.msra.mxu0 %v192
    %2301 = vmatpush.bf16.msra.mxu0 %v188
    %2302 = vmatpush.bf16.msra.mxu0 %v184
    %2303 = vmatpush.bf16.msra.mxu0 %v180
    %2304 = vmatpush.bf16.msra.mxu0 %v176
    %2305 = vmatpush.bf16.msra.mxu0 %v172
    %2306 = vmatpush.bf16.msra.mxu0 %v168
    %2307 = vmatmul.bf16.gmra.mxu0 %v2259
    %v2308 = vpop.f32.mrf.mxu0
    %v2309 = vadd.f32 0.0, %v2308
    %v2310 = vpop.f32.mrf.mxu0
    %2311 = vdwg.mxu0
    %v2312 = vadd.f32 %v2255, %v2270
    %v2313 = vadd.f32 %v2256, %v2283
    %v2314 = vadd.f32 %v2257, %v2296
    %v2315 = vadd.f32 %v2258, %v2309
    %v2316 = vxor.u32 %v2312, 2147483648
    %v2317 = vmul.f32 %v2316, 1.442695
    %v2318 = vpow.pop %v2317
    %v2319 = vadd.f32 %v2318, 1.0
    %v2320 = vrcp.pop %v2319
    %v2321 = vmul.f32 %v2319, %v2320
    %v2322 = vsub.f32 1.0, %v2321
    %v2323 = vmul.f32 %v2320, %v2322
    %v2324 = vadd.f32 %v2320, %v2323
    %vm2325 = vweird.f32 %v2319
    %vm2326 = vweird.f32 %v2320
    %vm2327 = vmor %vm2325, %vm2326
    %v2328 = vsel %vm2327, %v2320, %v2324
    %v2329 = vand.u32 2147483647, %v2319
    %vm2330 = vcmp.eq.f32.partialorder %v2329, 8.507059e+37
    %v2331 = vand.u32 %v2319, 2147483648
    %v2332 = vor.u32 1.1754944e-38, %v2331
    %v2333 = vsel %vm2330, %v2332, %v2328
    %v2334 = vmul.f32 1.0, %v2333
    %v2335 = vxor.u32 %v2313, 2147483648
    %v2336 = vmul.f32 %v2335, 1.442695
    %v2337 = vpow.pop %v2336
    %v2338 = vadd.f32 %v2337, 1.0
    %v2339 = vrcp.pop %v2338
    %v2340 = vmul.f32 %v2338, %v2339
    %v2341 = vsub.f32 1.0, %v2340
    %v2342 = vmul.f32 %v2339, %v2341
    %v2343 = vadd.f32 %v2339, %v2342
    %vm2344 = vweird.f32 %v2338
    %vm2345 = vweird.f32 %v2339
    %vm2346 = vmor %vm2344, %vm2345
    %v2347 = vsel %vm2346, %v2339, %v2343
    %v2348 = vand.u32 2147483647, %v2338
    %vm2349 = vcmp.eq.f32.partialorder %v2348, 8.507059e+37
    %v2350 = vand.u32 %v2338, 2147483648
    %v2351 = vor.u32 1.1754944e-38, %v2350
    %v2352 = vsel %vm2349, %v2351, %v2347
    %v2353 = vmul.f32 1.0, %v2352
    %v2354 = vtanh.pop %v2314
    %v2355 = vxor.u32 %v2315, 2147483648
    %v2356 = vmul.f32 %v2355, 1.442695
    %v2357 = vpow.pop %v2356
    %v2358 = vadd.f32 %v2357, 1.0
    %v2359 = vrcp.pop %v2358
    %v2360 = vmul.f32 %v2358, %v2359
    %v2361 = vsub.f32 1.0, %v2360
    %v2362 = vmul.f32 %v2359, %v2361
    %v2363 = vadd.f32 %v2359, %v2362
    %vm2364 = vweird.f32 %v2358
    %vm2365 = vweird.f32 %v2359
    %vm2366 = vmor %vm2364, %vm2365
    %v2367 = vsel %vm2366, %v2359, %v2363
    %v2368 = vand.u32 2147483647, %v2358
    %vm2369 = vcmp.eq.f32.partialorder %v2368, 8.507059e+37
    %v2370 = vand.u32 %v2358, 2147483648
    %v2371 = vor.u32 1.1754944e-38, %v2370
    %v2372 = vsel %vm2369, %v2371, %v2367
    %v2373 = vmul.f32 1.0, %v2372
    %v2374 = vmul.f32 %v2354, %v2334
    %v2375 = vmul.f32 %v2353, %v2249
    %v2376 = vadd.f32 %v2374, %v2375
    %v2377 = vtanh.pop %v2376
    %v2378 = vmul.f32 %v2373, %v2377
    %s2379 = scalar_lea.vmem %s4, 128
    %2380 = vst [vmem:[%s2379] sm:$0xff] %v2378
    %s2381 = scalar_lea.vmem %s0, 544
    %v2382 = vld [vmem:[%s2381] sm:$0xff]
    %v2383 = vld [vmem:[%s2381 + $0x8] sm:$0xff]
    %v2384 = vld [vmem:[%s2381 + $0x10] sm:$0xff]
    %v2385 = vld [vmem:[%s2381 + $0x18] sm:$0xff]
    %v2386 = vpack.c.bf16 %v2378, %v2378
    %2387 = vmatpush.bf16.msra.mxu0 %v193
    %2388 = vmatpush.bf16.msra.mxu0 %v189
    %2389 = vmatpush.bf16.msra.mxu0 %v185
    %2390 = vmatpush.bf16.msra.mxu0 %v181
    %2391 = vmatpush.bf16.msra.mxu0 %v177
    %2392 = vmatpush.bf16.msra.mxu0 %v173
    %2393 = vmatpush.bf16.msra.mxu0 %v169
    %2394 = vmatpush.bf16.msra.mxu0 %v165
    %2395 = vmatmul.bf16.gmra.mxu0 %v2386
    %v2396 = vpop.f32.mrf.mxu0
    %v2397 = vadd.f32 0.0, %v2396
    %v2398 = vpop.f32.mrf.mxu0
    %2399 = vdwg.mxu0
    %2400 = vmatpush.bf16.msra.mxu0 %v194
    %2401 = vmatpush.bf16.msra.mxu0 %v190
    %2402 = vmatpush.bf16.msra.mxu0 %v186
    %2403 = vmatpush.bf16.msra.mxu0 %v182
    %2404 = vmatpush.bf16.msra.mxu0 %v178
    %2405 = vmatpush.bf16.msra.mxu0 %v174
    %2406 = vmatpush.bf16.msra.mxu0 %v170
    %2407 = vmatpush.bf16.msra.mxu0 %v166
    %2408 = vmatmul.bf16.gmra.mxu0 %v2386
    %v2409 = vpop.f32.mrf.mxu0
    %v2410 = vadd.f32 0.0, %v2409
    %v2411 = vpop.f32.mrf.mxu0
    %2412 = vdwg.mxu0
    %2413 = vmatpush.bf16.msra.mxu0 %v195
    %2414 = vmatpush.bf16.msra.mxu0 %v191
    %2415 = vmatpush.bf16.msra.mxu0 %v187
    %2416 = vmatpush.bf16.msra.mxu0 %v183
    %2417 = vmatpush.bf16.msra.mxu0 %v179
    %2418 = vmatpush.bf16.msra.mxu0 %v175
    %2419 = vmatpush.bf16.msra.mxu0 %v171
    %2420 = vmatpush.bf16.msra.mxu0 %v167
    %2421 = vmatmul.bf16.gmra.mxu0 %v2386
    %v2422 = vpop.f32.mrf.mxu0
    %v2423 = vadd.f32 0.0, %v2422
    %v2424 = vpop.f32.mrf.mxu0
    %2425 = vdwg.mxu0
    %2426 = vmatpush.bf16.msra.mxu0 %v196
    %2427 = vmatpush.bf16.msra.mxu0 %v192
    %2428 = vmatpush.bf16.msra.mxu0 %v188
    %2429 = vmatpush.bf16.msra.mxu0 %v184
    %2430 = vmatpush.bf16.msra.mxu0 %v180
    %2431 = vmatpush.bf16.msra.mxu0 %v176
    %2432 = vmatpush.bf16.msra.mxu0 %v172
    %2433 = vmatpush.bf16.msra.mxu0 %v168
    %2434 = vmatmul.bf16.gmra.mxu0 %v2386
    %v2435 = vpop.f32.mrf.mxu0
    %v2436 = vadd.f32 0.0, %v2435
    %v2437 = vpop.f32.mrf.mxu0
    %2438 = vdwg.mxu0
    %v2439 = vadd.f32 %v2382, %v2397
    %v2440 = vadd.f32 %v2383, %v2410
    %v2441 = vadd.f32 %v2384, %v2423
    %v2442 = vadd.f32 %v2385, %v2436
    %v2443 = vxor.u32 %v2439, 2147483648
    %v2444 = vmul.f32 %v2443, 1.442695
    %v2445 = vpow.pop %v2444
    %v2446 = vadd.f32 %v2445, 1.0
    %v2447 = vrcp.pop %v2446
    %v2448 = vmul.f32 %v2446, %v2447
    %v2449 = vsub.f32 1.0, %v2448
    %v2450 = vmul.f32 %v2447, %v2449
    %v2451 = vadd.f32 %v2447, %v2450
    %vm2452 = vweird.f32 %v2446
    %vm2453 = vweird.f32 %v2447
    %vm2454 = vmor %vm2452, %vm2453
    %v2455 = vsel %vm2454, %v2447, %v2451
    %v2456 = vand.u32 2147483647, %v2446
    %vm2457 = vcmp.eq.f32.partialorder %v2456, 8.507059e+37
    %v2458 = vand.u32 %v2446, 2147483648
    %v2459 = vor.u32 1.1754944e-38, %v2458
    %v2460 = vsel %vm2457, %v2459, %v2455
    %v2461 = vmul.f32 1.0, %v2460
    %v2462 = vxor.u32 %v2440, 2147483648
    %v2463 = vmul.f32 %v2462, 1.442695
    %v2464 = vpow.pop %v2463
    %v2465 = vadd.f32 %v2464, 1.0
    %v2466 = vrcp.pop %v2465
    %v2467 = vmul.f32 %v2465, %v2466
    %v2468 = vsub.f32 1.0, %v2467
    %v2469 = vmul.f32 %v2466, %v2468
    %v2470 = vadd.f32 %v2466, %v2469
    %vm2471 = vweird.f32 %v2465
    %vm2472 = vweird.f32 %v2466
    %vm2473 = vmor %vm2471, %vm2472
    %v2474 = vsel %vm2473, %v2466, %v2470
    %v2475 = vand.u32 2147483647, %v2465
    %vm2476 = vcmp.eq.f32.partialorder %v2475, 8.507059e+37
    %v2477 = vand.u32 %v2465, 2147483648
    %v2478 = vor.u32 1.1754944e-38, %v2477
    %v2479 = vsel %vm2476, %v2478, %v2474
    %v2480 = vmul.f32 1.0, %v2479
    %v2481 = vtanh.pop %v2441
    %v2482 = vxor.u32 %v2442, 2147483648
    %v2483 = vmul.f32 %v2482, 1.442695
    %v2484 = vpow.pop %v2483
    %v2485 = vadd.f32 %v2484, 1.0
    %v2486 = vrcp.pop %v2485
    %v2487 = vmul.f32 %v2485, %v2486
    %v2488 = vsub.f32 1.0, %v2487
    %v2489 = vmul.f32 %v2486, %v2488
    %v2490 = vadd.f32 %v2486, %v2489
    %vm2491 = vweird.f32 %v2485
    %vm2492 = vweird.f32 %v2486
    %vm2493 = vmor %vm2491, %vm2492
    %v2494 = vsel %vm2493, %v2486, %v2490
    %v2495 = vand.u32 2147483647, %v2485
    %vm2496 = vcmp.eq.f32.partialorder %v2495, 8.507059e+37
    %v2497 = vand.u32 %v2485, 2147483648
    %v2498 = vor.u32 1.1754944e-38, %v2497
    %v2499 = vsel %vm2496, %v2498, %v2494
    %v2500 = vmul.f32 1.0, %v2499
    %v2501 = vmul.f32 %v2481, %v2461
    %v2502 = vmul.f32 %v2480, %v2376
    %v2503 = vadd.f32 %v2501, %v2502
    %v2504 = vtanh.pop %v2503
    %v2505 = vmul.f32 %v2500, %v2504
    %s2506 = scalar_lea.vmem %s4, 136
    %2507 = vst [vmem:[%s2506] sm:$0xff] %v2505
    %s2508 = scalar_lea.vmem %s0, 576
    %v2509 = vld [vmem:[%s2508] sm:$0xff]
    %v2510 = vld [vmem:[%s2508 + $0x8] sm:$0xff]
    %v2511 = vld [vmem:[%s2508 + $0x10] sm:$0xff]
    %v2512 = vld [vmem:[%s2508 + $0x18] sm:$0xff]
    %v2513 = vpack.c.bf16 %v2505, %v2505
    %2514 = vmatpush.bf16.msra.mxu0 %v193
    %2515 = vmatpush.bf16.msra.mxu0 %v189
    %2516 = vmatpush.bf16.msra.mxu0 %v185
    %2517 = vmatpush.bf16.msra.mxu0 %v181
    %2518 = vmatpush.bf16.msra.mxu0 %v177
    %2519 = vmatpush.bf16.msra.mxu0 %v173
    %2520 = vmatpush.bf16.msra.mxu0 %v169
    %2521 = vmatpush.bf16.msra.mxu0 %v165
    %2522 = vmatmul.bf16.gmra.mxu0 %v2513
    %v2523 = vpop.f32.mrf.mxu0
    %v2524 = vadd.f32 0.0, %v2523
    %v2525 = vpop.f32.mrf.mxu0
    %2526 = vdwg.mxu0
    %2527 = vmatpush.bf16.msra.mxu0 %v194
    %2528 = vmatpush.bf16.msra.mxu0 %v190
    %2529 = vmatpush.bf16.msra.mxu0 %v186
    %2530 = vmatpush.bf16.msra.mxu0 %v182
    %2531 = vmatpush.bf16.msra.mxu0 %v178
    %2532 = vmatpush.bf16.msra.mxu0 %v174
    %2533 = vmatpush.bf16.msra.mxu0 %v170
    %2534 = vmatpush.bf16.msra.mxu0 %v166
    %2535 = vmatmul.bf16.gmra.mxu0 %v2513
    %v2536 = vpop.f32.mrf.mxu0
    %v2537 = vadd.f32 0.0, %v2536
    %v2538 = vpop.f32.mrf.mxu0
    %2539 = vdwg.mxu0
    %2540 = vmatpush.bf16.msra.mxu0 %v195
    %2541 = vmatpush.bf16.msra.mxu0 %v191
    %2542 = vmatpush.bf16.msra.mxu0 %v187
    %2543 = vmatpush.bf16.msra.mxu0 %v183
    %2544 = vmatpush.bf16.msra.mxu0 %v179
    %2545 = vmatpush.bf16.msra.mxu0 %v175
    %2546 = vmatpush.bf16.msra.mxu0 %v171
    %2547 = vmatpush.bf16.msra.mxu0 %v167
    %2548 = vmatmul.bf16.gmra.mxu0 %v2513
    %v2549 = vpop.f32.mrf.mxu0
    %v2550 = vadd.f32 0.0, %v2549
    %v2551 = vpop.f32.mrf.mxu0
    %2552 = vdwg.mxu0
    %2553 = vmatpush.bf16.msra.mxu0 %v196
    %2554 = vmatpush.bf16.msra.mxu0 %v192
    %2555 = vmatpush.bf16.msra.mxu0 %v188
    %2556 = vmatpush.bf16.msra.mxu0 %v184
    %2557 = vmatpush.bf16.msra.mxu0 %v180
    %2558 = vmatpush.bf16.msra.mxu0 %v176
    %2559 = vmatpush.bf16.msra.mxu0 %v172
    %2560 = vmatpush.bf16.msra.mxu0 %v168
    %2561 = vmatmul.bf16.gmra.mxu0 %v2513
    %v2562 = vpop.f32.mrf.mxu0
    %v2563 = vadd.f32 0.0, %v2562
    %v2564 = vpop.f32.mrf.mxu0
    %2565 = vdwg.mxu0
    %v2566 = vadd.f32 %v2509, %v2524
    %v2567 = vadd.f32 %v2510, %v2537
    %v2568 = vadd.f32 %v2511, %v2550
    %v2569 = vadd.f32 %v2512, %v2563
    %v2570 = vxor.u32 %v2566, 2147483648
    %v2571 = vmul.f32 %v2570, 1.442695
    %v2572 = vpow.pop %v2571
    %v2573 = vadd.f32 %v2572, 1.0
    %v2574 = vrcp.pop %v2573
    %v2575 = vmul.f32 %v2573, %v2574
    %v2576 = vsub.f32 1.0, %v2575
    %v2577 = vmul.f32 %v2574, %v2576
    %v2578 = vadd.f32 %v2574, %v2577
    %vm2579 = vweird.f32 %v2573
    %vm2580 = vweird.f32 %v2574
    %vm2581 = vmor %vm2579, %vm2580
    %v2582 = vsel %vm2581, %v2574, %v2578
    %v2583 = vand.u32 2147483647, %v2573
    %vm2584 = vcmp.eq.f32.partialorder %v2583, 8.507059e+37
    %v2585 = vand.u32 %v2573, 2147483648
    %v2586 = vor.u32 1.1754944e-38, %v2585
    %v2587 = vsel %vm2584, %v2586, %v2582
    %v2588 = vmul.f32 1.0, %v2587
    %v2589 = vxor.u32 %v2567, 2147483648
    %v2590 = vmul.f32 %v2589, 1.442695
    %v2591 = vpow.pop %v2590
    %v2592 = vadd.f32 %v2591, 1.0
    %v2593 = vrcp.pop %v2592
    %v2594 = vmul.f32 %v2592, %v2593
    %v2595 = vsub.f32 1.0, %v2594
    %v2596 = vmul.f32 %v2593, %v2595
    %v2597 = vadd.f32 %v2593, %v2596
    %vm2598 = vweird.f32 %v2592
    %vm2599 = vweird.f32 %v2593
    %vm2600 = vmor %vm2598, %vm2599
    %v2601 = vsel %vm2600, %v2593, %v2597
    %v2602 = vand.u32 2147483647, %v2592
    %vm2603 = vcmp.eq.f32.partialorder %v2602, 8.507059e+37
    %v2604 = vand.u32 %v2592, 2147483648
    %v2605 = vor.u32 1.1754944e-38, %v2604
    %v2606 = vsel %vm2603, %v2605, %v2601
    %v2607 = vmul.f32 1.0, %v2606
    %v2608 = vtanh.pop %v2568
    %v2609 = vxor.u32 %v2569, 2147483648
    %v2610 = vmul.f32 %v2609, 1.442695
    %v2611 = vpow.pop %v2610
    %v2612 = vadd.f32 %v2611, 1.0
    %v2613 = vrcp.pop %v2612
    %v2614 = vmul.f32 %v2612, %v2613
    %v2615 = vsub.f32 1.0, %v2614
    %v2616 = vmul.f32 %v2613, %v2615
    %v2617 = vadd.f32 %v2613, %v2616
    %vm2618 = vweird.f32 %v2612
    %vm2619 = vweird.f32 %v2613
    %vm2620 = vmor %vm2618, %vm2619
    %v2621 = vsel %vm2620, %v2613, %v2617
    %v2622 = vand.u32 2147483647, %v2612
    %vm2623 = vcmp.eq.f32.partialorder %v2622, 8.507059e+37
    %v2624 = vand.u32 %v2612, 2147483648
    %v2625 = vor.u32 1.1754944e-38, %v2624
    %v2626 = vsel %vm2623, %v2625, %v2621
    %v2627 = vmul.f32 1.0, %v2626
    %v2628 = vmul.f32 %v2608, %v2588
    %v2629 = vmul.f32 %v2607, %v2503
    %v2630 = vadd.f32 %v2628, %v2629
    %v2631 = vtanh.pop %v2630
    %v2632 = vmul.f32 %v2627, %v2631
    %s2633 = scalar_lea.vmem %s4, 144
    %2634 = vst [vmem:[%s2633] sm:$0xff] %v2632
    %s2635 = scalar_lea.vmem %s0, 608
    %v2636 = vld [vmem:[%s2635] sm:$0xff]
    %v2637 = vld [vmem:[%s2635 + $0x8] sm:$0xff]
    %v2638 = vld [vmem:[%s2635 + $0x10] sm:$0xff]
    %v2639 = vld [vmem:[%s2635 + $0x18] sm:$0xff]
    %v2640 = vpack.c.bf16 %v2632, %v2632
    %2641 = vmatpush.bf16.msra.mxu0 %v193
    %2642 = vmatpush.bf16.msra.mxu0 %v189
    %2643 = vmatpush.bf16.msra.mxu0 %v185
    %2644 = vmatpush.bf16.msra.mxu0 %v181
    %2645 = vmatpush.bf16.msra.mxu0 %v177
    %2646 = vmatpush.bf16.msra.mxu0 %v173
    %2647 = vmatpush.bf16.msra.mxu0 %v169
    %2648 = vmatpush.bf16.msra.mxu0 %v165
    %2649 = vmatmul.bf16.gmra.mxu0 %v2640
    %v2650 = vpop.f32.mrf.mxu0
    %v2651 = vadd.f32 0.0, %v2650
    %v2652 = vpop.f32.mrf.mxu0
    %2653 = vdwg.mxu0
    %2654 = vmatpush.bf16.msra.mxu0 %v194
    %2655 = vmatpush.bf16.msra.mxu0 %v190
    %2656 = vmatpush.bf16.msra.mxu0 %v186
    %2657 = vmatpush.bf16.msra.mxu0 %v182
    %2658 = vmatpush.bf16.msra.mxu0 %v178
    %2659 = vmatpush.bf16.msra.mxu0 %v174
    %2660 = vmatpush.bf16.msra.mxu0 %v170
    %2661 = vmatpush.bf16.msra.mxu0 %v166
    %2662 = vmatmul.bf16.gmra.mxu0 %v2640
    %v2663 = vpop.f32.mrf.mxu0
    %v2664 = vadd.f32 0.0, %v2663
    %v2665 = vpop.f32.mrf.mxu0
    %2666 = vdwg.mxu0
    %2667 = vmatpush.bf16.msra.mxu0 %v195
    %2668 = vmatpush.bf16.msra.mxu0 %v191
    %2669 = vmatpush.bf16.msra.mxu0 %v187
    %2670 = vmatpush.bf16.msra.mxu0 %v183
    %2671 = vmatpush.bf16.msra.mxu0 %v179
    %2672 = vmatpush.bf16.msra.mxu0 %v175
    %2673 = vmatpush.bf16.msra.mxu0 %v171
    %2674 = vmatpush.bf16.msra.mxu0 %v167
    %2675 = vmatmul.bf16.gmra.mxu0 %v2640
    %v2676 = vpop.f32.mrf.mxu0
    %v2677 = vadd.f32 0.0, %v2676
    %v2678 = vpop.f32.mrf.mxu0
    %2679 = vdwg.mxu0
    %2680 = vmatpush.bf16.msra.mxu0 %v196
    %2681 = vmatpush.bf16.msra.mxu0 %v192
    %2682 = vmatpush.bf16.msra.mxu0 %v188
    %2683 = vmatpush.bf16.msra.mxu0 %v184
    %2684 = vmatpush.bf16.msra.mxu0 %v180
    %2685 = vmatpush.bf16.msra.mxu0 %v176
    %2686 = vmatpush.bf16.msra.mxu0 %v172
    %2687 = vmatpush.bf16.msra.mxu0 %v168
    %2688 = vmatmul.bf16.gmra.mxu0 %v2640
    %v2689 = vpop.f32.mrf.mxu0
    %v2690 = vadd.f32 0.0, %v2689
    %v2691 = vpop.f32.mrf.mxu0
    %2692 = vdwg.mxu0
    %v2693 = vadd.f32 %v2636, %v2651
    %v2694 = vadd.f32 %v2637, %v2664
    %v2695 = vadd.f32 %v2638, %v2677
    %v2696 = vadd.f32 %v2639, %v2690
    %v2697 = vxor.u32 %v2693, 2147483648
    %v2698 = vmul.f32 %v2697, 1.442695
    %v2699 = vpow.pop %v2698
    %v2700 = vadd.f32 %v2699, 1.0
    %v2701 = vrcp.pop %v2700
    %v2702 = vmul.f32 %v2700, %v2701
    %v2703 = vsub.f32 1.0, %v2702
    %v2704 = vmul.f32 %v2701, %v2703
    %v2705 = vadd.f32 %v2701, %v2704
    %vm2706 = vweird.f32 %v2700
    %vm2707 = vweird.f32 %v2701
    %vm2708 = vmor %vm2706, %vm2707
    %v2709 = vsel %vm2708, %v2701, %v2705
    %v2710 = vand.u32 2147483647, %v2700
    %vm2711 = vcmp.eq.f32.partialorder %v2710, 8.507059e+37
    %v2712 = vand.u32 %v2700, 2147483648
    %v2713 = vor.u32 1.1754944e-38, %v2712
    %v2714 = vsel %vm2711, %v2713, %v2709
    %v2715 = vmul.f32 1.0, %v2714
    %v2716 = vxor.u32 %v2694, 2147483648
    %v2717 = vmul.f32 %v2716, 1.442695
    %v2718 = vpow.pop %v2717
    %v2719 = vadd.f32 %v2718, 1.0
    %v2720 = vrcp.pop %v2719
    %v2721 = vmul.f32 %v2719, %v2720
    %v2722 = vsub.f32 1.0, %v2721
    %v2723 = vmul.f32 %v2720, %v2722
    %v2724 = vadd.f32 %v2720, %v2723
    %vm2725 = vweird.f32 %v2719
    %vm2726 = vweird.f32 %v2720
    %vm2727 = vmor %vm2725, %vm2726
    %v2728 = vsel %vm2727, %v2720, %v2724
    %v2729 = vand.u32 2147483647, %v2719
    %vm2730 = vcmp.eq.f32.partialorder %v2729, 8.507059e+37
    %v2731 = vand.u32 %v2719, 2147483648
    %v2732 = vor.u32 1.1754944e-38, %v2731
    %v2733 = vsel %vm2730, %v2732, %v2728
    %v2734 = vmul.f32 1.0, %v2733
    %v2735 = vtanh.pop %v2695
    %v2736 = vxor.u32 %v2696, 2147483648
    %v2737 = vmul.f32 %v2736, 1.442695
    %v2738 = vpow.pop %v2737
    %v2739 = vadd.f32 %v2738, 1.0
    %v2740 = vrcp.pop %v2739
    %v2741 = vmul.f32 %v2739, %v2740
    %v2742 = vsub.f32 1.0, %v2741
    %v2743 = vmul.f32 %v2740, %v2742
    %v2744 = vadd.f32 %v2740, %v2743
    %vm2745 = vweird.f32 %v2739
    %vm2746 = vweird.f32 %v2740
    %vm2747 = vmor %vm2745, %vm2746
    %v2748 = vsel %vm2747, %v2740, %v2744
    %v2749 = vand.u32 2147483647, %v2739
    %vm2750 = vcmp.eq.f32.partialorder %v2749, 8.507059e+37
    %v2751 = vand.u32 %v2739, 2147483648
    %v2752 = vor.u32 1.1754944e-38, %v2751
    %v2753 = vsel %vm2750, %v2752, %v2748
    %v2754 = vmul.f32 1.0, %v2753
    %v2755 = vmul.f32 %v2735, %v2715
    %v2756 = vmul.f32 %v2734, %v2630
    %v2757 = vadd.f32 %v2755, %v2756
    %v2758 = vtanh.pop %v2757
    %v2759 = vmul.f32 %v2754, %v2758
    %s2760 = scalar_lea.vmem %s4, 152
    %2761 = vst [vmem:[%s2760] sm:$0xff] %v2759
    %s2762 = scalar_lea.vmem %s0, 640
    %v2763 = vld [vmem:[%s2762] sm:$0xff]
    %v2764 = vld [vmem:[%s2762 + $0x8] sm:$0xff]
    %v2765 = vld [vmem:[%s2762 + $0x10] sm:$0xff]
    %v2766 = vld [vmem:[%s2762 + $0x18] sm:$0xff]
    %v2767 = vpack.c.bf16 %v2759, %v2759
    %2768 = vmatpush.bf16.msra.mxu0 %v193
    %2769 = vmatpush.bf16.msra.mxu0 %v189
    %2770 = vmatpush.bf16.msra.mxu0 %v185
    %2771 = vmatpush.bf16.msra.mxu0 %v181
    %2772 = vmatpush.bf16.msra.mxu0 %v177
    %2773 = vmatpush.bf16.msra.mxu0 %v173
    %2774 = vmatpush.bf16.msra.mxu0 %v169
    %2775 = vmatpush.bf16.msra.mxu0 %v165
    %2776 = vmatmul.bf16.gmra.mxu0 %v2767
    %v2777 = vpop.f32.mrf.mxu0
    %v2778 = vadd.f32 0.0, %v2777
    %v2779 = vpop.f32.mrf.mxu0
    %2780 = vdwg.mxu0
    %2781 = vmatpush.bf16.msra.mxu0 %v194
    %2782 = vmatpush.bf16.msra.mxu0 %v190
    %2783 = vmatpush.bf16.msra.mxu0 %v186
    %2784 = vmatpush.bf16.msra.mxu0 %v182
    %2785 = vmatpush.bf16.msra.mxu0 %v178
    %2786 = vmatpush.bf16.msra.mxu0 %v174
    %2787 = vmatpush.bf16.msra.mxu0 %v170
    %2788 = vmatpush.bf16.msra.mxu0 %v166
    %2789 = vmatmul.bf16.gmra.mxu0 %v2767
    %v2790 = vpop.f32.mrf.mxu0
    %v2791 = vadd.f32 0.0, %v2790
    %v2792 = vpop.f32.mrf.mxu0
    %2793 = vdwg.mxu0
    %2794 = vmatpush.bf16.msra.mxu0 %v195
    %2795 = vmatpush.bf16.msra.mxu0 %v191
    %2796 = vmatpush.bf16.msra.mxu0 %v187
    %2797 = vmatpush.bf16.msra.mxu0 %v183
    %2798 = vmatpush.bf16.msra.mxu0 %v179
    %2799 = vmatpush.bf16.msra.mxu0 %v175
    %2800 = vmatpush.bf16.msra.mxu0 %v171
    %2801 = vmatpush.bf16.msra.mxu0 %v167
    %2802 = vmatmul.bf16.gmra.mxu0 %v2767
    %v2803 = vpop.f32.mrf.mxu0
    %v2804 = vadd.f32 0.0, %v2803
    %v2805 = vpop.f32.mrf.mxu0
    %2806 = vdwg.mxu0
    %2807 = vmatpush.bf16.msra.mxu0 %v196
    %2808 = vmatpush.bf16.msra.mxu0 %v192
    %2809 = vmatpush.bf16.msra.mxu0 %v188
    %2810 = vmatpush.bf16.msra.mxu0 %v184
    %2811 = vmatpush.bf16.msra.mxu0 %v180
    %2812 = vmatpush.bf16.msra.mxu0 %v176
    %2813 = vmatpush.bf16.msra.mxu0 %v172
    %2814 = vmatpush.bf16.msra.mxu0 %v168
    %2815 = vmatmul.bf16.gmra.mxu0 %v2767
    %v2816 = vpop.f32.mrf.mxu0
    %v2817 = vadd.f32 0.0, %v2816
    %v2818 = vpop.f32.mrf.mxu0
    %2819 = vdwg.mxu0
    %v2820 = vadd.f32 %v2763, %v2778
    %v2821 = vadd.f32 %v2764, %v2791
    %v2822 = vadd.f32 %v2765, %v2804
    %v2823 = vadd.f32 %v2766, %v2817
    %v2824 = vxor.u32 %v2820, 2147483648
    %v2825 = vmul.f32 %v2824, 1.442695
    %v2826 = vpow.pop %v2825
    %v2827 = vadd.f32 %v2826, 1.0
    %v2828 = vrcp.pop %v2827
    %v2829 = vmul.f32 %v2827, %v2828
    %v2830 = vsub.f32 1.0, %v2829
    %v2831 = vmul.f32 %v2828, %v2830
    %v2832 = vadd.f32 %v2828, %v2831
    %vm2833 = vweird.f32 %v2827
    %vm2834 = vweird.f32 %v2828
    %vm2835 = vmor %vm2833, %vm2834
    %v2836 = vsel %vm2835, %v2828, %v2832
    %v2837 = vand.u32 2147483647, %v2827
    %vm2838 = vcmp.eq.f32.partialorder %v2837, 8.507059e+37
    %v2839 = vand.u32 %v2827, 2147483648
    %v2840 = vor.u32 1.1754944e-38, %v2839
    %v2841 = vsel %vm2838, %v2840, %v2836
    %v2842 = vmul.f32 1.0, %v2841
    %v2843 = vxor.u32 %v2821, 2147483648
    %v2844 = vmul.f32 %v2843, 1.442695
    %v2845 = vpow.pop %v2844
    %v2846 = vadd.f32 %v2845, 1.0
    %v2847 = vrcp.pop %v2846
    %v2848 = vmul.f32 %v2846, %v2847
    %v2849 = vsub.f32 1.0, %v2848
    %v2850 = vmul.f32 %v2847, %v2849
    %v2851 = vadd.f32 %v2847, %v2850
    %vm2852 = vweird.f32 %v2846
    %vm2853 = vweird.f32 %v2847
    %vm2854 = vmor %vm2852, %vm2853
    %v2855 = vsel %vm2854, %v2847, %v2851
    %v2856 = vand.u32 2147483647, %v2846
    %vm2857 = vcmp.eq.f32.partialorder %v2856, 8.507059e+37
    %v2858 = vand.u32 %v2846, 2147483648
    %v2859 = vor.u32 1.1754944e-38, %v2858
    %v2860 = vsel %vm2857, %v2859, %v2855
    %v2861 = vmul.f32 1.0, %v2860
    %v2862 = vtanh.pop %v2822
    %v2863 = vxor.u32 %v2823, 2147483648
    %v2864 = vmul.f32 %v2863, 1.442695
    %v2865 = vpow.pop %v2864
    %v2866 = vadd.f32 %v2865, 1.0
    %v2867 = vrcp.pop %v2866
    %v2868 = vmul.f32 %v2866, %v2867
    %v2869 = vsub.f32 1.0, %v2868
    %v2870 = vmul.f32 %v2867, %v2869
    %v2871 = vadd.f32 %v2867, %v2870
    %vm2872 = vweird.f32 %v2866
    %vm2873 = vweird.f32 %v2867
    %vm2874 = vmor %vm2872, %vm2873
    %v2875 = vsel %vm2874, %v2867, %v2871
    %v2876 = vand.u32 2147483647, %v2866
    %vm2877 = vcmp.eq.f32.partialorder %v2876, 8.507059e+37
    %v2878 = vand.u32 %v2866, 2147483648
    %v2879 = vor.u32 1.1754944e-38, %v2878
    %v2880 = vsel %vm2877, %v2879, %v2875
    %v2881 = vmul.f32 1.0, %v2880
    %v2882 = vmul.f32 %v2862, %v2842
    %v2883 = vmul.f32 %v2861, %v2757
    %v2884 = vadd.f32 %v2882, %v2883
    %v2885 = vtanh.pop %v2884
    %v2886 = vmul.f32 %v2881, %v2885
    %s2887 = scalar_lea.vmem %s4, 160
    %2888 = vst [vmem:[%s2887] sm:$0xff] %v2886
    %s2889 = scalar_lea.vmem %s0, 672
    %v2890 = vld [vmem:[%s2889] sm:$0xff]
    %v2891 = vld [vmem:[%s2889 + $0x8] sm:$0xff]
    %v2892 = vld [vmem:[%s2889 + $0x10] sm:$0xff]
    %v2893 = vld [vmem:[%s2889 + $0x18] sm:$0xff]
    %v2894 = vpack.c.bf16 %v2886, %v2886
    %2895 = vmatpush.bf16.msra.mxu0 %v193
    %2896 = vmatpush.bf16.msra.mxu0 %v189
    %2897 = vmatpush.bf16.msra.mxu0 %v185
    %2898 = vmatpush.bf16.msra.mxu0 %v181
    %2899 = vmatpush.bf16.msra.mxu0 %v177
    %2900 = vmatpush.bf16.msra.mxu0 %v173
    %2901 = vmatpush.bf16.msra.mxu0 %v169
    %2902 = vmatpush.bf16.msra.mxu0 %v165
    %2903 = vmatmul.bf16.gmra.mxu0 %v2894
    %v2904 = vpop.f32.mrf.mxu0
    %v2905 = vadd.f32 0.0, %v2904
    %v2906 = vpop.f32.mrf.mxu0
    %2907 = vdwg.mxu0
    %2908 = vmatpush.bf16.msra.mxu0 %v194
    %2909 = vmatpush.bf16.msra.mxu0 %v190
    %2910 = vmatpush.bf16.msra.mxu0 %v186
    %2911 = vmatpush.bf16.msra.mxu0 %v182
    %2912 = vmatpush.bf16.msra.mxu0 %v178
    %2913 = vmatpush.bf16.msra.mxu0 %v174
    %2914 = vmatpush.bf16.msra.mxu0 %v170
    %2915 = vmatpush.bf16.msra.mxu0 %v166
    %2916 = vmatmul.bf16.gmra.mxu0 %v2894
    %v2917 = vpop.f32.mrf.mxu0
    %v2918 = vadd.f32 0.0, %v2917
    %v2919 = vpop.f32.mrf.mxu0
    %2920 = vdwg.mxu0
    %2921 = vmatpush.bf16.msra.mxu0 %v195
    %2922 = vmatpush.bf16.msra.mxu0 %v191
    %2923 = vmatpush.bf16.msra.mxu0 %v187
    %2924 = vmatpush.bf16.msra.mxu0 %v183
    %2925 = vmatpush.bf16.msra.mxu0 %v179
    %2926 = vmatpush.bf16.msra.mxu0 %v175
    %2927 = vmatpush.bf16.msra.mxu0 %v171
    %2928 = vmatpush.bf16.msra.mxu0 %v167
    %2929 = vmatmul.bf16.gmra.mxu0 %v2894
    %v2930 = vpop.f32.mrf.mxu0
    %v2931 = vadd.f32 0.0, %v2930
    %v2932 = vpop.f32.mrf.mxu0
    %2933 = vdwg.mxu0
    %2934 = vmatpush.bf16.msra.mxu0 %v196
    %2935 = vmatpush.bf16.msra.mxu0 %v192
    %2936 = vmatpush.bf16.msra.mxu0 %v188
    %2937 = vmatpush.bf16.msra.mxu0 %v184
    %2938 = vmatpush.bf16.msra.mxu0 %v180
    %2939 = vmatpush.bf16.msra.mxu0 %v176
    %2940 = vmatpush.bf16.msra.mxu0 %v172
    %2941 = vmatpush.bf16.msra.mxu0 %v168
    %2942 = vmatmul.bf16.gmra.mxu0 %v2894
    %v2943 = vpop.f32.mrf.mxu0
    %v2944 = vadd.f32 0.0, %v2943
    %v2945 = vpop.f32.mrf.mxu0
    %2946 = vdwg.mxu0
    %v2947 = vadd.f32 %v2890, %v2905
    %v2948 = vadd.f32 %v2891, %v2918
    %v2949 = vadd.f32 %v2892, %v2931
    %v2950 = vadd.f32 %v2893, %v2944
    %v2951 = vxor.u32 %v2947, 2147483648
    %v2952 = vmul.f32 %v2951, 1.442695
    %v2953 = vpow.pop %v2952
    %v2954 = vadd.f32 %v2953, 1.0
    %v2955 = vrcp.pop %v2954
    %v2956 = vmul.f32 %v2954, %v2955
    %v2957 = vsub.f32 1.0, %v2956
    %v2958 = vmul.f32 %v2955, %v2957
    %v2959 = vadd.f32 %v2955, %v2958
    %vm2960 = vweird.f32 %v2954
    %vm2961 = vweird.f32 %v2955
    %vm2962 = vmor %vm2960, %vm2961
    %v2963 = vsel %vm2962, %v2955, %v2959
    %v2964 = vand.u32 2147483647, %v2954
    %vm2965 = vcmp.eq.f32.partialorder %v2964, 8.507059e+37
    %v2966 = vand.u32 %v2954, 2147483648
    %v2967 = vor.u32 1.1754944e-38, %v2966
    %v2968 = vsel %vm2965, %v2967, %v2963
    %v2969 = vmul.f32 1.0, %v2968
    %v2970 = vxor.u32 %v2948, 2147483648
    %v2971 = vmul.f32 %v2970, 1.442695
    %v2972 = vpow.pop %v2971
    %v2973 = vadd.f32 %v2972, 1.0
    %v2974 = vrcp.pop %v2973
    %v2975 = vmul.f32 %v2973, %v2974
    %v2976 = vsub.f32 1.0, %v2975
    %v2977 = vmul.f32 %v2974, %v2976
    %v2978 = vadd.f32 %v2974, %v2977
    %vm2979 = vweird.f32 %v2973
    %vm2980 = vweird.f32 %v2974
    %vm2981 = vmor %vm2979, %vm2980
    %v2982 = vsel %vm2981, %v2974, %v2978
    %v2983 = vand.u32 2147483647, %v2973
    %vm2984 = vcmp.eq.f32.partialorder %v2983, 8.507059e+37
    %v2985 = vand.u32 %v2973, 2147483648
    %v2986 = vor.u32 1.1754944e-38, %v2985
    %v2987 = vsel %vm2984, %v2986, %v2982
    %v2988 = vmul.f32 1.0, %v2987
    %v2989 = vtanh.pop %v2949
    %v2990 = vxor.u32 %v2950, 2147483648
    %v2991 = vmul.f32 %v2990, 1.442695
    %v2992 = vpow.pop %v2991
    %v2993 = vadd.f32 %v2992, 1.0
    %v2994 = vrcp.pop %v2993
    %v2995 = vmul.f32 %v2993, %v2994
    %v2996 = vsub.f32 1.0, %v2995
    %v2997 = vmul.f32 %v2994, %v2996
    %v2998 = vadd.f32 %v2994, %v2997
    %vm2999 = vweird.f32 %v2993
    %vm3000 = vweird.f32 %v2994
    %vm3001 = vmor %vm2999, %vm3000
    %v3002 = vsel %vm3001, %v2994, %v2998
    %v3003 = vand.u32 2147483647, %v2993
    %vm3004 = vcmp.eq.f32.partialorder %v3003, 8.507059e+37
    %v3005 = vand.u32 %v2993, 2147483648
    %v3006 = vor.u32 1.1754944e-38, %v3005
    %v3007 = vsel %vm3004, %v3006, %v3002
    %v3008 = vmul.f32 1.0, %v3007
    %v3009 = vmul.f32 %v2989, %v2969
    %v3010 = vmul.f32 %v2988, %v2884
    %v3011 = vadd.f32 %v3009, %v3010
    %v3012 = vtanh.pop %v3011
    %v3013 = vmul.f32 %v3008, %v3012
    %s3014 = scalar_lea.vmem %s4, 168
    %3015 = vst [vmem:[%s3014] sm:$0xff] %v3013
    %s3016 = scalar_lea.vmem %s0, 704
    %v3017 = vld [vmem:[%s3016] sm:$0xff]
    %v3018 = vld [vmem:[%s3016 + $0x8] sm:$0xff]
    %v3019 = vld [vmem:[%s3016 + $0x10] sm:$0xff]
    %v3020 = vld [vmem:[%s3016 + $0x18] sm:$0xff]
    %v3021 = vpack.c.bf16 %v3013, %v3013
    %3022 = vmatpush.bf16.msra.mxu0 %v193
    %3023 = vmatpush.bf16.msra.mxu0 %v189
    %3024 = vmatpush.bf16.msra.mxu0 %v185
    %3025 = vmatpush.bf16.msra.mxu0 %v181
    %3026 = vmatpush.bf16.msra.mxu0 %v177
    %3027 = vmatpush.bf16.msra.mxu0 %v173
    %3028 = vmatpush.bf16.msra.mxu0 %v169
    %3029 = vmatpush.bf16.msra.mxu0 %v165
    %3030 = vmatmul.bf16.gmra.mxu0 %v3021
    %v3031 = vpop.f32.mrf.mxu0
    %v3032 = vadd.f32 0.0, %v3031
    %v3033 = vpop.f32.mrf.mxu0
    %3034 = vdwg.mxu0
    %3035 = vmatpush.bf16.msra.mxu0 %v194
    %3036 = vmatpush.bf16.msra.mxu0 %v190
    %3037 = vmatpush.bf16.msra.mxu0 %v186
    %3038 = vmatpush.bf16.msra.mxu0 %v182
    %3039 = vmatpush.bf16.msra.mxu0 %v178
    %3040 = vmatpush.bf16.msra.mxu0 %v174
    %3041 = vmatpush.bf16.msra.mxu0 %v170
    %3042 = vmatpush.bf16.msra.mxu0 %v166
    %3043 = vmatmul.bf16.gmra.mxu0 %v3021
    %v3044 = vpop.f32.mrf.mxu0
    %v3045 = vadd.f32 0.0, %v3044
    %v3046 = vpop.f32.mrf.mxu0
    %3047 = vdwg.mxu0
    %3048 = vmatpush.bf16.msra.mxu0 %v195
    %3049 = vmatpush.bf16.msra.mxu0 %v191
    %3050 = vmatpush.bf16.msra.mxu0 %v187
    %3051 = vmatpush.bf16.msra.mxu0 %v183
    %3052 = vmatpush.bf16.msra.mxu0 %v179
    %3053 = vmatpush.bf16.msra.mxu0 %v175
    %3054 = vmatpush.bf16.msra.mxu0 %v171
    %3055 = vmatpush.bf16.msra.mxu0 %v167
    %3056 = vmatmul.bf16.gmra.mxu0 %v3021
    %v3057 = vpop.f32.mrf.mxu0
    %v3058 = vadd.f32 0.0, %v3057
    %v3059 = vpop.f32.mrf.mxu0
    %3060 = vdwg.mxu0
    %3061 = vmatpush.bf16.msra.mxu0 %v196
    %3062 = vmatpush.bf16.msra.mxu0 %v192
    %3063 = vmatpush.bf16.msra.mxu0 %v188
    %3064 = vmatpush.bf16.msra.mxu0 %v184
    %3065 = vmatpush.bf16.msra.mxu0 %v180
    %3066 = vmatpush.bf16.msra.mxu0 %v176
    %3067 = vmatpush.bf16.msra.mxu0 %v172
    %3068 = vmatpush.bf16.msra.mxu0 %v168
    %3069 = vmatmul.bf16.gmra.mxu0 %v3021
    %v3070 = vpop.f32.mrf.mxu0
    %v3071 = vadd.f32 0.0, %v3070
    %v3072 = vpop.f32.mrf.mxu0
    %3073 = vdwg.mxu0
    %v3074 = vadd.f32 %v3017, %v3032
    %v3075 = vadd.f32 %v3018, %v3045
    %v3076 = vadd.f32 %v3019, %v3058
    %v3077 = vadd.f32 %v3020, %v3071
    %v3078 = vxor.u32 %v3074, 2147483648
    %v3079 = vmul.f32 %v3078, 1.442695
    %v3080 = vpow.pop %v3079
    %v3081 = vadd.f32 %v3080, 1.0
    %v3082 = vrcp.pop %v3081
    %v3083 = vmul.f32 %v3081, %v3082
    %v3084 = vsub.f32 1.0, %v3083
    %v3085 = vmul.f32 %v3082, %v3084
    %v3086 = vadd.f32 %v3082, %v3085
    %vm3087 = vweird.f32 %v3081
    %vm3088 = vweird.f32 %v3082
    %vm3089 = vmor %vm3087, %vm3088
    %v3090 = vsel %vm3089, %v3082, %v3086
    %v3091 = vand.u32 2147483647, %v3081
    %vm3092 = vcmp.eq.f32.partialorder %v3091, 8.507059e+37
    %v3093 = vand.u32 %v3081, 2147483648
    %v3094 = vor.u32 1.1754944e-38, %v3093
    %v3095 = vsel %vm3092, %v3094, %v3090
    %v3096 = vmul.f32 1.0, %v3095
    %v3097 = vxor.u32 %v3075, 2147483648
    %v3098 = vmul.f32 %v3097, 1.442695
    %v3099 = vpow.pop %v3098
    %v3100 = vadd.f32 %v3099, 1.0
    %v3101 = vrcp.pop %v3100
    %v3102 = vmul.f32 %v3100, %v3101
    %v3103 = vsub.f32 1.0, %v3102
    %v3104 = vmul.f32 %v3101, %v3103
    %v3105 = vadd.f32 %v3101, %v3104
    %vm3106 = vweird.f32 %v3100
    %vm3107 = vweird.f32 %v3101
    %vm3108 = vmor %vm3106, %vm3107
    %v3109 = vsel %vm3108, %v3101, %v3105
    %v3110 = vand.u32 2147483647, %v3100
    %vm3111 = vcmp.eq.f32.partialorder %v3110, 8.507059e+37
    %v3112 = vand.u32 %v3100, 2147483648
    %v3113 = vor.u32 1.1754944e-38, %v3112
    %v3114 = vsel %vm3111, %v3113, %v3109
    %v3115 = vmul.f32 1.0, %v3114
    %v3116 = vtanh.pop %v3076
    %v3117 = vxor.u32 %v3077, 2147483648
    %v3118 = vmul.f32 %v3117, 1.442695
    %v3119 = vpow.pop %v3118
    %v3120 = vadd.f32 %v3119, 1.0
    %v3121 = vrcp.pop %v3120
    %v3122 = vmul.f32 %v3120, %v3121
    %v3123 = vsub.f32 1.0, %v3122
    %v3124 = vmul.f32 %v3121, %v3123
    %v3125 = vadd.f32 %v3121, %v3124
    %vm3126 = vweird.f32 %v3120
    %vm3127 = vweird.f32 %v3121
    %vm3128 = vmor %vm3126, %vm3127
    %v3129 = vsel %vm3128, %v3121, %v3125
    %v3130 = vand.u32 2147483647, %v3120
    %vm3131 = vcmp.eq.f32.partialorder %v3130, 8.507059e+37
    %v3132 = vand.u32 %v3120, 2147483648
    %v3133 = vor.u32 1.1754944e-38, %v3132
    %v3134 = vsel %vm3131, %v3133, %v3129
    %v3135 = vmul.f32 1.0, %v3134
    %v3136 = vmul.f32 %v3116, %v3096
    %v3137 = vmul.f32 %v3115, %v3011
    %v3138 = vadd.f32 %v3136, %v3137
    %v3139 = vtanh.pop %v3138
    %v3140 = vmul.f32 %v3135, %v3139
    %s3141 = scalar_lea.vmem %s4, 176
    %3142 = vst [vmem:[%s3141] sm:$0xff] %v3140
    %s3143 = scalar_lea.vmem %s0, 736
    %v3144 = vld [vmem:[%s3143] sm:$0xff]
    %v3145 = vld [vmem:[%s3143 + $0x8] sm:$0xff]
    %v3146 = vld [vmem:[%s3143 + $0x10] sm:$0xff]
    %v3147 = vld [vmem:[%s3143 + $0x18] sm:$0xff]
    %v3148 = vpack.c.bf16 %v3140, %v3140
    %3149 = vmatpush.bf16.msra.mxu0 %v193
    %3150 = vmatpush.bf16.msra.mxu0 %v189
    %3151 = vmatpush.bf16.msra.mxu0 %v185
    %3152 = vmatpush.bf16.msra.mxu0 %v181
    %3153 = vmatpush.bf16.msra.mxu0 %v177
    %3154 = vmatpush.bf16.msra.mxu0 %v173
    %3155 = vmatpush.bf16.msra.mxu0 %v169
    %3156 = vmatpush.bf16.msra.mxu0 %v165
    %3157 = vmatmul.bf16.gmra.mxu0 %v3148
    %v3158 = vpop.f32.mrf.mxu0
    %v3159 = vadd.f32 0.0, %v3158
    %v3160 = vpop.f32.mrf.mxu0
    %3161 = vdwg.mxu0
    %3162 = vmatpush.bf16.msra.mxu0 %v194
    %3163 = vmatpush.bf16.msra.mxu0 %v190
    %3164 = vmatpush.bf16.msra.mxu0 %v186
    %3165 = vmatpush.bf16.msra.mxu0 %v182
    %3166 = vmatpush.bf16.msra.mxu0 %v178
    %3167 = vmatpush.bf16.msra.mxu0 %v174
    %3168 = vmatpush.bf16.msra.mxu0 %v170
    %3169 = vmatpush.bf16.msra.mxu0 %v166
    %3170 = vmatmul.bf16.gmra.mxu0 %v3148
    %v3171 = vpop.f32.mrf.mxu0
    %v3172 = vadd.f32 0.0, %v3171
    %v3173 = vpop.f32.mrf.mxu0
    %3174 = vdwg.mxu0
    %3175 = vmatpush.bf16.msra.mxu0 %v195
    %3176 = vmatpush.bf16.msra.mxu0 %v191
    %3177 = vmatpush.bf16.msra.mxu0 %v187
    %3178 = vmatpush.bf16.msra.mxu0 %v183
    %3179 = vmatpush.bf16.msra.mxu0 %v179
    %3180 = vmatpush.bf16.msra.mxu0 %v175
    %3181 = vmatpush.bf16.msra.mxu0 %v171
    %3182 = vmatpush.bf16.msra.mxu0 %v167
    %3183 = vmatmul.bf16.gmra.mxu0 %v3148
    %v3184 = vpop.f32.mrf.mxu0
    %v3185 = vadd.f32 0.0, %v3184
    %v3186 = vpop.f32.mrf.mxu0
    %3187 = vdwg.mxu0
    %3188 = vmatpush.bf16.msra.mxu0 %v196
    %3189 = vmatpush.bf16.msra.mxu0 %v192
    %3190 = vmatpush.bf16.msra.mxu0 %v188
    %3191 = vmatpush.bf16.msra.mxu0 %v184
    %3192 = vmatpush.bf16.msra.mxu0 %v180
    %3193 = vmatpush.bf16.msra.mxu0 %v176
    %3194 = vmatpush.bf16.msra.mxu0 %v172
    %3195 = vmatpush.bf16.msra.mxu0 %v168
    %3196 = vmatmul.bf16.gmra.mxu0 %v3148
    %v3197 = vpop.f32.mrf.mxu0
    %v3198 = vadd.f32 0.0, %v3197
    %v3199 = vpop.f32.mrf.mxu0
    %3200 = vdwg.mxu0
    %v3201 = vadd.f32 %v3144, %v3159
    %v3202 = vadd.f32 %v3145, %v3172
    %v3203 = vadd.f32 %v3146, %v3185
    %v3204 = vadd.f32 %v3147, %v3198
    %v3205 = vxor.u32 %v3201, 2147483648
    %v3206 = vmul.f32 %v3205, 1.442695
    %v3207 = vpow.pop %v3206
    %v3208 = vadd.f32 %v3207, 1.0
    %v3209 = vrcp.pop %v3208
    %v3210 = vmul.f32 %v3208, %v3209
    %v3211 = vsub.f32 1.0, %v3210
    %v3212 = vmul.f32 %v3209, %v3211
    %v3213 = vadd.f32 %v3209, %v3212
    %vm3214 = vweird.f32 %v3208
    %vm3215 = vweird.f32 %v3209
    %vm3216 = vmor %vm3214, %vm3215
    %v3217 = vsel %vm3216, %v3209, %v3213
    %v3218 = vand.u32 2147483647, %v3208
    %vm3219 = vcmp.eq.f32.partialorder %v3218, 8.507059e+37
    %v3220 = vand.u32 %v3208, 2147483648
    %v3221 = vor.u32 1.1754944e-38, %v3220
    %v3222 = vsel %vm3219, %v3221, %v3217
    %v3223 = vmul.f32 1.0, %v3222
    %v3224 = vxor.u32 %v3202, 2147483648
    %v3225 = vmul.f32 %v3224, 1.442695
    %v3226 = vpow.pop %v3225
    %v3227 = vadd.f32 %v3226, 1.0
    %v3228 = vrcp.pop %v3227
    %v3229 = vmul.f32 %v3227, %v3228
    %v3230 = vsub.f32 1.0, %v3229
    %v3231 = vmul.f32 %v3228, %v3230
    %v3232 = vadd.f32 %v3228, %v3231
    %vm3233 = vweird.f32 %v3227
    %vm3234 = vweird.f32 %v3228
    %vm3235 = vmor %vm3233, %vm3234
    %v3236 = vsel %vm3235, %v3228, %v3232
    %v3237 = vand.u32 2147483647, %v3227
    %vm3238 = vcmp.eq.f32.partialorder %v3237, 8.507059e+37
    %v3239 = vand.u32 %v3227, 2147483648
    %v3240 = vor.u32 1.1754944e-38, %v3239
    %v3241 = vsel %vm3238, %v3240, %v3236
    %v3242 = vmul.f32 1.0, %v3241
    %v3243 = vtanh.pop %v3203
    %v3244 = vxor.u32 %v3204, 2147483648
    %v3245 = vmul.f32 %v3244, 1.442695
    %v3246 = vpow.pop %v3245
    %v3247 = vadd.f32 %v3246, 1.0
    %v3248 = vrcp.pop %v3247
    %v3249 = vmul.f32 %v3247, %v3248
    %v3250 = vsub.f32 1.0, %v3249
    %v3251 = vmul.f32 %v3248, %v3250
    %v3252 = vadd.f32 %v3248, %v3251
    %vm3253 = vweird.f32 %v3247
    %vm3254 = vweird.f32 %v3248
    %vm3255 = vmor %vm3253, %vm3254
    %v3256 = vsel %vm3255, %v3248, %v3252
    %v3257 = vand.u32 2147483647, %v3247
    %vm3258 = vcmp.eq.f32.partialorder %v3257, 8.507059e+37
    %v3259 = vand.u32 %v3247, 2147483648
    %v3260 = vor.u32 1.1754944e-38, %v3259
    %v3261 = vsel %vm3258, %v3260, %v3256
    %v3262 = vmul.f32 1.0, %v3261
    %v3263 = vmul.f32 %v3243, %v3223
    %v3264 = vmul.f32 %v3242, %v3138
    %v3265 = vadd.f32 %v3263, %v3264
    %v3266 = vtanh.pop %v3265
    %v3267 = vmul.f32 %v3262, %v3266
    %s3268 = scalar_lea.vmem %s4, 184
    %3269 = vst [vmem:[%s3268] sm:$0xff] %v3267
    %s3270 = scalar_lea.vmem %s0, 768
    %v3271 = vld [vmem:[%s3270] sm:$0xff]
    %v3272 = vld [vmem:[%s3270 + $0x8] sm:$0xff]
    %v3273 = vld [vmem:[%s3270 + $0x10] sm:$0xff]
    %v3274 = vld [vmem:[%s3270 + $0x18] sm:$0xff]
    %v3275 = vpack.c.bf16 %v3267, %v3267
    %3276 = vmatpush.bf16.msra.mxu0 %v193
    %3277 = vmatpush.bf16.msra.mxu0 %v189
    %3278 = vmatpush.bf16.msra.mxu0 %v185
    %3279 = vmatpush.bf16.msra.mxu0 %v181
    %3280 = vmatpush.bf16.msra.mxu0 %v177
    %3281 = vmatpush.bf16.msra.mxu0 %v173
    %3282 = vmatpush.bf16.msra.mxu0 %v169
    %3283 = vmatpush.bf16.msra.mxu0 %v165
    %3284 = vmatmul.bf16.gmra.mxu0 %v3275
    %v3285 = vpop.f32.mrf.mxu0
    %v3286 = vadd.f32 0.0, %v3285
    %v3287 = vpop.f32.mrf.mxu0
    %3288 = vdwg.mxu0
    %3289 = vmatpush.bf16.msra.mxu0 %v194
    %3290 = vmatpush.bf16.msra.mxu0 %v190
    %3291 = vmatpush.bf16.msra.mxu0 %v186
    %3292 = vmatpush.bf16.msra.mxu0 %v182
    %3293 = vmatpush.bf16.msra.mxu0 %v178
    %3294 = vmatpush.bf16.msra.mxu0 %v174
    %3295 = vmatpush.bf16.msra.mxu0 %v170
    %3296 = vmatpush.bf16.msra.mxu0 %v166
    %3297 = vmatmul.bf16.gmra.mxu0 %v3275
    %v3298 = vpop.f32.mrf.mxu0
    %v3299 = vadd.f32 0.0, %v3298
    %v3300 = vpop.f32.mrf.mxu0
    %3301 = vdwg.mxu0
    %3302 = vmatpush.bf16.msra.mxu0 %v195
    %3303 = vmatpush.bf16.msra.mxu0 %v191
    %3304 = vmatpush.bf16.msra.mxu0 %v187
    %3305 = vmatpush.bf16.msra.mxu0 %v183
    %3306 = vmatpush.bf16.msra.mxu0 %v179
    %3307 = vmatpush.bf16.msra.mxu0 %v175
    %3308 = vmatpush.bf16.msra.mxu0 %v171
    %3309 = vmatpush.bf16.msra.mxu0 %v167
    %3310 = vmatmul.bf16.gmra.mxu0 %v3275
    %v3311 = vpop.f32.mrf.mxu0
    %v3312 = vadd.f32 0.0, %v3311
    %v3313 = vpop.f32.mrf.mxu0
    %3314 = vdwg.mxu0
    %3315 = vmatpush.bf16.msra.mxu0 %v196
    %3316 = vmatpush.bf16.msra.mxu0 %v192
    %3317 = vmatpush.bf16.msra.mxu0 %v188
    %3318 = vmatpush.bf16.msra.mxu0 %v184
    %3319 = vmatpush.bf16.msra.mxu0 %v180
    %3320 = vmatpush.bf16.msra.mxu0 %v176
    %3321 = vmatpush.bf16.msra.mxu0 %v172
    %3322 = vmatpush.bf16.msra.mxu0 %v168
    %3323 = vmatmul.bf16.gmra.mxu0 %v3275
    %v3324 = vpop.f32.mrf.mxu0
    %v3325 = vadd.f32 0.0, %v3324
    %v3326 = vpop.f32.mrf.mxu0
    %3327 = vdwg.mxu0
    %v3328 = vadd.f32 %v3271, %v3286
    %v3329 = vadd.f32 %v3272, %v3299
    %v3330 = vadd.f32 %v3273, %v3312
    %v3331 = vadd.f32 %v3274, %v3325
    %v3332 = vxor.u32 %v3328, 2147483648
    %v3333 = vmul.f32 %v3332, 1.442695
    %v3334 = vpow.pop %v3333
    %v3335 = vadd.f32 %v3334, 1.0
    %v3336 = vrcp.pop %v3335
    %v3337 = vmul.f32 %v3335, %v3336
    %v3338 = vsub.f32 1.0, %v3337
    %v3339 = vmul.f32 %v3336, %v3338
    %v3340 = vadd.f32 %v3336, %v3339
    %vm3341 = vweird.f32 %v3335
    %vm3342 = vweird.f32 %v3336
    %vm3343 = vmor %vm3341, %vm3342
    %v3344 = vsel %vm3343, %v3336, %v3340
    %v3345 = vand.u32 2147483647, %v3335
    %vm3346 = vcmp.eq.f32.partialorder %v3345, 8.507059e+37
    %v3347 = vand.u32 %v3335, 2147483648
    %v3348 = vor.u32 1.1754944e-38, %v3347
    %v3349 = vsel %vm3346, %v3348, %v3344
    %v3350 = vmul.f32 1.0, %v3349
    %v3351 = vxor.u32 %v3329, 2147483648
    %v3352 = vmul.f32 %v3351, 1.442695
    %v3353 = vpow.pop %v3352
    %v3354 = vadd.f32 %v3353, 1.0
    %v3355 = vrcp.pop %v3354
    %v3356 = vmul.f32 %v3354, %v3355
    %v3357 = vsub.f32 1.0, %v3356
    %v3358 = vmul.f32 %v3355, %v3357
    %v3359 = vadd.f32 %v3355, %v3358
    %vm3360 = vweird.f32 %v3354
    %vm3361 = vweird.f32 %v3355
    %vm3362 = vmor %vm3360, %vm3361
    %v3363 = vsel %vm3362, %v3355, %v3359
    %v3364 = vand.u32 2147483647, %v3354
    %vm3365 = vcmp.eq.f32.partialorder %v3364, 8.507059e+37
    %v3366 = vand.u32 %v3354, 2147483648
    %v3367 = vor.u32 1.1754944e-38, %v3366
    %v3368 = vsel %vm3365, %v3367, %v3363
    %v3369 = vmul.f32 1.0, %v3368
    %v3370 = vtanh.pop %v3330
    %v3371 = vxor.u32 %v3331, 2147483648
    %v3372 = vmul.f32 %v3371, 1.442695
    %v3373 = vpow.pop %v3372
    %v3374 = vadd.f32 %v3373, 1.0
    %v3375 = vrcp.pop %v3374
    %v3376 = vmul.f32 %v3374, %v3375
    %v3377 = vsub.f32 1.0, %v3376
    %v3378 = vmul.f32 %v3375, %v3377
    %v3379 = vadd.f32 %v3375, %v3378
    %vm3380 = vweird.f32 %v3374
    %vm3381 = vweird.f32 %v3375
    %vm3382 = vmor %vm3380, %vm3381
    %v3383 = vsel %vm3382, %v3375, %v3379
    %v3384 = vand.u32 2147483647, %v3374
    %vm3385 = vcmp.eq.f32.partialorder %v3384, 8.507059e+37
    %v3386 = vand.u32 %v3374, 2147483648
    %v3387 = vor.u32 1.1754944e-38, %v3386
    %v3388 = vsel %vm3385, %v3387, %v3383
    %v3389 = vmul.f32 1.0, %v3388
    %v3390 = vmul.f32 %v3370, %v3350
    %v3391 = vmul.f32 %v3369, %v3265
    %v3392 = vadd.f32 %v3390, %v3391
    %v3393 = vtanh.pop %v3392
    %v3394 = vmul.f32 %v3389, %v3393
    %s3395 = scalar_lea.vmem %s4, 192
    %3396 = vst [vmem:[%s3395] sm:$0xff] %v3394
    %s3397 = scalar_lea.vmem %s0, 800
    %v3398 = vld [vmem:[%s3397] sm:$0xff]
    %v3399 = vld [vmem:[%s3397 + $0x8] sm:$0xff]
    %v3400 = vld [vmem:[%s3397 + $0x10] sm:$0xff]
    %v3401 = vld [vmem:[%s3397 + $0x18] sm:$0xff]
    %v3402 = vpack.c.bf16 %v3394, %v3394
    %3403 = vmatpush.bf16.msra.mxu0 %v193
    %3404 = vmatpush.bf16.msra.mxu0 %v189
    %3405 = vmatpush.bf16.msra.mxu0 %v185
    %3406 = vmatpush.bf16.msra.mxu0 %v181
    %3407 = vmatpush.bf16.msra.mxu0 %v177
    %3408 = vmatpush.bf16.msra.mxu0 %v173
    %3409 = vmatpush.bf16.msra.mxu0 %v169
    %3410 = vmatpush.bf16.msra.mxu0 %v165
    %3411 = vmatmul.bf16.gmra.mxu0 %v3402
    %v3412 = vpop.f32.mrf.mxu0
    %v3413 = vadd.f32 0.0, %v3412
    %v3414 = vpop.f32.mrf.mxu0
    %3415 = vdwg.mxu0
    %3416 = vmatpush.bf16.msra.mxu0 %v194
    %3417 = vmatpush.bf16.msra.mxu0 %v190
    %3418 = vmatpush.bf16.msra.mxu0 %v186
    %3419 = vmatpush.bf16.msra.mxu0 %v182
    %3420 = vmatpush.bf16.msra.mxu0 %v178
    %3421 = vmatpush.bf16.msra.mxu0 %v174
    %3422 = vmatpush.bf16.msra.mxu0 %v170
    %3423 = vmatpush.bf16.msra.mxu0 %v166
    %3424 = vmatmul.bf16.gmra.mxu0 %v3402
    %v3425 = vpop.f32.mrf.mxu0
    %v3426 = vadd.f32 0.0, %v3425
    %v3427 = vpop.f32.mrf.mxu0
    %3428 = vdwg.mxu0
    %3429 = vmatpush.bf16.msra.mxu0 %v195
    %3430 = vmatpush.bf16.msra.mxu0 %v191
    %3431 = vmatpush.bf16.msra.mxu0 %v187
    %3432 = vmatpush.bf16.msra.mxu0 %v183
    %3433 = vmatpush.bf16.msra.mxu0 %v179
    %3434 = vmatpush.bf16.msra.mxu0 %v175
    %3435 = vmatpush.bf16.msra.mxu0 %v171
    %3436 = vmatpush.bf16.msra.mxu0 %v167
    %3437 = vmatmul.bf16.gmra.mxu0 %v3402
    %v3438 = vpop.f32.mrf.mxu0
    %v3439 = vadd.f32 0.0, %v3438
    %v3440 = vpop.f32.mrf.mxu0
    %3441 = vdwg.mxu0
    %3442 = vmatpush.bf16.msra.mxu0 %v196
    %3443 = vmatpush.bf16.msra.mxu0 %v192
    %3444 = vmatpush.bf16.msra.mxu0 %v188
    %3445 = vmatpush.bf16.msra.mxu0 %v184
    %3446 = vmatpush.bf16.msra.mxu0 %v180
    %3447 = vmatpush.bf16.msra.mxu0 %v176
    %3448 = vmatpush.bf16.msra.mxu0 %v172
    %3449 = vmatpush.bf16.msra.mxu0 %v168
    %3450 = vmatmul.bf16.gmra.mxu0 %v3402
    %v3451 = vpop.f32.mrf.mxu0
    %v3452 = vadd.f32 0.0, %v3451
    %v3453 = vpop.f32.mrf.mxu0
    %3454 = vdwg.mxu0
    %v3455 = vadd.f32 %v3398, %v3413
    %v3456 = vadd.f32 %v3399, %v3426
    %v3457 = vadd.f32 %v3400, %v3439
    %v3458 = vadd.f32 %v3401, %v3452
    %v3459 = vxor.u32 %v3455, 2147483648
    %v3460 = vmul.f32 %v3459, 1.442695
    %v3461 = vpow.pop %v3460
    %v3462 = vadd.f32 %v3461, 1.0
    %v3463 = vrcp.pop %v3462
    %v3464 = vmul.f32 %v3462, %v3463
    %v3465 = vsub.f32 1.0, %v3464
    %v3466 = vmul.f32 %v3463, %v3465
    %v3467 = vadd.f32 %v3463, %v3466
    %vm3468 = vweird.f32 %v3462
    %vm3469 = vweird.f32 %v3463
    %vm3470 = vmor %vm3468, %vm3469
    %v3471 = vsel %vm3470, %v3463, %v3467
    %v3472 = vand.u32 2147483647, %v3462
    %vm3473 = vcmp.eq.f32.partialorder %v3472, 8.507059e+37
    %v3474 = vand.u32 %v3462, 2147483648
    %v3475 = vor.u32 1.1754944e-38, %v3474
    %v3476 = vsel %vm3473, %v3475, %v3471
    %v3477 = vmul.f32 1.0, %v3476
    %v3478 = vxor.u32 %v3456, 2147483648
    %v3479 = vmul.f32 %v3478, 1.442695
    %v3480 = vpow.pop %v3479
    %v3481 = vadd.f32 %v3480, 1.0
    %v3482 = vrcp.pop %v3481
    %v3483 = vmul.f32 %v3481, %v3482
    %v3484 = vsub.f32 1.0, %v3483
    %v3485 = vmul.f32 %v3482, %v3484
    %v3486 = vadd.f32 %v3482, %v3485
    %vm3487 = vweird.f32 %v3481
    %vm3488 = vweird.f32 %v3482
    %vm3489 = vmor %vm3487, %vm3488
    %v3490 = vsel %vm3489, %v3482, %v3486
    %v3491 = vand.u32 2147483647, %v3481
    %vm3492 = vcmp.eq.f32.partialorder %v3491, 8.507059e+37
    %v3493 = vand.u32 %v3481, 2147483648
    %v3494 = vor.u32 1.1754944e-38, %v3493
    %v3495 = vsel %vm3492, %v3494, %v3490
    %v3496 = vmul.f32 1.0, %v3495
    %v3497 = vtanh.pop %v3457
    %v3498 = vxor.u32 %v3458, 2147483648
    %v3499 = vmul.f32 %v3498, 1.442695
    %v3500 = vpow.pop %v3499
    %v3501 = vadd.f32 %v3500, 1.0
    %v3502 = vrcp.pop %v3501
    %v3503 = vmul.f32 %v3501, %v3502
    %v3504 = vsub.f32 1.0, %v3503
    %v3505 = vmul.f32 %v3502, %v3504
    %v3506 = vadd.f32 %v3502, %v3505
    %vm3507 = vweird.f32 %v3501
    %vm3508 = vweird.f32 %v3502
    %vm3509 = vmor %vm3507, %vm3508
    %v3510 = vsel %vm3509, %v3502, %v3506
    %v3511 = vand.u32 2147483647, %v3501
    %vm3512 = vcmp.eq.f32.partialorder %v3511, 8.507059e+37
    %v3513 = vand.u32 %v3501, 2147483648
    %v3514 = vor.u32 1.1754944e-38, %v3513
    %v3515 = vsel %vm3512, %v3514, %v3510
    %v3516 = vmul.f32 1.0, %v3515
    %v3517 = vmul.f32 %v3497, %v3477
    %v3518 = vmul.f32 %v3496, %v3392
    %v3519 = vadd.f32 %v3517, %v3518
    %v3520 = vtanh.pop %v3519
    %v3521 = vmul.f32 %v3516, %v3520
    %s3522 = scalar_lea.vmem %s4, 200
    %3523 = vst [vmem:[%s3522] sm:$0xff] %v3521
    %s3524 = scalar_lea.vmem %s0, 832
    %v3525 = vld [vmem:[%s3524] sm:$0xff]
    %v3526 = vld [vmem:[%s3524 + $0x8] sm:$0xff]
    %v3527 = vld [vmem:[%s3524 + $0x10] sm:$0xff]
    %v3528 = vld [vmem:[%s3524 + $0x18] sm:$0xff]
    %v3529 = vpack.c.bf16 %v3521, %v3521
    %3530 = vmatpush.bf16.msra.mxu0 %v193
    %3531 = vmatpush.bf16.msra.mxu0 %v189
    %3532 = vmatpush.bf16.msra.mxu0 %v185
    %3533 = vmatpush.bf16.msra.mxu0 %v181
    %3534 = vmatpush.bf16.msra.mxu0 %v177
    %3535 = vmatpush.bf16.msra.mxu0 %v173
    %3536 = vmatpush.bf16.msra.mxu0 %v169
    %3537 = vmatpush.bf16.msra.mxu0 %v165
    %3538 = vmatmul.bf16.gmra.mxu0 %v3529
    %v3539 = vpop.f32.mrf.mxu0
    %v3540 = vadd.f32 0.0, %v3539
    %v3541 = vpop.f32.mrf.mxu0
    %3542 = vdwg.mxu0
    %3543 = vmatpush.bf16.msra.mxu0 %v194
    %3544 = vmatpush.bf16.msra.mxu0 %v190
    %3545 = vmatpush.bf16.msra.mxu0 %v186
    %3546 = vmatpush.bf16.msra.mxu0 %v182
    %3547 = vmatpush.bf16.msra.mxu0 %v178
    %3548 = vmatpush.bf16.msra.mxu0 %v174
    %3549 = vmatpush.bf16.msra.mxu0 %v170
    %3550 = vmatpush.bf16.msra.mxu0 %v166
    %3551 = vmatmul.bf16.gmra.mxu0 %v3529
    %v3552 = vpop.f32.mrf.mxu0
    %v3553 = vadd.f32 0.0, %v3552
    %v3554 = vpop.f32.mrf.mxu0
    %3555 = vdwg.mxu0
    %3556 = vmatpush.bf16.msra.mxu0 %v195
    %3557 = vmatpush.bf16.msra.mxu0 %v191
    %3558 = vmatpush.bf16.msra.mxu0 %v187
    %3559 = vmatpush.bf16.msra.mxu0 %v183
    %3560 = vmatpush.bf16.msra.mxu0 %v179
    %3561 = vmatpush.bf16.msra.mxu0 %v175
    %3562 = vmatpush.bf16.msra.mxu0 %v171
    %3563 = vmatpush.bf16.msra.mxu0 %v167
    %3564 = vmatmul.bf16.gmra.mxu0 %v3529
    %v3565 = vpop.f32.mrf.mxu0
    %v3566 = vadd.f32 0.0, %v3565
    %v3567 = vpop.f32.mrf.mxu0
    %3568 = vdwg.mxu0
    %3569 = vmatpush.bf16.msra.mxu0 %v196
    %3570 = vmatpush.bf16.msra.mxu0 %v192
    %3571 = vmatpush.bf16.msra.mxu0 %v188
    %3572 = vmatpush.bf16.msra.mxu0 %v184
    %3573 = vmatpush.bf16.msra.mxu0 %v180
    %3574 = vmatpush.bf16.msra.mxu0 %v176
    %3575 = vmatpush.bf16.msra.mxu0 %v172
    %3576 = vmatpush.bf16.msra.mxu0 %v168
    %3577 = vmatmul.bf16.gmra.mxu0 %v3529
    %v3578 = vpop.f32.mrf.mxu0
    %v3579 = vadd.f32 0.0, %v3578
    %v3580 = vpop.f32.mrf.mxu0
    %3581 = vdwg.mxu0
    %v3582 = vadd.f32 %v3525, %v3540
    %v3583 = vadd.f32 %v3526, %v3553
    %v3584 = vadd.f32 %v3527, %v3566
    %v3585 = vadd.f32 %v3528, %v3579
    %v3586 = vxor.u32 %v3582, 2147483648
    %v3587 = vmul.f32 %v3586, 1.442695
    %v3588 = vpow.pop %v3587
    %v3589 = vadd.f32 %v3588, 1.0
    %v3590 = vrcp.pop %v3589
    %v3591 = vmul.f32 %v3589, %v3590
    %v3592 = vsub.f32 1.0, %v3591
    %v3593 = vmul.f32 %v3590, %v3592
    %v3594 = vadd.f32 %v3590, %v3593
    %vm3595 = vweird.f32 %v3589
    %vm3596 = vweird.f32 %v3590
    %vm3597 = vmor %vm3595, %vm3596
    %v3598 = vsel %vm3597, %v3590, %v3594
    %v3599 = vand.u32 2147483647, %v3589
    %vm3600 = vcmp.eq.f32.partialorder %v3599, 8.507059e+37
    %v3601 = vand.u32 %v3589, 2147483648
    %v3602 = vor.u32 1.1754944e-38, %v3601
    %v3603 = vsel %vm3600, %v3602, %v3598
    %v3604 = vmul.f32 1.0, %v3603
    %v3605 = vxor.u32 %v3583, 2147483648
    %v3606 = vmul.f32 %v3605, 1.442695
    %v3607 = vpow.pop %v3606
    %v3608 = vadd.f32 %v3607, 1.0
    %v3609 = vrcp.pop %v3608
    %v3610 = vmul.f32 %v3608, %v3609
    %v3611 = vsub.f32 1.0, %v3610
    %v3612 = vmul.f32 %v3609, %v3611
    %v3613 = vadd.f32 %v3609, %v3612
    %vm3614 = vweird.f32 %v3608
    %vm3615 = vweird.f32 %v3609
    %vm3616 = vmor %vm3614, %vm3615
    %v3617 = vsel %vm3616, %v3609, %v3613
    %v3618 = vand.u32 2147483647, %v3608
    %vm3619 = vcmp.eq.f32.partialorder %v3618, 8.507059e+37
    %v3620 = vand.u32 %v3608, 2147483648
    %v3621 = vor.u32 1.1754944e-38, %v3620
    %v3622 = vsel %vm3619, %v3621, %v3617
    %v3623 = vmul.f32 1.0, %v3622
    %v3624 = vtanh.pop %v3584
    %v3625 = vxor.u32 %v3585, 2147483648
    %v3626 = vmul.f32 %v3625, 1.442695
    %v3627 = vpow.pop %v3626
    %v3628 = vadd.f32 %v3627, 1.0
    %v3629 = vrcp.pop %v3628
    %v3630 = vmul.f32 %v3628, %v3629
    %v3631 = vsub.f32 1.0, %v3630
    %v3632 = vmul.f32 %v3629, %v3631
    %v3633 = vadd.f32 %v3629, %v3632
    %vm3634 = vweird.f32 %v3628
    %vm3635 = vweird.f32 %v3629
    %vm3636 = vmor %vm3634, %vm3635
    %v3637 = vsel %vm3636, %v3629, %v3633
    %v3638 = vand.u32 2147483647, %v3628
    %vm3639 = vcmp.eq.f32.partialorder %v3638, 8.507059e+37
    %v3640 = vand.u32 %v3628, 2147483648
    %v3641 = vor.u32 1.1754944e-38, %v3640
    %v3642 = vsel %vm3639, %v3641, %v3637
    %v3643 = vmul.f32 1.0, %v3642
    %v3644 = vmul.f32 %v3624, %v3604
    %v3645 = vmul.f32 %v3623, %v3519
    %v3646 = vadd.f32 %v3644, %v3645
    %v3647 = vtanh.pop %v3646
    %v3648 = vmul.f32 %v3643, %v3647
    %s3649 = scalar_lea.vmem %s4, 208
    %3650 = vst [vmem:[%s3649] sm:$0xff] %v3648
    %s3651 = scalar_lea.vmem %s0, 864
    %v3652 = vld [vmem:[%s3651] sm:$0xff]
    %v3653 = vld [vmem:[%s3651 + $0x8] sm:$0xff]
    %v3654 = vld [vmem:[%s3651 + $0x10] sm:$0xff]
    %v3655 = vld [vmem:[%s3651 + $0x18] sm:$0xff]
    %v3656 = vpack.c.bf16 %v3648, %v3648
    %3657 = vmatpush.bf16.msra.mxu0 %v193
    %3658 = vmatpush.bf16.msra.mxu0 %v189
    %3659 = vmatpush.bf16.msra.mxu0 %v185
    %3660 = vmatpush.bf16.msra.mxu0 %v181
    %3661 = vmatpush.bf16.msra.mxu0 %v177
    %3662 = vmatpush.bf16.msra.mxu0 %v173
    %3663 = vmatpush.bf16.msra.mxu0 %v169
    %3664 = vmatpush.bf16.msra.mxu0 %v165
    %3665 = vmatmul.bf16.gmra.mxu0 %v3656
    %v3666 = vpop.f32.mrf.mxu0
    %v3667 = vadd.f32 0.0, %v3666
    %v3668 = vpop.f32.mrf.mxu0
    %3669 = vdwg.mxu0
    %3670 = vmatpush.bf16.msra.mxu0 %v194
    %3671 = vmatpush.bf16.msra.mxu0 %v190
    %3672 = vmatpush.bf16.msra.mxu0 %v186
    %3673 = vmatpush.bf16.msra.mxu0 %v182
    %3674 = vmatpush.bf16.msra.mxu0 %v178
    %3675 = vmatpush.bf16.msra.mxu0 %v174
    %3676 = vmatpush.bf16.msra.mxu0 %v170
    %3677 = vmatpush.bf16.msra.mxu0 %v166
    %3678 = vmatmul.bf16.gmra.mxu0 %v3656
    %v3679 = vpop.f32.mrf.mxu0
    %v3680 = vadd.f32 0.0, %v3679
    %v3681 = vpop.f32.mrf.mxu0
    %3682 = vdwg.mxu0
    %3683 = vmatpush.bf16.msra.mxu0 %v195
    %3684 = vmatpush.bf16.msra.mxu0 %v191
    %3685 = vmatpush.bf16.msra.mxu0 %v187
    %3686 = vmatpush.bf16.msra.mxu0 %v183
    %3687 = vmatpush.bf16.msra.mxu0 %v179
    %3688 = vmatpush.bf16.msra.mxu0 %v175
    %3689 = vmatpush.bf16.msra.mxu0 %v171
    %3690 = vmatpush.bf16.msra.mxu0 %v167
    %3691 = vmatmul.bf16.gmra.mxu0 %v3656
    %v3692 = vpop.f32.mrf.mxu0
    %v3693 = vadd.f32 0.0, %v3692
    %v3694 = vpop.f32.mrf.mxu0
    %3695 = vdwg.mxu0
    %3696 = vmatpush.bf16.msra.mxu0 %v196
    %3697 = vmatpush.bf16.msra.mxu0 %v192
    %3698 = vmatpush.bf16.msra.mxu0 %v188
    %3699 = vmatpush.bf16.msra.mxu0 %v184
    %3700 = vmatpush.bf16.msra.mxu0 %v180
    %3701 = vmatpush.bf16.msra.mxu0 %v176
    %3702 = vmatpush.bf16.msra.mxu0 %v172
    %3703 = vmatpush.bf16.msra.mxu0 %v168
    %3704 = vmatmul.bf16.gmra.mxu0 %v3656
    %v3705 = vpop.f32.mrf.mxu0
    %v3706 = vadd.f32 0.0, %v3705
    %v3707 = vpop.f32.mrf.mxu0
    %3708 = vdwg.mxu0
    %v3709 = vadd.f32 %v3652, %v3667
    %v3710 = vadd.f32 %v3653, %v3680
    %v3711 = vadd.f32 %v3654, %v3693
    %v3712 = vadd.f32 %v3655, %v3706
    %v3713 = vxor.u32 %v3709, 2147483648
    %v3714 = vmul.f32 %v3713, 1.442695
    %v3715 = vpow.pop %v3714
    %v3716 = vadd.f32 %v3715, 1.0
    %v3717 = vrcp.pop %v3716
    %v3718 = vmul.f32 %v3716, %v3717
    %v3719 = vsub.f32 1.0, %v3718
    %v3720 = vmul.f32 %v3717, %v3719
    %v3721 = vadd.f32 %v3717, %v3720
    %vm3722 = vweird.f32 %v3716
    %vm3723 = vweird.f32 %v3717
    %vm3724 = vmor %vm3722, %vm3723
    %v3725 = vsel %vm3724, %v3717, %v3721
    %v3726 = vand.u32 2147483647, %v3716
    %vm3727 = vcmp.eq.f32.partialorder %v3726, 8.507059e+37
    %v3728 = vand.u32 %v3716, 2147483648
    %v3729 = vor.u32 1.1754944e-38, %v3728
    %v3730 = vsel %vm3727, %v3729, %v3725
    %v3731 = vmul.f32 1.0, %v3730
    %v3732 = vxor.u32 %v3710, 2147483648
    %v3733 = vmul.f32 %v3732, 1.442695
    %v3734 = vpow.pop %v3733
    %v3735 = vadd.f32 %v3734, 1.0
    %v3736 = vrcp.pop %v3735
    %v3737 = vmul.f32 %v3735, %v3736
    %v3738 = vsub.f32 1.0, %v3737
    %v3739 = vmul.f32 %v3736, %v3738
    %v3740 = vadd.f32 %v3736, %v3739
    %vm3741 = vweird.f32 %v3735
    %vm3742 = vweird.f32 %v3736
    %vm3743 = vmor %vm3741, %vm3742
    %v3744 = vsel %vm3743, %v3736, %v3740
    %v3745 = vand.u32 2147483647, %v3735
    %vm3746 = vcmp.eq.f32.partialorder %v3745, 8.507059e+37
    %v3747 = vand.u32 %v3735, 2147483648
    %v3748 = vor.u32 1.1754944e-38, %v3747
    %v3749 = vsel %vm3746, %v3748, %v3744
    %v3750 = vmul.f32 1.0, %v3749
    %v3751 = vtanh.pop %v3711
    %v3752 = vxor.u32 %v3712, 2147483648
    %v3753 = vmul.f32 %v3752, 1.442695
    %v3754 = vpow.pop %v3753
    %v3755 = vadd.f32 %v3754, 1.0
    %v3756 = vrcp.pop %v3755
    %v3757 = vmul.f32 %v3755, %v3756
    %v3758 = vsub.f32 1.0, %v3757
    %v3759 = vmul.f32 %v3756, %v3758
    %v3760 = vadd.f32 %v3756, %v3759
    %vm3761 = vweird.f32 %v3755
    %vm3762 = vweird.f32 %v3756
    %vm3763 = vmor %vm3761, %vm3762
    %v3764 = vsel %vm3763, %v3756, %v3760
    %v3765 = vand.u32 2147483647, %v3755
    %vm3766 = vcmp.eq.f32.partialorder %v3765, 8.507059e+37
    %v3767 = vand.u32 %v3755, 2147483648
    %v3768 = vor.u32 1.1754944e-38, %v3767
    %v3769 = vsel %vm3766, %v3768, %v3764
    %v3770 = vmul.f32 1.0, %v3769
    %v3771 = vmul.f32 %v3751, %v3731
    %v3772 = vmul.f32 %v3750, %v3646
    %v3773 = vadd.f32 %v3771, %v3772
    %v3774 = vtanh.pop %v3773
    %v3775 = vmul.f32 %v3770, %v3774
    %s3776 = scalar_lea.vmem %s4, 216
    %3777 = vst [vmem:[%s3776] sm:$0xff] %v3775
    %s3778 = scalar_lea.vmem %s0, 896
    %v3779 = vld [vmem:[%s3778] sm:$0xff]
    %v3780 = vld [vmem:[%s3778 + $0x8] sm:$0xff]
    %v3781 = vld [vmem:[%s3778 + $0x10] sm:$0xff]
    %v3782 = vld [vmem:[%s3778 + $0x18] sm:$0xff]
    %v3783 = vpack.c.bf16 %v3775, %v3775
    %3784 = vmatpush.bf16.msra.mxu0 %v193
    %3785 = vmatpush.bf16.msra.mxu0 %v189
    %3786 = vmatpush.bf16.msra.mxu0 %v185
    %3787 = vmatpush.bf16.msra.mxu0 %v181
    %3788 = vmatpush.bf16.msra.mxu0 %v177
    %3789 = vmatpush.bf16.msra.mxu0 %v173
    %3790 = vmatpush.bf16.msra.mxu0 %v169
    %3791 = vmatpush.bf16.msra.mxu0 %v165
    %3792 = vmatmul.bf16.gmra.mxu0 %v3783
    %v3793 = vpop.f32.mrf.mxu0
    %v3794 = vadd.f32 0.0, %v3793
    %v3795 = vpop.f32.mrf.mxu0
    %3796 = vdwg.mxu0
    %3797 = vmatpush.bf16.msra.mxu0 %v194
    %3798 = vmatpush.bf16.msra.mxu0 %v190
    %3799 = vmatpush.bf16.msra.mxu0 %v186
    %3800 = vmatpush.bf16.msra.mxu0 %v182
    %3801 = vmatpush.bf16.msra.mxu0 %v178
    %3802 = vmatpush.bf16.msra.mxu0 %v174
    %3803 = vmatpush.bf16.msra.mxu0 %v170
    %3804 = vmatpush.bf16.msra.mxu0 %v166
    %3805 = vmatmul.bf16.gmra.mxu0 %v3783
    %v3806 = vpop.f32.mrf.mxu0
    %v3807 = vadd.f32 0.0, %v3806
    %v3808 = vpop.f32.mrf.mxu0
    %3809 = vdwg.mxu0
    %3810 = vmatpush.bf16.msra.mxu0 %v195
    %3811 = vmatpush.bf16.msra.mxu0 %v191
    %3812 = vmatpush.bf16.msra.mxu0 %v187
    %3813 = vmatpush.bf16.msra.mxu0 %v183
    %3814 = vmatpush.bf16.msra.mxu0 %v179
    %3815 = vmatpush.bf16.msra.mxu0 %v175
    %3816 = vmatpush.bf16.msra.mxu0 %v171
    %3817 = vmatpush.bf16.msra.mxu0 %v167
    %3818 = vmatmul.bf16.gmra.mxu0 %v3783
    %v3819 = vpop.f32.mrf.mxu0
    %v3820 = vadd.f32 0.0, %v3819
    %v3821 = vpop.f32.mrf.mxu0
    %3822 = vdwg.mxu0
    %3823 = vmatpush.bf16.msra.mxu0 %v196
    %3824 = vmatpush.bf16.msra.mxu0 %v192
    %3825 = vmatpush.bf16.msra.mxu0 %v188
    %3826 = vmatpush.bf16.msra.mxu0 %v184
    %3827 = vmatpush.bf16.msra.mxu0 %v180
    %3828 = vmatpush.bf16.msra.mxu0 %v176
    %3829 = vmatpush.bf16.msra.mxu0 %v172
    %3830 = vmatpush.bf16.msra.mxu0 %v168
    %3831 = vmatmul.bf16.gmra.mxu0 %v3783
    %v3832 = vpop.f32.mrf.mxu0
    %v3833 = vadd.f32 0.0, %v3832
    %v3834 = vpop.f32.mrf.mxu0
    %3835 = vdwg.mxu0
    %v3836 = vadd.f32 %v3779, %v3794
    %v3837 = vadd.f32 %v3780, %v3807
    %v3838 = vadd.f32 %v3781, %v3820
    %v3839 = vadd.f32 %v3782, %v3833
    %v3840 = vxor.u32 %v3836, 2147483648
    %v3841 = vmul.f32 %v3840, 1.442695
    %v3842 = vpow.pop %v3841
    %v3843 = vadd.f32 %v3842, 1.0
    %v3844 = vrcp.pop %v3843
    %v3845 = vmul.f32 %v3843, %v3844
    %v3846 = vsub.f32 1.0, %v3845
    %v3847 = vmul.f32 %v3844, %v3846
    %v3848 = vadd.f32 %v3844, %v3847
    %vm3849 = vweird.f32 %v3843
    %vm3850 = vweird.f32 %v3844
    %vm3851 = vmor %vm3849, %vm3850
    %v3852 = vsel %vm3851, %v3844, %v3848
    %v3853 = vand.u32 2147483647, %v3843
    %vm3854 = vcmp.eq.f32.partialorder %v3853, 8.507059e+37
    %v3855 = vand.u32 %v3843, 2147483648
    %v3856 = vor.u32 1.1754944e-38, %v3855
    %v3857 = vsel %vm3854, %v3856, %v3852
    %v3858 = vmul.f32 1.0, %v3857
    %v3859 = vxor.u32 %v3837, 2147483648
    %v3860 = vmul.f32 %v3859, 1.442695
    %v3861 = vpow.pop %v3860
    %v3862 = vadd.f32 %v3861, 1.0
    %v3863 = vrcp.pop %v3862
    %v3864 = vmul.f32 %v3862, %v3863
    %v3865 = vsub.f32 1.0, %v3864
    %v3866 = vmul.f32 %v3863, %v3865
    %v3867 = vadd.f32 %v3863, %v3866
    %vm3868 = vweird.f32 %v3862
    %vm3869 = vweird.f32 %v3863
    %vm3870 = vmor %vm3868, %vm3869
    %v3871 = vsel %vm3870, %v3863, %v3867
    %v3872 = vand.u32 2147483647, %v3862
    %vm3873 = vcmp.eq.f32.partialorder %v3872, 8.507059e+37
    %v3874 = vand.u32 %v3862, 2147483648
    %v3875 = vor.u32 1.1754944e-38, %v3874
    %v3876 = vsel %vm3873, %v3875, %v3871
    %v3877 = vmul.f32 1.0, %v3876
    %v3878 = vtanh.pop %v3838
    %v3879 = vxor.u32 %v3839, 2147483648
    %v3880 = vmul.f32 %v3879, 1.442695
    %v3881 = vpow.pop %v3880
    %v3882 = vadd.f32 %v3881, 1.0
    %v3883 = vrcp.pop %v3882
    %v3884 = vmul.f32 %v3882, %v3883
    %v3885 = vsub.f32 1.0, %v3884
    %v3886 = vmul.f32 %v3883, %v3885
    %v3887 = vadd.f32 %v3883, %v3886
    %vm3888 = vweird.f32 %v3882
    %vm3889 = vweird.f32 %v3883
    %vm3890 = vmor %vm3888, %vm3889
    %v3891 = vsel %vm3890, %v3883, %v3887
    %v3892 = vand.u32 2147483647, %v3882
    %vm3893 = vcmp.eq.f32.partialorder %v3892, 8.507059e+37
    %v3894 = vand.u32 %v3882, 2147483648
    %v3895 = vor.u32 1.1754944e-38, %v3894
    %v3896 = vsel %vm3893, %v3895, %v3891
    %v3897 = vmul.f32 1.0, %v3896
    %v3898 = vmul.f32 %v3878, %v3858
    %v3899 = vmul.f32 %v3877, %v3773
    %v3900 = vadd.f32 %v3898, %v3899
    %v3901 = vtanh.pop %v3900
    %v3902 = vmul.f32 %v3897, %v3901
    %s3903 = scalar_lea.vmem %s4, 224
    %3904 = vst [vmem:[%s3903] sm:$0xff] %v3902
    %s3905 = scalar_lea.vmem %s0, 928
    %v3906 = vld [vmem:[%s3905] sm:$0xff]
    %v3907 = vld [vmem:[%s3905 + $0x8] sm:$0xff]
    %v3908 = vld [vmem:[%s3905 + $0x10] sm:$0xff]
    %v3909 = vld [vmem:[%s3905 + $0x18] sm:$0xff]
    %v3910 = vpack.c.bf16 %v3902, %v3902
    %3911 = vmatpush.bf16.msra.mxu0 %v193
    %3912 = vmatpush.bf16.msra.mxu0 %v189
    %3913 = vmatpush.bf16.msra.mxu0 %v185
    %3914 = vmatpush.bf16.msra.mxu0 %v181
    %3915 = vmatpush.bf16.msra.mxu0 %v177
    %3916 = vmatpush.bf16.msra.mxu0 %v173
    %3917 = vmatpush.bf16.msra.mxu0 %v169
    %3918 = vmatpush.bf16.msra.mxu0 %v165
    %3919 = vmatmul.bf16.gmra.mxu0 %v3910
    %v3920 = vpop.f32.mrf.mxu0
    %v3921 = vadd.f32 0.0, %v3920
    %v3922 = vpop.f32.mrf.mxu0
    %3923 = vdwg.mxu0
    %3924 = vmatpush.bf16.msra.mxu0 %v194
    %3925 = vmatpush.bf16.msra.mxu0 %v190
    %3926 = vmatpush.bf16.msra.mxu0 %v186
    %3927 = vmatpush.bf16.msra.mxu0 %v182
    %3928 = vmatpush.bf16.msra.mxu0 %v178
    %3929 = vmatpush.bf16.msra.mxu0 %v174
    %3930 = vmatpush.bf16.msra.mxu0 %v170
    %3931 = vmatpush.bf16.msra.mxu0 %v166
    %3932 = vmatmul.bf16.gmra.mxu0 %v3910
    %v3933 = vpop.f32.mrf.mxu0
    %v3934 = vadd.f32 0.0, %v3933
    %v3935 = vpop.f32.mrf.mxu0
    %3936 = vdwg.mxu0
    %3937 = vmatpush.bf16.msra.mxu0 %v195
    %3938 = vmatpush.bf16.msra.mxu0 %v191
    %3939 = vmatpush.bf16.msra.mxu0 %v187
    %3940 = vmatpush.bf16.msra.mxu0 %v183
    %3941 = vmatpush.bf16.msra.mxu0 %v179
    %3942 = vmatpush.bf16.msra.mxu0 %v175
    %3943 = vmatpush.bf16.msra.mxu0 %v171
    %3944 = vmatpush.bf16.msra.mxu0 %v167
    %3945 = vmatmul.bf16.gmra.mxu0 %v3910
    %v3946 = vpop.f32.mrf.mxu0
    %v3947 = vadd.f32 0.0, %v3946
    %v3948 = vpop.f32.mrf.mxu0
    %3949 = vdwg.mxu0
    %3950 = vmatpush.bf16.msra.mxu0 %v196
    %3951 = vmatpush.bf16.msra.mxu0 %v192
    %3952 = vmatpush.bf16.msra.mxu0 %v188
    %3953 = vmatpush.bf16.msra.mxu0 %v184
    %3954 = vmatpush.bf16.msra.mxu0 %v180
    %3955 = vmatpush.bf16.msra.mxu0 %v176
    %3956 = vmatpush.bf16.msra.mxu0 %v172
    %3957 = vmatpush.bf16.msra.mxu0 %v168
    %3958 = vmatmul.bf16.gmra.mxu0 %v3910
    %v3959 = vpop.f32.mrf.mxu0
    %v3960 = vadd.f32 0.0, %v3959
    %v3961 = vpop.f32.mrf.mxu0
    %3962 = vdwg.mxu0
    %v3963 = vadd.f32 %v3906, %v3921
    %v3964 = vadd.f32 %v3907, %v3934
    %v3965 = vadd.f32 %v3908, %v3947
    %v3966 = vadd.f32 %v3909, %v3960
    %v3967 = vxor.u32 %v3963, 2147483648
    %v3968 = vmul.f32 %v3967, 1.442695
    %v3969 = vpow.pop %v3968
    %v3970 = vadd.f32 %v3969, 1.0
    %v3971 = vrcp.pop %v3970
    %v3972 = vmul.f32 %v3970, %v3971
    %v3973 = vsub.f32 1.0, %v3972
    %v3974 = vmul.f32 %v3971, %v3973
    %v3975 = vadd.f32 %v3971, %v3974
    %vm3976 = vweird.f32 %v3970
    %vm3977 = vweird.f32 %v3971
    %vm3978 = vmor %vm3976, %vm3977
    %v3979 = vsel %vm3978, %v3971, %v3975
    %v3980 = vand.u32 2147483647, %v3970
    %vm3981 = vcmp.eq.f32.partialorder %v3980, 8.507059e+37
    %v3982 = vand.u32 %v3970, 2147483648
    %v3983 = vor.u32 1.1754944e-38, %v3982
    %v3984 = vsel %vm3981, %v3983, %v3979
    %v3985 = vmul.f32 1.0, %v3984
    %v3986 = vxor.u32 %v3964, 2147483648
    %v3987 = vmul.f32 %v3986, 1.442695
    %v3988 = vpow.pop %v3987
    %v3989 = vadd.f32 %v3988, 1.0
    %v3990 = vrcp.pop %v3989
    %v3991 = vmul.f32 %v3989, %v3990
    %v3992 = vsub.f32 1.0, %v3991
    %v3993 = vmul.f32 %v3990, %v3992
    %v3994 = vadd.f32 %v3990, %v3993
    %vm3995 = vweird.f32 %v3989
    %vm3996 = vweird.f32 %v3990
    %vm3997 = vmor %vm3995, %vm3996
    %v3998 = vsel %vm3997, %v3990, %v3994
    %v3999 = vand.u32 2147483647, %v3989
    %vm4000 = vcmp.eq.f32.partialorder %v3999, 8.507059e+37
    %v4001 = vand.u32 %v3989, 2147483648
    %v4002 = vor.u32 1.1754944e-38, %v4001
    %v4003 = vsel %vm4000, %v4002, %v3998
    %v4004 = vmul.f32 1.0, %v4003
    %v4005 = vtanh.pop %v3965
    %v4006 = vxor.u32 %v3966, 2147483648
    %v4007 = vmul.f32 %v4006, 1.442695
    %v4008 = vpow.pop %v4007
    %v4009 = vadd.f32 %v4008, 1.0
    %v4010 = vrcp.pop %v4009
    %v4011 = vmul.f32 %v4009, %v4010
    %v4012 = vsub.f32 1.0, %v4011
    %v4013 = vmul.f32 %v4010, %v4012
    %v4014 = vadd.f32 %v4010, %v4013
    %vm4015 = vweird.f32 %v4009
    %vm4016 = vweird.f32 %v4010
    %vm4017 = vmor %vm4015, %vm4016
    %v4018 = vsel %vm4017, %v4010, %v4014
    %v4019 = vand.u32 2147483647, %v4009
    %vm4020 = vcmp.eq.f32.partialorder %v4019, 8.507059e+37
    %v4021 = vand.u32 %v4009, 2147483648
    %v4022 = vor.u32 1.1754944e-38, %v4021
    %v4023 = vsel %vm4020, %v4022, %v4018
    %v4024 = vmul.f32 1.0, %v4023
    %v4025 = vmul.f32 %v4005, %v3985
    %v4026 = vmul.f32 %v4004, %v3900
    %v4027 = vadd.f32 %v4025, %v4026
    %v4028 = vtanh.pop %v4027
    %v4029 = vmul.f32 %v4024, %v4028
    %s4030 = scalar_lea.vmem %s4, 232
    %4031 = vst [vmem:[%s4030] sm:$0xff] %v4029
    %s4032 = scalar_lea.vmem %s0, 960
    %v4033 = vld [vmem:[%s4032] sm:$0xff]
    %v4034 = vld [vmem:[%s4032 + $0x8] sm:$0xff]
    %v4035 = vld [vmem:[%s4032 + $0x10] sm:$0xff]
    %v4036 = vld [vmem:[%s4032 + $0x18] sm:$0xff]
    %v4037 = vpack.c.bf16 %v4029, %v4029
    %4038 = vmatpush.bf16.msra.mxu0 %v193
    %4039 = vmatpush.bf16.msra.mxu0 %v189
    %4040 = vmatpush.bf16.msra.mxu0 %v185
    %4041 = vmatpush.bf16.msra.mxu0 %v181
    %4042 = vmatpush.bf16.msra.mxu0 %v177
    %4043 = vmatpush.bf16.msra.mxu0 %v173
    %4044 = vmatpush.bf16.msra.mxu0 %v169
    %4045 = vmatpush.bf16.msra.mxu0 %v165
    %4046 = vmatmul.bf16.gmra.mxu0 %v4037
    %v4047 = vpop.f32.mrf.mxu0
    %v4048 = vadd.f32 0.0, %v4047
    %v4049 = vpop.f32.mrf.mxu0
    %4050 = vdwg.mxu0
    %4051 = vmatpush.bf16.msra.mxu0 %v194
    %4052 = vmatpush.bf16.msra.mxu0 %v190
    %4053 = vmatpush.bf16.msra.mxu0 %v186
    %4054 = vmatpush.bf16.msra.mxu0 %v182
    %4055 = vmatpush.bf16.msra.mxu0 %v178
    %4056 = vmatpush.bf16.msra.mxu0 %v174
    %4057 = vmatpush.bf16.msra.mxu0 %v170
    %4058 = vmatpush.bf16.msra.mxu0 %v166
    %4059 = vmatmul.bf16.gmra.mxu0 %v4037
    %v4060 = vpop.f32.mrf.mxu0
    %v4061 = vadd.f32 0.0, %v4060
    %v4062 = vpop.f32.mrf.mxu0
    %4063 = vdwg.mxu0
    %4064 = vmatpush.bf16.msra.mxu0 %v195
    %4065 = vmatpush.bf16.msra.mxu0 %v191
    %4066 = vmatpush.bf16.msra.mxu0 %v187
    %4067 = vmatpush.bf16.msra.mxu0 %v183
    %4068 = vmatpush.bf16.msra.mxu0 %v179
    %4069 = vmatpush.bf16.msra.mxu0 %v175
    %4070 = vmatpush.bf16.msra.mxu0 %v171
    %4071 = vmatpush.bf16.msra.mxu0 %v167
    %4072 = vmatmul.bf16.gmra.mxu0 %v4037
    %v4073 = vpop.f32.mrf.mxu0
    %v4074 = vadd.f32 0.0, %v4073
    %v4075 = vpop.f32.mrf.mxu0
    %4076 = vdwg.mxu0
    %4077 = vmatpush.bf16.msra.mxu0 %v196
    %4078 = vmatpush.bf16.msra.mxu0 %v192
    %4079 = vmatpush.bf16.msra.mxu0 %v188
    %4080 = vmatpush.bf16.msra.mxu0 %v184
    %4081 = vmatpush.bf16.msra.mxu0 %v180
    %4082 = vmatpush.bf16.msra.mxu0 %v176
    %4083 = vmatpush.bf16.msra.mxu0 %v172
    %4084 = vmatpush.bf16.msra.mxu0 %v168
    %4085 = vmatmul.bf16.gmra.mxu0 %v4037
    %v4086 = vpop.f32.mrf.mxu0
    %v4087 = vadd.f32 0.0, %v4086
    %v4088 = vpop.f32.mrf.mxu0
    %4089 = vdwg.mxu0
    %v4090 = vadd.f32 %v4033, %v4048
    %v4091 = vadd.f32 %v4034, %v4061
    %v4092 = vadd.f32 %v4035, %v4074
    %v4093 = vadd.f32 %v4036, %v4087
    %v4094 = vxor.u32 %v4090, 2147483648
    %v4095 = vmul.f32 %v4094, 1.442695
    %v4096 = vpow.pop %v4095
    %v4097 = vadd.f32 %v4096, 1.0
    %v4098 = vrcp.pop %v4097
    %v4099 = vmul.f32 %v4097, %v4098
    %v4100 = vsub.f32 1.0, %v4099
    %v4101 = vmul.f32 %v4098, %v4100
    %v4102 = vadd.f32 %v4098, %v4101
    %vm4103 = vweird.f32 %v4097
    %vm4104 = vweird.f32 %v4098
    %vm4105 = vmor %vm4103, %vm4104
    %v4106 = vsel %vm4105, %v4098, %v4102
    %v4107 = vand.u32 2147483647, %v4097
    %vm4108 = vcmp.eq.f32.partialorder %v4107, 8.507059e+37
    %v4109 = vand.u32 %v4097, 2147483648
    %v4110 = vor.u32 1.1754944e-38, %v4109
    %v4111 = vsel %vm4108, %v4110, %v4106
    %v4112 = vmul.f32 1.0, %v4111
    %v4113 = vxor.u32 %v4091, 2147483648
    %v4114 = vmul.f32 %v4113, 1.442695
    %v4115 = vpow.pop %v4114
    %v4116 = vadd.f32 %v4115, 1.0
    %v4117 = vrcp.pop %v4116
    %v4118 = vmul.f32 %v4116, %v4117
    %v4119 = vsub.f32 1.0, %v4118
    %v4120 = vmul.f32 %v4117, %v4119
    %v4121 = vadd.f32 %v4117, %v4120
    %vm4122 = vweird.f32 %v4116
    %vm4123 = vweird.f32 %v4117
    %vm4124 = vmor %vm4122, %vm4123
    %v4125 = vsel %vm4124, %v4117, %v4121
    %v4126 = vand.u32 2147483647, %v4116
    %vm4127 = vcmp.eq.f32.partialorder %v4126, 8.507059e+37
    %v4128 = vand.u32 %v4116, 2147483648
    %v4129 = vor.u32 1.1754944e-38, %v4128
    %v4130 = vsel %vm4127, %v4129, %v4125
    %v4131 = vmul.f32 1.0, %v4130
    %v4132 = vtanh.pop %v4092
    %v4133 = vxor.u32 %v4093, 2147483648
    %v4134 = vmul.f32 %v4133, 1.442695
    %v4135 = vpow.pop %v4134
    %v4136 = vadd.f32 %v4135, 1.0
    %v4137 = vrcp.pop %v4136
    %v4138 = vmul.f32 %v4136, %v4137
    %v4139 = vsub.f32 1.0, %v4138
    %v4140 = vmul.f32 %v4137, %v4139
    %v4141 = vadd.f32 %v4137, %v4140
    %vm4142 = vweird.f32 %v4136
    %vm4143 = vweird.f32 %v4137
    %vm4144 = vmor %vm4142, %vm4143
    %v4145 = vsel %vm4144, %v4137, %v4141
    %v4146 = vand.u32 2147483647, %v4136
    %vm4147 = vcmp.eq.f32.partialorder %v4146, 8.507059e+37
    %v4148 = vand.u32 %v4136, 2147483648
    %v4149 = vor.u32 1.1754944e-38, %v4148
    %v4150 = vsel %vm4147, %v4149, %v4145
    %v4151 = vmul.f32 1.0, %v4150
    %v4152 = vmul.f32 %v4132, %v4112
    %v4153 = vmul.f32 %v4131, %v4027
    %v4154 = vadd.f32 %v4152, %v4153
    %v4155 = vtanh.pop %v4154
    %v4156 = vmul.f32 %v4151, %v4155
    %s4157 = scalar_lea.vmem %s4, 240
    %4158 = vst [vmem:[%s4157] sm:$0xff] %v4156
    %s4159 = scalar_lea.vmem %s0, 992
    %v4160 = vld [vmem:[%s4159] sm:$0xff]
    %v4161 = vld [vmem:[%s4159 + $0x8] sm:$0xff]
    %v4162 = vld [vmem:[%s4159 + $0x10] sm:$0xff]
    %v4163 = vld [vmem:[%s4159 + $0x18] sm:$0xff]
    %v4164 = vpack.c.bf16 %v4156, %v4156
    %4165 = vmatpush.bf16.msra.mxu0 %v193
    %4166 = vmatpush.bf16.msra.mxu0 %v189
    %4167 = vmatpush.bf16.msra.mxu0 %v185
    %4168 = vmatpush.bf16.msra.mxu0 %v181
    %4169 = vmatpush.bf16.msra.mxu0 %v177
    %4170 = vmatpush.bf16.msra.mxu0 %v173
    %4171 = vmatpush.bf16.msra.mxu0 %v169
    %4172 = vmatpush.bf16.msra.mxu0 %v165
    %4173 = vmatmul.bf16.gmra.mxu0 %v4164
    %v4174 = vpop.f32.mrf.mxu0
    %v4175 = vadd.f32 0.0, %v4174
    %v4176 = vpop.f32.mrf.mxu0
    %4177 = vdwg.mxu0
    %4178 = vmatpush.bf16.msra.mxu0 %v194
    %4179 = vmatpush.bf16.msra.mxu0 %v190
    %4180 = vmatpush.bf16.msra.mxu0 %v186
    %4181 = vmatpush.bf16.msra.mxu0 %v182
    %4182 = vmatpush.bf16.msra.mxu0 %v178
    %4183 = vmatpush.bf16.msra.mxu0 %v174
    %4184 = vmatpush.bf16.msra.mxu0 %v170
    %4185 = vmatpush.bf16.msra.mxu0 %v166
    %4186 = vmatmul.bf16.gmra.mxu0 %v4164
    %v4187 = vpop.f32.mrf.mxu0
    %v4188 = vadd.f32 0.0, %v4187
    %v4189 = vpop.f32.mrf.mxu0
    %4190 = vdwg.mxu0
    %4191 = vmatpush.bf16.msra.mxu0 %v195
    %4192 = vmatpush.bf16.msra.mxu0 %v191
    %4193 = vmatpush.bf16.msra.mxu0 %v187
    %4194 = vmatpush.bf16.msra.mxu0 %v183
    %4195 = vmatpush.bf16.msra.mxu0 %v179
    %4196 = vmatpush.bf16.msra.mxu0 %v175
    %4197 = vmatpush.bf16.msra.mxu0 %v171
    %4198 = vmatpush.bf16.msra.mxu0 %v167
    %4199 = vmatmul.bf16.gmra.mxu0 %v4164
    %v4200 = vpop.f32.mrf.mxu0
    %v4201 = vadd.f32 0.0, %v4200
    %v4202 = vpop.f32.mrf.mxu0
    %4203 = vdwg.mxu0
    %4204 = vmatpush.bf16.msra.mxu0 %v196
    %4205 = vmatpush.bf16.msra.mxu0 %v192
    %4206 = vmatpush.bf16.msra.mxu0 %v188
    %4207 = vmatpush.bf16.msra.mxu0 %v184
    %4208 = vmatpush.bf16.msra.mxu0 %v180
    %4209 = vmatpush.bf16.msra.mxu0 %v176
    %4210 = vmatpush.bf16.msra.mxu0 %v172
    %4211 = vmatpush.bf16.msra.mxu0 %v168
    %4212 = vmatmul.bf16.gmra.mxu0 %v4164
    %v4213 = vpop.f32.mrf.mxu0
    %v4214 = vadd.f32 0.0, %v4213
    %v4215 = vpop.f32.mrf.mxu0
    %4216 = vdwg.mxu0
    %v4217 = vadd.f32 %v4160, %v4175
    %v4218 = vadd.f32 %v4161, %v4188
    %v4219 = vadd.f32 %v4162, %v4201
    %v4220 = vadd.f32 %v4163, %v4214
    %v4221 = vxor.u32 %v4217, 2147483648
    %v4222 = vmul.f32 %v4221, 1.442695
    %v4223 = vpow.pop %v4222
    %v4224 = vadd.f32 %v4223, 1.0
    %v4225 = vrcp.pop %v4224
    %v4226 = vmul.f32 %v4224, %v4225
    %v4227 = vsub.f32 1.0, %v4226
    %v4228 = vmul.f32 %v4225, %v4227
    %v4229 = vadd.f32 %v4225, %v4228
    %vm4230 = vweird.f32 %v4224
    %vm4231 = vweird.f32 %v4225
    %vm4232 = vmor %vm4230, %vm4231
    %v4233 = vsel %vm4232, %v4225, %v4229
    %v4234 = vand.u32 2147483647, %v4224
    %vm4235 = vcmp.eq.f32.partialorder %v4234, 8.507059e+37
    %v4236 = vand.u32 %v4224, 2147483648
    %v4237 = vor.u32 1.1754944e-38, %v4236
    %v4238 = vsel %vm4235, %v4237, %v4233
    %v4239 = vmul.f32 1.0, %v4238
    %v4240 = vxor.u32 %v4218, 2147483648
    %v4241 = vmul.f32 %v4240, 1.442695
    %v4242 = vpow.pop %v4241
    %v4243 = vadd.f32 %v4242, 1.0
    %v4244 = vrcp.pop %v4243
    %v4245 = vmul.f32 %v4243, %v4244
    %v4246 = vsub.f32 1.0, %v4245
    %v4247 = vmul.f32 %v4244, %v4246
    %v4248 = vadd.f32 %v4244, %v4247
    %vm4249 = vweird.f32 %v4243
    %vm4250 = vweird.f32 %v4244
    %vm4251 = vmor %vm4249, %vm4250
    %v4252 = vsel %vm4251, %v4244, %v4248
    %v4253 = vand.u32 2147483647, %v4243
    %vm4254 = vcmp.eq.f32.partialorder %v4253, 8.507059e+37
    %v4255 = vand.u32 %v4243, 2147483648
    %v4256 = vor.u32 1.1754944e-38, %v4255
    %v4257 = vsel %vm4254, %v4256, %v4252
    %v4258 = vmul.f32 1.0, %v4257
    %v4259 = vtanh.pop %v4219
    %v4260 = vxor.u32 %v4220, 2147483648
    %v4261 = vmul.f32 %v4260, 1.442695
    %v4262 = vpow.pop %v4261
    %v4263 = vadd.f32 %v4262, 1.0
    %v4264 = vrcp.pop %v4263
    %v4265 = vmul.f32 %v4263, %v4264
    %v4266 = vsub.f32 1.0, %v4265
    %v4267 = vmul.f32 %v4264, %v4266
    %v4268 = vadd.f32 %v4264, %v4267
    %vm4269 = vweird.f32 %v4263
    %vm4270 = vweird.f32 %v4264
    %vm4271 = vmor %vm4269, %vm4270
    %v4272 = vsel %vm4271, %v4264, %v4268
    %v4273 = vand.u32 2147483647, %v4263
    %vm4274 = vcmp.eq.f32.partialorder %v4273, 8.507059e+37
    %v4275 = vand.u32 %v4263, 2147483648
    %v4276 = vor.u32 1.1754944e-38, %v4275
    %v4277 = vsel %vm4274, %v4276, %v4272
    %v4278 = vmul.f32 1.0, %v4277
    %v4279 = vmul.f32 %v4259, %v4239
    %v4280 = vmul.f32 %v4258, %v4154
    %v4281 = vadd.f32 %v4279, %v4280
    %v4282 = vtanh.pop %v4281
    %v4283 = vmul.f32 %v4278, %v4282
    %s4284 = scalar_lea.vmem %s4, 248
    %4285 = vst [vmem:[%s4284] sm:$0xff] %v4283
    %4286 = vst [vmem:[#allocation2] sm:$0xff] %v4283
    %4287 = vst [vmem:[#allocation3] sm:$0xff] %v4281
    // Predicated region
    $region22: #{lstm_forward.3} parent=1 // pred_check
      %p4288 = pneg %p22
    $region23: #{lstm_forward.3} parent=1 // pred_check_branch
      %4290 = sbr.rel (%p4288) target = $region25
    $region24: #{lstm_forward.3} parent=1 // pred_region
      %4291 = vst [vmem:[#allocation4] sm:$0xff] %v4283
      %4292 = vst [vmem:[#allocation6] sm:$0xff] %v4281
    $region25: #{lstm_forward.3} parent=1 // pred_fallthru
      _
    // Predicated region
    $region26: #{lstm_forward.3} parent=1 // pred_check
      _
    $region27: #{lstm_forward.3} parent=1 // pred_check_branch
      %4294 = sbr.rel (0) target = $region29
    $region28: #{lstm_forward.3} parent=1 // pred_region
      _
    $region29: #{lstm_forward.3} parent=1 // pred_fallthru
      _
    // Predicated region
    $region30: #{lstm_forward.3} parent=1 // pred_check
      _
    $region31: #{lstm_forward.3} parent=1 // pred_check_branch
      %4296 = sbr.rel (0) target = $region33
    $region32: #{lstm_forward.3} parent=1 // pred_region
      %4298 = vsyncadd [#allocation5], 0
      %s4300 = sshll.u32 [#allocation4], 4
      %s4301 = int_to_ptr.vmem [resolvable:$true] %s4300
      %s4302 = sshll.u32 %s5, 4
      %s4303 = int_to_ptr.hbm [resolvable:$true] %s4302
      %4305 = dma.vmem_to_hbm [thread:$0]  %s4301, 128, %s4303, [#allocation5]
    $region33: #{lstm_forward.3} parent=1 // pred_fallthru
      _
    // Predicated region
    $region34: #{lstm_forward.3} parent=1 // pred_check
      _
    $region35: #{lstm_forward.3} parent=1 // pred_check_branch
      %4307 = sbr.rel (0) target = $region37
    $region36: #{lstm_forward.3} parent=1 // pred_region
      %4309 = vsyncadd [#allocation7], 0
      %s4311 = sshll.u32 [#allocation6], 4
      %s4312 = int_to_ptr.vmem [resolvable:$true] %s4311
      %s4313 = sshll.u32 %s6, 4
      %s4314 = int_to_ptr.hbm [resolvable:$true] %s4313
      %4316 = dma.vmem_to_hbm [thread:$0]  %s4312, 128, %s4314, [#allocation7]
    $region37: #{lstm_forward.3} parent=1 // pred_fallthru
      _
    // Predicated region
    $region38: #{lstm_forward.3} parent=1 // pred_check
      _
    $region39: #{lstm_forward.3} parent=1 // pred_check_branch
      %4318 = sbr.rel (0) target = $region41
    $region40: #{lstm_forward.3} parent=1 // pred_region
      _
    $region41: #{lstm_forward.3} parent=1 // pred_fallthru
      _
    // Predicated region
    $region42: #{lstm_forward.3} parent=1 // pred_check
      _
    $region43: #{lstm_forward.3} parent=1 // pred_check_branch
      %4320 = sbr.rel (0) target = $region45
    $region44: #{lstm_forward.3} parent=1 // pred_region
      %4322 = dma.done [#allocation5], 128
    $region45: #{lstm_forward.3} parent=1 // pred_fallthru
      _
    // Predicated region
    $region46: #{lstm_forward.3} parent=1 // pred_check
      _
    $region47: #{lstm_forward.3} parent=1 // pred_check_branch
      %4324 = sbr.rel (0) target = $region49
    $region48: #{lstm_forward.3} parent=1 // pred_region
      %4326 = dma.done [#allocation7], 128
    $region49: #{lstm_forward.3} parent=1 // pred_fallthru
      _
    %4327 = vsyncpa [#allocation5], 1
    %4328 = vsyncpa [#allocation7], 1

</llo_original>
